<compile_context>
chip_gen: v5e
topology: v5e:2x2
jax: 0.10.0
libtpu: 0.0.40
codegen_flags: <defaults>
</compile_context>

<pallas_src>
import jax
import jax.numpy as jnp
from jax import lax
from jax.experimental import pallas as pl
from jax.experimental.pallas import tpu as pltpu

LN_EPS = 1e-12
NUM_CLASSES = 3
LOGIT_PAD = 128          # lane-dense padded logit width (true classes = 3)


def _layer_norm(x, gamma, beta):
    mu = jnp.mean(x, axis=-1, keepdims=True)
    var = jnp.mean((x - mu) ** 2, axis=-1, keepdims=True)
    return (x - mu) * lax.rsqrt(var + LN_EPS) * gamma + beta


def _default_batch_block(batch):
    # v7x has two TensorCores per chip -> keep >=2 "parallel" grid blocks so
    # both get work.  Single-TC v5e/v6e: one big block amortizes the
    # ~0.35us/step grid overhead (the dominant fixed cost at these toy dims).
    try:
        kind = jax.devices()[0].device_kind.lower()
    except Exception:
        kind = ""
    if "v7" in kind or "7x" in kind:
        return max(batch // 2, 1)
    return batch


# ----------------------------------------------------------------------------
# Fused kernel: embedding gather + embedding-LN + attention + FFN + CLS + head
# One grid step == one block of Bt sequences (N = Bt*S flattened rows).
# ----------------------------------------------------------------------------
def _make_kernel(batch_block, seq_len, hidden, ffn, vocab_pad):
    Bt, S, H, F, VP = batch_block, seq_len, hidden, ffn, vocab_pad
    N = Bt * S
    assert H % 16 == 0 and F % 16 == 0, "bf16 slab rows must stay tile-aligned"

    # Row offsets inside the packed bf16 weight slab (must match the wrapper).
    R_WQ, R_WK, R_WV, R_WO = 0 * H, 1 * H, 2 * H, 3 * H
    R_W2 = 4 * H                 # F rows
    R_HW1 = 4 * H + F
    R_W1 = 5 * H + F
    R_HW2 = 6 * H + F
    # Row indices inside the f32 vector slab (must match the wrapper).
    (V_EMB_G, V_EMB_B, V_BQ, V_BK, V_BV, V_BO, V_G1, V_B1,
     V_C1, V_C2, V_G2, V_B2, V_HB1, V_HB2) = range(14)

    inv_sqrt_h = 1.0 / float(H) ** 0.5

    def kernel(ids_ref, emb_ref, w_ref, vec_ref, msel_ref, out_ref):
        f32 = jnp.float32
        bf16 = lambda a: a.astype(jnp.bfloat16)

        def vec(row, width):                 # (1, width) f32 bias / LN vector
            return vec_ref[row:row + 1, :width]

        def wmat(r0, nrows, ncols):          # bf16 weight, static prefix slice
            return w_ref[r0:r0 + nrows, :ncols]

        # --- fused embedding gather: exact f32 one-hot matmul on the MXU,
        #     plus precomputed per-row position embeddings ---
        ids = ids_ref[...]                                            # (N,1) i32
        onehot = (lax.broadcasted_iota(jnp.int32, (N, VP), 1) == ids).astype(f32)
        x = jnp.dot(onehot, emb_ref[:VP, :], preferred_element_type=f32)
        x = x + emb_ref[VP:VP + N, :]                                 # (N,H)

        # --- embedding LayerNorm (f32) ---
        x = _layer_norm(x, vec(V_EMB_G, H), vec(V_EMB_B, H))

        # --- self-attention: three (H,H) projections (avoids mid-lane-tile
        #     slices of a fused QKV output at H=32), block-diagonal attention
        #     as a single (N,N) MXU matmul ---
        xb = bf16(x)
        q = jnp.dot(xb, wmat(R_WQ, H, H), preferred_element_type=f32) + vec(V_BQ, H)
        k = jnp.dot(xb, wmat(R_WK, H, H), preferred_element_type=f32) + vec(V_BK, H)
        v = jnp.dot(xb, wmat(R_WV, H, H), preferred_element_type=f32) + vec(V_BV, H)

        scores = lax.dot_general(bf16(q), bf16(k), (((1,), (1,)), ((), ())),
                                 preferred_element_type=f32)          # (N,N)
        # Precomputed additive block-diagonal mask (0 / -1e30): one VPU add.
        # (Every row has >=S unmasked entries, so the softmax sum is never 0.)
        scores = scores * inv_sqrt_h + msel_ref[:N, :]
        scores = scores - jnp.max(scores, axis=-1, keepdims=True)
        p = jnp.exp(scores)
        attn = p * pl.reciprocal(jnp.sum(p, axis=-1, keepdims=True), approx=True)

        ctx = jnp.dot(bf16(attn), bf16(v), preferred_element_type=f32)
        attn_out = (jnp.dot(bf16(ctx), wmat(R_WO, H, H),
                            preferred_element_type=f32) + vec(V_BO, H))
        h1 = _layer_norm(x + attn_out, vec(V_G1, H), vec(V_B1, H))

        # --- feed-forward (bf16 matmuls, f32 bias/ReLU) ---
        ff = jnp.dot(bf16(h1), wmat(R_W1, H, F),
                     preferred_element_type=f32) + vec(V_C1, F)
        ff = jnp.maximum(ff, 0.0)
        ff = jnp.dot(bf16(ff), wmat(R_W2, F, H),
                     preferred_element_type=f32) + vec(V_C2, H)
        h2 = _layer_norm(h1 + ff, vec(V_G2, H), vec(V_B2, H))          # (N,H)

        # --- CLS rows (position 0 of every sequence) via the precomputed f32
        #     selection matmul: MXU-only, no strided sublane gather, and h2
        #     stays f32 until the head's own bf16 cast ---
        cls = jnp.dot(msel_ref[N:N + Bt, :], h2, preferred_element_type=f32)

        # --- trainable head: Linear+ReLU, Linear -> lane-dense (Bt,128) slab ---
        hx = jnp.maximum(jnp.dot(bf16(cls), wmat(R_HW1, H, H),
                                 preferred_element_type=f32) + vec(V_HB1, H), 0.0)
        logits = jnp.dot(bf16(hx), wmat(R_HW2, H, LOGIT_PAD),
                         preferred_element_type=f32) + vec(V_HB2, LOGIT_PAD)
        out_ref[...] = logits.astype(out_ref.dtype)

    return kernel


# ----------------------------------------------------------------------------
# Wrapper: operand packing (trace-time) + fused Pallas kernel + logits slice
# ----------------------------------------------------------------------------
def senti_bert_forward(token_ids, params, batch_block=None):
    B, S = token_ids.shape
    V, H = params["word_emb"].shape
    F = params["w1"].shape[1]
    VP = pl.cdiv(V, 128) * 128                 # vocab rows padded to lane tile

    if batch_block is None:
        batch_block = _default_batch_block(B)
    Bt = max(min(batch_block, B), 1)
    pad = (-B) % Bt
    Bp = B + pad
    N = Bt * S
    num_blocks = Bp // Bt

    # ---- token ids, flattened batch-major; padded batch rows use id 0 ----
    ids = token_ids.reshape(B * S, 1).astype(jnp.int32)
    if pad:
        ids = jnp.concatenate([ids, jnp.zeros((pad * S, 1), jnp.int32)], axis=0)

    # ---- packed, grid-invariant operands ----
    def pad_lanes(w, width, dtype):
        out = jnp.zeros((w.shape[0], width), dtype)
        return out.at[:, :w.shape[1]].set(w.astype(dtype))

    # f32 embedding slab: zero-padded word table + per-row position embeddings
    wemb = jnp.zeros((VP, H), jnp.float32).at[:V].set(params["word_emb"])
    pos_tile = jnp.tile(params["pos_emb"].astype(jnp.float32), (Bt, 1))   # (N,H)
    emb_slab = jnp.concatenate([wemb, pos_tile], axis=0)                  # (VP+N,H)

    # bf16 weight slab: each matrix zero-padded to 128 lanes, stacked on rows
    wslab = jnp.concatenate(
        [pad_lanes(params[k], 128, jnp.bfloat16)
         for k in ("wq", "wk", "wv", "wo", "w2", "hw1", "w1", "hw2")], axis=0)

    # f32 "vectors" slab: all biases / LayerNorm gains in one (16,128) tile
    vec_names = ("emb_g", "emb_b", "bq", "bk", "bv", "bo", "g1", "b1",
                 "c1", "c2", "g2", "b2", "hb1", "hb2")
    vrows = [pad_lanes(params[k], 128, jnp.float32) for k in vec_names]
    vrows.append(jnp.zeros((16 - len(vec_names), 128), jnp.float32))
    vecs = jnp.concatenate(vrows, axis=0)                                 # (16,128)

    # f32 mask/selector slab: block-diagonal additive mask + CLS selector
    seq_of_row = jnp.arange(N) // S
    mask = jnp.where(seq_of_row[:, None] == seq_of_row[None, :],
                     0.0, -1e30).astype(jnp.float32)                      # (N,N)
    sel = (jnp.arange(N)[None, :] ==
           (jnp.arange(Bt)[:, None] * S)).astype(jnp.float32)             # (Bt,N)
    msel = jnp.concatenate([mask, sel], axis=0)                           # (N+Bt,N)

    kernel = _make_kernel(Bt, S, H, F, VP)

    flops = 2 * num_blocks * (
        N * VP * H + 3 * N * H * H + 2 * N * N * H + N * H * H
        + 2 * N * H * F + Bt * N * H + Bt * H * H + Bt * H * LOGIT_PAD)
    transcendentals = num_blocks * (N * N + 4 * N)
    bytes_accessed = int(ids.size * 4 + emb_slab.size * 4 + wslab.size * 2
                         + vecs.size * 4 + msel.size * 4 + Bp * LOGIT_PAD * 4)

    def run(resident_single_buffered):
        def inv_spec(shape):
            # Block-invariant operand: the second pipeline buffer is pure VMEM
            # waste, so request single buffering.
            if resident_single_buffered:
                return pl.BlockSpec(shape, lambda b: (0, 0),
                                    pipeline_mode=pl.Buffered(1))
            return pl.BlockSpec(shape, lambda b: (0, 0))

        grid_spec = pltpu.PrefetchScalarGridSpec(
            num_scalar_prefetch=0,
            grid=(num_blocks,),
            in_specs=[
                pl.BlockSpec((N, 1), lambda b: (b, 0)),        # token ids
                inv_spec(emb_slab.shape),                      # embedding slab
                inv_spec(wslab.shape),                         # bf16 weights
                inv_spec(vecs.shape),                          # biases / LN
                inv_spec(msel.shape),                          # mask + selector
            ],
            out_specs=pl.BlockSpec((Bt, LOGIT_PAD), lambda b: (b, 0)),
        )
        return pl.pallas_call(
            kernel,
            out_shape=jax.ShapeDtypeStruct((Bp, LOGIT_PAD), jnp.float32),
            grid_spec=grid_spec,
            compiler_params=pltpu.CompilerParams(
                dimension_semantics=("parallel",)),
            cost_estimate=pl.CostEstimate(
                flops=flops, transcendentals=transcendentals,
                bytes_accessed=bytes_accessed),
        )(ids, emb_slab, wslab, vecs, msel)

    try:
        out = run(True)
    except Exception:
        # TODO(synk): pl.Buffered(1) (single-buffered resident weights) not
        # accepted by this Pallas build -- fall back to default buffering.
        out = run(False)
    return out[:B, :NUM_CLASSES]


# ----------------------------------------------------------------------------
# Deterministic parameter init (natural f32 shapes; packing/casting in wrapper)
# ----------------------------------------------------------------------------
def init_params(key, vocab=100, seq=8, hidden=32, ffn=64):
    keys = iter(jax.random.split(key, 32))
    n = lambda shape, s=0.02: jax.random.normal(next(keys), shape, jnp.float32) * s
    return {
        # frozen synthetic embeddings
        "word_emb": n((vocab, hidden)), "pos_emb": n((seq, hidden)),
        # frozen synthetic encoder layer
        "emb_g": 1.0 + n((1, hidden)), "emb_b": n((1, hidden)),
        "wq": n((hidden, hidden)), "bq": n((1, hidden)),
        "wk": n((hidden, hidden)), "bk": n((1, hidden)),
        "wv": n((hidden, hidden)), "bv": n((1, hidden)),
        "wo": n((hidden, hidden)), "bo": n((1, hidden)),
        "g1": 1.0 + n((1, hidden)), "b1": n((1, hidden)),
        "w1": n((hidden, ffn)), "c1": n((1, ffn)),
        "w2": n((ffn, hidden)), "c2": n((1, hidden)),
        "g2": 1.0 + n((1, hidden)), "b2": n((1, hidden)),
        # trainable head: Linear(H,H)+ReLU, Linear(H,3)
        "hw1": n((hidden, hidden)), "hb1": n((1, hidden)),
        "hw2": n((hidden, NUM_CLASSES)), "hb2": n((1, NUM_CLASSES)),
    }


# ----------------------------------------------------------------------------
# Pure-JAX f32 reference (same parameters, unfused math)
# ----------------------------------------------------------------------------
def reference_forward(token_ids, p):
    def ln(x, g, b):
        mu = x.mean(-1, keepdims=True)
        var = ((x - mu) ** 2).mean(-1, keepdims=True)
        return (x - mu) / jnp.sqrt(var + LN_EPS) * g + b

    emb = p["word_emb"][token_ids] + p["pos_emb"][None, :, :]
    h = ln(emb, p["emb_g"], p["emb_b"])
    q = h @ p["wq"] + p["bq"]
    k = h @ p["wk"] + p["bk"]
    v = h @ p["wv"] + p["bv"]
    scores = jnp.einsum("bqd,bkd->bqk", q, k) / jnp.sqrt(jnp.float32(h.shape[-1]))
    attn = jax.nn.softmax(scores, axis=-1)
    ctx = jnp.einsum("bqk,bkd->bqd", attn, v)
    h1 = ln(h + ctx @ p["wo"] + p["bo"], p["g1"], p["b1"])
    ffn = jax.nn.relu(h1 @ p["w1"] + p["c1"]) @ p["w2"] + p["c2"]
    h2 = ln(h1 + ffn, p["g2"], p["b2"])
    cls = h2[:, 0, :]                          # torch.squeeze is a no-op for B > 1
    x = jax.nn.relu(cls @ p["hw1"] + p["hb1"])
    return x @ p["hw2"] + p["hb2"]


if __name__ == "__main__":
    # B=32, S=8, H=32: on single-TC v5e/v6e the whole batch is one grid block
    # (256 MXU rows); on 2-TC v7x it splits into two parallel 128-row blocks.
    B, S, H, F, VOCAB = 32, 8, 32, 64, 100
    key = jax.random.PRNGKey(0)
    k_tok, k_param = jax.random.split(key)
    token_ids = jax.random.randint(k_tok, (B, S), 0, VOCAB, dtype=jnp.int32)
    params = init_params(k_param, vocab=VOCAB, seq=S, hidden=H, ffn=F)

    logits = jax.block_until_ready(senti_bert_forward(token_ids, params))
    ref = reference_forward(token_ids, params)

    assert logits.shape == (B, NUM_CLASSES)
    # bf16 matmul operands / bf16-stored weights + approx reciprocal vs. f32 ref.
    assert jnp.allclose(logits, ref, rtol=3e-2, atol=5e-3), (logits, ref)

    print("KERNEL_OK")
</pallas_src>

<mosaic_0001>
module attributes {stable_mosaic.version = 11 : i64} {
  func.func @kernel(%arg0: i32, %arg1: memref<256x1xi32, #tpu.memory_space<vmem>>, %arg2: memref<384x32xf32, #tpu.memory_space<vmem>>, %arg3: memref<288x128xbf16, #tpu.memory_space<vmem>>, %arg4: memref<16x128xf32, #tpu.memory_space<vmem>>, %arg5: memref<288x256xf32, #tpu.memory_space<vmem>>, %arg6: memref<32x128xf32, #tpu.memory_space<vmem>>) attributes {dimension_semantics = [#tpu.dimension_semantics<parallel>], iteration_bounds = array<i64: 1>, scalar_prefetch = 0 : i64, scratch_operands = 0 : i64, tpu.core_type = #tpu.core_type<tc>, window_params = [{transform_indices = @transform_0, window_bounds = array<i64: 256, 1>}, {pipeline_mode = #tpu.pipeline_mode<synchronous>, transform_indices = @transform_1, window_bounds = array<i64: 384, 32>}, {pipeline_mode = #tpu.pipeline_mode<synchronous>, transform_indices = @transform_2, window_bounds = array<i64: 288, 128>}, {pipeline_mode = #tpu.pipeline_mode<synchronous>, transform_indices = @transform_3, window_bounds = array<i64: 16, 128>}, {pipeline_mode = #tpu.pipeline_mode<synchronous>, transform_indices = @transform_4, window_bounds = array<i64: 288, 256>}, {transform_indices = @transform_5, window_bounds = array<i64: 32, 128>}]} {
    %c0 = arith.constant 0 : index
    %c0_0 = arith.constant 0 : index
    %0 = vector.load %arg1[%c0, %c0_0] : memref<256x1xi32, #tpu.memory_space<vmem>>, vector<256x1xi32>
    %1 = tpu.iota {dimensions = array<i32: 1>} : vector<256x128xi32>
    %2 = vector.broadcast %0 : vector<256x1xi32> to vector<256x128xi32>
    %3 = arith.cmpi eq, %1, %2 : vector<256x128xi32>
    %4 = arith.extui %3 : vector<256x128xi1> to vector<256x128xi32>
    %5 = arith.sitofp %4 : vector<256x128xi32> to vector<256x128xf32>
    %c0_1 = arith.constant 0 : index
    %c0_2 = arith.constant 0 : index
    %6 = vector.load %arg2[%c0_1, %c0_2] : memref<384x32xf32, #tpu.memory_space<vmem>>, vector<128x32xf32>
    %cst = arith.constant dense<0.000000e+00> : vector<256x32xf32>
    %7 = tpu.matmul %5, %6, %cst {dimension_numbers = #tpu.dot_dimension_numbers<[1], [0], [0], [1], [0, 0, 1, 1], [], []>} : vector<256x128xf32>, vector<128x32xf32>, vector<256x32xf32> -> vector<256x32xf32>
    %c128 = arith.constant 128 : index
    %c0_3 = arith.constant 0 : index
    %8 = vector.load %arg2[%c128, %c0_3] : memref<384x32xf32, #tpu.memory_space<vmem>>, vector<256x32xf32>
    %9 = arith.addf %7, %8 : vector<256x32xf32>
    %c0_4 = arith.constant 0 : index
    %c0_5 = arith.constant 0 : index
    %10 = vector.load %arg4[%c0_4, %c0_5] : memref<16x128xf32, #tpu.memory_space<vmem>>, vector<1x32xf32>
    %c1 = arith.constant 1 : index
    %c0_6 = arith.constant 0 : index
    %11 = vector.load %arg4[%c1, %c0_6] : memref<16x128xf32, #tpu.memory_space<vmem>>, vector<1x32xf32>
    %cst_7 = arith.constant dense<0.000000e+00> : vector<256xf32>
    %12 = vector.multi_reduction <add>, %9, %cst_7 [1] : vector<256x32xf32> to vector<256xf32>
    %13 = vector.shape_cast %12 : vector<256xf32> to vector<256x1xf32>
    %cst_8 = arith.constant 3.200000e+01 : f32
    %14 = vector.broadcast %cst_8 : f32 to vector<256x1xf32>
    %15 = arith.divf %13, %14 : vector<256x1xf32>
    %16 = vector.broadcast %15 : vector<256x1xf32> to vector<256x32xf32>
    %17 = arith.subf %9, %16 : vector<256x32xf32>
    %18 = arith.mulf %17, %17 : vector<256x32xf32>
    %cst_9 = arith.constant dense<0.000000e+00> : vector<256xf32>
    %19 = vector.multi_reduction <add>, %18, %cst_9 [1] : vector<256x32xf32> to vector<256xf32>
    %20 = vector.shape_cast %19 : vector<256xf32> to vector<256x1xf32>
    %cst_10 = arith.constant 3.200000e+01 : f32
    %21 = vector.broadcast %cst_10 : f32 to vector<256x1xf32>
    %22 = arith.divf %20, %21 : vector<256x1xf32>
    %23 = vector.broadcast %15 : vector<256x1xf32> to vector<256x32xf32>
    %24 = arith.subf %9, %23 : vector<256x32xf32>
    %cst_11 = arith.constant 9.99999996E-13 : f32
    %25 = vector.broadcast %cst_11 : f32 to vector<256x1xf32>
    %26 = arith.addf %22, %25 : vector<256x1xf32>
    %27 = math.rsqrt %26 : vector<256x1xf32>
    %28 = vector.broadcast %27 : vector<256x1xf32> to vector<256x32xf32>
    %29 = arith.mulf %24, %28 : vector<256x32xf32>
    %30 = vector.broadcast %10 : vector<1x32xf32> to vector<256x32xf32>
    %31 = arith.mulf %29, %30 : vector<256x32xf32>
    %32 = vector.broadcast %11 : vector<1x32xf32> to vector<256x32xf32>
    %33 = arith.addf %31, %32 : vector<256x32xf32>
    %34 = arith.truncf %33 : vector<256x32xf32> to vector<256x32xbf16>
    %c0_12 = arith.constant 0 : index
    %c0_13 = arith.constant 0 : index
    %35 = vector.load %arg3[%c0_12, %c0_13] : memref<288x128xbf16, #tpu.memory_space<vmem>>, vector<32x32xbf16>
    %cst_14 = arith.constant dense<0.000000e+00> : vector<256x32xf32>
    %36 = tpu.matmul %34, %35, %cst_14 {dimension_numbers = #tpu.dot_dimension_numbers<[1], [0], [0], [1], [0, 0, 1, 1], [], []>} : vector<256x32xbf16>, vector<32x32xbf16>, vector<256x32xf32> -> vector<256x32xf32>
    %c2 = arith.constant 2 : index
    %c0_15 = arith.constant 0 : index
    %37 = vector.load %arg4[%c2, %c0_15] : memref<16x128xf32, #tpu.memory_space<vmem>>, vector<1x32xf32>
    %38 = vector.broadcast %37 : vector<1x32xf32> to vector<256x32xf32>
    %39 = arith.addf %36, %38 : vector<256x32xf32>
    %c32 = arith.constant 32 : index
    %c0_16 = arith.constant 0 : index
    %40 = vector.load %arg3[%c32, %c0_16] : memref<288x128xbf16, #tpu.memory_space<vmem>>, vector<32x32xbf16>
    %cst_17 = arith.constant dense<0.000000e+00> : vector<256x32xf32>
    %41 = tpu.matmul %34, %40, %cst_17 {dimension_numbers = #tpu.dot_dimension_numbers<[1], [0], [0], [1], [0, 0, 1, 1], [], []>} : vector<256x32xbf16>, vector<32x32xbf16>, vector<256x32xf32> -> vector<256x32xf32>
    %c3 = arith.constant 3 : index
    %c0_18 = arith.constant 0 : index
    %42 = vector.load %arg4[%c3, %c0_18] : memref<16x128xf32, #tpu.memory_space<vmem>>, vector<1x32xf32>
    %43 = vector.broadcast %42 : vector<1x32xf32> to vector<256x32xf32>
    %44 = arith.addf %41, %43 : vector<256x32xf32>
    %c64 = arith.constant 64 : index
    %c0_19 = arith.constant 0 : index
    %45 = vector.load %arg3[%c64, %c0_19] : memref<288x128xbf16, #tpu.memory_space<vmem>>, vector<32x32xbf16>
    %cst_20 = arith.constant dense<0.000000e+00> : vector<256x32xf32>
    %46 = tpu.matmul %34, %45, %cst_20 {dimension_numbers = #tpu.dot_dimension_numbers<[1], [0], [0], [1], [0, 0, 1, 1], [], []>} : vector<256x32xbf16>, vector<32x32xbf16>, vector<256x32xf32> -> vector<256x32xf32>
    %c4 = arith.constant 4 : index
    %c0_21 = arith.constant 0 : index
    %47 = vector.load %arg4[%c4, %c0_21] : memref<16x128xf32, #tpu.memory_space<vmem>>, vector<1x32xf32>
    %48 = vector.broadcast %47 : vector<1x32xf32> to vector<256x32xf32>
    %49 = arith.addf %46, %48 : vector<256x32xf32>
    %50 = arith.truncf %39 : vector<256x32xf32> to vector<256x32xbf16>
    %51 = arith.truncf %44 : vector<256x32xf32> to vector<256x32xbf16>
    %cst_22 = arith.constant dense<0.000000e+00> : vector<256x256xf32>
    %52 = tpu.matmul %50, %51, %cst_22 {dimension_numbers = #tpu.dot_dimension_numbers<[1], [1], [0], [0], [0, 0, 1, 0], [], []>} : vector<256x32xbf16>, vector<256x32xbf16>, vector<256x256xf32> -> vector<256x256xf32>
    %cst_23 = arith.constant 0.176776692 : f32
    %53 = vector.broadcast %cst_23 : f32 to vector<256x256xf32>
    %54 = arith.mulf %52, %53 : vector<256x256xf32>
    %c0_24 = arith.constant 0 : index
    %c0_25 = arith.constant 0 : index
    %55 = vector.load %arg5[%c0_24, %c0_25] : memref<288x256xf32, #tpu.memory_space<vmem>>, vector<256x256xf32>
    %56 = arith.addf %54, %55 : vector<256x256xf32>
    %cst_26 = arith.constant dense<0xFF800000> : vector<256xf32>
    %57 = vector.multi_reduction <maximumf>, %56, %cst_26 [1] : vector<256x256xf32> to vector<256xf32>
    %58 = vector.shape_cast %57 : vector<256xf32> to vector<256x1xf32>
    %59 = vector.broadcast %58 : vector<256x1xf32> to vector<256x256xf32>
    %60 = arith.subf %56, %59 : vector<256x256xf32>
    %61 = math.exp %60 : vector<256x256xf32>
    %cst_27 = arith.constant dense<0.000000e+00> : vector<256xf32>
    %62 = vector.multi_reduction <add>, %61, %cst_27 [1] : vector<256x256xf32> to vector<256xf32>
    %63 = vector.shape_cast %62 : vector<256xf32> to vector<256x1xf32>
    %64 = tpu.reciprocal %63 {approx = true} : vector<256x1xf32> -> vector<256x1xf32>
    %65 = vector.broadcast %64 : vector<256x1xf32> to vector<256x256xf32>
    %66 = arith.mulf %61, %65 : vector<256x256xf32>
    %67 = arith.truncf %66 : vector<256x256xf32> to vector<256x256xbf16>
    %68 = arith.truncf %49 : vector<256x32xf32> to vector<256x32xbf16>
    %cst_28 = arith.constant dense<0.000000e+00> : vector<256x32xf32>
    %69 = tpu.matmul %67, %68, %cst_28 {dimension_numbers = #tpu.dot_dimension_numbers<[1], [0], [0], [1], [0, 0, 1, 1], [], []>} : vector<256x256xbf16>, vector<256x32xbf16>, vector<256x32xf32> -> vector<256x32xf32>
    %70 = arith.truncf %69 : vector<256x32xf32> to vector<256x32xbf16>
    %c96 = arith.constant 96 : index
    %c0_29 = arith.constant 0 : index
    %71 = vector.load %arg3[%c96, %c0_29] : memref<288x128xbf16, #tpu.memory_space<vmem>>, vector<32x32xbf16>
    %cst_30 = arith.constant dense<0.000000e+00> : vector<256x32xf32>
    %72 = tpu.matmul %70, %71, %cst_30 {dimension_numbers = #tpu.dot_dimension_numbers<[1], [0], [0], [1], [0, 0, 1, 1], [], []>} : vector<256x32xbf16>, vector<32x32xbf16>, vector<256x32xf32> -> vector<256x32xf32>
    %c5 = arith.constant 5 : index
    %c0_31 = arith.constant 0 : index
    %73 = vector.load %arg4[%c5, %c0_31] : memref<16x128xf32, #tpu.memory_space<vmem>>, vector<1x32xf32>
    %74 = vector.broadcast %73 : vector<1x32xf32> to vector<256x32xf32>
    %75 = arith.addf %72, %74 : vector<256x32xf32>
    %76 = arith.addf %33, %75 : vector<256x32xf32>
    %c6 = arith.constant 6 : index
    %c0_32 = arith.constant 0 : index
    %77 = vector.load %arg4[%c6, %c0_32] : memref<16x128xf32, #tpu.memory_space<vmem>>, vector<1x32xf32>
    %c7 = arith.constant 7 : index
    %c0_33 = arith.constant 0 : index
    %78 = vector.load %arg4[%c7, %c0_33] : memref<16x128xf32, #tpu.memory_space<vmem>>, vector<1x32xf32>
    %cst_34 = arith.constant dense<0.000000e+00> : vector<256xf32>
    %79 = vector.multi_reduction <add>, %76, %cst_34 [1] : vector<256x32xf32> to vector<256xf32>
    %80 = vector.shape_cast %79 : vector<256xf32> to vector<256x1xf32>
    %cst_35 = arith.constant 3.200000e+01 : f32
    %81 = vector.broadcast %cst_35 : f32 to vector<256x1xf32>
    %82 = arith.divf %80, %81 : vector<256x1xf32>
    %83 = vector.broadcast %82 : vector<256x1xf32> to vector<256x32xf32>
    %84 = arith.subf %76, %83 : vector<256x32xf32>
    %85 = arith.mulf %84, %84 : vector<256x32xf32>
    %cst_36 = arith.constant dense<0.000000e+00> : vector<256xf32>
    %86 = vector.multi_reduction <add>, %85, %cst_36 [1] : vector<256x32xf32> to vector<256xf32>
    %87 = vector.shape_cast %86 : vector<256xf32> to vector<256x1xf32>
    %cst_37 = arith.constant 3.200000e+01 : f32
    %88 = vector.broadcast %cst_37 : f32 to vector<256x1xf32>
    %89 = arith.divf %87, %88 : vector<256x1xf32>
    %90 = vector.broadcast %82 : vector<256x1xf32> to vector<256x32xf32>
    %91 = arith.subf %76, %90 : vector<256x32xf32>
    %cst_38 = arith.constant 9.99999996E-13 : f32
    %92 = vector.broadcast %cst_38 : f32 to vector<256x1xf32>
    %93 = arith.addf %89, %92 : vector<256x1xf32>
    %94 = math.rsqrt %93 : vector<256x1xf32>
    %95 = vector.broadcast %94 : vector<256x1xf32> to vector<256x32xf32>
    %96 = arith.mulf %91, %95 : vector<256x32xf32>
    %97 = vector.broadcast %77 : vector<1x32xf32> to vector<256x32xf32>
    %98 = arith.mulf %96, %97 : vector<256x32xf32>
    %99 = vector.broadcast %78 : vector<1x32xf32> to vector<256x32xf32>
    %100 = arith.addf %98, %99 : vector<256x32xf32>
    %101 = arith.truncf %100 : vector<256x32xf32> to vector<256x32xbf16>
    %c224 = arith.constant 224 : index
    %c0_39 = arith.constant 0 : index
    %102 = vector.load %arg3[%c224, %c0_39] : memref<288x128xbf16, #tpu.memory_space<vmem>>, vector<32x64xbf16>
    %cst_40 = arith.constant dense<0.000000e+00> : vector<256x64xf32>
    %103 = tpu.matmul %101, %102, %cst_40 {dimension_numbers = #tpu.dot_dimension_numbers<[1], [0], [0], [1], [0, 0, 1, 1], [], []>} : vector<256x32xbf16>, vector<32x64xbf16>, vector<256x64xf32> -> vector<256x64xf32>
    %c8 = arith.constant 8 : index
    %c0_41 = arith.constant 0 : index
    %104 = vector.load %arg4[%c8, %c0_41] : memref<16x128xf32, #tpu.memory_space<vmem>>, vector<1x64xf32>
    %105 = vector.broadcast %104 : vector<1x64xf32> to vector<256x64xf32>
    %106 = arith.addf %103, %105 : vector<256x64xf32>
    %cst_42 = arith.constant 0.000000e+00 : f32
    %107 = vector.broadcast %cst_42 : f32 to vector<256x64xf32>
    %108 = arith.maximumf %106, %107 : vector<256x64xf32>
    %109 = arith.truncf %108 : vector<256x64xf32> to vector<256x64xbf16>
    %c128_43 = arith.constant 128 : index
    %c0_44 = arith.constant 0 : index
    %110 = vector.load %arg3[%c128_43, %c0_44] : memref<288x128xbf16, #tpu.memory_space<vmem>>, vector<64x32xbf16>
    %cst_45 = arith.constant dense<0.000000e+00> : vector<256x32xf32>
    %111 = tpu.matmul %109, %110, %cst_45 {dimension_numbers = #tpu.dot_dimension_numbers<[1], [0], [0], [1], [0, 0, 1, 1], [], []>} : vector<256x64xbf16>, vector<64x32xbf16>, vector<256x32xf32> -> vector<256x32xf32>
    %c9 = arith.constant 9 : index
    %c0_46 = arith.constant 0 : index
    %112 = vector.load %arg4[%c9, %c0_46] : memref<16x128xf32, #tpu.memory_space<vmem>>, vector<1x32xf32>
    %113 = vector.broadcast %112 : vector<1x32xf32> to vector<256x32xf32>
    %114 = arith.addf %111, %113 : vector<256x32xf32>
    %115 = arith.addf %100, %114 : vector<256x32xf32>
    %c10 = arith.constant 10 : index
    %c0_47 = arith.constant 0 : index
    %116 = vector.load %arg4[%c10, %c0_47] : memref<16x128xf32, #tpu.memory_space<vmem>>, vector<1x32xf32>
    %c11 = arith.constant 11 : index
    %c0_48 = arith.constant 0 : index
    %117 = vector.load %arg4[%c11, %c0_48] : memref<16x128xf32, #tpu.memory_space<vmem>>, vector<1x32xf32>
    %cst_49 = arith.constant dense<0.000000e+00> : vector<256xf32>
    %118 = vector.multi_reduction <add>, %115, %cst_49 [1] : vector<256x32xf32> to vector<256xf32>
    %119 = vector.shape_cast %118 : vector<256xf32> to vector<256x1xf32>
    %cst_50 = arith.constant 3.200000e+01 : f32
    %120 = vector.broadcast %cst_50 : f32 to vector<256x1xf32>
    %121 = arith.divf %119, %120 : vector<256x1xf32>
    %122 = vector.broadcast %121 : vector<256x1xf32> to vector<256x32xf32>
    %123 = arith.subf %115, %122 : vector<256x32xf32>
    %124 = arith.mulf %123, %123 : vector<256x32xf32>
    %cst_51 = arith.constant dense<0.000000e+00> : vector<256xf32>
    %125 = vector.multi_reduction <add>, %124, %cst_51 [1] : vector<256x32xf32> to vector<256xf32>
    %126 = vector.shape_cast %125 : vector<256xf32> to vector<256x1xf32>
    %cst_52 = arith.constant 3.200000e+01 : f32
    %127 = vector.broadcast %cst_52 : f32 to vector<256x1xf32>
    %128 = arith.divf %126, %127 : vector<256x1xf32>
    %129 = vector.broadcast %121 : vector<256x1xf32> to vector<256x32xf32>
    %130 = arith.subf %115, %129 : vector<256x32xf32>
    %cst_53 = arith.constant 9.99999996E-13 : f32
    %131 = vector.broadcast %cst_53 : f32 to vector<256x1xf32>
    %132 = arith.addf %128, %131 : vector<256x1xf32>
    %133 = math.rsqrt %132 : vector<256x1xf32>
    %134 = vector.broadcast %133 : vector<256x1xf32> to vector<256x32xf32>
    %135 = arith.mulf %130, %134 : vector<256x32xf32>
    %136 = vector.broadcast %116 : vector<1x32xf32> to vector<256x32xf32>
    %137 = arith.mulf %135, %136 : vector<256x32xf32>
    %138 = vector.broadcast %117 : vector<1x32xf32> to vector<256x32xf32>
    %139 = arith.addf %137, %138 : vector<256x32xf32>
    %c256 = arith.constant 256 : index
    %c0_54 = arith.constant 0 : index
    %140 = vector.load %arg5[%c256, %c0_54] : memref<288x256xf32, #tpu.memory_space<vmem>>, vector<32x256xf32>
    %cst_55 = arith.constant dense<0.000000e+00> : vector<32x32xf32>
    %141 = tpu.matmul %140, %139, %cst_55 {dimension_numbers = #tpu.dot_dimension_numbers<[1], [0], [0], [1], [0, 0, 1, 1], [], []>} : vector<32x256xf32>, vector<256x32xf32>, vector<32x32xf32> -> vector<32x32xf32>
    %142 = arith.truncf %141 : vector<32x32xf32> to vector<32x32xbf16>
    %c192 = arith.constant 192 : index
    %c0_56 = arith.constant 0 : index
    %143 = vector.load %arg3[%c192, %c0_56] : memref<288x128xbf16, #tpu.memory_space<vmem>>, vector<32x32xbf16>
    %cst_57 = arith.constant dense<0.000000e+00> : vector<32x32xf32>
    %144 = tpu.matmul %142, %143, %cst_57 {dimension_numbers = #tpu.dot_dimension_numbers<[1], [0], [0], [1], [0, 0, 1, 1], [], []>} : vector<32x32xbf16>, vector<32x32xbf16>, vector<32x32xf32> -> vector<32x32xf32>
    %c12 = arith.constant 12 : index
    %c0_58 = arith.constant 0 : index
    %145 = vector.load %arg4[%c12, %c0_58] : memref<16x128xf32, #tpu.memory_space<vmem>>, vector<1x32xf32>
    %146 = vector.broadcast %145 : vector<1x32xf32> to vector<32x32xf32>
    %147 = arith.addf %144, %146 : vector<32x32xf32>
    %cst_59 = arith.constant 0.000000e+00 : f32
    %148 = vector.broadcast %cst_59 : f32 to vector<32x32xf32>
    %149 = arith.maximumf %147, %148 : vector<32x32xf32>
    %150 = arith.truncf %149 : vector<32x32xf32> to vector<32x32xbf16>
    %c256_60 = arith.constant 256 : index
    %c0_61 = arith.constant 0 : index
    %151 = vector.load %arg3[%c256_60, %c0_61] : memref<288x128xbf16, #tpu.memory_space<vmem>>, vector<32x128xbf16>
    %cst_62 = arith.constant dense<0.000000e+00> : vector<32x128xf32>
    %152 = tpu.matmul %150, %151, %cst_62 {dimension_numbers = #tpu.dot_dimension_numbers<[1], [0], [0], [1], [0, 0, 1, 1], [], []>} : vector<32x32xbf16>, vector<32x128xbf16>, vector<32x128xf32> -> vector<32x128xf32>
    %c13 = arith.constant 13 : index
    %c0_63 = arith.constant 0 : index
    %153 = vector.load %arg4[%c13, %c0_63] : memref<16x128xf32, #tpu.memory_space<vmem>>, vector<1x128xf32>
    %154 = vector.broadcast %153 : vector<1x128xf32> to vector<32x128xf32>
    %155 = arith.addf %152, %154 : vector<32x128xf32>
    %c0_64 = arith.constant 0 : index
    %c0_65 = arith.constant 0 : index
    %156 = vector.load %arg6[%c0_64, %c0_65] : memref<32x128xf32, #tpu.memory_space<vmem>>, vector<32x128xf32>
    tpu.vector_store %arg6[%c0_64, %c0_65], %155 {strides = array<i32>} : memref<32x128xf32, #tpu.memory_space<vmem>>, vector<32x128xf32>,
    return
  }
  func.func @transform_0(%arg0: i32) -> (i32, i32) {
    %c0_i32 = arith.constant 0 : i32
    %c0_i32_0 = arith.constant 0 : i32
    return %arg0, %c0_i32 : i32, i32
  }
  func.func @transform_1(%arg0: i32) -> (i32, i32) {
    %c0_i32 = arith.constant 0 : i32
    %c0_i32_0 = arith.constant 0 : i32
    %c0_i32_1 = arith.constant 0 : i32
    return %c0_i32, %c0_i32_0 : i32, i32
  }
  func.func @transform_2(%arg0: i32) -> (i32, i32) {
    %c0_i32 = arith.constant 0 : i32
    %c0_i32_0 = arith.constant 0 : i32
    %c0_i32_1 = arith.constant 0 : i32
    return %c0_i32, %c0_i32_0 : i32, i32
  }
  func.func @transform_3(%arg0: i32) -> (i32, i32) {
    %c0_i32 = arith.constant 0 : i32
    %c0_i32_0 = arith.constant 0 : i32
    %c0_i32_1 = arith.constant 0 : i32
    return %c0_i32, %c0_i32_0 : i32, i32
  }
  func.func @transform_4(%arg0: i32) -> (i32, i32) {
    %c0_i32 = arith.constant 0 : i32
    %c0_i32_0 = arith.constant 0 : i32
    %c0_i32_1 = arith.constant 0 : i32
    return %c0_i32, %c0_i32_0 : i32, i32
  }
  func.func @transform_5(%arg0: i32) -> (i32, i32) {
    %c0_i32 = arith.constant 0 : i32
    %c0_i32_0 = arith.constant 0 : i32
    return %arg0, %c0_i32 : i32, i32
  }
}

module attributes {stable_mosaic.version = 11 : i64} {
  func.func @kernel(%arg0: i32, %arg1: memref<256x1xi32, #tpu.memory_space<vmem>>, %arg2: memref<384x32xf32, #tpu.memory_space<vmem>>, %arg3: memref<288x128xbf16, #tpu.memory_space<vmem>>, %arg4: memref<16x128xf32, #tpu.memory_space<vmem>>, %arg5: memref<288x256xf32, #tpu.memory_space<vmem>>, %arg6: memref<32x128xf32, #tpu.memory_space<vmem>>) attributes {dimension_semantics = [#tpu.dimension_semantics<parallel>], iteration_bounds = array<i64: 1>, scalar_prefetch = 0 : i64, scratch_operands = 0 : i64, tpu.core_type = #tpu.core_type<tc>, window_params = [{transform_indices = @transform_0, window_bounds = array<i64: 256, 1>}, {pipeline_mode = #tpu.pipeline_mode<synchronous>, transform_indices = @transform_1, window_bounds = array<i64: 384, 32>}, {pipeline_mode = #tpu.pipeline_mode<synchronous>, transform_indices = @transform_2, window_bounds = array<i64: 288, 128>}, {pipeline_mode = #tpu.pipeline_mode<synchronous>, transform_indices = @transform_3, window_bounds = array<i64: 16, 128>}, {pipeline_mode = #tpu.pipeline_mode<synchronous>, transform_indices = @transform_4, window_bounds = array<i64: 288, 256>}, {transform_indices = @transform_5, window_bounds = array<i64: 32, 128>}]} {
    %c0 = arith.constant 0 : index
    %c0_0 = arith.constant 0 : index
    %0 = vector.load %arg1[%c0, %c0_0] : memref<256x1xi32, #tpu.memory_space<vmem>>, vector<256x1xi32>
    %1 = tpu.iota {dimensions = array<i32: 1>} : vector<256x128xi32>
    %2 = vector.broadcast %0 : vector<256x1xi32> to vector<256x128xi32>
    %3 = arith.cmpi eq, %1, %2 : vector<256x128xi32>
    %4 = arith.extui %3 : vector<256x128xi1> to vector<256x128xi32>
    %5 = arith.sitofp %4 : vector<256x128xi32> to vector<256x128xf32>
    %c0_1 = arith.constant 0 : index
    %c0_2 = arith.constant 0 : index
    %6 = vector.load %arg2[%c0_1, %c0_2] : memref<384x32xf32, #tpu.memory_space<vmem>>, vector<128x32xf32>
    %cst = arith.constant dense<0.000000e+00> : vector<256x32xf32>
    %7 = tpu.matmul %5, %6, %cst {dimension_numbers = #tpu.dot_dimension_numbers<[1], [0], [0], [1], [0, 0, 1, 1], [], []>} : vector<256x128xf32>, vector<128x32xf32>, vector<256x32xf32> -> vector<256x32xf32>
    %c128 = arith.constant 128 : index
    %c0_3 = arith.constant 0 : index
    %8 = vector.load %arg2[%c128, %c0_3] : memref<384x32xf32, #tpu.memory_space<vmem>>, vector<256x32xf32>
    %9 = arith.addf %7, %8 : vector<256x32xf32>
    %c0_4 = arith.constant 0 : index
    %c0_5 = arith.constant 0 : index
    %10 = vector.load %arg4[%c0_4, %c0_5] : memref<16x128xf32, #tpu.memory_space<vmem>>, vector<1x32xf32>
    %c1 = arith.constant 1 : index
    %c0_6 = arith.constant 0 : index
    %11 = vector.load %arg4[%c1, %c0_6] : memref<16x128xf32, #tpu.memory_space<vmem>>, vector<1x32xf32>
    %cst_7 = arith.constant dense<0.000000e+00> : vector<256xf32>
    %12 = vector.multi_reduction <add>, %9, %cst_7 [1] : vector<256x32xf32> to vector<256xf32>
    %13 = vector.shape_cast %12 : vector<256xf32> to vector<256x1xf32>
    %cst_8 = arith.constant 3.200000e+01 : f32
    %14 = vector.broadcast %cst_8 : f32 to vector<256x1xf32>
    %15 = arith.divf %13, %14 : vector<256x1xf32>
    %16 = vector.broadcast %15 : vector<256x1xf32> to vector<256x32xf32>
    %17 = arith.subf %9, %16 : vector<256x32xf32>
    %18 = arith.mulf %17, %17 : vector<256x32xf32>
    %cst_9 = arith.constant dense<0.000000e+00> : vector<256xf32>
    %19 = vector.multi_reduction <add>, %18, %cst_9 [1] : vector<256x32xf32> to vector<256xf32>
    %20 = vector.shape_cast %19 : vector<256xf32> to vector<256x1xf32>
    %cst_10 = arith.constant 3.200000e+01 : f32
    %21 = vector.broadcast %cst_10 : f32 to vector<256x1xf32>
    %22 = arith.divf %20, %21 : vector<256x1xf32>
    %23 = vector.broadcast %15 : vector<256x1xf32> to vector<256x32xf32>
    %24 = arith.subf %9, %23 : vector<256x32xf32>
    %cst_11 = arith.constant 9.99999996E-13 : f32
    %25 = vector.broadcast %cst_11 : f32 to vector<256x1xf32>
    %26 = arith.addf %22, %25 : vector<256x1xf32>
    %27 = math.rsqrt %26 : vector<256x1xf32>
    %28 = vector.broadcast %27 : vector<256x1xf32> to vector<256x32xf32>
    %29 = arith.mulf %24, %28 : vector<256x32xf32>
    %30 = vector.broadcast %10 : vector<1x32xf32> to vector<256x32xf32>
    %31 = arith.mulf %29, %30 : vector<256x32xf32>
    %32 = vector.broadcast %11 : vector<1x32xf32> to vector<256x32xf32>
    %33 = arith.addf %31, %32 : vector<256x32xf32>
    %34 = arith.truncf %33 : vector<256x32xf32> to vector<256x32xbf16>
    %c0_12 = arith.constant 0 : index
    %c0_13 = arith.constant 0 : index
    %35 = vector.load %arg3[%c0_12, %c0_13] : memref<288x128xbf16, #tpu.memory_space<vmem>>, vector<32x32xbf16>
    %cst_14 = arith.constant dense<0.000000e+00> : vector<256x32xf32>
    %36 = tpu.matmul %34, %35, %cst_14 {dimension_numbers = #tpu.dot_dimension_numbers<[1], [0], [0], [1], [0, 0, 1, 1], [], []>} : vector<256x32xbf16>, vector<32x32xbf16>, vector<256x32xf32> -> vector<256x32xf32>
    %c2 = arith.constant 2 : index
    %c0_15 = arith.constant 0 : index
    %37 = vector.load %arg4[%c2, %c0_15] : memref<16x128xf32, #tpu.memory_space<vmem>>, vector<1x32xf32>
    %38 = vector.broadcast %37 : vector<1x32xf32> to vector<256x32xf32>
    %39 = arith.addf %36, %38 : vector<256x32xf32>
    %c32 = arith.constant 32 : index
    %c0_16 = arith.constant 0 : index
    %40 = vector.load %arg3[%c32, %c0_16] : memref<288x128xbf16, #tpu.memory_space<vmem>>, vector<32x32xbf16>
    %cst_17 = arith.constant dense<0.000000e+00> : vector<256x32xf32>
    %41 = tpu.matmul %34, %40, %cst_17 {dimension_numbers = #tpu.dot_dimension_numbers<[1], [0], [0], [1], [0, 0, 1, 1], [], []>} : vector<256x32xbf16>, vector<32x32xbf16>, vector<256x32xf32> -> vector<256x32xf32>
    %c3 = arith.constant 3 : index
    %c0_18 = arith.constant 0 : index
    %42 = vector.load %arg4[%c3, %c0_18] : memref<16x128xf32, #tpu.memory_space<vmem>>, vector<1x32xf32>
    %43 = vector.broadcast %42 : vector<1x32xf32> to vector<256x32xf32>
    %44 = arith.addf %41, %43 : vector<256x32xf32>
    %c64 = arith.constant 64 : index
    %c0_19 = arith.constant 0 : index
    %45 = vector.load %arg3[%c64, %c0_19] : memref<288x128xbf16, #tpu.memory_space<vmem>>, vector<32x32xbf16>
    %cst_20 = arith.constant dense<0.000000e+00> : vector<256x32xf32>
    %46 = tpu.matmul %34, %45, %cst_20 {dimension_numbers = #tpu.dot_dimension_numbers<[1], [0], [0], [1], [0, 0, 1, 1], [], []>} : vector<256x32xbf16>, vector<32x32xbf16>, vector<256x32xf32> -> vector<256x32xf32>
    %c4 = arith.constant 4 : index
    %c0_21 = arith.constant 0 : index
    %47 = vector.load %arg4[%c4, %c0_21] : memref<16x128xf32, #tpu.memory_space<vmem>>, vector<1x32xf32>
    %48 = vector.broadcast %47 : vector<1x32xf32> to vector<256x32xf32>
    %49 = arith.addf %46, %48 : vector<256x32xf32>
    %50 = arith.truncf %39 : vector<256x32xf32> to vector<256x32xbf16>
    %51 = arith.truncf %44 : vector<256x32xf32> to vector<256x32xbf16>
    %cst_22 = arith.constant dense<0.000000e+00> : vector<256x256xf32>
    %52 = tpu.matmul %50, %51, %cst_22 {dimension_numbers = #tpu.dot_dimension_numbers<[1], [1], [0], [0], [0, 0, 1, 0], [], []>} : vector<256x32xbf16>, vector<256x32xbf16>, vector<256x256xf32> -> vector<256x256xf32>
    %cst_23 = arith.constant 0.176776692 : f32
    %53 = vector.broadcast %cst_23 : f32 to vector<256x256xf32>
    %54 = arith.mulf %52, %53 : vector<256x256xf32>
    %c0_24 = arith.constant 0 : index
    %c0_25 = arith.constant 0 : index
    %55 = vector.load %arg5[%c0_24, %c0_25] : memref<288x256xf32, #tpu.memory_space<vmem>>, vector<256x256xf32>
    %56 = arith.addf %54, %55 : vector<256x256xf32>
    %cst_26 = arith.constant dense<0xFF800000> : vector<256xf32>
    %57 = vector.multi_reduction <maximumf>, %56, %cst_26 [1] : vector<256x256xf32> to vector<256xf32>
    %58 = vector.shape_cast %57 : vector<256xf32> to vector<256x1xf32>
    %59 = vector.broadcast %58 : vector<256x1xf32> to vector<256x256xf32>
    %60 = arith.subf %56, %59 : vector<256x256xf32>
    %61 = math.exp %60 : vector<256x256xf32>
    %cst_27 = arith.constant dense<0.000000e+00> : vector<256xf32>
    %62 = vector.multi_reduction <add>, %61, %cst_27 [1] : vector<256x256xf32> to vector<256xf32>
    %63 = vector.shape_cast %62 : vector<256xf32> to vector<256x1xf32>
    %64 = tpu.reciprocal %63 {approx = true} : vector<256x1xf32> -> vector<256x1xf32>
    %65 = vector.broadcast %64 : vector<256x1xf32> to vector<256x256xf32>
    %66 = arith.mulf %61, %65 : vector<256x256xf32>
    %67 = arith.truncf %66 : vector<256x256xf32> to vector<256x256xbf16>
    %68 = arith.truncf %49 : vector<256x32xf32> to vector<256x32xbf16>
    %cst_28 = arith.constant dense<0.000000e+00> : vector<256x32xf32>
    %69 = tpu.matmul %67, %68, %cst_28 {dimension_numbers = #tpu.dot_dimension_numbers<[1], [0], [0], [1], [0, 0, 1, 1], [], []>} : vector<256x256xbf16>, vector<256x32xbf16>, vector<256x32xf32> -> vector<256x32xf32>
    %70 = arith.truncf %69 : vector<256x32xf32> to vector<256x32xbf16>
    %c96 = arith.constant 96 : index
    %c0_29 = arith.constant 0 : index
    %71 = vector.load %arg3[%c96, %c0_29] : memref<288x128xbf16, #tpu.memory_space<vmem>>, vector<32x32xbf16>
    %cst_30 = arith.constant dense<0.000000e+00> : vector<256x32xf32>
    %72 = tpu.matmul %70, %71, %cst_30 {dimension_numbers = #tpu.dot_dimension_numbers<[1], [0], [0], [1], [0, 0, 1, 1], [], []>} : vector<256x32xbf16>, vector<32x32xbf16>, vector<256x32xf32> -> vector<256x32xf32>
    %c5 = arith.constant 5 : index
    %c0_31 = arith.constant 0 : index
    %73 = vector.load %arg4[%c5, %c0_31] : memref<16x128xf32, #tpu.memory_space<vmem>>, vector<1x32xf32>
    %74 = vector.broadcast %73 : vector<1x32xf32> to vector<256x32xf32>
    %75 = arith.addf %72, %74 : vector<256x32xf32>
    %76 = arith.addf %33, %75 : vector<256x32xf32>
    %c6 = arith.constant 6 : index
    %c0_32 = arith.constant 0 : index
    %77 = vector.load %arg4[%c6, %c0_32] : memref<16x128xf32, #tpu.memory_space<vmem>>, vector<1x32xf32>
    %c7 = arith.constant 7 : index
    %c0_33 = arith.constant 0 : index
    %78 = vector.load %arg4[%c7, %c0_33] : memref<16x128xf32, #tpu.memory_space<vmem>>, vector<1x32xf32>
    %cst_34 = arith.constant dense<0.000000e+00> : vector<256xf32>
    %79 = vector.multi_reduction <add>, %76, %cst_34 [1] : vector<256x32xf32> to vector<256xf32>
    %80 = vector.shape_cast %79 : vector<256xf32> to vector<256x1xf32>
    %cst_35 = arith.constant 3.200000e+01 : f32
    %81 = vector.broadcast %cst_35 : f32 to vector<256x1xf32>
    %82 = arith.divf %80, %81 : vector<256x1xf32>
    %83 = vector.broadcast %82 : vector<256x1xf32> to vector<256x32xf32>
    %84 = arith.subf %76, %83 : vector<256x32xf32>
    %85 = arith.mulf %84, %84 : vector<256x32xf32>
    %cst_36 = arith.constant dense<0.000000e+00> : vector<256xf32>
    %86 = vector.multi_reduction <add>, %85, %cst_36 [1] : vector<256x32xf32> to vector<256xf32>
    %87 = vector.shape_cast %86 : vector<256xf32> to vector<256x1xf32>
    %cst_37 = arith.constant 3.200000e+01 : f32
    %88 = vector.broadcast %cst_37 : f32 to vector<256x1xf32>
    %89 = arith.divf %87, %88 : vector<256x1xf32>
    %90 = vector.broadcast %82 : vector<256x1xf32> to vector<256x32xf32>
    %91 = arith.subf %76, %90 : vector<256x32xf32>
    %cst_38 = arith.constant 9.99999996E-13 : f32
    %92 = vector.broadcast %cst_38 : f32 to vector<256x1xf32>
    %93 = arith.addf %89, %92 : vector<256x1xf32>
    %94 = math.rsqrt %93 : vector<256x1xf32>
    %95 = vector.broadcast %94 : vector<256x1xf32> to vector<256x32xf32>
    %96 = arith.mulf %91, %95 : vector<256x32xf32>
    %97 = vector.broadcast %77 : vector<1x32xf32> to vector<256x32xf32>
    %98 = arith.mulf %96, %97 : vector<256x32xf32>
    %99 = vector.broadcast %78 : vector<1x32xf32> to vector<256x32xf32>
    %100 = arith.addf %98, %99 : vector<256x32xf32>
    %101 = arith.truncf %100 : vector<256x32xf32> to vector<256x32xbf16>
    %c224 = arith.constant 224 : index
    %c0_39 = arith.constant 0 : index
    %102 = vector.load %arg3[%c224, %c0_39] : memref<288x128xbf16, #tpu.memory_space<vmem>>, vector<32x64xbf16>
    %cst_40 = arith.constant dense<0.000000e+00> : vector<256x64xf32>
    %103 = tpu.matmul %101, %102, %cst_40 {dimension_numbers = #tpu.dot_dimension_numbers<[1], [0], [0], [1], [0, 0, 1, 1], [], []>} : vector<256x32xbf16>, vector<32x64xbf16>, vector<256x64xf32> -> vector<256x64xf32>
    %c8 = arith.constant 8 : index
    %c0_41 = arith.constant 0 : index
    %104 = vector.load %arg4[%c8, %c0_41] : memref<16x128xf32, #tpu.memory_space<vmem>>, vector<1x64xf32>
    %105 = vector.broadcast %104 : vector<1x64xf32> to vector<256x64xf32>
    %106 = arith.addf %103, %105 : vector<256x64xf32>
    %cst_42 = arith.constant 0.000000e+00 : f32
    %107 = vector.broadcast %cst_42 : f32 to vector<256x64xf32>
    %108 = arith.maximumf %106, %107 : vector<256x64xf32>
    %109 = arith.truncf %108 : vector<256x64xf32> to vector<256x64xbf16>
    %c128_43 = arith.constant 128 : index
    %c0_44 = arith.constant 0 : index
    %110 = vector.load %arg3[%c128_43, %c0_44] : memref<288x128xbf16, #tpu.memory_space<vmem>>, vector<64x32xbf16>
    %cst_45 = arith.constant dense<0.000000e+00> : vector<256x32xf32>
    %111 = tpu.matmul %109, %110, %cst_45 {dimension_numbers = #tpu.dot_dimension_numbers<[1], [0], [0], [1], [0, 0, 1, 1], [], []>} : vector<256x64xbf16>, vector<64x32xbf16>, vector<256x32xf32> -> vector<256x32xf32>
    %c9 = arith.constant 9 : index
    %c0_46 = arith.constant 0 : index
    %112 = vector.load %arg4[%c9, %c0_46] : memref<16x128xf32, #tpu.memory_space<vmem>>, vector<1x32xf32>
    %113 = vector.broadcast %112 : vector<1x32xf32> to vector<256x32xf32>
    %114 = arith.addf %111, %113 : vector<256x32xf32>
    %115 = arith.addf %100, %114 : vector<256x32xf32>
    %c10 = arith.constant 10 : index
    %c0_47 = arith.constant 0 : index
    %116 = vector.load %arg4[%c10, %c0_47] : memref<16x128xf32, #tpu.memory_space<vmem>>, vector<1x32xf32>
    %c11 = arith.constant 11 : index
    %c0_48 = arith.constant 0 : index
    %117 = vector.load %arg4[%c11, %c0_48] : memref<16x128xf32, #tpu.memory_space<vmem>>, vector<1x32xf32>
    %cst_49 = arith.constant dense<0.000000e+00> : vector<256xf32>
    %118 = vector.multi_reduction <add>, %115, %cst_49 [1] : vector<256x32xf32> to vector<256xf32>
    %119 = vector.shape_cast %118 : vector<256xf32> to vector<256x1xf32>
    %cst_50 = arith.constant 3.200000e+01 : f32
    %120 = vector.broadcast %cst_50 : f32 to vector<256x1xf32>
    %121 = arith.divf %119, %120 : vector<256x1xf32>
    %122 = vector.broadcast %121 : vector<256x1xf32> to vector<256x32xf32>
    %123 = arith.subf %115, %122 : vector<256x32xf32>
    %124 = arith.mulf %123, %123 : vector<256x32xf32>
    %cst_51 = arith.constant dense<0.000000e+00> : vector<256xf32>
    %125 = vector.multi_reduction <add>, %124, %cst_51 [1] : vector<256x32xf32> to vector<256xf32>
    %126 = vector.shape_cast %125 : vector<256xf32> to vector<256x1xf32>
    %cst_52 = arith.constant 3.200000e+01 : f32
    %127 = vector.broadcast %cst_52 : f32 to vector<256x1xf32>
    %128 = arith.divf %126, %127 : vector<256x1xf32>
    %129 = vector.broadcast %121 : vector<256x1xf32> to vector<256x32xf32>
    %130 = arith.subf %115, %129 : vector<256x32xf32>
    %cst_53 = arith.constant 9.99999996E-13 : f32
    %131 = vector.broadcast %cst_53 : f32 to vector<256x1xf32>
    %132 = arith.addf %128, %131 : vector<256x1xf32>
    %133 = math.rsqrt %132 : vector<256x1xf32>
    %134 = vector.broadcast %133 : vector<256x1xf32> to vector<256x32xf32>
    %135 = arith.mulf %130, %134 : vector<256x32xf32>
    %136 = vector.broadcast %116 : vector<1x32xf32> to vector<256x32xf32>
    %137 = arith.mulf %135, %136 : vector<256x32xf32>
    %138 = vector.broadcast %117 : vector<1x32xf32> to vector<256x32xf32>
    %139 = arith.addf %137, %138 : vector<256x32xf32>
    %c256 = arith.constant 256 : index
    %c0_54 = arith.constant 0 : index
    %140 = vector.load %arg5[%c256, %c0_54] : memref<288x256xf32, #tpu.memory_space<vmem>>, vector<32x256xf32>
    %cst_55 = arith.constant dense<0.000000e+00> : vector<32x32xf32>
    %141 = tpu.matmul %140, %139, %cst_55 {dimension_numbers = #tpu.dot_dimension_numbers<[1], [0], [0], [1], [0, 0, 1, 1], [], []>} : vector<32x256xf32>, vector<256x32xf32>, vector<32x32xf32> -> vector<32x32xf32>
    %142 = arith.truncf %141 : vector<32x32xf32> to vector<32x32xbf16>
    %c192 = arith.constant 192 : index
    %c0_56 = arith.constant 0 : index
    %143 = vector.load %arg3[%c192, %c0_56] : memref<288x128xbf16, #tpu.memory_space<vmem>>, vector<32x32xbf16>
    %cst_57 = arith.constant dense<0.000000e+00> : vector<32x32xf32>
    %144 = tpu.matmul %142, %143, %cst_57 {dimension_numbers = #tpu.dot_dimension_numbers<[1], [0], [0], [1], [0, 0, 1, 1], [], []>} : vector<32x32xbf16>, vector<32x32xbf16>, vector<32x32xf32> -> vector<32x32xf32>
    %c12 = arith.constant 12 : index
    %c0_58 = arith.constant 0 : index
    %145 = vector.load %arg4[%c12, %c0_58] : memref<16x128xf32, #tpu.memory_space<vmem>>, vector<1x32xf32>
    %146 = vector.broadcast %145 : vector<1x32xf32> to vector<32x32xf32>
    %147 = arith.addf %144, %146 : vector<32x32xf32>
    %cst_59 = arith.constant 0.000000e+00 : f32
    %148 = vector.broadcast %cst_59 : f32 to vector<32x32xf32>
    %149 = arith.maximumf %147, %148 : vector<32x32xf32>
    %150 = arith.truncf %149 : vector<32x32xf32> to vector<32x32xbf16>
    %c256_60 = arith.constant 256 : index
    %c0_61 = arith.constant 0 : index
    %151 = vector.load %arg3[%c256_60, %c0_61] : memref<288x128xbf16, #tpu.memory_space<vmem>>, vector<32x128xbf16>
    %cst_62 = arith.constant dense<0.000000e+00> : vector<32x128xf32>
    %152 = tpu.matmul %150, %151, %cst_62 {dimension_numbers = #tpu.dot_dimension_numbers<[1], [0], [0], [1], [0, 0, 1, 1], [], []>} : vector<32x32xbf16>, vector<32x128xbf16>, vector<32x128xf32> -> vector<32x128xf32>
    %c13 = arith.constant 13 : index
    %c0_63 = arith.constant 0 : index
    %153 = vector.load %arg4[%c13, %c0_63] : memref<16x128xf32, #tpu.memory_space<vmem>>, vector<1x128xf32>
    %154 = vector.broadcast %153 : vector<1x128xf32> to vector<32x128xf32>
    %155 = arith.addf %152, %154 : vector<32x128xf32>
    %c0_64 = arith.constant 0 : index
    %c0_65 = arith.constant 0 : index
    %156 = vector.load %arg6[%c0_64, %c0_65] : memref<32x128xf32, #tpu.memory_space<vmem>>, vector<32x128xf32>
    tpu.vector_store %arg6[%c0_64, %c0_65], %155 {strides = array<i32>} : memref<32x128xf32, #tpu.memory_space<vmem>>, vector<32x128xf32>,
    return
  }
  func.func @transform_0(%arg0: i32) -> (i32, i32) {
    %c0_i32 = arith.constant 0 : i32
    %c0_i32_0 = arith.constant 0 : i32
    return %arg0, %c0_i32 : i32, i32
  }
  func.func @transform_1(%arg0: i32) -> (i32, i32) {
    %c0_i32 = arith.constant 0 : i32
    %c0_i32_0 = arith.constant 0 : i32
    %c0_i32_1 = arith.constant 0 : i32
    return %c0_i32, %c0_i32_0 : i32, i32
  }
  func.func @transform_2(%arg0: i32) -> (i32, i32) {
    %c0_i32 = arith.constant 0 : i32
    %c0_i32_0 = arith.constant 0 : i32
    %c0_i32_1 = arith.constant 0 : i32
    return %c0_i32, %c0_i32_0 : i32, i32
  }
  func.func @transform_3(%arg0: i32) -> (i32, i32) {
    %c0_i32 = arith.constant 0 : i32
    %c0_i32_0 = arith.constant 0 : i32
    %c0_i32_1 = arith.constant 0 : i32
    return %c0_i32, %c0_i32_0 : i32, i32
  }
  func.func @transform_4(%arg0: i32) -> (i32, i32) {
    %c0_i32 = arith.constant 0 : i32
    %c0_i32_0 = arith.constant 0 : i32
    %c0_i32_1 = arith.constant 0 : i32
    return %c0_i32, %c0_i32_0 : i32, i32
  }
  func.func @transform_5(%arg0: i32) -> (i32, i32) {
    %c0_i32 = arith.constant 0 : i32
    %c0_i32_0 = arith.constant 0 : i32
    return %arg0, %c0_i32 : i32, i32
  }
}

</mosaic_0001>

<llo_original>
// kernel: tpu_custom_call.1
$region0: #{tpu_custom_call.1}
  #allocation0 [shape = 'u32[]', space=smem, size = 0x4, offset = 0x4, fixed_abs, tag = 'smem constant byte address 0x4 - core index']
  #allocation1 [shape = 'u32[72,128]{1,0:T(1,128)}', space=vmem, size = 0x9000, scoped, tag = 'internal scratch']
  %s0 = inlined_call_operand.vmem [shape: s32[256,1], index: 0, kind: input, shape index: {}]
  %s1 = inlined_call_operand.vmem [shape: f32[384,32], index: 1, kind: input, shape index: {}]
  %s2 = inlined_call_operand.vmem [shape: bf16[288,128], index: 2, kind: input, shape index: {}]
  %s3 = inlined_call_operand.vmem [shape: f32[16,128], index: 3, kind: input, shape index: {}]
  %s4 = inlined_call_operand.vmem [shape: f32[288,256], index: 4, kind: input, shape index: {}]
  %s5 = inlined_call_operand.hbm [shape: f32[32,128], index: 5, kind: output, shape index: {}]
  %s6 = sld [smem:[#allocation0]]
  $region30: #{tpu_custom_call.1} parent=0
    _
  %s8 = ssub.s32 1, %s6
  %s9 = scalar_select 0, %s8, %s6
  $region1: #{tpu_custom_call.1} parent=0
    #allocation2 [shape = 'u8[16384]{0}', space=vmem, size = 0x4000, scoped, tag = 'output window, operand 0, single buffered']
    #allocation3 [shape = 's32[1]{0}', space=sflag, size = 0x4, scoped, tag = 'scoped memory for tpu_custom_call.1']
    %10 = vsyncpa [#allocation3], 0
    // Predicated region
    $region2: #{tpu_custom_call.1} parent=1 // pred_check
      _
    $region3: #{tpu_custom_call.1} parent=1 // pred_check_branch
      %12 = sbr.rel (0) target = $region5
    $region4: #{tpu_custom_call.1} parent=1 // pred_region
      _
    $region5: #{tpu_custom_call.1} parent=1 // pred_fallthru
      _
    // Predicated region
    $region6: #{tpu_custom_call.1} parent=1 // pred_check
      _
    $region7: #{tpu_custom_call.1} parent=1 // pred_check_branch
      %14 = sbr.rel (0) target = $region9
    $region8: #{tpu_custom_call.1} parent=1 // pred_region
      _
    $region9: #{tpu_custom_call.1} parent=1 // pred_fallthru
      _
    // Predicated region
    $region10: #{tpu_custom_call.1} parent=1 // pred_check
      _
    $region11: #{tpu_custom_call.1} parent=1 // pred_check_branch
      %16 = sbr.rel (0) target = $region13
    $region12: #{tpu_custom_call.1} parent=1 // pred_region
      _
    $region13: #{tpu_custom_call.1} parent=1 // pred_fallthru
      _
    // Predicated region
    $region14: #{tpu_custom_call.1} parent=1 // pred_check
      _
    $region15: #{tpu_custom_call.1} parent=1 // pred_check_branch
      %18 = sbr.rel (0) target = $region17
    $region16: #{tpu_custom_call.1} parent=1 // pred_region
      _
    $region17: #{tpu_custom_call.1} parent=1 // pred_fallthru
      _
    // Predicated region
    $region18: #{tpu_custom_call.1} parent=1 // pred_check
      _
    $region19: #{tpu_custom_call.1} parent=1 // pred_check_branch
      %20 = sbr.rel (0) target = $region21
    $region20: #{tpu_custom_call.1} parent=1 // pred_region
      _
    $region21: #{tpu_custom_call.1} parent=1 // pred_fallthru
      _
    %v22 = vld [vmem:[%s0] sm:$0xff]
    %v23 = vld [vmem:[%s0 + $0x8] sm:$0xff]
    %v24 = vld [vmem:[%s0 + $0x10] sm:$0xff]
    %v25 = vld [vmem:[%s0 + $0x18] sm:$0xff]
    %v26 = vld [vmem:[%s0 + $0x20] sm:$0xff]
    %v27 = vld [vmem:[%s0 + $0x28] sm:$0xff]
    %v28 = vld [vmem:[%s0 + $0x30] sm:$0xff]
    %v29 = vld [vmem:[%s0 + $0x38] sm:$0xff]
    %v30 = vld [vmem:[%s0 + $0x40] sm:$0xff]
    %v31 = vld [vmem:[%s0 + $0x48] sm:$0xff]
    %v32 = vld [vmem:[%s0 + $0x50] sm:$0xff]
    %v33 = vld [vmem:[%s0 + $0x58] sm:$0xff]
    %v34 = vld [vmem:[%s0 + $0x60] sm:$0xff]
    %v35 = vld [vmem:[%s0 + $0x68] sm:$0xff]
    %v36 = vld [vmem:[%s0 + $0x70] sm:$0xff]
    %v37 = vld [vmem:[%s0 + $0x78] sm:$0xff]
    %v38 = vld [vmem:[%s0 + $0x80] sm:$0xff]
    %v39 = vld [vmem:[%s0 + $0x88] sm:$0xff]
    %v40 = vld [vmem:[%s0 + $0x90] sm:$0xff]
    %v41 = vld [vmem:[%s0 + $0x98] sm:$0xff]
    %v42 = vld [vmem:[%s0 + $0xa0] sm:$0xff]
    %v43 = vld [vmem:[%s0 + $0xa8] sm:$0xff]
    %v44 = vld [vmem:[%s0 + $0xb0] sm:$0xff]
    %v45 = vld [vmem:[%s0 + $0xb8] sm:$0xff]
    %v46 = vld [vmem:[%s0 + $0xc0] sm:$0xff]
    %v47 = vld [vmem:[%s0 + $0xc8] sm:$0xff]
    %v48 = vld [vmem:[%s0 + $0xd0] sm:$0xff]
    %v49 = vld [vmem:[%s0 + $0xd8] sm:$0xff]
    %v50 = vld [vmem:[%s0 + $0xe0] sm:$0xff]
    %v51 = vld [vmem:[%s0 + $0xe8] sm:$0xff]
    %v52 = vld [vmem:[%s0 + $0xf0] sm:$0xff]
    %v53 = vld [vmem:[%s0 + $0xf8] sm:$0xff]
    %v54 = vlaneseq
    %v55 = vand.u32 %v54, 127
    %56 = vset.pattern.permute.xlu0 0
    %57 = vperm.xlu0 %56, %v22
    %v58 = vpop.permute.xlu0 %57
    %59 = vset.pattern.permute.xlu0 0
    %60 = vperm.xlu0 %59, %v23
    %v61 = vpop.permute.xlu0 %60
    %62 = vset.pattern.permute.xlu0 0
    %63 = vperm.xlu0 %62, %v24
    %v64 = vpop.permute.xlu0 %63
    %65 = vset.pattern.permute.xlu0 0
    %66 = vperm.xlu0 %65, %v25
    %v67 = vpop.permute.xlu0 %66
    %68 = vset.pattern.permute.xlu0 0
    %69 = vperm.xlu0 %68, %v26
    %v70 = vpop.permute.xlu0 %69
    %71 = vset.pattern.permute.xlu0 0
    %72 = vperm.xlu0 %71, %v27
    %v73 = vpop.permute.xlu0 %72
    %74 = vset.pattern.permute.xlu0 0
    %75 = vperm.xlu0 %74, %v28
    %v76 = vpop.permute.xlu0 %75
    %77 = vset.pattern.permute.xlu0 0
    %78 = vperm.xlu0 %77, %v29
    %v79 = vpop.permute.xlu0 %78
    %80 = vset.pattern.permute.xlu0 0
    %81 = vperm.xlu0 %80, %v30
    %v82 = vpop.permute.xlu0 %81
    %83 = vset.pattern.permute.xlu0 0
    %84 = vperm.xlu0 %83, %v31
    %v85 = vpop.permute.xlu0 %84
    %86 = vset.pattern.permute.xlu0 0
    %87 = vperm.xlu0 %86, %v32
    %v88 = vpop.permute.xlu0 %87
    %89 = vset.pattern.permute.xlu0 0
    %90 = vperm.xlu0 %89, %v33
    %v91 = vpop.permute.xlu0 %90
    %92 = vset.pattern.permute.xlu0 0
    %93 = vperm.xlu0 %92, %v34
    %v94 = vpop.permute.xlu0 %93
    %95 = vset.pattern.permute.xlu0 0
    %96 = vperm.xlu0 %95, %v35
    %v97 = vpop.permute.xlu0 %96
    %98 = vset.pattern.permute.xlu0 0
    %99 = vperm.xlu0 %98, %v36
    %v100 = vpop.permute.xlu0 %99
    %101 = vset.pattern.permute.xlu0 0
    %102 = vperm.xlu0 %101, %v37
    %v103 = vpop.permute.xlu0 %102
    %104 = vset.pattern.permute.xlu0 0
    %105 = vperm.xlu0 %104, %v38
    %v106 = vpop.permute.xlu0 %105
    %107 = vset.pattern.permute.xlu0 0
    %108 = vperm.xlu0 %107, %v39
    %v109 = vpop.permute.xlu0 %108
    %110 = vset.pattern.permute.xlu0 0
    %111 = vperm.xlu0 %110, %v40
    %v112 = vpop.permute.xlu0 %111
    %113 = vset.pattern.permute.xlu0 0
    %114 = vperm.xlu0 %113, %v41
    %v115 = vpop.permute.xlu0 %114
    %116 = vset.pattern.permute.xlu0 0
    %117 = vperm.xlu0 %116, %v42
    %v118 = vpop.permute.xlu0 %117
    %119 = vset.pattern.permute.xlu0 0
    %120 = vperm.xlu0 %119, %v43
    %v121 = vpop.permute.xlu0 %120
    %122 = vset.pattern.permute.xlu0 0
    %123 = vperm.xlu0 %122, %v44
    %v124 = vpop.permute.xlu0 %123
    %125 = vset.pattern.permute.xlu0 0
    %126 = vperm.xlu0 %125, %v45
    %v127 = vpop.permute.xlu0 %126
    %128 = vset.pattern.permute.xlu0 0
    %129 = vperm.xlu0 %128, %v46
    %v130 = vpop.permute.xlu0 %129
    %131 = vset.pattern.permute.xlu0 0
    %132 = vperm.xlu0 %131, %v47
    %v133 = vpop.permute.xlu0 %132
    %134 = vset.pattern.permute.xlu0 0
    %135 = vperm.xlu0 %134, %v48
    %v136 = vpop.permute.xlu0 %135
    %137 = vset.pattern.permute.xlu0 0
    %138 = vperm.xlu0 %137, %v49
    %v139 = vpop.permute.xlu0 %138
    %140 = vset.pattern.permute.xlu0 0
    %141 = vperm.xlu0 %140, %v50
    %v142 = vpop.permute.xlu0 %141
    %143 = vset.pattern.permute.xlu0 0
    %144 = vperm.xlu0 %143, %v51
    %v145 = vpop.permute.xlu0 %144
    %146 = vset.pattern.permute.xlu0 0
    %147 = vperm.xlu0 %146, %v52
    %v148 = vpop.permute.xlu0 %147
    %149 = vset.pattern.permute.xlu0 0
    %150 = vperm.xlu0 %149, %v53
    %v151 = vpop.permute.xlu0 %150
    %vm152 = vcmp.eq.s32.totalorder %v55, %v58
    %vm153 = vcmp.eq.s32.totalorder %v55, %v61
    %vm154 = vcmp.eq.s32.totalorder %v55, %v64
    %vm155 = vcmp.eq.s32.totalorder %v55, %v67
    %vm156 = vcmp.eq.s32.totalorder %v55, %v70
    %vm157 = vcmp.eq.s32.totalorder %v55, %v73
    %vm158 = vcmp.eq.s32.totalorder %v55, %v76
    %vm159 = vcmp.eq.s32.totalorder %v55, %v79
    %vm160 = vcmp.eq.s32.totalorder %v55, %v82
    %vm161 = vcmp.eq.s32.totalorder %v55, %v85
    %vm162 = vcmp.eq.s32.totalorder %v55, %v88
    %vm163 = vcmp.eq.s32.totalorder %v55, %v91
    %vm164 = vcmp.eq.s32.totalorder %v55, %v94
    %vm165 = vcmp.eq.s32.totalorder %v55, %v97
    %vm166 = vcmp.eq.s32.totalorder %v55, %v100
    %vm167 = vcmp.eq.s32.totalorder %v55, %v103
    %vm168 = vcmp.eq.s32.totalorder %v55, %v106
    %vm169 = vcmp.eq.s32.totalorder %v55, %v109
    %vm170 = vcmp.eq.s32.totalorder %v55, %v112
    %vm171 = vcmp.eq.s32.totalorder %v55, %v115
    %vm172 = vcmp.eq.s32.totalorder %v55, %v118
    %vm173 = vcmp.eq.s32.totalorder %v55, %v121
    %vm174 = vcmp.eq.s32.totalorder %v55, %v124
    %vm175 = vcmp.eq.s32.totalorder %v55, %v127
    %vm176 = vcmp.eq.s32.totalorder %v55, %v130
    %vm177 = vcmp.eq.s32.totalorder %v55, %v133
    %vm178 = vcmp.eq.s32.totalorder %v55, %v136
    %vm179 = vcmp.eq.s32.totalorder %v55, %v139
    %vm180 = vcmp.eq.s32.totalorder %v55, %v142
    %vm181 = vcmp.eq.s32.totalorder %v55, %v145
    %vm182 = vcmp.eq.s32.totalorder %v55, %v148
    %vm183 = vcmp.eq.s32.totalorder %v55, %v151
    %v184 = vsel %vm152, 1, 0
    %v185 = vsel %vm153, 1, 0
    %v186 = vsel %vm154, 1, 0
    %v187 = vsel %vm155, 1, 0
    %v188 = vsel %vm156, 1, 0
    %v189 = vsel %vm157, 1, 0
    %v190 = vsel %vm158, 1, 0
    %v191 = vsel %vm159, 1, 0
    %v192 = vsel %vm160, 1, 0
    %v193 = vsel %vm161, 1, 0
    %v194 = vsel %vm162, 1, 0
    %v195 = vsel %vm163, 1, 0
    %v196 = vsel %vm164, 1, 0
    %v197 = vsel %vm165, 1, 0
    %v198 = vsel %vm166, 1, 0
    %v199 = vsel %vm167, 1, 0
    %v200 = vsel %vm168, 1, 0
    %v201 = vsel %vm169, 1, 0
    %v202 = vsel %vm170, 1, 0
    %v203 = vsel %vm171, 1, 0
    %v204 = vsel %vm172, 1, 0
    %v205 = vsel %vm173, 1, 0
    %v206 = vsel %vm174, 1, 0
    %v207 = vsel %vm175, 1, 0
    %v208 = vsel %vm176, 1, 0
    %v209 = vsel %vm177, 1, 0
    %v210 = vsel %vm178, 1, 0
    %v211 = vsel %vm179, 1, 0
    %v212 = vsel %vm180, 1, 0
    %v213 = vsel %vm181, 1, 0
    %v214 = vsel %vm182, 1, 0
    %v215 = vsel %vm183, 1, 0
    %v216 = vcvt.s32.f32 %v184
    %v217 = vcvt.s32.f32 %v185
    %v218 = vcvt.s32.f32 %v186
    %v219 = vcvt.s32.f32 %v187
    %v220 = vcvt.s32.f32 %v188
    %v221 = vcvt.s32.f32 %v189
    %v222 = vcvt.s32.f32 %v190
    %v223 = vcvt.s32.f32 %v191
    %v224 = vcvt.s32.f32 %v192
    %v225 = vcvt.s32.f32 %v193
    %v226 = vcvt.s32.f32 %v194
    %v227 = vcvt.s32.f32 %v195
    %v228 = vcvt.s32.f32 %v196
    %v229 = vcvt.s32.f32 %v197
    %v230 = vcvt.s32.f32 %v198
    %v231 = vcvt.s32.f32 %v199
    %v232 = vcvt.s32.f32 %v200
    %v233 = vcvt.s32.f32 %v201
    %v234 = vcvt.s32.f32 %v202
    %v235 = vcvt.s32.f32 %v203
    %v236 = vcvt.s32.f32 %v204
    %v237 = vcvt.s32.f32 %v205
    %v238 = vcvt.s32.f32 %v206
    %v239 = vcvt.s32.f32 %v207
    %v240 = vcvt.s32.f32 %v208
    %v241 = vcvt.s32.f32 %v209
    %v242 = vcvt.s32.f32 %v210
    %v243 = vcvt.s32.f32 %v211
    %v244 = vcvt.s32.f32 %v212
    %v245 = vcvt.s32.f32 %v213
    %v246 = vcvt.s32.f32 %v214
    %v247 = vcvt.s32.f32 %v215
    %v248 = vld [vmem:[%s1] sm:$0xff]
    %v249 = vld [vmem:[%s1 + $0x8] sm:$0xff]
    %v250 = vld [vmem:[%s1 + $0x10] sm:$0xff]
    %v251 = vld [vmem:[%s1 + $0x18] sm:$0xff]
    %v252 = vld [vmem:[%s1 + $0x20] sm:$0xff]
    %v253 = vld [vmem:[%s1 + $0x28] sm:$0xff]
    %v254 = vld [vmem:[%s1 + $0x30] sm:$0xff]
    %v255 = vld [vmem:[%s1 + $0x38] sm:$0xff]
    %v256 = vld [vmem:[%s1 + $0x40] sm:$0xff]
    %v257 = vld [vmem:[%s1 + $0x48] sm:$0xff]
    %v258 = vld [vmem:[%s1 + $0x50] sm:$0xff]
    %v259 = vld [vmem:[%s1 + $0x58] sm:$0xff]
    %v260 = vld [vmem:[%s1 + $0x60] sm:$0xff]
    %v261 = vld [vmem:[%s1 + $0x68] sm:$0xff]
    %v262 = vld [vmem:[%s1 + $0x70] sm:$0xff]
    %v263 = vld [vmem:[%s1 + $0x78] sm:$0xff]
    %v264 = vld [vmem:[%s1 + $0x80] sm:$0xff]
    %v265 = vld [vmem:[%s1 + $0x88] sm:$0xff]
    %v266 = vld [vmem:[%s1 + $0x90] sm:$0xff]
    %v267 = vld [vmem:[%s1 + $0x98] sm:$0xff]
    %v268 = vld [vmem:[%s1 + $0xa0] sm:$0xff]
    %v269 = vld [vmem:[%s1 + $0xa8] sm:$0xff]
    %v270 = vld [vmem:[%s1 + $0xb0] sm:$0xff]
    %v271 = vld [vmem:[%s1 + $0xb8] sm:$0xff]
    %v272 = vld [vmem:[%s1 + $0xc0] sm:$0xff]
    %v273 = vld [vmem:[%s1 + $0xc8] sm:$0xff]
    %v274 = vld [vmem:[%s1 + $0xd0] sm:$0xff]
    %v275 = vld [vmem:[%s1 + $0xd8] sm:$0xff]
    %v276 = vld [vmem:[%s1 + $0xe0] sm:$0xff]
    %v277 = vld [vmem:[%s1 + $0xe8] sm:$0xff]
    %v278 = vld [vmem:[%s1 + $0xf0] sm:$0xff]
    %v279 = vld [vmem:[%s1 + $0xf8] sm:$0xff]
    %v280 = vld [vmem:[%s1 + $0x100] sm:$0xff]
    %v281 = vld [vmem:[%s1 + $0x108] sm:$0xff]
    %v282 = vld [vmem:[%s1 + $0x110] sm:$0xff]
    %v283 = vld [vmem:[%s1 + $0x118] sm:$0xff]
    %v284 = vld [vmem:[%s1 + $0x120] sm:$0xff]
    %v285 = vld [vmem:[%s1 + $0x128] sm:$0xff]
    %v286 = vld [vmem:[%s1 + $0x130] sm:$0xff]
    %v287 = vld [vmem:[%s1 + $0x138] sm:$0xff]
    %v288 = vld [vmem:[%s1 + $0x140] sm:$0xff]
    %v289 = vld [vmem:[%s1 + $0x148] sm:$0xff]
    %v290 = vld [vmem:[%s1 + $0x150] sm:$0xff]
    %v291 = vld [vmem:[%s1 + $0x158] sm:$0xff]
    %v292 = vld [vmem:[%s1 + $0x160] sm:$0xff]
    %v293 = vld [vmem:[%s1 + $0x168] sm:$0xff]
    %v294 = vld [vmem:[%s1 + $0x170] sm:$0xff]
    %v295 = vld [vmem:[%s1 + $0x178] sm:$0xff]
    %296 = vmatpush.msra.mxu0 %v263
    %297 = vmatpush.msra.mxu0 %v262
    %298 = vmatpush.msra.mxu0 %v261
    %299 = vmatpush.msra.mxu0 %v260
    %300 = vmatpush.msra.mxu0 %v259
    %301 = vmatpush.msra.mxu0 %v258
    %302 = vmatpush.msra.mxu0 %v257
    %303 = vmatpush.msra.mxu0 %v256
    %304 = vmatpush.msra.mxu0 %v255
    %305 = vmatpush.msra.mxu0 %v254
    %306 = vmatpush.msra.mxu0 %v253
    %307 = vmatpush.msra.mxu0 %v252
    %308 = vmatpush.msra.mxu0 %v251
    %309 = vmatpush.msra.mxu0 %v250
    %310 = vmatpush.msra.mxu0 %v249
    %311 = vmatpush.msra.mxu0 %v248
    %312 = vmatmul.f32.gmra.mxu0 %v216
    %v313 = vpop.f32.mrf.mxu0
    %v314 = vadd.f32 %v264, %v313
    %315 = vmatmul.f32.gmra.mxu0 %v217
    %v316 = vpop.f32.mrf.mxu0
    %v317 = vadd.f32 %v265, %v316
    %318 = vmatmul.f32.gmra.mxu0 %v218
    %v319 = vpop.f32.mrf.mxu0
    %v320 = vadd.f32 %v266, %v319
    %321 = vmatmul.f32.gmra.mxu0 %v219
    %v322 = vpop.f32.mrf.mxu0
    %v323 = vadd.f32 %v267, %v322
    %324 = vmatmul.f32.gmra.mxu0 %v220
    %v325 = vpop.f32.mrf.mxu0
    %v326 = vadd.f32 %v268, %v325
    %327 = vmatmul.f32.gmra.mxu0 %v221
    %v328 = vpop.f32.mrf.mxu0
    %v329 = vadd.f32 %v269, %v328
    %330 = vmatmul.f32.gmra.mxu0 %v222
    %v331 = vpop.f32.mrf.mxu0
    %v332 = vadd.f32 %v270, %v331
    %333 = vmatmul.f32.gmra.mxu0 %v223
    %v334 = vpop.f32.mrf.mxu0
    %v335 = vadd.f32 %v271, %v334
    %336 = vmatmul.f32.gmra.mxu0 %v224
    %v337 = vpop.f32.mrf.mxu0
    %v338 = vadd.f32 %v272, %v337
    %339 = vmatmul.f32.gmra.mxu0 %v225
    %v340 = vpop.f32.mrf.mxu0
    %v341 = vadd.f32 %v273, %v340
    %342 = vmatmul.f32.gmra.mxu0 %v226
    %v343 = vpop.f32.mrf.mxu0
    %v344 = vadd.f32 %v274, %v343
    %345 = vmatmul.f32.gmra.mxu0 %v227
    %v346 = vpop.f32.mrf.mxu0
    %v347 = vadd.f32 %v275, %v346
    %348 = vmatmul.f32.gmra.mxu0 %v228
    %v349 = vpop.f32.mrf.mxu0
    %v350 = vadd.f32 %v276, %v349
    %351 = vmatmul.f32.gmra.mxu0 %v229
    %v352 = vpop.f32.mrf.mxu0
    %v353 = vadd.f32 %v277, %v352
    %354 = vmatmul.f32.gmra.mxu0 %v230
    %v355 = vpop.f32.mrf.mxu0
    %v356 = vadd.f32 %v278, %v355
    %357 = vmatmul.f32.gmra.mxu0 %v231
    %v358 = vpop.f32.mrf.mxu0
    %v359 = vadd.f32 %v279, %v358
    %360 = vmatmul.f32.gmra.mxu0 %v232
    %v361 = vpop.f32.mrf.mxu0
    %v362 = vadd.f32 %v280, %v361
    %363 = vmatmul.f32.gmra.mxu0 %v233
    %v364 = vpop.f32.mrf.mxu0
    %v365 = vadd.f32 %v281, %v364
    %366 = vmatmul.f32.gmra.mxu0 %v234
    %v367 = vpop.f32.mrf.mxu0
    %v368 = vadd.f32 %v282, %v367
    %369 = vmatmul.f32.gmra.mxu0 %v235
    %v370 = vpop.f32.mrf.mxu0
    %v371 = vadd.f32 %v283, %v370
    %372 = vmatmul.f32.gmra.mxu0 %v236
    %v373 = vpop.f32.mrf.mxu0
    %v374 = vadd.f32 %v284, %v373
    %375 = vmatmul.f32.gmra.mxu0 %v237
    %v376 = vpop.f32.mrf.mxu0
    %v377 = vadd.f32 %v285, %v376
    %378 = vmatmul.f32.gmra.mxu0 %v238
    %v379 = vpop.f32.mrf.mxu0
    %v380 = vadd.f32 %v286, %v379
    %381 = vmatmul.f32.gmra.mxu0 %v239
    %v382 = vpop.f32.mrf.mxu0
    %v383 = vadd.f32 %v287, %v382
    %384 = vmatmul.f32.gmra.mxu0 %v240
    %v385 = vpop.f32.mrf.mxu0
    %v386 = vadd.f32 %v288, %v385
    %387 = vmatmul.f32.gmra.mxu0 %v241
    %v388 = vpop.f32.mrf.mxu0
    %v389 = vadd.f32 %v289, %v388
    %390 = vmatmul.f32.gmra.mxu0 %v242
    %v391 = vpop.f32.mrf.mxu0
    %v392 = vadd.f32 %v290, %v391
    %393 = vmatmul.f32.gmra.mxu0 %v243
    %v394 = vpop.f32.mrf.mxu0
    %v395 = vadd.f32 %v291, %v394
    %396 = vmatmul.f32.gmra.mxu0 %v244
    %v397 = vpop.f32.mrf.mxu0
    %v398 = vadd.f32 %v292, %v397
    %399 = vmatmul.f32.gmra.mxu0 %v245
    %v400 = vpop.f32.mrf.mxu0
    %v401 = vadd.f32 %v293, %v400
    %402 = vmatmul.f32.gmra.mxu0 %v246
    %v403 = vpop.f32.mrf.mxu0
    %v404 = vadd.f32 %v294, %v403
    %405 = vmatmul.f32.gmra.mxu0 %v247
    %v406 = vpop.f32.mrf.mxu0
    %v407 = vadd.f32 %v295, %v406
    %408 = vdwg.mxu0
    %v409 = vld [vmem:[%s3] sm:$0x1]
    %v410 = vld [vmem:[%s3 + $0x1] sm:$0x1]
    %vm411 = vcmask 261120
    %v412 = vsel %vm411, %v314, 0.0
    %413 = vadd.xlane.f32.xlu0 %v412
    %v414 = vpop.xlane.xlu0 %413
    %v415 = vsel %vm411, %v317, 0.0
    %416 = vadd.xlane.f32.xlu0 %v415
    %v417 = vpop.xlane.xlu0 %416
    %v418 = vsel %vm411, %v320, 0.0
    %419 = vadd.xlane.f32.xlu0 %v418
    %v420 = vpop.xlane.xlu0 %419
    %v421 = vsel %vm411, %v323, 0.0
    %422 = vadd.xlane.f32.xlu0 %v421
    %v423 = vpop.xlane.xlu0 %422
    %v424 = vsel %vm411, %v326, 0.0
    %425 = vadd.xlane.f32.xlu0 %v424
    %v426 = vpop.xlane.xlu0 %425
    %v427 = vsel %vm411, %v329, 0.0
    %428 = vadd.xlane.f32.xlu0 %v427
    %v429 = vpop.xlane.xlu0 %428
    %v430 = vsel %vm411, %v332, 0.0
    %431 = vadd.xlane.f32.xlu0 %v430
    %v432 = vpop.xlane.xlu0 %431
    %v433 = vsel %vm411, %v335, 0.0
    %434 = vadd.xlane.f32.xlu0 %v433
    %v435 = vpop.xlane.xlu0 %434
    %v436 = vsel %vm411, %v338, 0.0
    %437 = vadd.xlane.f32.xlu0 %v436
    %v438 = vpop.xlane.xlu0 %437
    %v439 = vsel %vm411, %v341, 0.0
    %440 = vadd.xlane.f32.xlu0 %v439
    %v441 = vpop.xlane.xlu0 %440
    %v442 = vsel %vm411, %v344, 0.0
    %443 = vadd.xlane.f32.xlu0 %v442
    %v444 = vpop.xlane.xlu0 %443
    %v445 = vsel %vm411, %v347, 0.0
    %446 = vadd.xlane.f32.xlu0 %v445
    %v447 = vpop.xlane.xlu0 %446
    %v448 = vsel %vm411, %v350, 0.0
    %449 = vadd.xlane.f32.xlu0 %v448
    %v450 = vpop.xlane.xlu0 %449
    %v451 = vsel %vm411, %v353, 0.0
    %452 = vadd.xlane.f32.xlu0 %v451
    %v453 = vpop.xlane.xlu0 %452
    %v454 = vsel %vm411, %v356, 0.0
    %455 = vadd.xlane.f32.xlu0 %v454
    %v456 = vpop.xlane.xlu0 %455
    %v457 = vsel %vm411, %v359, 0.0
    %458 = vadd.xlane.f32.xlu0 %v457
    %v459 = vpop.xlane.xlu0 %458
    %v460 = vsel %vm411, %v362, 0.0
    %461 = vadd.xlane.f32.xlu0 %v460
    %v462 = vpop.xlane.xlu0 %461
    %v463 = vsel %vm411, %v365, 0.0
    %464 = vadd.xlane.f32.xlu0 %v463
    %v465 = vpop.xlane.xlu0 %464
    %v466 = vsel %vm411, %v368, 0.0
    %467 = vadd.xlane.f32.xlu0 %v466
    %v468 = vpop.xlane.xlu0 %467
    %v469 = vsel %vm411, %v371, 0.0
    %470 = vadd.xlane.f32.xlu0 %v469
    %v471 = vpop.xlane.xlu0 %470
    %v472 = vsel %vm411, %v374, 0.0
    %473 = vadd.xlane.f32.xlu0 %v472
    %v474 = vpop.xlane.xlu0 %473
    %v475 = vsel %vm411, %v377, 0.0
    %476 = vadd.xlane.f32.xlu0 %v475
    %v477 = vpop.xlane.xlu0 %476
    %v478 = vsel %vm411, %v380, 0.0
    %479 = vadd.xlane.f32.xlu0 %v478
    %v480 = vpop.xlane.xlu0 %479
    %v481 = vsel %vm411, %v383, 0.0
    %482 = vadd.xlane.f32.xlu0 %v481
    %v483 = vpop.xlane.xlu0 %482
    %v484 = vsel %vm411, %v386, 0.0
    %485 = vadd.xlane.f32.xlu0 %v484
    %v486 = vpop.xlane.xlu0 %485
    %v487 = vsel %vm411, %v389, 0.0
    %488 = vadd.xlane.f32.xlu0 %v487
    %v489 = vpop.xlane.xlu0 %488
    %v490 = vsel %vm411, %v392, 0.0
    %491 = vadd.xlane.f32.xlu0 %v490
    %v492 = vpop.xlane.xlu0 %491
    %v493 = vsel %vm411, %v395, 0.0
    %494 = vadd.xlane.f32.xlu0 %v493
    %v495 = vpop.xlane.xlu0 %494
    %v496 = vsel %vm411, %v398, 0.0
    %497 = vadd.xlane.f32.xlu0 %v496
    %v498 = vpop.xlane.xlu0 %497
    %v499 = vsel %vm411, %v401, 0.0
    %500 = vadd.xlane.f32.xlu0 %v499
    %v501 = vpop.xlane.xlu0 %500
    %v502 = vsel %vm411, %v404, 0.0
    %503 = vadd.xlane.f32.xlu0 %v502
    %v504 = vpop.xlane.xlu0 %503
    %v505 = vsel %vm411, %v407, 0.0
    %506 = vadd.xlane.f32.xlu0 %v505
    %v507 = vpop.xlane.xlu0 %506
    %v508 = vrcp.pop 32.0
    %v509 = vmul.f32 32.0, %v508
    %v510 = vsub.f32 1.0, %v509
    %v511 = vmul.f32 %v508, %v510
    %v512 = vadd.f32 %v508, %v511
    %vm513 = vweird.f32 %v508
    %v514 = vsel %vm513, %v508, %v512
    %v515 = vmul.f32 %v414, %v514
    %v516 = vmul.f32 %v417, %v514
    %v517 = vmul.f32 %v420, %v514
    %v518 = vmul.f32 %v423, %v514
    %v519 = vmul.f32 %v426, %v514
    %v520 = vmul.f32 %v429, %v514
    %v521 = vmul.f32 %v432, %v514
    %v522 = vmul.f32 %v435, %v514
    %v523 = vmul.f32 %v438, %v514
    %v524 = vmul.f32 %v441, %v514
    %v525 = vmul.f32 %v444, %v514
    %v526 = vmul.f32 %v447, %v514
    %v527 = vmul.f32 %v450, %v514
    %v528 = vmul.f32 %v453, %v514
    %v529 = vmul.f32 %v456, %v514
    %v530 = vmul.f32 %v459, %v514
    %v531 = vmul.f32 %v462, %v514
    %v532 = vmul.f32 %v465, %v514
    %v533 = vmul.f32 %v468, %v514
    %v534 = vmul.f32 %v471, %v514
    %v535 = vmul.f32 %v474, %v514
    %v536 = vmul.f32 %v477, %v514
    %v537 = vmul.f32 %v480, %v514
    %v538 = vmul.f32 %v483, %v514
    %v539 = vmul.f32 %v486, %v514
    %v540 = vmul.f32 %v489, %v514
    %v541 = vmul.f32 %v492, %v514
    %v542 = vmul.f32 %v495, %v514
    %v543 = vmul.f32 %v498, %v514
    %v544 = vmul.f32 %v501, %v514
    %v545 = vmul.f32 %v504, %v514
    %v546 = vmul.f32 %v507, %v514
    %v547 = vsub.f32 %v314, %v515
    %v548 = vsub.f32 %v317, %v516
    %v549 = vsub.f32 %v320, %v517
    %v550 = vsub.f32 %v323, %v518
    %v551 = vsub.f32 %v326, %v519
    %v552 = vsub.f32 %v329, %v520
    %v553 = vsub.f32 %v332, %v521
    %v554 = vsub.f32 %v335, %v522
    %v555 = vsub.f32 %v338, %v523
    %v556 = vsub.f32 %v341, %v524
    %v557 = vsub.f32 %v344, %v525
    %v558 = vsub.f32 %v347, %v526
    %v559 = vsub.f32 %v350, %v527
    %v560 = vsub.f32 %v353, %v528
    %v561 = vsub.f32 %v356, %v529
    %v562 = vsub.f32 %v359, %v530
    %v563 = vsub.f32 %v362, %v531
    %v564 = vsub.f32 %v365, %v532
    %v565 = vsub.f32 %v368, %v533
    %v566 = vsub.f32 %v371, %v534
    %v567 = vsub.f32 %v374, %v535
    %v568 = vsub.f32 %v377, %v536
    %v569 = vsub.f32 %v380, %v537
    %v570 = vsub.f32 %v383, %v538
    %v571 = vsub.f32 %v386, %v539
    %v572 = vsub.f32 %v389, %v540
    %v573 = vsub.f32 %v392, %v541
    %v574 = vsub.f32 %v395, %v542
    %v575 = vsub.f32 %v398, %v543
    %v576 = vsub.f32 %v401, %v544
    %v577 = vsub.f32 %v404, %v545
    %v578 = vsub.f32 %v407, %v546
    %v579 = vmul.f32 %v547, %v547
    %v580 = vmul.f32 %v548, %v548
    %v581 = vmul.f32 %v549, %v549
    %v582 = vmul.f32 %v550, %v550
    %v583 = vmul.f32 %v551, %v551
    %v584 = vmul.f32 %v552, %v552
    %v585 = vmul.f32 %v553, %v553
    %v586 = vmul.f32 %v554, %v554
    %v587 = vmul.f32 %v555, %v555
    %v588 = vmul.f32 %v556, %v556
    %v589 = vmul.f32 %v557, %v557
    %v590 = vmul.f32 %v558, %v558
    %v591 = vmul.f32 %v559, %v559
    %v592 = vmul.f32 %v560, %v560
    %v593 = vmul.f32 %v561, %v561
    %v594 = vmul.f32 %v562, %v562
    %v595 = vmul.f32 %v563, %v563
    %v596 = vmul.f32 %v564, %v564
    %v597 = vmul.f32 %v565, %v565
    %v598 = vmul.f32 %v566, %v566
    %v599 = vmul.f32 %v567, %v567
    %v600 = vmul.f32 %v568, %v568
    %v601 = vmul.f32 %v569, %v569
    %v602 = vmul.f32 %v570, %v570
    %v603 = vmul.f32 %v571, %v571
    %v604 = vmul.f32 %v572, %v572
    %v605 = vmul.f32 %v573, %v573
    %v606 = vmul.f32 %v574, %v574
    %v607 = vmul.f32 %v575, %v575
    %v608 = vmul.f32 %v576, %v576
    %v609 = vmul.f32 %v577, %v577
    %v610 = vmul.f32 %v578, %v578
    %v611 = vsel %vm411, %v579, 0.0
    %612 = vadd.xlane.f32.xlu0 %v611
    %v613 = vpop.xlane.xlu0 %612
    %v614 = vsel %vm411, %v580, 0.0
    %615 = vadd.xlane.f32.xlu0 %v614
    %v616 = vpop.xlane.xlu0 %615
    %v617 = vsel %vm411, %v581, 0.0
    %618 = vadd.xlane.f32.xlu0 %v617
    %v619 = vpop.xlane.xlu0 %618
    %v620 = vsel %vm411, %v582, 0.0
    %621 = vadd.xlane.f32.xlu0 %v620
    %v622 = vpop.xlane.xlu0 %621
    %v623 = vsel %vm411, %v583, 0.0
    %624 = vadd.xlane.f32.xlu0 %v623
    %v625 = vpop.xlane.xlu0 %624
    %v626 = vsel %vm411, %v584, 0.0
    %627 = vadd.xlane.f32.xlu0 %v626
    %v628 = vpop.xlane.xlu0 %627
    %v629 = vsel %vm411, %v585, 0.0
    %630 = vadd.xlane.f32.xlu0 %v629
    %v631 = vpop.xlane.xlu0 %630
    %v632 = vsel %vm411, %v586, 0.0
    %633 = vadd.xlane.f32.xlu0 %v632
    %v634 = vpop.xlane.xlu0 %633
    %v635 = vsel %vm411, %v587, 0.0
    %636 = vadd.xlane.f32.xlu0 %v635
    %v637 = vpop.xlane.xlu0 %636
    %v638 = vsel %vm411, %v588, 0.0
    %639 = vadd.xlane.f32.xlu0 %v638
    %v640 = vpop.xlane.xlu0 %639
    %v641 = vsel %vm411, %v589, 0.0
    %642 = vadd.xlane.f32.xlu0 %v641
    %v643 = vpop.xlane.xlu0 %642
    %v644 = vsel %vm411, %v590, 0.0
    %645 = vadd.xlane.f32.xlu0 %v644
    %v646 = vpop.xlane.xlu0 %645
    %v647 = vsel %vm411, %v591, 0.0
    %648 = vadd.xlane.f32.xlu0 %v647
    %v649 = vpop.xlane.xlu0 %648
    %v650 = vsel %vm411, %v592, 0.0
    %651 = vadd.xlane.f32.xlu0 %v650
    %v652 = vpop.xlane.xlu0 %651
    %v653 = vsel %vm411, %v593, 0.0
    %654 = vadd.xlane.f32.xlu0 %v653
    %v655 = vpop.xlane.xlu0 %654
    %v656 = vsel %vm411, %v594, 0.0
    %657 = vadd.xlane.f32.xlu0 %v656
    %v658 = vpop.xlane.xlu0 %657
    %v659 = vsel %vm411, %v595, 0.0
    %660 = vadd.xlane.f32.xlu0 %v659
    %v661 = vpop.xlane.xlu0 %660
    %v662 = vsel %vm411, %v596, 0.0
    %663 = vadd.xlane.f32.xlu0 %v662
    %v664 = vpop.xlane.xlu0 %663
    %v665 = vsel %vm411, %v597, 0.0
    %666 = vadd.xlane.f32.xlu0 %v665
    %v667 = vpop.xlane.xlu0 %666
    %v668 = vsel %vm411, %v598, 0.0
    %669 = vadd.xlane.f32.xlu0 %v668
    %v670 = vpop.xlane.xlu0 %669
    %v671 = vsel %vm411, %v599, 0.0
    %672 = vadd.xlane.f32.xlu0 %v671
    %v673 = vpop.xlane.xlu0 %672
    %v674 = vsel %vm411, %v600, 0.0
    %675 = vadd.xlane.f32.xlu0 %v674
    %v676 = vpop.xlane.xlu0 %675
    %v677 = vsel %vm411, %v601, 0.0
    %678 = vadd.xlane.f32.xlu0 %v677
    %v679 = vpop.xlane.xlu0 %678
    %v680 = vsel %vm411, %v602, 0.0
    %681 = vadd.xlane.f32.xlu0 %v680
    %v682 = vpop.xlane.xlu0 %681
    %v683 = vsel %vm411, %v603, 0.0
    %684 = vadd.xlane.f32.xlu0 %v683
    %v685 = vpop.xlane.xlu0 %684
    %v686 = vsel %vm411, %v604, 0.0
    %687 = vadd.xlane.f32.xlu0 %v686
    %v688 = vpop.xlane.xlu0 %687
    %v689 = vsel %vm411, %v605, 0.0
    %690 = vadd.xlane.f32.xlu0 %v689
    %v691 = vpop.xlane.xlu0 %690
    %v692 = vsel %vm411, %v606, 0.0
    %693 = vadd.xlane.f32.xlu0 %v692
    %v694 = vpop.xlane.xlu0 %693
    %v695 = vsel %vm411, %v607, 0.0
    %696 = vadd.xlane.f32.xlu0 %v695
    %v697 = vpop.xlane.xlu0 %696
    %v698 = vsel %vm411, %v608, 0.0
    %699 = vadd.xlane.f32.xlu0 %v698
    %v700 = vpop.xlane.xlu0 %699
    %v701 = vsel %vm411, %v609, 0.0
    %702 = vadd.xlane.f32.xlu0 %v701
    %v703 = vpop.xlane.xlu0 %702
    %v704 = vsel %vm411, %v610, 0.0
    %705 = vadd.xlane.f32.xlu0 %v704
    %v706 = vpop.xlane.xlu0 %705
    %v707 = vmul.f32 %v613, %v514
    %v708 = vmul.f32 %v616, %v514
    %v709 = vmul.f32 %v619, %v514
    %v710 = vmul.f32 %v622, %v514
    %v711 = vmul.f32 %v625, %v514
    %v712 = vmul.f32 %v628, %v514
    %v713 = vmul.f32 %v631, %v514
    %v714 = vmul.f32 %v634, %v514
    %v715 = vmul.f32 %v637, %v514
    %v716 = vmul.f32 %v640, %v514
    %v717 = vmul.f32 %v643, %v514
    %v718 = vmul.f32 %v646, %v514
    %v719 = vmul.f32 %v649, %v514
    %v720 = vmul.f32 %v652, %v514
    %v721 = vmul.f32 %v655, %v514
    %v722 = vmul.f32 %v658, %v514
    %v723 = vmul.f32 %v661, %v514
    %v724 = vmul.f32 %v664, %v514
    %v725 = vmul.f32 %v667, %v514
    %v726 = vmul.f32 %v670, %v514
    %v727 = vmul.f32 %v673, %v514
    %v728 = vmul.f32 %v676, %v514
    %v729 = vmul.f32 %v679, %v514
    %v730 = vmul.f32 %v682, %v514
    %v731 = vmul.f32 %v685, %v514
    %v732 = vmul.f32 %v688, %v514
    %v733 = vmul.f32 %v691, %v514
    %v734 = vmul.f32 %v694, %v514
    %v735 = vmul.f32 %v697, %v514
    %v736 = vmul.f32 %v700, %v514
    %v737 = vmul.f32 %v703, %v514
    %v738 = vmul.f32 %v706, %v514
    %v739 = vadd.f32 %v707, 1e-12
    %v740 = vadd.f32 %v708, 1e-12
    %v741 = vadd.f32 %v709, 1e-12
    %v742 = vadd.f32 %v710, 1e-12
    %v743 = vadd.f32 %v711, 1e-12
    %v744 = vadd.f32 %v712, 1e-12
    %v745 = vadd.f32 %v713, 1e-12
    %v746 = vadd.f32 %v714, 1e-12
    %v747 = vadd.f32 %v715, 1e-12
    %v748 = vadd.f32 %v716, 1e-12
    %v749 = vadd.f32 %v717, 1e-12
    %v750 = vadd.f32 %v718, 1e-12
    %v751 = vadd.f32 %v719, 1e-12
    %v752 = vadd.f32 %v720, 1e-12
    %v753 = vadd.f32 %v721, 1e-12
    %v754 = vadd.f32 %v722, 1e-12
    %v755 = vadd.f32 %v723, 1e-12
    %v756 = vadd.f32 %v724, 1e-12
    %v757 = vadd.f32 %v725, 1e-12
    %v758 = vadd.f32 %v726, 1e-12
    %v759 = vadd.f32 %v727, 1e-12
    %v760 = vadd.f32 %v728, 1e-12
    %v761 = vadd.f32 %v729, 1e-12
    %v762 = vadd.f32 %v730, 1e-12
    %v763 = vadd.f32 %v731, 1e-12
    %v764 = vadd.f32 %v732, 1e-12
    %v765 = vadd.f32 %v733, 1e-12
    %v766 = vadd.f32 %v734, 1e-12
    %v767 = vadd.f32 %v735, 1e-12
    %v768 = vadd.f32 %v736, 1e-12
    %v769 = vadd.f32 %v737, 1e-12
    %v770 = vadd.f32 %v738, 1e-12
    %v771 = vrsqrt.pop %v739
    %v772 = vmul.f32 %v771, %v739
    %v773 = vmul.f32 %v772, %v771
    %v774 = vmul.f32 0.5, %v773
    %v775 = vsub.f32 1.5, %v774
    %v776 = vmul.f32 %v771, %v775
    %vm777 = vweird.f32 %v739
    %vm778 = vweird.f32 %v771
    %vm779 = vmor %vm777, %vm778
    %v780 = vsel %vm779, %v771, %v776
    %v781 = vrsqrt.pop %v740
    %v782 = vmul.f32 %v781, %v740
    %v783 = vmul.f32 %v782, %v781
    %v784 = vmul.f32 0.5, %v783
    %v785 = vsub.f32 1.5, %v784
    %v786 = vmul.f32 %v781, %v785
    %vm787 = vweird.f32 %v740
    %vm788 = vweird.f32 %v781
    %vm789 = vmor %vm787, %vm788
    %v790 = vsel %vm789, %v781, %v786
    %v791 = vrsqrt.pop %v741
    %v792 = vmul.f32 %v791, %v741
    %v793 = vmul.f32 %v792, %v791
    %v794 = vmul.f32 0.5, %v793
    %v795 = vsub.f32 1.5, %v794
    %v796 = vmul.f32 %v791, %v795
    %vm797 = vweird.f32 %v741
    %vm798 = vweird.f32 %v791
    %vm799 = vmor %vm797, %vm798
    %v800 = vsel %vm799, %v791, %v796
    %v801 = vrsqrt.pop %v742
    %v802 = vmul.f32 %v801, %v742
    %v803 = vmul.f32 %v802, %v801
    %v804 = vmul.f32 0.5, %v803
    %v805 = vsub.f32 1.5, %v804
    %v806 = vmul.f32 %v801, %v805
    %vm807 = vweird.f32 %v742
    %vm808 = vweird.f32 %v801
    %vm809 = vmor %vm807, %vm808
    %v810 = vsel %vm809, %v801, %v806
    %v811 = vrsqrt.pop %v743
    %v812 = vmul.f32 %v811, %v743
    %v813 = vmul.f32 %v812, %v811
    %v814 = vmul.f32 0.5, %v813
    %v815 = vsub.f32 1.5, %v814
    %v816 = vmul.f32 %v811, %v815
    %vm817 = vweird.f32 %v743
    %vm818 = vweird.f32 %v811
    %vm819 = vmor %vm817, %vm818
    %v820 = vsel %vm819, %v811, %v816
    %v821 = vrsqrt.pop %v744
    %v822 = vmul.f32 %v821, %v744
    %v823 = vmul.f32 %v822, %v821
    %v824 = vmul.f32 0.5, %v823
    %v825 = vsub.f32 1.5, %v824
    %v826 = vmul.f32 %v821, %v825
    %vm827 = vweird.f32 %v744
    %vm828 = vweird.f32 %v821
    %vm829 = vmor %vm827, %vm828
    %v830 = vsel %vm829, %v821, %v826
    %v831 = vrsqrt.pop %v745
    %v832 = vmul.f32 %v831, %v745
    %v833 = vmul.f32 %v832, %v831
    %v834 = vmul.f32 0.5, %v833
    %v835 = vsub.f32 1.5, %v834
    %v836 = vmul.f32 %v831, %v835
    %vm837 = vweird.f32 %v745
    %vm838 = vweird.f32 %v831
    %vm839 = vmor %vm837, %vm838
    %v840 = vsel %vm839, %v831, %v836
    %v841 = vrsqrt.pop %v746
    %v842 = vmul.f32 %v841, %v746
    %v843 = vmul.f32 %v842, %v841
    %v844 = vmul.f32 0.5, %v843
    %v845 = vsub.f32 1.5, %v844
    %v846 = vmul.f32 %v841, %v845
    %vm847 = vweird.f32 %v746
    %vm848 = vweird.f32 %v841
    %vm849 = vmor %vm847, %vm848
    %v850 = vsel %vm849, %v841, %v846
    %v851 = vrsqrt.pop %v747
    %v852 = vmul.f32 %v851, %v747
    %v853 = vmul.f32 %v852, %v851
    %v854 = vmul.f32 0.5, %v853
    %v855 = vsub.f32 1.5, %v854
    %v856 = vmul.f32 %v851, %v855
    %vm857 = vweird.f32 %v747
    %vm858 = vweird.f32 %v851
    %vm859 = vmor %vm857, %vm858
    %v860 = vsel %vm859, %v851, %v856
    %v861 = vrsqrt.pop %v748
    %v862 = vmul.f32 %v861, %v748
    %v863 = vmul.f32 %v862, %v861
    %v864 = vmul.f32 0.5, %v863
    %v865 = vsub.f32 1.5, %v864
    %v866 = vmul.f32 %v861, %v865
    %vm867 = vweird.f32 %v748
    %vm868 = vweird.f32 %v861
    %vm869 = vmor %vm867, %vm868
    %v870 = vsel %vm869, %v861, %v866
    %v871 = vrsqrt.pop %v749
    %v872 = vmul.f32 %v871, %v749
    %v873 = vmul.f32 %v872, %v871
    %v874 = vmul.f32 0.5, %v873
    %v875 = vsub.f32 1.5, %v874
    %v876 = vmul.f32 %v871, %v875
    %vm877 = vweird.f32 %v749
    %vm878 = vweird.f32 %v871
    %vm879 = vmor %vm877, %vm878
    %v880 = vsel %vm879, %v871, %v876
    %v881 = vrsqrt.pop %v750
    %v882 = vmul.f32 %v881, %v750
    %v883 = vmul.f32 %v882, %v881
    %v884 = vmul.f32 0.5, %v883
    %v885 = vsub.f32 1.5, %v884
    %v886 = vmul.f32 %v881, %v885
    %vm887 = vweird.f32 %v750
    %vm888 = vweird.f32 %v881
    %vm889 = vmor %vm887, %vm888
    %v890 = vsel %vm889, %v881, %v886
    %v891 = vrsqrt.pop %v751
    %v892 = vmul.f32 %v891, %v751
    %v893 = vmul.f32 %v892, %v891
    %v894 = vmul.f32 0.5, %v893
    %v895 = vsub.f32 1.5, %v894
    %v896 = vmul.f32 %v891, %v895
    %vm897 = vweird.f32 %v751
    %vm898 = vweird.f32 %v891
    %vm899 = vmor %vm897, %vm898
    %v900 = vsel %vm899, %v891, %v896
    %v901 = vrsqrt.pop %v752
    %v902 = vmul.f32 %v901, %v752
    %v903 = vmul.f32 %v902, %v901
    %v904 = vmul.f32 0.5, %v903
    %v905 = vsub.f32 1.5, %v904
    %v906 = vmul.f32 %v901, %v905
    %vm907 = vweird.f32 %v752
    %vm908 = vweird.f32 %v901
    %vm909 = vmor %vm907, %vm908
    %v910 = vsel %vm909, %v901, %v906
    %v911 = vrsqrt.pop %v753
    %v912 = vmul.f32 %v911, %v753
    %v913 = vmul.f32 %v912, %v911
    %v914 = vmul.f32 0.5, %v913
    %v915 = vsub.f32 1.5, %v914
    %v916 = vmul.f32 %v911, %v915
    %vm917 = vweird.f32 %v753
    %vm918 = vweird.f32 %v911
    %vm919 = vmor %vm917, %vm918
    %v920 = vsel %vm919, %v911, %v916
    %v921 = vrsqrt.pop %v754
    %v922 = vmul.f32 %v921, %v754
    %v923 = vmul.f32 %v922, %v921
    %v924 = vmul.f32 0.5, %v923
    %v925 = vsub.f32 1.5, %v924
    %v926 = vmul.f32 %v921, %v925
    %vm927 = vweird.f32 %v754
    %vm928 = vweird.f32 %v921
    %vm929 = vmor %vm927, %vm928
    %v930 = vsel %vm929, %v921, %v926
    %v931 = vrsqrt.pop %v755
    %v932 = vmul.f32 %v931, %v755
    %v933 = vmul.f32 %v932, %v931
    %v934 = vmul.f32 0.5, %v933
    %v935 = vsub.f32 1.5, %v934
    %v936 = vmul.f32 %v931, %v935
    %vm937 = vweird.f32 %v755
    %vm938 = vweird.f32 %v931
    %vm939 = vmor %vm937, %vm938
    %v940 = vsel %vm939, %v931, %v936
    %v941 = vrsqrt.pop %v756
    %v942 = vmul.f32 %v941, %v756
    %v943 = vmul.f32 %v942, %v941
    %v944 = vmul.f32 0.5, %v943
    %v945 = vsub.f32 1.5, %v944
    %v946 = vmul.f32 %v941, %v945
    %vm947 = vweird.f32 %v756
    %vm948 = vweird.f32 %v941
    %vm949 = vmor %vm947, %vm948
    %v950 = vsel %vm949, %v941, %v946
    %v951 = vrsqrt.pop %v757
    %v952 = vmul.f32 %v951, %v757
    %v953 = vmul.f32 %v952, %v951
    %v954 = vmul.f32 0.5, %v953
    %v955 = vsub.f32 1.5, %v954
    %v956 = vmul.f32 %v951, %v955
    %vm957 = vweird.f32 %v757
    %vm958 = vweird.f32 %v951
    %vm959 = vmor %vm957, %vm958
    %v960 = vsel %vm959, %v951, %v956
    %v961 = vrsqrt.pop %v758
    %v962 = vmul.f32 %v961, %v758
    %v963 = vmul.f32 %v962, %v961
    %v964 = vmul.f32 0.5, %v963
    %v965 = vsub.f32 1.5, %v964
    %v966 = vmul.f32 %v961, %v965
    %vm967 = vweird.f32 %v758
    %vm968 = vweird.f32 %v961
    %vm969 = vmor %vm967, %vm968
    %v970 = vsel %vm969, %v961, %v966
    %v971 = vrsqrt.pop %v759
    %v972 = vmul.f32 %v971, %v759
    %v973 = vmul.f32 %v972, %v971
    %v974 = vmul.f32 0.5, %v973
    %v975 = vsub.f32 1.5, %v974
    %v976 = vmul.f32 %v971, %v975
    %vm977 = vweird.f32 %v759
    %vm978 = vweird.f32 %v971
    %vm979 = vmor %vm977, %vm978
    %v980 = vsel %vm979, %v971, %v976
    %v981 = vrsqrt.pop %v760
    %v982 = vmul.f32 %v981, %v760
    %v983 = vmul.f32 %v982, %v981
    %v984 = vmul.f32 0.5, %v983
    %v985 = vsub.f32 1.5, %v984
    %v986 = vmul.f32 %v981, %v985
    %vm987 = vweird.f32 %v760
    %vm988 = vweird.f32 %v981
    %vm989 = vmor %vm987, %vm988
    %v990 = vsel %vm989, %v981, %v986
    %v991 = vrsqrt.pop %v761
    %v992 = vmul.f32 %v991, %v761
    %v993 = vmul.f32 %v992, %v991
    %v994 = vmul.f32 0.5, %v993
    %v995 = vsub.f32 1.5, %v994
    %v996 = vmul.f32 %v991, %v995
    %vm997 = vweird.f32 %v761
    %vm998 = vweird.f32 %v991
    %vm999 = vmor %vm997, %vm998
    %v1000 = vsel %vm999, %v991, %v996
    %v1001 = vrsqrt.pop %v762
    %v1002 = vmul.f32 %v1001, %v762
    %v1003 = vmul.f32 %v1002, %v1001
    %v1004 = vmul.f32 0.5, %v1003
    %v1005 = vsub.f32 1.5, %v1004
    %v1006 = vmul.f32 %v1001, %v1005
    %vm1007 = vweird.f32 %v762
    %vm1008 = vweird.f32 %v1001
    %vm1009 = vmor %vm1007, %vm1008
    %v1010 = vsel %vm1009, %v1001, %v1006
    %v1011 = vrsqrt.pop %v763
    %v1012 = vmul.f32 %v1011, %v763
    %v1013 = vmul.f32 %v1012, %v1011
    %v1014 = vmul.f32 0.5, %v1013
    %v1015 = vsub.f32 1.5, %v1014
    %v1016 = vmul.f32 %v1011, %v1015
    %vm1017 = vweird.f32 %v763
    %vm1018 = vweird.f32 %v1011
    %vm1019 = vmor %vm1017, %vm1018
    %v1020 = vsel %vm1019, %v1011, %v1016
    %v1021 = vrsqrt.pop %v764
    %v1022 = vmul.f32 %v1021, %v764
    %v1023 = vmul.f32 %v1022, %v1021
    %v1024 = vmul.f32 0.5, %v1023
    %v1025 = vsub.f32 1.5, %v1024
    %v1026 = vmul.f32 %v1021, %v1025
    %vm1027 = vweird.f32 %v764
    %vm1028 = vweird.f32 %v1021
    %vm1029 = vmor %vm1027, %vm1028
    %v1030 = vsel %vm1029, %v1021, %v1026
    %v1031 = vrsqrt.pop %v765
    %v1032 = vmul.f32 %v1031, %v765
    %v1033 = vmul.f32 %v1032, %v1031
    %v1034 = vmul.f32 0.5, %v1033
    %v1035 = vsub.f32 1.5, %v1034
    %v1036 = vmul.f32 %v1031, %v1035
    %vm1037 = vweird.f32 %v765
    %vm1038 = vweird.f32 %v1031
    %vm1039 = vmor %vm1037, %vm1038
    %v1040 = vsel %vm1039, %v1031, %v1036
    %v1041 = vrsqrt.pop %v766
    %v1042 = vmul.f32 %v1041, %v766
    %v1043 = vmul.f32 %v1042, %v1041
    %v1044 = vmul.f32 0.5, %v1043
    %v1045 = vsub.f32 1.5, %v1044
    %v1046 = vmul.f32 %v1041, %v1045
    %vm1047 = vweird.f32 %v766
    %vm1048 = vweird.f32 %v1041
    %vm1049 = vmor %vm1047, %vm1048
    %v1050 = vsel %vm1049, %v1041, %v1046
    %v1051 = vrsqrt.pop %v767
    %v1052 = vmul.f32 %v1051, %v767
    %v1053 = vmul.f32 %v1052, %v1051
    %v1054 = vmul.f32 0.5, %v1053
    %v1055 = vsub.f32 1.5, %v1054
    %v1056 = vmul.f32 %v1051, %v1055
    %vm1057 = vweird.f32 %v767
    %vm1058 = vweird.f32 %v1051
    %vm1059 = vmor %vm1057, %vm1058
    %v1060 = vsel %vm1059, %v1051, %v1056
    %v1061 = vrsqrt.pop %v768
    %v1062 = vmul.f32 %v1061, %v768
    %v1063 = vmul.f32 %v1062, %v1061
    %v1064 = vmul.f32 0.5, %v1063
    %v1065 = vsub.f32 1.5, %v1064
    %v1066 = vmul.f32 %v1061, %v1065
    %vm1067 = vweird.f32 %v768
    %vm1068 = vweird.f32 %v1061
    %vm1069 = vmor %vm1067, %vm1068
    %v1070 = vsel %vm1069, %v1061, %v1066
    %v1071 = vrsqrt.pop %v769
    %v1072 = vmul.f32 %v1071, %v769
    %v1073 = vmul.f32 %v1072, %v1071
    %v1074 = vmul.f32 0.5, %v1073
    %v1075 = vsub.f32 1.5, %v1074
    %v1076 = vmul.f32 %v1071, %v1075
    %vm1077 = vweird.f32 %v769
    %vm1078 = vweird.f32 %v1071
    %vm1079 = vmor %vm1077, %vm1078
    %v1080 = vsel %vm1079, %v1071, %v1076
    %v1081 = vrsqrt.pop %v770
    %v1082 = vmul.f32 %v1081, %v770
    %v1083 = vmul.f32 %v1082, %v1081
    %v1084 = vmul.f32 0.5, %v1083
    %v1085 = vsub.f32 1.5, %v1084
    %v1086 = vmul.f32 %v1081, %v1085
    %vm1087 = vweird.f32 %v770
    %vm1088 = vweird.f32 %v1081
    %vm1089 = vmor %vm1087, %vm1088
    %v1090 = vsel %vm1089, %v1081, %v1086
    %v1091 = vmul.f32 %v547, %v780
    %v1092 = vmul.f32 %v548, %v790
    %v1093 = vmul.f32 %v549, %v800
    %v1094 = vmul.f32 %v550, %v810
    %v1095 = vmul.f32 %v551, %v820
    %v1096 = vmul.f32 %v552, %v830
    %v1097 = vmul.f32 %v553, %v840
    %v1098 = vmul.f32 %v554, %v850
    %v1099 = vmul.f32 %v555, %v860
    %v1100 = vmul.f32 %v556, %v870
    %v1101 = vmul.f32 %v557, %v880
    %v1102 = vmul.f32 %v558, %v890
    %v1103 = vmul.f32 %v559, %v900
    %v1104 = vmul.f32 %v560, %v910
    %v1105 = vmul.f32 %v561, %v920
    %v1106 = vmul.f32 %v562, %v930
    %v1107 = vmul.f32 %v563, %v940
    %v1108 = vmul.f32 %v564, %v950
    %v1109 = vmul.f32 %v565, %v960
    %v1110 = vmul.f32 %v566, %v970
    %v1111 = vmul.f32 %v567, %v980
    %v1112 = vmul.f32 %v568, %v990
    %v1113 = vmul.f32 %v569, %v1000
    %v1114 = vmul.f32 %v570, %v1010
    %v1115 = vmul.f32 %v571, %v1020
    %v1116 = vmul.f32 %v572, %v1030
    %v1117 = vmul.f32 %v573, %v1040
    %v1118 = vmul.f32 %v574, %v1050
    %v1119 = vmul.f32 %v575, %v1060
    %v1120 = vmul.f32 %v576, %v1070
    %v1121 = vmul.f32 %v577, %v1080
    %v1122 = vmul.f32 %v578, %v1090
    %v1123 = vperm.slane %v409, 0
    %v1124 = vmul.f32 %v1091, %v1123
    %v1125 = vmul.f32 %v1092, %v1123
    %v1126 = vmul.f32 %v1093, %v1123
    %v1127 = vmul.f32 %v1094, %v1123
    %v1128 = vmul.f32 %v1095, %v1123
    %v1129 = vmul.f32 %v1096, %v1123
    %v1130 = vmul.f32 %v1097, %v1123
    %v1131 = vmul.f32 %v1098, %v1123
    %v1132 = vmul.f32 %v1099, %v1123
    %v1133 = vmul.f32 %v1100, %v1123
    %v1134 = vmul.f32 %v1101, %v1123
    %v1135 = vmul.f32 %v1102, %v1123
    %v1136 = vmul.f32 %v1103, %v1123
    %v1137 = vmul.f32 %v1104, %v1123
    %v1138 = vmul.f32 %v1105, %v1123
    %v1139 = vmul.f32 %v1106, %v1123
    %v1140 = vmul.f32 %v1107, %v1123
    %v1141 = vmul.f32 %v1108, %v1123
    %v1142 = vmul.f32 %v1109, %v1123
    %v1143 = vmul.f32 %v1110, %v1123
    %v1144 = vmul.f32 %v1111, %v1123
    %v1145 = vmul.f32 %v1112, %v1123
    %v1146 = vmul.f32 %v1113, %v1123
    %v1147 = vmul.f32 %v1114, %v1123
    %v1148 = vmul.f32 %v1115, %v1123
    %v1149 = vmul.f32 %v1116, %v1123
    %v1150 = vmul.f32 %v1117, %v1123
    %v1151 = vmul.f32 %v1118, %v1123
    %v1152 = vmul.f32 %v1119, %v1123
    %v1153 = vmul.f32 %v1120, %v1123
    %v1154 = vmul.f32 %v1121, %v1123
    %v1155 = vmul.f32 %v1122, %v1123
    %v1156 = vperm.slane %v410, 0
    %v1157 = vadd.f32 %v1124, %v1156
    %v1158 = vadd.f32 %v1125, %v1156
    %v1159 = vadd.f32 %v1126, %v1156
    %v1160 = vadd.f32 %v1127, %v1156
    %v1161 = vadd.f32 %v1128, %v1156
    %v1162 = vadd.f32 %v1129, %v1156
    %v1163 = vadd.f32 %v1130, %v1156
    %v1164 = vadd.f32 %v1131, %v1156
    %v1165 = vadd.f32 %v1132, %v1156
    %v1166 = vadd.f32 %v1133, %v1156
    %v1167 = vadd.f32 %v1134, %v1156
    %v1168 = vadd.f32 %v1135, %v1156
    %v1169 = vadd.f32 %v1136, %v1156
    %v1170 = vadd.f32 %v1137, %v1156
    %v1171 = vadd.f32 %v1138, %v1156
    %v1172 = vadd.f32 %v1139, %v1156
    %v1173 = vadd.f32 %v1140, %v1156
    %v1174 = vadd.f32 %v1141, %v1156
    %v1175 = vadd.f32 %v1142, %v1156
    %v1176 = vadd.f32 %v1143, %v1156
    %v1177 = vadd.f32 %v1144, %v1156
    %v1178 = vadd.f32 %v1145, %v1156
    %v1179 = vadd.f32 %v1146, %v1156
    %v1180 = vadd.f32 %v1147, %v1156
    %v1181 = vadd.f32 %v1148, %v1156
    %v1182 = vadd.f32 %v1149, %v1156
    %v1183 = vadd.f32 %v1150, %v1156
    %v1184 = vadd.f32 %v1151, %v1156
    %v1185 = vadd.f32 %v1152, %v1156
    %v1186 = vadd.f32 %v1153, %v1156
    %v1187 = vadd.f32 %v1154, %v1156
    %v1188 = vadd.f32 %v1155, %v1156
    %v1189 = vpack.c.bf16 %v1158, %v1157
    %v1190 = vpack.c.bf16 %v1160, %v1159
    %v1191 = vpack.c.bf16 %v1162, %v1161
    %v1192 = vpack.c.bf16 %v1164, %v1163
    %v1193 = vpack.c.bf16 %v1166, %v1165
    %v1194 = vpack.c.bf16 %v1168, %v1167
    %v1195 = vpack.c.bf16 %v1170, %v1169
    %v1196 = vpack.c.bf16 %v1172, %v1171
    %v1197 = vpack.c.bf16 %v1174, %v1173
    %v1198 = vpack.c.bf16 %v1176, %v1175
    %v1199 = vpack.c.bf16 %v1178, %v1177
    %v1200 = vpack.c.bf16 %v1180, %v1179
    %v1201 = vpack.c.bf16 %v1182, %v1181
    %v1202 = vpack.c.bf16 %v1184, %v1183
    %v1203 = vpack.c.bf16 %v1186, %v1185
    %v1204 = vpack.c.bf16 %v1188, %v1187
    %v1205 = vld [vmem:[%s2] sm:$0xf]
    %v1206 = vld [vmem:[%s2 + $0x4] sm:$0xf]
    %v1207 = vld [vmem:[%s2 + $0x8] sm:$0xf]
    %v1208 = vld [vmem:[%s2 + $0xc] sm:$0xf]
    %v1209 = vld [vmem:[%s3 + $0x2] sm:$0x1]
    %v1210 = vperm.slane %v1209, 0
    %v1215 = vunpack.c.l.b16 %v1205
    %v1216 = vunpack.c.l.b16 %v1206
    %v1217 = vunpack.c.l.b16 %v1207
    %v1218 = vunpack.c.l.b16 %v1208
    %v1219 = vpack.c.b16 %v1216, %v1215
    %v1220 = vpack.c.b16 %v1218, %v1217
    %v1224 = vsel %vm411, %v1189, 0
    %v1227 = vsel %vm411, %v1190, 0
    %v1230 = vsel %vm411, %v1191, 0
    %v1233 = vsel %vm411, %v1192, 0
    %v1236 = vsel %vm411, %v1193, 0
    %v1239 = vsel %vm411, %v1194, 0
    %v1242 = vsel %vm411, %v1195, 0
    %v1245 = vsel %vm411, %v1196, 0
    %v1248 = vsel %vm411, %v1197, 0
    %v1251 = vsel %vm411, %v1198, 0
    %v1254 = vsel %vm411, %v1199, 0
    %v1257 = vsel %vm411, %v1200, 0
    %v1260 = vsel %vm411, %v1201, 0
    %v1263 = vsel %vm411, %v1202, 0
    %v1266 = vsel %vm411, %v1203, 0
    %v1269 = vsel %vm411, %v1204, 0
    %1271 = vmatpush.bf16.msra.mxu0 0
    %1272 = vmatpush.bf16.msra.mxu0 0
    %1273 = vmatpush.bf16.msra.mxu0 0
    %1274 = vmatpush.bf16.msra.mxu0 0
    %1275 = vmatpush.bf16.msra.mxu0 0
    %1276 = vmatpush.bf16.msra.mxu0 0
    %1277 = vmatpush.bf16.msra.mxu0 %v1220
    %1278 = vmatpush.bf16.msra.mxu0 %v1219
    %1279 = vmatmul.bf16.gmra.mxu0 %v1224
    %v1280 = vpop.f32.mrf.mxu0
    %v1281 = vadd.f32 %v1210, %v1280
    %v1282 = vpop.f32.mrf.mxu0
    %v1283 = vadd.f32 %v1210, %v1282
    %1284 = vmatmul.bf16.gmra.mxu0 %v1227
    %v1285 = vpop.f32.mrf.mxu0
    %v1286 = vadd.f32 %v1210, %v1285
    %v1287 = vpop.f32.mrf.mxu0
    %v1288 = vadd.f32 %v1210, %v1287
    %1289 = vmatmul.bf16.gmra.mxu0 %v1230
    %v1290 = vpop.f32.mrf.mxu0
    %v1291 = vadd.f32 %v1210, %v1290
    %v1292 = vpop.f32.mrf.mxu0
    %v1293 = vadd.f32 %v1210, %v1292
    %1294 = vmatmul.bf16.gmra.mxu0 %v1233
    %v1295 = vpop.f32.mrf.mxu0
    %v1296 = vadd.f32 %v1210, %v1295
    %v1297 = vpop.f32.mrf.mxu0
    %v1298 = vadd.f32 %v1210, %v1297
    %1299 = vmatmul.bf16.gmra.mxu0 %v1236
    %v1300 = vpop.f32.mrf.mxu0
    %v1301 = vadd.f32 %v1210, %v1300
    %v1302 = vpop.f32.mrf.mxu0
    %v1303 = vadd.f32 %v1210, %v1302
    %1304 = vmatmul.bf16.gmra.mxu0 %v1239
    %v1305 = vpop.f32.mrf.mxu0
    %v1306 = vadd.f32 %v1210, %v1305
    %v1307 = vpop.f32.mrf.mxu0
    %v1308 = vadd.f32 %v1210, %v1307
    %1309 = vmatmul.bf16.gmra.mxu0 %v1242
    %v1310 = vpop.f32.mrf.mxu0
    %v1311 = vadd.f32 %v1210, %v1310
    %v1312 = vpop.f32.mrf.mxu0
    %v1313 = vadd.f32 %v1210, %v1312
    %1314 = vmatmul.bf16.gmra.mxu0 %v1245
    %v1315 = vpop.f32.mrf.mxu0
    %v1316 = vadd.f32 %v1210, %v1315
    %v1317 = vpop.f32.mrf.mxu0
    %v1318 = vadd.f32 %v1210, %v1317
    %1319 = vmatmul.bf16.gmra.mxu0 %v1248
    %v1320 = vpop.f32.mrf.mxu0
    %v1321 = vadd.f32 %v1210, %v1320
    %v1322 = vpop.f32.mrf.mxu0
    %v1323 = vadd.f32 %v1210, %v1322
    %1324 = vmatmul.bf16.gmra.mxu0 %v1251
    %v1325 = vpop.f32.mrf.mxu0
    %v1326 = vadd.f32 %v1210, %v1325
    %v1327 = vpop.f32.mrf.mxu0
    %v1328 = vadd.f32 %v1210, %v1327
    %1329 = vmatmul.bf16.gmra.mxu0 %v1254
    %v1330 = vpop.f32.mrf.mxu0
    %v1331 = vadd.f32 %v1210, %v1330
    %v1332 = vpop.f32.mrf.mxu0
    %v1333 = vadd.f32 %v1210, %v1332
    %1334 = vmatmul.bf16.gmra.mxu0 %v1257
    %v1335 = vpop.f32.mrf.mxu0
    %v1336 = vadd.f32 %v1210, %v1335
    %v1337 = vpop.f32.mrf.mxu0
    %v1338 = vadd.f32 %v1210, %v1337
    %1339 = vmatmul.bf16.gmra.mxu0 %v1260
    %v1340 = vpop.f32.mrf.mxu0
    %v1341 = vadd.f32 %v1210, %v1340
    %v1342 = vpop.f32.mrf.mxu0
    %v1343 = vadd.f32 %v1210, %v1342
    %1344 = vmatmul.bf16.gmra.mxu0 %v1263
    %v1345 = vpop.f32.mrf.mxu0
    %v1346 = vadd.f32 %v1210, %v1345
    %v1347 = vpop.f32.mrf.mxu0
    %v1348 = vadd.f32 %v1210, %v1347
    %1349 = vmatmul.bf16.gmra.mxu0 %v1266
    %v1350 = vpop.f32.mrf.mxu0
    %v1351 = vadd.f32 %v1210, %v1350
    %v1352 = vpop.f32.mrf.mxu0
    %v1353 = vadd.f32 %v1210, %v1352
    %1354 = vmatmul.bf16.gmra.mxu0 %v1269
    %v1355 = vpop.f32.mrf.mxu0
    %v1356 = vadd.f32 %v1210, %v1355
    %v1357 = vpop.f32.mrf.mxu0
    %v1358 = vadd.f32 %v1210, %v1357
    %1359 = vdwg.mxu0
    %v1360 = vld [vmem:[%s2 + $0x10] sm:$0xf]
    %v1361 = vld [vmem:[%s2 + $0x14] sm:$0xf]
    %v1362 = vld [vmem:[%s2 + $0x18] sm:$0xf]
    %v1363 = vld [vmem:[%s2 + $0x1c] sm:$0xf]
    %v1364 = vld [vmem:[%s3 + $0x3] sm:$0x1]
    %v1365 = vperm.slane %v1364, 0
    %v1370 = vunpack.c.l.b16 %v1360
    %v1371 = vunpack.c.l.b16 %v1361
    %v1372 = vunpack.c.l.b16 %v1362
    %v1373 = vunpack.c.l.b16 %v1363
    %v1374 = vpack.c.b16 %v1371, %v1370
    %v1375 = vpack.c.b16 %v1373, %v1372
    %1378 = vmatpush.bf16.msra.mxu0 0
    %1379 = vmatpush.bf16.msra.mxu0 0
    %1380 = vmatpush.bf16.msra.mxu0 0
    %1381 = vmatpush.bf16.msra.mxu0 0
    %1382 = vmatpush.bf16.msra.mxu0 0
    %1383 = vmatpush.bf16.msra.mxu0 0
    %1384 = vmatpush.bf16.msra.mxu0 %v1375
    %1385 = vmatpush.bf16.msra.mxu0 %v1374
    %1386 = vmatmul.bf16.gmra.mxu0 %v1224
    %v1387 = vpop.f32.mrf.mxu0
    %v1388 = vadd.f32 %v1365, %v1387
    %v1389 = vpop.f32.mrf.mxu0
    %v1390 = vadd.f32 %v1365, %v1389
    %1391 = vmatmul.bf16.gmra.mxu0 %v1227
    %v1392 = vpop.f32.mrf.mxu0
    %v1393 = vadd.f32 %v1365, %v1392
    %v1394 = vpop.f32.mrf.mxu0
    %v1395 = vadd.f32 %v1365, %v1394
    %1396 = vmatmul.bf16.gmra.mxu0 %v1230
    %v1397 = vpop.f32.mrf.mxu0
    %v1398 = vadd.f32 %v1365, %v1397
    %v1399 = vpop.f32.mrf.mxu0
    %v1400 = vadd.f32 %v1365, %v1399
    %1401 = vmatmul.bf16.gmra.mxu0 %v1233
    %v1402 = vpop.f32.mrf.mxu0
    %v1403 = vadd.f32 %v1365, %v1402
    %v1404 = vpop.f32.mrf.mxu0
    %v1405 = vadd.f32 %v1365, %v1404
    %1406 = vmatmul.bf16.gmra.mxu0 %v1236
    %v1407 = vpop.f32.mrf.mxu0
    %v1408 = vadd.f32 %v1365, %v1407
    %v1409 = vpop.f32.mrf.mxu0
    %v1410 = vadd.f32 %v1365, %v1409
    %1411 = vmatmul.bf16.gmra.mxu0 %v1239
    %v1412 = vpop.f32.mrf.mxu0
    %v1413 = vadd.f32 %v1365, %v1412
    %v1414 = vpop.f32.mrf.mxu0
    %v1415 = vadd.f32 %v1365, %v1414
    %1416 = vmatmul.bf16.gmra.mxu0 %v1242
    %v1417 = vpop.f32.mrf.mxu0
    %v1418 = vadd.f32 %v1365, %v1417
    %v1419 = vpop.f32.mrf.mxu0
    %v1420 = vadd.f32 %v1365, %v1419
    %1421 = vmatmul.bf16.gmra.mxu0 %v1245
    %v1422 = vpop.f32.mrf.mxu0
    %v1423 = vadd.f32 %v1365, %v1422
    %v1424 = vpop.f32.mrf.mxu0
    %v1425 = vadd.f32 %v1365, %v1424
    %1426 = vmatmul.bf16.gmra.mxu0 %v1248
    %v1427 = vpop.f32.mrf.mxu0
    %v1428 = vadd.f32 %v1365, %v1427
    %v1429 = vpop.f32.mrf.mxu0
    %v1430 = vadd.f32 %v1365, %v1429
    %1431 = vmatmul.bf16.gmra.mxu0 %v1251
    %v1432 = vpop.f32.mrf.mxu0
    %v1433 = vadd.f32 %v1365, %v1432
    %v1434 = vpop.f32.mrf.mxu0
    %v1435 = vadd.f32 %v1365, %v1434
    %1436 = vmatmul.bf16.gmra.mxu0 %v1254
    %v1437 = vpop.f32.mrf.mxu0
    %v1438 = vadd.f32 %v1365, %v1437
    %v1439 = vpop.f32.mrf.mxu0
    %v1440 = vadd.f32 %v1365, %v1439
    %1441 = vmatmul.bf16.gmra.mxu0 %v1257
    %v1442 = vpop.f32.mrf.mxu0
    %v1443 = vadd.f32 %v1365, %v1442
    %v1444 = vpop.f32.mrf.mxu0
    %v1445 = vadd.f32 %v1365, %v1444
    %1446 = vmatmul.bf16.gmra.mxu0 %v1260
    %v1447 = vpop.f32.mrf.mxu0
    %v1448 = vadd.f32 %v1365, %v1447
    %v1449 = vpop.f32.mrf.mxu0
    %v1450 = vadd.f32 %v1365, %v1449
    %1451 = vmatmul.bf16.gmra.mxu0 %v1263
    %v1452 = vpop.f32.mrf.mxu0
    %v1453 = vadd.f32 %v1365, %v1452
    %v1454 = vpop.f32.mrf.mxu0
    %v1455 = vadd.f32 %v1365, %v1454
    %1456 = vmatmul.bf16.gmra.mxu0 %v1266
    %v1457 = vpop.f32.mrf.mxu0
    %v1458 = vadd.f32 %v1365, %v1457
    %v1459 = vpop.f32.mrf.mxu0
    %v1460 = vadd.f32 %v1365, %v1459
    %1461 = vmatmul.bf16.gmra.mxu0 %v1269
    %v1462 = vpop.f32.mrf.mxu0
    %v1463 = vadd.f32 %v1365, %v1462
    %v1464 = vpop.f32.mrf.mxu0
    %v1465 = vadd.f32 %v1365, %v1464
    %1466 = vdwg.mxu0
    %v1467 = vld [vmem:[%s2 + $0x20] sm:$0xf]
    %v1468 = vld [vmem:[%s2 + $0x24] sm:$0xf]
    %v1469 = vld [vmem:[%s2 + $0x28] sm:$0xf]
    %v1470 = vld [vmem:[%s2 + $0x2c] sm:$0xf]
    %v1471 = vld [vmem:[%s3 + $0x4] sm:$0x1]
    %v1472 = vperm.slane %v1471, 0
    %v1477 = vunpack.c.l.b16 %v1467
    %v1478 = vunpack.c.l.b16 %v1468
    %v1479 = vunpack.c.l.b16 %v1469
    %v1480 = vunpack.c.l.b16 %v1470
    %v1481 = vpack.c.b16 %v1478, %v1477
    %v1482 = vpack.c.b16 %v1480, %v1479
    %1485 = vmatpush.bf16.msra.mxu0 0
    %1486 = vmatpush.bf16.msra.mxu0 0
    %1487 = vmatpush.bf16.msra.mxu0 0
    %1488 = vmatpush.bf16.msra.mxu0 0
    %1489 = vmatpush.bf16.msra.mxu0 0
    %1490 = vmatpush.bf16.msra.mxu0 0
    %1491 = vmatpush.bf16.msra.mxu0 %v1482
    %1492 = vmatpush.bf16.msra.mxu0 %v1481
    %1493 = vmatmul.bf16.gmra.mxu0 %v1224
    %v1494 = vpop.f32.mrf.mxu0
    %v1495 = vadd.f32 %v1472, %v1494
    %v1496 = vpop.f32.mrf.mxu0
    %v1497 = vadd.f32 %v1472, %v1496
    %1498 = vmatmul.bf16.gmra.mxu0 %v1227
    %v1499 = vpop.f32.mrf.mxu0
    %v1500 = vadd.f32 %v1472, %v1499
    %v1501 = vpop.f32.mrf.mxu0
    %v1502 = vadd.f32 %v1472, %v1501
    %1503 = vmatmul.bf16.gmra.mxu0 %v1230
    %v1504 = vpop.f32.mrf.mxu0
    %v1505 = vadd.f32 %v1472, %v1504
    %v1506 = vpop.f32.mrf.mxu0
    %v1507 = vadd.f32 %v1472, %v1506
    %1508 = vmatmul.bf16.gmra.mxu0 %v1233
    %v1509 = vpop.f32.mrf.mxu0
    %v1510 = vadd.f32 %v1472, %v1509
    %v1511 = vpop.f32.mrf.mxu0
    %v1512 = vadd.f32 %v1472, %v1511
    %1513 = vmatmul.bf16.gmra.mxu0 %v1236
    %v1514 = vpop.f32.mrf.mxu0
    %v1515 = vadd.f32 %v1472, %v1514
    %v1516 = vpop.f32.mrf.mxu0
    %v1517 = vadd.f32 %v1472, %v1516
    %1518 = vmatmul.bf16.gmra.mxu0 %v1239
    %v1519 = vpop.f32.mrf.mxu0
    %v1520 = vadd.f32 %v1472, %v1519
    %v1521 = vpop.f32.mrf.mxu0
    %v1522 = vadd.f32 %v1472, %v1521
    %1523 = vmatmul.bf16.gmra.mxu0 %v1242
    %v1524 = vpop.f32.mrf.mxu0
    %v1525 = vadd.f32 %v1472, %v1524
    %v1526 = vpop.f32.mrf.mxu0
    %v1527 = vadd.f32 %v1472, %v1526
    %1528 = vmatmul.bf16.gmra.mxu0 %v1245
    %v1529 = vpop.f32.mrf.mxu0
    %v1530 = vadd.f32 %v1472, %v1529
    %v1531 = vpop.f32.mrf.mxu0
    %v1532 = vadd.f32 %v1472, %v1531
    %1533 = vmatmul.bf16.gmra.mxu0 %v1248
    %v1534 = vpop.f32.mrf.mxu0
    %v1535 = vadd.f32 %v1472, %v1534
    %v1536 = vpop.f32.mrf.mxu0
    %v1537 = vadd.f32 %v1472, %v1536
    %1538 = vmatmul.bf16.gmra.mxu0 %v1251
    %v1539 = vpop.f32.mrf.mxu0
    %v1540 = vadd.f32 %v1472, %v1539
    %v1541 = vpop.f32.mrf.mxu0
    %v1542 = vadd.f32 %v1472, %v1541
    %1543 = vmatmul.bf16.gmra.mxu0 %v1254
    %v1544 = vpop.f32.mrf.mxu0
    %v1545 = vadd.f32 %v1472, %v1544
    %v1546 = vpop.f32.mrf.mxu0
    %v1547 = vadd.f32 %v1472, %v1546
    %1548 = vmatmul.bf16.gmra.mxu0 %v1257
    %v1549 = vpop.f32.mrf.mxu0
    %v1550 = vadd.f32 %v1472, %v1549
    %v1551 = vpop.f32.mrf.mxu0
    %v1552 = vadd.f32 %v1472, %v1551
    %1553 = vmatmul.bf16.gmra.mxu0 %v1260
    %v1554 = vpop.f32.mrf.mxu0
    %v1555 = vadd.f32 %v1472, %v1554
    %v1556 = vpop.f32.mrf.mxu0
    %v1557 = vadd.f32 %v1472, %v1556
    %1558 = vmatmul.bf16.gmra.mxu0 %v1263
    %v1559 = vpop.f32.mrf.mxu0
    %v1560 = vadd.f32 %v1472, %v1559
    %v1561 = vpop.f32.mrf.mxu0
    %v1562 = vadd.f32 %v1472, %v1561
    %1563 = vmatmul.bf16.gmra.mxu0 %v1266
    %v1564 = vpop.f32.mrf.mxu0
    %v1565 = vadd.f32 %v1472, %v1564
    %v1566 = vpop.f32.mrf.mxu0
    %v1567 = vadd.f32 %v1472, %v1566
    %1568 = vmatmul.bf16.gmra.mxu0 %v1269
    %v1569 = vpop.f32.mrf.mxu0
    %v1570 = vadd.f32 %v1472, %v1569
    %v1571 = vpop.f32.mrf.mxu0
    %v1572 = vadd.f32 %v1472, %v1571
    %1573 = vdwg.mxu0
    %v1574 = vpack.c.bf16 %v1283, %v1281
    %v1575 = vpack.c.bf16 %v1288, %v1286
    %v1576 = vpack.c.bf16 %v1293, %v1291
    %v1577 = vpack.c.bf16 %v1298, %v1296
    %v1578 = vpack.c.bf16 %v1303, %v1301
    %v1579 = vpack.c.bf16 %v1308, %v1306
    %v1580 = vpack.c.bf16 %v1313, %v1311
    %v1581 = vpack.c.bf16 %v1318, %v1316
    %v1582 = vpack.c.bf16 %v1323, %v1321
    %v1583 = vpack.c.bf16 %v1328, %v1326
    %v1584 = vpack.c.bf16 %v1333, %v1331
    %v1585 = vpack.c.bf16 %v1338, %v1336
    %v1586 = vpack.c.bf16 %v1343, %v1341
    %v1587 = vpack.c.bf16 %v1348, %v1346
    %v1588 = vpack.c.bf16 %v1353, %v1351
    %v1589 = vpack.c.bf16 %v1358, %v1356
    %v1590 = vpack.c.bf16 %v1390, %v1388
    %v1591 = vpack.c.bf16 %v1395, %v1393
    %v1592 = vpack.c.bf16 %v1400, %v1398
    %v1593 = vpack.c.bf16 %v1405, %v1403
    %v1594 = vpack.c.bf16 %v1410, %v1408
    %v1595 = vpack.c.bf16 %v1415, %v1413
    %v1596 = vpack.c.bf16 %v1420, %v1418
    %v1597 = vpack.c.bf16 %v1425, %v1423
    %v1598 = vpack.c.bf16 %v1430, %v1428
    %v1599 = vpack.c.bf16 %v1435, %v1433
    %v1600 = vpack.c.bf16 %v1440, %v1438
    %v1601 = vpack.c.bf16 %v1445, %v1443
    %v1602 = vpack.c.bf16 %v1450, %v1448
    %v1603 = vpack.c.bf16 %v1455, %v1453
    %v1604 = vpack.c.bf16 %v1460, %v1458
    %v1605 = vpack.c.bf16 %v1465, %v1463
    %v1607 = vsel %vm411, %v1574, 0
    %v1610 = vsel %vm411, %v1575, 0
    %v1613 = vsel %vm411, %v1576, 0
    %v1616 = vsel %vm411, %v1577, 0
    %v1619 = vsel %vm411, %v1578, 0
    %v1622 = vsel %vm411, %v1579, 0
    %v1625 = vsel %vm411, %v1580, 0
    %v1628 = vsel %vm411, %v1581, 0
    %v1631 = vsel %vm411, %v1582, 0
    %v1634 = vsel %vm411, %v1583, 0
    %v1637 = vsel %vm411, %v1584, 0
    %v1640 = vsel %vm411, %v1585, 0
    %v1643 = vsel %vm411, %v1586, 0
    %v1646 = vsel %vm411, %v1587, 0
    %v1649 = vsel %vm411, %v1588, 0
    %v1652 = vsel %vm411, %v1589, 0
    %v1655 = vsel %vm411, %v1590, 0
    %v1658 = vsel %vm411, %v1591, 0
    %v1661 = vsel %vm411, %v1592, 0
    %v1664 = vsel %vm411, %v1593, 0
    %v1667 = vsel %vm411, %v1594, 0
    %v1670 = vsel %vm411, %v1595, 0
    %v1673 = vsel %vm411, %v1596, 0
    %v1676 = vsel %vm411, %v1597, 0
    %v1679 = vsel %vm411, %v1598, 0
    %v1682 = vsel %vm411, %v1599, 0
    %v1685 = vsel %vm411, %v1600, 0
    %v1688 = vsel %vm411, %v1601, 0
    %v1691 = vsel %vm411, %v1602, 0
    %v1694 = vsel %vm411, %v1603, 0
    %v1697 = vsel %vm411, %v1604, 0
    %v1700 = vsel %vm411, %v1605, 0
    %1702 = vmatpush.bf16.xpose.msra.mxu0 %v1676
    %1703 = vmatpush.bf16.xpose.msra.mxu0 %v1673
    %1704 = vmatpush.bf16.xpose.msra.mxu0 %v1670
    %1705 = vmatpush.bf16.xpose.msra.mxu0 %v1667
    %1706 = vmatpush.bf16.xpose.msra.mxu0 %v1664
    %1707 = vmatpush.bf16.xpose.msra.mxu0 %v1661
    %1708 = vmatpush.bf16.xpose.msra.mxu0 %v1658
    %1709 = vmatpush.bf16.xpose.msra.mxu0 %v1655
    %1710 = vmatmul.bf16.gmra.mxu0 %v1607
    %v1711 = vpop.f32.mrf.mxu0
    %v1712 = vadd.f32 0.0, %v1711
    %v1713 = vpop.f32.mrf.mxu0
    %v1714 = vadd.f32 0.0, %v1713
    %1715 = vmatmul.bf16.gmra.mxu0 %v1610
    %v1716 = vpop.f32.mrf.mxu0
    %v1717 = vadd.f32 0.0, %v1716
    %v1718 = vpop.f32.mrf.mxu0
    %v1719 = vadd.f32 0.0, %v1718
    %1720 = vmatmul.bf16.gmra.mxu0 %v1613
    %v1721 = vpop.f32.mrf.mxu0
    %v1722 = vadd.f32 0.0, %v1721
    %v1723 = vpop.f32.mrf.mxu0
    %v1724 = vadd.f32 0.0, %v1723
    %1725 = vmatmul.bf16.gmra.mxu0 %v1616
    %v1726 = vpop.f32.mrf.mxu0
    %v1727 = vadd.f32 0.0, %v1726
    %v1728 = vpop.f32.mrf.mxu0
    %v1729 = vadd.f32 0.0, %v1728
    %1730 = vmatmul.bf16.gmra.mxu0 %v1619
    %v1731 = vpop.f32.mrf.mxu0
    %v1732 = vadd.f32 0.0, %v1731
    %v1733 = vpop.f32.mrf.mxu0
    %v1734 = vadd.f32 0.0, %v1733
    %1735 = vmatmul.bf16.gmra.mxu0 %v1622
    %v1736 = vpop.f32.mrf.mxu0
    %v1737 = vadd.f32 0.0, %v1736
    %v1738 = vpop.f32.mrf.mxu0
    %v1739 = vadd.f32 0.0, %v1738
    %1740 = vmatmul.bf16.gmra.mxu0 %v1625
    %v1741 = vpop.f32.mrf.mxu0
    %v1742 = vadd.f32 0.0, %v1741
    %v1743 = vpop.f32.mrf.mxu0
    %v1744 = vadd.f32 0.0, %v1743
    %1745 = vmatmul.bf16.gmra.mxu0 %v1628
    %v1746 = vpop.f32.mrf.mxu0
    %v1747 = vadd.f32 0.0, %v1746
    %v1748 = vpop.f32.mrf.mxu0
    %v1749 = vadd.f32 0.0, %v1748
    %1750 = vmatmul.bf16.gmra.mxu0 %v1631
    %v1751 = vpop.f32.mrf.mxu0
    %v1752 = vadd.f32 0.0, %v1751
    %v1753 = vpop.f32.mrf.mxu0
    %v1754 = vadd.f32 0.0, %v1753
    %1755 = vmatmul.bf16.gmra.mxu0 %v1634
    %v1756 = vpop.f32.mrf.mxu0
    %v1757 = vadd.f32 0.0, %v1756
    %v1758 = vpop.f32.mrf.mxu0
    %v1759 = vadd.f32 0.0, %v1758
    %1760 = vmatmul.bf16.gmra.mxu0 %v1637
    %v1761 = vpop.f32.mrf.mxu0
    %v1762 = vadd.f32 0.0, %v1761
    %v1763 = vpop.f32.mrf.mxu0
    %v1764 = vadd.f32 0.0, %v1763
    %1765 = vmatmul.bf16.gmra.mxu0 %v1640
    %v1766 = vpop.f32.mrf.mxu0
    %v1767 = vadd.f32 0.0, %v1766
    %v1768 = vpop.f32.mrf.mxu0
    %v1769 = vadd.f32 0.0, %v1768
    %1770 = vmatmul.bf16.gmra.mxu0 %v1643
    %v1771 = vpop.f32.mrf.mxu0
    %v1772 = vadd.f32 0.0, %v1771
    %v1773 = vpop.f32.mrf.mxu0
    %v1774 = vadd.f32 0.0, %v1773
    %1775 = vmatmul.bf16.gmra.mxu0 %v1646
    %v1776 = vpop.f32.mrf.mxu0
    %v1777 = vadd.f32 0.0, %v1776
    %v1778 = vpop.f32.mrf.mxu0
    %v1779 = vadd.f32 0.0, %v1778
    %1780 = vmatmul.bf16.gmra.mxu0 %v1649
    %v1781 = vpop.f32.mrf.mxu0
    %v1782 = vadd.f32 0.0, %v1781
    %v1783 = vpop.f32.mrf.mxu0
    %v1784 = vadd.f32 0.0, %v1783
    %1785 = vmatmul.bf16.gmra.mxu0 %v1652
    %v1786 = vpop.f32.mrf.mxu0
    %v1787 = vadd.f32 0.0, %v1786
    %v1788 = vpop.f32.mrf.mxu0
    %v1789 = vadd.f32 0.0, %v1788
    %1790 = vdwg.mxu0
    %1791 = vmatpush.bf16.xpose.msra.mxu0 %v1700
    %1792 = vmatpush.bf16.xpose.msra.mxu0 %v1697
    %1793 = vmatpush.bf16.xpose.msra.mxu0 %v1694
    %1794 = vmatpush.bf16.xpose.msra.mxu0 %v1691
    %1795 = vmatpush.bf16.xpose.msra.mxu0 %v1688
    %1796 = vmatpush.bf16.xpose.msra.mxu0 %v1685
    %1797 = vmatpush.bf16.xpose.msra.mxu0 %v1682
    %1798 = vmatpush.bf16.xpose.msra.mxu0 %v1679
    %1799 = vmatmul.bf16.gmra.mxu0 %v1607
    %v1800 = vpop.f32.mrf.mxu0
    %v1801 = vadd.f32 0.0, %v1800
    %v1802 = vpop.f32.mrf.mxu0
    %v1803 = vadd.f32 0.0, %v1802
    %1804 = vmatmul.bf16.gmra.mxu0 %v1610
    %v1805 = vpop.f32.mrf.mxu0
    %v1806 = vadd.f32 0.0, %v1805
    %v1807 = vpop.f32.mrf.mxu0
    %v1808 = vadd.f32 0.0, %v1807
    %1809 = vmatmul.bf16.gmra.mxu0 %v1613
    %v1810 = vpop.f32.mrf.mxu0
    %v1811 = vadd.f32 0.0, %v1810
    %v1812 = vpop.f32.mrf.mxu0
    %v1813 = vadd.f32 0.0, %v1812
    %1814 = vmatmul.bf16.gmra.mxu0 %v1616
    %v1815 = vpop.f32.mrf.mxu0
    %v1816 = vadd.f32 0.0, %v1815
    %v1817 = vpop.f32.mrf.mxu0
    %v1818 = vadd.f32 0.0, %v1817
    %1819 = vmatmul.bf16.gmra.mxu0 %v1619
    %v1820 = vpop.f32.mrf.mxu0
    %v1821 = vadd.f32 0.0, %v1820
    %v1822 = vpop.f32.mrf.mxu0
    %v1823 = vadd.f32 0.0, %v1822
    %1824 = vmatmul.bf16.gmra.mxu0 %v1622
    %v1825 = vpop.f32.mrf.mxu0
    %v1826 = vadd.f32 0.0, %v1825
    %v1827 = vpop.f32.mrf.mxu0
    %v1828 = vadd.f32 0.0, %v1827
    %1829 = vmatmul.bf16.gmra.mxu0 %v1625
    %v1830 = vpop.f32.mrf.mxu0
    %v1831 = vadd.f32 0.0, %v1830
    %v1832 = vpop.f32.mrf.mxu0
    %v1833 = vadd.f32 0.0, %v1832
    %1834 = vmatmul.bf16.gmra.mxu0 %v1628
    %v1835 = vpop.f32.mrf.mxu0
    %v1836 = vadd.f32 0.0, %v1835
    %v1837 = vpop.f32.mrf.mxu0
    %v1838 = vadd.f32 0.0, %v1837
    %1839 = vmatmul.bf16.gmra.mxu0 %v1631
    %v1840 = vpop.f32.mrf.mxu0
    %v1841 = vadd.f32 0.0, %v1840
    %v1842 = vpop.f32.mrf.mxu0
    %v1843 = vadd.f32 0.0, %v1842
    %1844 = vmatmul.bf16.gmra.mxu0 %v1634
    %v1845 = vpop.f32.mrf.mxu0
    %v1846 = vadd.f32 0.0, %v1845
    %v1847 = vpop.f32.mrf.mxu0
    %v1848 = vadd.f32 0.0, %v1847
    %1849 = vmatmul.bf16.gmra.mxu0 %v1637
    %v1850 = vpop.f32.mrf.mxu0
    %v1851 = vadd.f32 0.0, %v1850
    %v1852 = vpop.f32.mrf.mxu0
    %v1853 = vadd.f32 0.0, %v1852
    %1854 = vmatmul.bf16.gmra.mxu0 %v1640
    %v1855 = vpop.f32.mrf.mxu0
    %v1856 = vadd.f32 0.0, %v1855
    %v1857 = vpop.f32.mrf.mxu0
    %v1858 = vadd.f32 0.0, %v1857
    %1859 = vmatmul.bf16.gmra.mxu0 %v1643
    %v1860 = vpop.f32.mrf.mxu0
    %v1861 = vadd.f32 0.0, %v1860
    %v1862 = vpop.f32.mrf.mxu0
    %v1863 = vadd.f32 0.0, %v1862
    %1864 = vmatmul.bf16.gmra.mxu0 %v1646
    %v1865 = vpop.f32.mrf.mxu0
    %v1866 = vadd.f32 0.0, %v1865
    %v1867 = vpop.f32.mrf.mxu0
    %v1868 = vadd.f32 0.0, %v1867
    %1869 = vmatmul.bf16.gmra.mxu0 %v1649
    %v1870 = vpop.f32.mrf.mxu0
    %v1871 = vadd.f32 0.0, %v1870
    %v1872 = vpop.f32.mrf.mxu0
    %v1873 = vadd.f32 0.0, %v1872
    %1874 = vmatmul.bf16.gmra.mxu0 %v1652
    %v1875 = vpop.f32.mrf.mxu0
    %v1876 = vadd.f32 0.0, %v1875
    %v1877 = vpop.f32.mrf.mxu0
    %v1878 = vadd.f32 0.0, %v1877
    %1879 = vdwg.mxu0
    %v1880 = vmul.f32 %v1712, 0.17677669
    %v1881 = vmul.f32 %v1801, 0.17677669
    %v1882 = vmul.f32 %v1714, 0.17677669
    %v1883 = vmul.f32 %v1803, 0.17677669
    %v1884 = vmul.f32 %v1717, 0.17677669
    %v1885 = vmul.f32 %v1806, 0.17677669
    %v1886 = vmul.f32 %v1719, 0.17677669
    %v1887 = vmul.f32 %v1808, 0.17677669
    %v1888 = vmul.f32 %v1722, 0.17677669
    %v1889 = vmul.f32 %v1811, 0.17677669
    %v1890 = vmul.f32 %v1724, 0.17677669
    %v1891 = vmul.f32 %v1813, 0.17677669
    %v1892 = vmul.f32 %v1727, 0.17677669
    %v1893 = vmul.f32 %v1816, 0.17677669
    %v1894 = vmul.f32 %v1729, 0.17677669
    %v1895 = vmul.f32 %v1818, 0.17677669
    %v1896 = vmul.f32 %v1732, 0.17677669
    %v1897 = vmul.f32 %v1821, 0.17677669
    %v1898 = vmul.f32 %v1734, 0.17677669
    %v1899 = vmul.f32 %v1823, 0.17677669
    %v1900 = vmul.f32 %v1737, 0.17677669
    %v1901 = vmul.f32 %v1826, 0.17677669
    %v1902 = vmul.f32 %v1739, 0.17677669
    %v1903 = vmul.f32 %v1828, 0.17677669
    %v1904 = vmul.f32 %v1742, 0.17677669
    %v1905 = vmul.f32 %v1831, 0.17677669
    %v1906 = vmul.f32 %v1744, 0.17677669
    %v1907 = vmul.f32 %v1833, 0.17677669
    %v1908 = vmul.f32 %v1747, 0.17677669
    %v1909 = vmul.f32 %v1836, 0.17677669
    %v1910 = vmul.f32 %v1749, 0.17677669
    %v1911 = vmul.f32 %v1838, 0.17677669
    %v1912 = vmul.f32 %v1752, 0.17677669
    %v1913 = vmul.f32 %v1841, 0.17677669
    %v1914 = vmul.f32 %v1754, 0.17677669
    %v1915 = vmul.f32 %v1843, 0.17677669
    %v1916 = vmul.f32 %v1757, 0.17677669
    %v1917 = vmul.f32 %v1846, 0.17677669
    %v1918 = vmul.f32 %v1759, 0.17677669
    %v1919 = vmul.f32 %v1848, 0.17677669
    %v1920 = vmul.f32 %v1762, 0.17677669
    %v1921 = vmul.f32 %v1851, 0.17677669
    %v1922 = vmul.f32 %v1764, 0.17677669
    %v1923 = vmul.f32 %v1853, 0.17677669
    %v1924 = vmul.f32 %v1767, 0.17677669
    %v1925 = vmul.f32 %v1856, 0.17677669
    %v1926 = vmul.f32 %v1769, 0.17677669
    %v1927 = vmul.f32 %v1858, 0.17677669
    %v1928 = vmul.f32 %v1772, 0.17677669
    %v1929 = vmul.f32 %v1861, 0.17677669
    %v1930 = vmul.f32 %v1774, 0.17677669
    %v1931 = vmul.f32 %v1863, 0.17677669
    %v1932 = vmul.f32 %v1777, 0.17677669
    %v1933 = vmul.f32 %v1866, 0.17677669
    %v1934 = vmul.f32 %v1779, 0.17677669
    %v1935 = vmul.f32 %v1868, 0.17677669
    %v1936 = vmul.f32 %v1782, 0.17677669
    %v1937 = vmul.f32 %v1871, 0.17677669
    %v1938 = vmul.f32 %v1784, 0.17677669
    %v1939 = vmul.f32 %v1873, 0.17677669
    %v1940 = vmul.f32 %v1787, 0.17677669
    %v1941 = vmul.f32 %v1876, 0.17677669
    %v1942 = vmul.f32 %v1789, 0.17677669
    %v1943 = vmul.f32 %v1878, 0.17677669
    %v1944 = vld [vmem:[%s4] sm:$0xff]
    %v1945 = vld [vmem:[%s4 + $0x8] sm:$0xff]
    %v1946 = vld [vmem:[%s4 + $0x10] sm:$0xff]
    %v1947 = vld [vmem:[%s4 + $0x18] sm:$0xff]
    %v1948 = vld [vmem:[%s4 + $0x20] sm:$0xff]
    %v1949 = vld [vmem:[%s4 + $0x28] sm:$0xff]
    %v1950 = vld [vmem:[%s4 + $0x30] sm:$0xff]
    %v1951 = vld [vmem:[%s4 + $0x38] sm:$0xff]
    %v1952 = vld [vmem:[%s4 + $0x40] sm:$0xff]
    %v1953 = vld [vmem:[%s4 + $0x48] sm:$0xff]
    %v1954 = vld [vmem:[%s4 + $0x50] sm:$0xff]
    %v1955 = vld [vmem:[%s4 + $0x58] sm:$0xff]
    %v1956 = vld [vmem:[%s4 + $0x60] sm:$0xff]
    %v1957 = vld [vmem:[%s4 + $0x68] sm:$0xff]
    %v1958 = vld [vmem:[%s4 + $0x70] sm:$0xff]
    %v1959 = vld [vmem:[%s4 + $0x78] sm:$0xff]
    %v1960 = vld [vmem:[%s4 + $0x80] sm:$0xff]
    %v1961 = vld [vmem:[%s4 + $0x88] sm:$0xff]
    %v1962 = vld [vmem:[%s4 + $0x90] sm:$0xff]
    %v1963 = vld [vmem:[%s4 + $0x98] sm:$0xff]
    %v1964 = vld [vmem:[%s4 + $0xa0] sm:$0xff]
    %v1965 = vld [vmem:[%s4 + $0xa8] sm:$0xff]
    %v1966 = vld [vmem:[%s4 + $0xb0] sm:$0xff]
    %v1967 = vld [vmem:[%s4 + $0xb8] sm:$0xff]
    %v1968 = vld [vmem:[%s4 + $0xc0] sm:$0xff]
    %v1969 = vld [vmem:[%s4 + $0xc8] sm:$0xff]
    %v1970 = vld [vmem:[%s4 + $0xd0] sm:$0xff]
    %v1971 = vld [vmem:[%s4 + $0xd8] sm:$0xff]
    %v1972 = vld [vmem:[%s4 + $0xe0] sm:$0xff]
    %v1973 = vld [vmem:[%s4 + $0xe8] sm:$0xff]
    %v1974 = vld [vmem:[%s4 + $0xf0] sm:$0xff]
    %v1975 = vld [vmem:[%s4 + $0xf8] sm:$0xff]
    %v1976 = vld [vmem:[%s4 + $0x100] sm:$0xff]
    %v1977 = vld [vmem:[%s4 + $0x108] sm:$0xff]
    %v1978 = vld [vmem:[%s4 + $0x110] sm:$0xff]
    %v1979 = vld [vmem:[%s4 + $0x118] sm:$0xff]
    %v1980 = vld [vmem:[%s4 + $0x120] sm:$0xff]
    %v1981 = vld [vmem:[%s4 + $0x128] sm:$0xff]
    %v1982 = vld [vmem:[%s4 + $0x130] sm:$0xff]
    %v1983 = vld [vmem:[%s4 + $0x138] sm:$0xff]
    %v1984 = vld [vmem:[%s4 + $0x140] sm:$0xff]
    %v1985 = vld [vmem:[%s4 + $0x148] sm:$0xff]
    %v1986 = vld [vmem:[%s4 + $0x150] sm:$0xff]
    %v1987 = vld [vmem:[%s4 + $0x158] sm:$0xff]
    %v1988 = vld [vmem:[%s4 + $0x160] sm:$0xff]
    %v1989 = vld [vmem:[%s4 + $0x168] sm:$0xff]
    %v1990 = vld [vmem:[%s4 + $0x170] sm:$0xff]
    %v1991 = vld [vmem:[%s4 + $0x178] sm:$0xff]
    %v1992 = vld [vmem:[%s4 + $0x180] sm:$0xff]
    %v1993 = vld [vmem:[%s4 + $0x188] sm:$0xff]
    %v1994 = vld [vmem:[%s4 + $0x190] sm:$0xff]
    %v1995 = vld [vmem:[%s4 + $0x198] sm:$0xff]
    %v1996 = vld [vmem:[%s4 + $0x1a0] sm:$0xff]
    %v1997 = vld [vmem:[%s4 + $0x1a8] sm:$0xff]
    %v1998 = vld [vmem:[%s4 + $0x1b0] sm:$0xff]
    %v1999 = vld [vmem:[%s4 + $0x1b8] sm:$0xff]
    %v2000 = vld [vmem:[%s4 + $0x1c0] sm:$0xff]
    %v2001 = vld [vmem:[%s4 + $0x1c8] sm:$0xff]
    %v2002 = vld [vmem:[%s4 + $0x1d0] sm:$0xff]
    %v2003 = vld [vmem:[%s4 + $0x1d8] sm:$0xff]
    %v2004 = vld [vmem:[%s4 + $0x1e0] sm:$0xff]
    %v2005 = vld [vmem:[%s4 + $0x1e8] sm:$0xff]
    %v2006 = vld [vmem:[%s4 + $0x1f0] sm:$0xff]
    %v2007 = vld [vmem:[%s4 + $0x1f8] sm:$0xff]
    %v2008 = vadd.f32 %v1880, %v1944
    %v2009 = vadd.f32 %v1881, %v1945
    %v2010 = vadd.f32 %v1882, %v1946
    %v2011 = vadd.f32 %v1883, %v1947
    %v2012 = vadd.f32 %v1884, %v1948
    %v2013 = vadd.f32 %v1885, %v1949
    %v2014 = vadd.f32 %v1886, %v1950
    %v2015 = vadd.f32 %v1887, %v1951
    %v2016 = vadd.f32 %v1888, %v1952
    %v2017 = vadd.f32 %v1889, %v1953
    %v2018 = vadd.f32 %v1890, %v1954
    %v2019 = vadd.f32 %v1891, %v1955
    %v2020 = vadd.f32 %v1892, %v1956
    %v2021 = vadd.f32 %v1893, %v1957
    %v2022 = vadd.f32 %v1894, %v1958
    %v2023 = vadd.f32 %v1895, %v1959
    %v2024 = vadd.f32 %v1896, %v1960
    %v2025 = vadd.f32 %v1897, %v1961
    %v2026 = vadd.f32 %v1898, %v1962
    %v2027 = vadd.f32 %v1899, %v1963
    %v2028 = vadd.f32 %v1900, %v1964
    %v2029 = vadd.f32 %v1901, %v1965
    %v2030 = vadd.f32 %v1902, %v1966
    %v2031 = vadd.f32 %v1903, %v1967
    %v2032 = vadd.f32 %v1904, %v1968
    %v2033 = vadd.f32 %v1905, %v1969
    %v2034 = vadd.f32 %v1906, %v1970
    %v2035 = vadd.f32 %v1907, %v1971
    %v2036 = vadd.f32 %v1908, %v1972
    %v2037 = vadd.f32 %v1909, %v1973
    %v2038 = vadd.f32 %v1910, %v1974
    %v2039 = vadd.f32 %v1911, %v1975
    %v2040 = vadd.f32 %v1912, %v1976
    %v2041 = vadd.f32 %v1913, %v1977
    %v2042 = vadd.f32 %v1914, %v1978
    %v2043 = vadd.f32 %v1915, %v1979
    %v2044 = vadd.f32 %v1916, %v1980
    %v2045 = vadd.f32 %v1917, %v1981
    %v2046 = vadd.f32 %v1918, %v1982
    %v2047 = vadd.f32 %v1919, %v1983
    %v2048 = vadd.f32 %v1920, %v1984
    %v2049 = vadd.f32 %v1921, %v1985
    %v2050 = vadd.f32 %v1922, %v1986
    %v2051 = vadd.f32 %v1923, %v1987
    %v2052 = vadd.f32 %v1924, %v1988
    %v2053 = vadd.f32 %v1925, %v1989
    %v2054 = vadd.f32 %v1926, %v1990
    %v2055 = vadd.f32 %v1927, %v1991
    %v2056 = vadd.f32 %v1928, %v1992
    %v2057 = vadd.f32 %v1929, %v1993
    %v2058 = vadd.f32 %v1930, %v1994
    %v2059 = vadd.f32 %v1931, %v1995
    %v2060 = vadd.f32 %v1932, %v1996
    %v2061 = vadd.f32 %v1933, %v1997
    %v2062 = vadd.f32 %v1934, %v1998
    %v2063 = vadd.f32 %v1935, %v1999
    %v2064 = vadd.f32 %v1936, %v2000
    %v2065 = vadd.f32 %v1937, %v2001
    %v2066 = vadd.f32 %v1938, %v2002
    %v2067 = vadd.f32 %v1939, %v2003
    %v2068 = vadd.f32 %v1940, %v2004
    %v2069 = vadd.f32 %v1941, %v2005
    %v2070 = vadd.f32 %v1942, %v2006
    %v2071 = vadd.f32 %v1943, %v2007
    %v2072 = vmax.f32 %v2008, %v2009
    %2073 = vmax.xlane.f32.xlu0 %v2072
    %v2074 = vpop.xlane.xlu0 %2073
    %v2075 = vmax.f32 %v2010, %v2011
    %2076 = vmax.xlane.f32.xlu0 %v2075
    %v2077 = vpop.xlane.xlu0 %2076
    %v2078 = vmax.f32 %v2012, %v2013
    %2079 = vmax.xlane.f32.xlu0 %v2078
    %v2080 = vpop.xlane.xlu0 %2079
    %v2081 = vmax.f32 %v2014, %v2015
    %2082 = vmax.xlane.f32.xlu0 %v2081
    %v2083 = vpop.xlane.xlu0 %2082
    %v2084 = vmax.f32 %v2016, %v2017
    %2085 = vmax.xlane.f32.xlu0 %v2084
    %v2086 = vpop.xlane.xlu0 %2085
    %v2087 = vmax.f32 %v2018, %v2019
    %2088 = vmax.xlane.f32.xlu0 %v2087
    %v2089 = vpop.xlane.xlu0 %2088
    %v2090 = vmax.f32 %v2020, %v2021
    %2091 = vmax.xlane.f32.xlu0 %v2090
    %v2092 = vpop.xlane.xlu0 %2091
    %v2093 = vmax.f32 %v2022, %v2023
    %2094 = vmax.xlane.f32.xlu0 %v2093
    %v2095 = vpop.xlane.xlu0 %2094
    %v2096 = vmax.f32 %v2024, %v2025
    %2097 = vmax.xlane.f32.xlu0 %v2096
    %v2098 = vpop.xlane.xlu0 %2097
    %v2099 = vmax.f32 %v2026, %v2027
    %2100 = vmax.xlane.f32.xlu0 %v2099
    %v2101 = vpop.xlane.xlu0 %2100
    %v2102 = vmax.f32 %v2028, %v2029
    %2103 = vmax.xlane.f32.xlu0 %v2102
    %v2104 = vpop.xlane.xlu0 %2103
    %v2105 = vmax.f32 %v2030, %v2031
    %2106 = vmax.xlane.f32.xlu0 %v2105
    %v2107 = vpop.xlane.xlu0 %2106
    %v2108 = vmax.f32 %v2032, %v2033
    %2109 = vmax.xlane.f32.xlu0 %v2108
    %v2110 = vpop.xlane.xlu0 %2109
    %v2111 = vmax.f32 %v2034, %v2035
    %2112 = vmax.xlane.f32.xlu0 %v2111
    %v2113 = vpop.xlane.xlu0 %2112
    %v2114 = vmax.f32 %v2036, %v2037
    %2115 = vmax.xlane.f32.xlu0 %v2114
    %v2116 = vpop.xlane.xlu0 %2115
    %v2117 = vmax.f32 %v2038, %v2039
    %2118 = vmax.xlane.f32.xlu0 %v2117
    %v2119 = vpop.xlane.xlu0 %2118
    %v2120 = vmax.f32 %v2040, %v2041
    %2121 = vmax.xlane.f32.xlu0 %v2120
    %v2122 = vpop.xlane.xlu0 %2121
    %v2123 = vmax.f32 %v2042, %v2043
    %2124 = vmax.xlane.f32.xlu0 %v2123
    %v2125 = vpop.xlane.xlu0 %2124
    %v2126 = vmax.f32 %v2044, %v2045
    %2127 = vmax.xlane.f32.xlu0 %v2126
    %v2128 = vpop.xlane.xlu0 %2127
    %v2129 = vmax.f32 %v2046, %v2047
    %2130 = vmax.xlane.f32.xlu0 %v2129
    %v2131 = vpop.xlane.xlu0 %2130
    %v2132 = vmax.f32 %v2048, %v2049
    %2133 = vmax.xlane.f32.xlu0 %v2132
    %v2134 = vpop.xlane.xlu0 %2133
    %v2135 = vmax.f32 %v2050, %v2051
    %2136 = vmax.xlane.f32.xlu0 %v2135
    %v2137 = vpop.xlane.xlu0 %2136
    %v2138 = vmax.f32 %v2052, %v2053
    %2139 = vmax.xlane.f32.xlu0 %v2138
    %v2140 = vpop.xlane.xlu0 %2139
    %v2141 = vmax.f32 %v2054, %v2055
    %2142 = vmax.xlane.f32.xlu0 %v2141
    %v2143 = vpop.xlane.xlu0 %2142
    %v2144 = vmax.f32 %v2056, %v2057
    %2145 = vmax.xlane.f32.xlu0 %v2144
    %v2146 = vpop.xlane.xlu0 %2145
    %v2147 = vmax.f32 %v2058, %v2059
    %2148 = vmax.xlane.f32.xlu0 %v2147
    %v2149 = vpop.xlane.xlu0 %2148
    %v2150 = vmax.f32 %v2060, %v2061
    %2151 = vmax.xlane.f32.xlu0 %v2150
    %v2152 = vpop.xlane.xlu0 %2151
    %v2153 = vmax.f32 %v2062, %v2063
    %2154 = vmax.xlane.f32.xlu0 %v2153
    %v2155 = vpop.xlane.xlu0 %2154
    %v2156 = vmax.f32 %v2064, %v2065
    %2157 = vmax.xlane.f32.xlu0 %v2156
    %v2158 = vpop.xlane.xlu0 %2157
    %v2159 = vmax.f32 %v2066, %v2067
    %2160 = vmax.xlane.f32.xlu0 %v2159
    %v2161 = vpop.xlane.xlu0 %2160
    %v2162 = vmax.f32 %v2068, %v2069
    %2163 = vmax.xlane.f32.xlu0 %v2162
    %v2164 = vpop.xlane.xlu0 %2163
    %v2165 = vmax.f32 %v2070, %v2071
    %2166 = vmax.xlane.f32.xlu0 %v2165
    %v2167 = vpop.xlane.xlu0 %2166
    %v2168 = vsub.f32 %v2008, %v2074
    %v2169 = vsub.f32 %v2009, %v2074
    %v2170 = vsub.f32 %v2010, %v2077
    %v2171 = vsub.f32 %v2011, %v2077
    %v2172 = vsub.f32 %v2012, %v2080
    %v2173 = vsub.f32 %v2013, %v2080
    %v2174 = vsub.f32 %v2014, %v2083
    %v2175 = vsub.f32 %v2015, %v2083
    %v2176 = vsub.f32 %v2016, %v2086
    %v2177 = vsub.f32 %v2017, %v2086
    %v2178 = vsub.f32 %v2018, %v2089
    %v2179 = vsub.f32 %v2019, %v2089
    %v2180 = vsub.f32 %v2020, %v2092
    %v2181 = vsub.f32 %v2021, %v2092
    %v2182 = vsub.f32 %v2022, %v2095
    %v2183 = vsub.f32 %v2023, %v2095
    %v2184 = vsub.f32 %v2024, %v2098
    %v2185 = vsub.f32 %v2025, %v2098
    %v2186 = vsub.f32 %v2026, %v2101
    %v2187 = vsub.f32 %v2027, %v2101
    %v2188 = vsub.f32 %v2028, %v2104
    %v2189 = vsub.f32 %v2029, %v2104
    %v2190 = vsub.f32 %v2030, %v2107
    %v2191 = vsub.f32 %v2031, %v2107
    %v2192 = vsub.f32 %v2032, %v2110
    %v2193 = vsub.f32 %v2033, %v2110
    %v2194 = vsub.f32 %v2034, %v2113
    %v2195 = vsub.f32 %v2035, %v2113
    %v2196 = vsub.f32 %v2036, %v2116
    %v2197 = vsub.f32 %v2037, %v2116
    %v2198 = vsub.f32 %v2038, %v2119
    %v2199 = vsub.f32 %v2039, %v2119
    %v2200 = vsub.f32 %v2040, %v2122
    %v2201 = vsub.f32 %v2041, %v2122
    %v2202 = vsub.f32 %v2042, %v2125
    %v2203 = vsub.f32 %v2043, %v2125
    %v2204 = vsub.f32 %v2044, %v2128
    %v2205 = vsub.f32 %v2045, %v2128
    %v2206 = vsub.f32 %v2046, %v2131
    %v2207 = vsub.f32 %v2047, %v2131
    %v2208 = vsub.f32 %v2048, %v2134
    %v2209 = vsub.f32 %v2049, %v2134
    %v2210 = vsub.f32 %v2050, %v2137
    %v2211 = vsub.f32 %v2051, %v2137
    %v2212 = vsub.f32 %v2052, %v2140
    %v2213 = vsub.f32 %v2053, %v2140
    %v2214 = vsub.f32 %v2054, %v2143
    %v2215 = vsub.f32 %v2055, %v2143
    %v2216 = vsub.f32 %v2056, %v2146
    %v2217 = vsub.f32 %v2057, %v2146
    %v2218 = vsub.f32 %v2058, %v2149
    %v2219 = vsub.f32 %v2059, %v2149
    %v2220 = vsub.f32 %v2060, %v2152
    %v2221 = vsub.f32 %v2061, %v2152
    %v2222 = vsub.f32 %v2062, %v2155
    %v2223 = vsub.f32 %v2063, %v2155
    %v2224 = vsub.f32 %v2064, %v2158
    %v2225 = vsub.f32 %v2065, %v2158
    %v2226 = vsub.f32 %v2066, %v2161
    %v2227 = vsub.f32 %v2067, %v2161
    %v2228 = vsub.f32 %v2068, %v2164
    %v2229 = vsub.f32 %v2069, %v2164
    %v2230 = vsub.f32 %v2070, %v2167
    %v2231 = vsub.f32 %v2071, %v2167
    %v2232 = vmul.f32 %v2168, 1.442695
    %v2233 = vpow.pop %v2232
    %v2234 = vmul.f32 %v2169, 1.442695
    %v2235 = vpow.pop %v2234
    %v2236 = vmul.f32 %v2170, 1.442695
    %v2237 = vpow.pop %v2236
    %v2238 = vmul.f32 %v2171, 1.442695
    %v2239 = vpow.pop %v2238
    %v2240 = vmul.f32 %v2172, 1.442695
    %v2241 = vpow.pop %v2240
    %v2242 = vmul.f32 %v2173, 1.442695
    %v2243 = vpow.pop %v2242
    %v2244 = vmul.f32 %v2174, 1.442695
    %v2245 = vpow.pop %v2244
    %v2246 = vmul.f32 %v2175, 1.442695
    %v2247 = vpow.pop %v2246
    %v2248 = vmul.f32 %v2176, 1.442695
    %v2249 = vpow.pop %v2248
    %v2250 = vmul.f32 %v2177, 1.442695
    %v2251 = vpow.pop %v2250
    %v2252 = vmul.f32 %v2178, 1.442695
    %v2253 = vpow.pop %v2252
    %v2254 = vmul.f32 %v2179, 1.442695
    %v2255 = vpow.pop %v2254
    %v2256 = vmul.f32 %v2180, 1.442695
    %v2257 = vpow.pop %v2256
    %v2258 = vmul.f32 %v2181, 1.442695
    %v2259 = vpow.pop %v2258
    %v2260 = vmul.f32 %v2182, 1.442695
    %v2261 = vpow.pop %v2260
    %v2262 = vmul.f32 %v2183, 1.442695
    %v2263 = vpow.pop %v2262
    %v2264 = vmul.f32 %v2184, 1.442695
    %v2265 = vpow.pop %v2264
    %v2266 = vmul.f32 %v2185, 1.442695
    %v2267 = vpow.pop %v2266
    %v2268 = vmul.f32 %v2186, 1.442695
    %v2269 = vpow.pop %v2268
    %v2270 = vmul.f32 %v2187, 1.442695
    %v2271 = vpow.pop %v2270
    %v2272 = vmul.f32 %v2188, 1.442695
    %v2273 = vpow.pop %v2272
    %v2274 = vmul.f32 %v2189, 1.442695
    %v2275 = vpow.pop %v2274
    %v2276 = vmul.f32 %v2190, 1.442695
    %v2277 = vpow.pop %v2276
    %v2278 = vmul.f32 %v2191, 1.442695
    %v2279 = vpow.pop %v2278
    %v2280 = vmul.f32 %v2192, 1.442695
    %v2281 = vpow.pop %v2280
    %v2282 = vmul.f32 %v2193, 1.442695
    %v2283 = vpow.pop %v2282
    %v2284 = vmul.f32 %v2194, 1.442695
    %v2285 = vpow.pop %v2284
    %v2286 = vmul.f32 %v2195, 1.442695
    %v2287 = vpow.pop %v2286
    %v2288 = vmul.f32 %v2196, 1.442695
    %v2289 = vpow.pop %v2288
    %v2290 = vmul.f32 %v2197, 1.442695
    %v2291 = vpow.pop %v2290
    %v2292 = vmul.f32 %v2198, 1.442695
    %v2293 = vpow.pop %v2292
    %v2294 = vmul.f32 %v2199, 1.442695
    %v2295 = vpow.pop %v2294
    %v2296 = vmul.f32 %v2200, 1.442695
    %v2297 = vpow.pop %v2296
    %v2298 = vmul.f32 %v2201, 1.442695
    %v2299 = vpow.pop %v2298
    %v2300 = vmul.f32 %v2202, 1.442695
    %v2301 = vpow.pop %v2300
    %v2302 = vmul.f32 %v2203, 1.442695
    %v2303 = vpow.pop %v2302
    %v2304 = vmul.f32 %v2204, 1.442695
    %v2305 = vpow.pop %v2304
    %v2306 = vmul.f32 %v2205, 1.442695
    %v2307 = vpow.pop %v2306
    %v2308 = vmul.f32 %v2206, 1.442695
    %v2309 = vpow.pop %v2308
    %v2310 = vmul.f32 %v2207, 1.442695
    %v2311 = vpow.pop %v2310
    %v2312 = vmul.f32 %v2208, 1.442695
    %v2313 = vpow.pop %v2312
    %v2314 = vmul.f32 %v2209, 1.442695
    %v2315 = vpow.pop %v2314
    %v2316 = vmul.f32 %v2210, 1.442695
    %v2317 = vpow.pop %v2316
    %v2318 = vmul.f32 %v2211, 1.442695
    %v2319 = vpow.pop %v2318
    %v2320 = vmul.f32 %v2212, 1.442695
    %v2321 = vpow.pop %v2320
    %v2322 = vmul.f32 %v2213, 1.442695
    %v2323 = vpow.pop %v2322
    %v2324 = vmul.f32 %v2214, 1.442695
    %v2325 = vpow.pop %v2324
    %v2326 = vmul.f32 %v2215, 1.442695
    %v2327 = vpow.pop %v2326
    %v2328 = vmul.f32 %v2216, 1.442695
    %v2329 = vpow.pop %v2328
    %v2330 = vmul.f32 %v2217, 1.442695
    %v2331 = vpow.pop %v2330
    %v2332 = vmul.f32 %v2218, 1.442695
    %v2333 = vpow.pop %v2332
    %v2334 = vmul.f32 %v2219, 1.442695
    %v2335 = vpow.pop %v2334
    %v2336 = vmul.f32 %v2220, 1.442695
    %v2337 = vpow.pop %v2336
    %v2338 = vmul.f32 %v2221, 1.442695
    %v2339 = vpow.pop %v2338
    %v2340 = vmul.f32 %v2222, 1.442695
    %v2341 = vpow.pop %v2340
    %v2342 = vmul.f32 %v2223, 1.442695
    %v2343 = vpow.pop %v2342
    %v2344 = vmul.f32 %v2224, 1.442695
    %v2345 = vpow.pop %v2344
    %v2346 = vmul.f32 %v2225, 1.442695
    %v2347 = vpow.pop %v2346
    %v2348 = vmul.f32 %v2226, 1.442695
    %v2349 = vpow.pop %v2348
    %v2350 = vmul.f32 %v2227, 1.442695
    %v2351 = vpow.pop %v2350
    %v2352 = vmul.f32 %v2228, 1.442695
    %v2353 = vpow.pop %v2352
    %v2354 = vmul.f32 %v2229, 1.442695
    %v2355 = vpow.pop %v2354
    %v2356 = vmul.f32 %v2230, 1.442695
    %v2357 = vpow.pop %v2356
    %v2358 = vmul.f32 %v2231, 1.442695
    %v2359 = vpow.pop %v2358
    %v2360 = vadd.f32 %v2233, %v2235
    %2361 = vadd.xlane.f32.xlu0 %v2360
    %v2362 = vpop.xlane.xlu0 %2361
    %v2363 = vadd.f32 %v2237, %v2239
    %2364 = vadd.xlane.f32.xlu0 %v2363
    %v2365 = vpop.xlane.xlu0 %2364
    %v2366 = vadd.f32 %v2241, %v2243
    %2367 = vadd.xlane.f32.xlu0 %v2366
    %v2368 = vpop.xlane.xlu0 %2367
    %v2369 = vadd.f32 %v2245, %v2247
    %2370 = vadd.xlane.f32.xlu0 %v2369
    %v2371 = vpop.xlane.xlu0 %2370
    %v2372 = vadd.f32 %v2249, %v2251
    %2373 = vadd.xlane.f32.xlu0 %v2372
    %v2374 = vpop.xlane.xlu0 %2373
    %v2375 = vadd.f32 %v2253, %v2255
    %2376 = vadd.xlane.f32.xlu0 %v2375
    %v2377 = vpop.xlane.xlu0 %2376
    %v2378 = vadd.f32 %v2257, %v2259
    %2379 = vadd.xlane.f32.xlu0 %v2378
    %v2380 = vpop.xlane.xlu0 %2379
    %v2381 = vadd.f32 %v2261, %v2263
    %2382 = vadd.xlane.f32.xlu0 %v2381
    %v2383 = vpop.xlane.xlu0 %2382
    %v2384 = vadd.f32 %v2265, %v2267
    %2385 = vadd.xlane.f32.xlu0 %v2384
    %v2386 = vpop.xlane.xlu0 %2385
    %v2387 = vadd.f32 %v2269, %v2271
    %2388 = vadd.xlane.f32.xlu0 %v2387
    %v2389 = vpop.xlane.xlu0 %2388
    %v2390 = vadd.f32 %v2273, %v2275
    %2391 = vadd.xlane.f32.xlu0 %v2390
    %v2392 = vpop.xlane.xlu0 %2391
    %v2393 = vadd.f32 %v2277, %v2279
    %2394 = vadd.xlane.f32.xlu0 %v2393
    %v2395 = vpop.xlane.xlu0 %2394
    %v2396 = vadd.f32 %v2281, %v2283
    %2397 = vadd.xlane.f32.xlu0 %v2396
    %v2398 = vpop.xlane.xlu0 %2397
    %v2399 = vadd.f32 %v2285, %v2287
    %2400 = vadd.xlane.f32.xlu0 %v2399
    %v2401 = vpop.xlane.xlu0 %2400
    %v2402 = vadd.f32 %v2289, %v2291
    %2403 = vadd.xlane.f32.xlu0 %v2402
    %v2404 = vpop.xlane.xlu0 %2403
    %v2405 = vadd.f32 %v2293, %v2295
    %2406 = vadd.xlane.f32.xlu0 %v2405
    %v2407 = vpop.xlane.xlu0 %2406
    %v2408 = vadd.f32 %v2297, %v2299
    %2409 = vadd.xlane.f32.xlu0 %v2408
    %v2410 = vpop.xlane.xlu0 %2409
    %v2411 = vadd.f32 %v2301, %v2303
    %2412 = vadd.xlane.f32.xlu0 %v2411
    %v2413 = vpop.xlane.xlu0 %2412
    %v2414 = vadd.f32 %v2305, %v2307
    %2415 = vadd.xlane.f32.xlu0 %v2414
    %v2416 = vpop.xlane.xlu0 %2415
    %v2417 = vadd.f32 %v2309, %v2311
    %2418 = vadd.xlane.f32.xlu0 %v2417
    %v2419 = vpop.xlane.xlu0 %2418
    %v2420 = vadd.f32 %v2313, %v2315
    %2421 = vadd.xlane.f32.xlu0 %v2420
    %v2422 = vpop.xlane.xlu0 %2421
    %v2423 = vadd.f32 %v2317, %v2319
    %2424 = vadd.xlane.f32.xlu0 %v2423
    %v2425 = vpop.xlane.xlu0 %2424
    %v2426 = vadd.f32 %v2321, %v2323
    %2427 = vadd.xlane.f32.xlu0 %v2426
    %v2428 = vpop.xlane.xlu0 %2427
    %v2429 = vadd.f32 %v2325, %v2327
    %2430 = vadd.xlane.f32.xlu0 %v2429
    %v2431 = vpop.xlane.xlu0 %2430
    %v2432 = vadd.f32 %v2329, %v2331
    %2433 = vadd.xlane.f32.xlu0 %v2432
    %v2434 = vpop.xlane.xlu0 %2433
    %v2435 = vadd.f32 %v2333, %v2335
    %2436 = vadd.xlane.f32.xlu0 %v2435
    %v2437 = vpop.xlane.xlu0 %2436
    %v2438 = vadd.f32 %v2337, %v2339
    %2439 = vadd.xlane.f32.xlu0 %v2438
    %v2440 = vpop.xlane.xlu0 %2439
    %v2441 = vadd.f32 %v2341, %v2343
    %2442 = vadd.xlane.f32.xlu0 %v2441
    %v2443 = vpop.xlane.xlu0 %2442
    %v2444 = vadd.f32 %v2345, %v2347
    %2445 = vadd.xlane.f32.xlu0 %v2444
    %v2446 = vpop.xlane.xlu0 %2445
    %v2447 = vadd.f32 %v2349, %v2351
    %2448 = vadd.xlane.f32.xlu0 %v2447
    %v2449 = vpop.xlane.xlu0 %2448
    %v2450 = vadd.f32 %v2353, %v2355
    %2451 = vadd.xlane.f32.xlu0 %v2450
    %v2452 = vpop.xlane.xlu0 %2451
    %v2453 = vadd.f32 %v2357, %v2359
    %2454 = vadd.xlane.f32.xlu0 %v2453
    %v2455 = vpop.xlane.xlu0 %2454
    %v2456 = vrcp.pop %v2362
    %v2457 = vrcp.pop %v2365
    %v2458 = vrcp.pop %v2368
    %v2459 = vrcp.pop %v2371
    %v2460 = vrcp.pop %v2374
    %v2461 = vrcp.pop %v2377
    %v2462 = vrcp.pop %v2380
    %v2463 = vrcp.pop %v2383
    %v2464 = vrcp.pop %v2386
    %v2465 = vrcp.pop %v2389
    %v2466 = vrcp.pop %v2392
    %v2467 = vrcp.pop %v2395
    %v2468 = vrcp.pop %v2398
    %v2469 = vrcp.pop %v2401
    %v2470 = vrcp.pop %v2404
    %v2471 = vrcp.pop %v2407
    %v2472 = vrcp.pop %v2410
    %v2473 = vrcp.pop %v2413
    %v2474 = vrcp.pop %v2416
    %v2475 = vrcp.pop %v2419
    %v2476 = vrcp.pop %v2422
    %v2477 = vrcp.pop %v2425
    %v2478 = vrcp.pop %v2428
    %v2479 = vrcp.pop %v2431
    %v2480 = vrcp.pop %v2434
    %v2481 = vrcp.pop %v2437
    %v2482 = vrcp.pop %v2440
    %v2483 = vrcp.pop %v2443
    %v2484 = vrcp.pop %v2446
    %v2485 = vrcp.pop %v2449
    %v2486 = vrcp.pop %v2452
    %v2487 = vrcp.pop %v2455
    %v2488 = vmul.f32 %v2233, %v2456
    %v2489 = vmul.f32 %v2235, %v2456
    %v2490 = vmul.f32 %v2237, %v2457
    %v2491 = vmul.f32 %v2239, %v2457
    %v2492 = vmul.f32 %v2241, %v2458
    %v2493 = vmul.f32 %v2243, %v2458
    %v2494 = vmul.f32 %v2245, %v2459
    %v2495 = vmul.f32 %v2247, %v2459
    %v2496 = vmul.f32 %v2249, %v2460
    %v2497 = vmul.f32 %v2251, %v2460
    %v2498 = vmul.f32 %v2253, %v2461
    %v2499 = vmul.f32 %v2255, %v2461
    %v2500 = vmul.f32 %v2257, %v2462
    %v2501 = vmul.f32 %v2259, %v2462
    %v2502 = vmul.f32 %v2261, %v2463
    %v2503 = vmul.f32 %v2263, %v2463
    %v2504 = vmul.f32 %v2265, %v2464
    %v2505 = vmul.f32 %v2267, %v2464
    %v2506 = vmul.f32 %v2269, %v2465
    %v2507 = vmul.f32 %v2271, %v2465
    %v2508 = vmul.f32 %v2273, %v2466
    %v2509 = vmul.f32 %v2275, %v2466
    %v2510 = vmul.f32 %v2277, %v2467
    %v2511 = vmul.f32 %v2279, %v2467
    %v2512 = vmul.f32 %v2281, %v2468
    %v2513 = vmul.f32 %v2283, %v2468
    %v2514 = vmul.f32 %v2285, %v2469
    %v2515 = vmul.f32 %v2287, %v2469
    %v2516 = vmul.f32 %v2289, %v2470
    %v2517 = vmul.f32 %v2291, %v2470
    %v2518 = vmul.f32 %v2293, %v2471
    %v2519 = vmul.f32 %v2295, %v2471
    %v2520 = vmul.f32 %v2297, %v2472
    %v2521 = vmul.f32 %v2299, %v2472
    %v2522 = vmul.f32 %v2301, %v2473
    %v2523 = vmul.f32 %v2303, %v2473
    %v2524 = vmul.f32 %v2305, %v2474
    %v2525 = vmul.f32 %v2307, %v2474
    %v2526 = vmul.f32 %v2309, %v2475
    %v2527 = vmul.f32 %v2311, %v2475
    %v2528 = vmul.f32 %v2313, %v2476
    %v2529 = vmul.f32 %v2315, %v2476
    %v2530 = vmul.f32 %v2317, %v2477
    %v2531 = vmul.f32 %v2319, %v2477
    %v2532 = vmul.f32 %v2321, %v2478
    %v2533 = vmul.f32 %v2323, %v2478
    %v2534 = vmul.f32 %v2325, %v2479
    %v2535 = vmul.f32 %v2327, %v2479
    %v2536 = vmul.f32 %v2329, %v2480
    %v2537 = vmul.f32 %v2331, %v2480
    %v2538 = vmul.f32 %v2333, %v2481
    %v2539 = vmul.f32 %v2335, %v2481
    %v2540 = vmul.f32 %v2337, %v2482
    %v2541 = vmul.f32 %v2339, %v2482
    %v2542 = vmul.f32 %v2341, %v2483
    %v2543 = vmul.f32 %v2343, %v2483
    %v2544 = vmul.f32 %v2345, %v2484
    %v2545 = vmul.f32 %v2347, %v2484
    %v2546 = vmul.f32 %v2349, %v2485
    %v2547 = vmul.f32 %v2351, %v2485
    %v2548 = vmul.f32 %v2353, %v2486
    %v2549 = vmul.f32 %v2355, %v2486
    %v2550 = vmul.f32 %v2357, %v2487
    %v2551 = vmul.f32 %v2359, %v2487
    %v2552 = vpack.c.bf16 %v2490, %v2488
    %v2553 = vpack.c.bf16 %v2491, %v2489
    %v2554 = vpack.c.bf16 %v2494, %v2492
    %v2555 = vpack.c.bf16 %v2495, %v2493
    %v2556 = vpack.c.bf16 %v2498, %v2496
    %v2557 = vpack.c.bf16 %v2499, %v2497
    %v2558 = vpack.c.bf16 %v2502, %v2500
    %v2559 = vpack.c.bf16 %v2503, %v2501
    %v2560 = vpack.c.bf16 %v2506, %v2504
    %v2561 = vpack.c.bf16 %v2507, %v2505
    %v2562 = vpack.c.bf16 %v2510, %v2508
    %v2563 = vpack.c.bf16 %v2511, %v2509
    %v2564 = vpack.c.bf16 %v2514, %v2512
    %v2565 = vpack.c.bf16 %v2515, %v2513
    %v2566 = vpack.c.bf16 %v2518, %v2516
    %v2567 = vpack.c.bf16 %v2519, %v2517
    %v2568 = vpack.c.bf16 %v2522, %v2520
    %v2569 = vpack.c.bf16 %v2523, %v2521
    %v2570 = vpack.c.bf16 %v2526, %v2524
    %v2571 = vpack.c.bf16 %v2527, %v2525
    %v2572 = vpack.c.bf16 %v2530, %v2528
    %v2573 = vpack.c.bf16 %v2531, %v2529
    %v2574 = vpack.c.bf16 %v2534, %v2532
    %v2575 = vpack.c.bf16 %v2535, %v2533
    %v2576 = vpack.c.bf16 %v2538, %v2536
    %v2577 = vpack.c.bf16 %v2539, %v2537
    %v2578 = vpack.c.bf16 %v2542, %v2540
    %v2579 = vpack.c.bf16 %v2543, %v2541
    %v2580 = vpack.c.bf16 %v2546, %v2544
    %v2581 = vpack.c.bf16 %v2547, %v2545
    %v2582 = vpack.c.bf16 %v2550, %v2548
    %v2583 = vpack.c.bf16 %v2551, %v2549
    %v2584 = vpack.c.bf16 %v1497, %v1495
    %v2585 = vpack.c.bf16 %v1502, %v1500
    %v2586 = vpack.c.bf16 %v1507, %v1505
    %v2587 = vpack.c.bf16 %v1512, %v1510
    %v2588 = vpack.c.bf16 %v1517, %v1515
    %v2589 = vpack.c.bf16 %v1522, %v1520
    %v2590 = vpack.c.bf16 %v1527, %v1525
    %v2591 = vpack.c.bf16 %v1532, %v1530
    %v2592 = vpack.c.bf16 %v1537, %v1535
    %v2593 = vpack.c.bf16 %v1542, %v1540
    %v2594 = vpack.c.bf16 %v1547, %v1545
    %v2595 = vpack.c.bf16 %v1552, %v1550
    %v2596 = vpack.c.bf16 %v1557, %v1555
    %v2597 = vpack.c.bf16 %v1562, %v1560
    %v2598 = vpack.c.bf16 %v1567, %v1565
    %v2599 = vpack.c.bf16 %v1572, %v1570
    %2600 = vmatpush.bf16.msra.mxu0 %v2591
    %2601 = vmatpush.bf16.msra.mxu0 %v2590
    %2602 = vmatpush.bf16.msra.mxu0 %v2589
    %2603 = vmatpush.bf16.msra.mxu0 %v2588
    %2604 = vmatpush.bf16.msra.mxu0 %v2587
    %2605 = vmatpush.bf16.msra.mxu0 %v2586
    %2606 = vmatpush.bf16.msra.mxu0 %v2585
    %2607 = vmatpush.bf16.msra.mxu0 %v2584
    %2608 = vmatmul.bf16.gmra.mxu0 %v2552
    %v2609 = vpop.f32.mrf.mxu0
    %v2610 = vadd.f32 0.0, %v2609
    %v2611 = vpop.f32.mrf.mxu0
    %v2612 = vadd.f32 0.0, %v2611
    %2613 = vmatmul.bf16.gmra.mxu0 %v2554
    %v2614 = vpop.f32.mrf.mxu0
    %v2615 = vadd.f32 0.0, %v2614
    %v2616 = vpop.f32.mrf.mxu0
    %v2617 = vadd.f32 0.0, %v2616
    %2618 = vmatmul.bf16.gmra.mxu0 %v2556
    %v2619 = vpop.f32.mrf.mxu0
    %v2620 = vadd.f32 0.0, %v2619
    %v2621 = vpop.f32.mrf.mxu0
    %v2622 = vadd.f32 0.0, %v2621
    %2623 = vmatmul.bf16.gmra.mxu0 %v2558
    %v2624 = vpop.f32.mrf.mxu0
    %v2625 = vadd.f32 0.0, %v2624
    %v2626 = vpop.f32.mrf.mxu0
    %v2627 = vadd.f32 0.0, %v2626
    %2628 = vmatmul.bf16.gmra.mxu0 %v2560
    %v2629 = vpop.f32.mrf.mxu0
    %v2630 = vadd.f32 0.0, %v2629
    %v2631 = vpop.f32.mrf.mxu0
    %v2632 = vadd.f32 0.0, %v2631
    %2633 = vmatmul.bf16.gmra.mxu0 %v2562
    %v2634 = vpop.f32.mrf.mxu0
    %v2635 = vadd.f32 0.0, %v2634
    %v2636 = vpop.f32.mrf.mxu0
    %v2637 = vadd.f32 0.0, %v2636
    %2638 = vmatmul.bf16.gmra.mxu0 %v2564
    %v2639 = vpop.f32.mrf.mxu0
    %v2640 = vadd.f32 0.0, %v2639
    %v2641 = vpop.f32.mrf.mxu0
    %v2642 = vadd.f32 0.0, %v2641
    %2643 = vmatmul.bf16.gmra.mxu0 %v2566
    %v2644 = vpop.f32.mrf.mxu0
    %v2645 = vadd.f32 0.0, %v2644
    %v2646 = vpop.f32.mrf.mxu0
    %v2647 = vadd.f32 0.0, %v2646
    %2648 = vmatmul.bf16.gmra.mxu0 %v2568
    %v2649 = vpop.f32.mrf.mxu0
    %v2650 = vadd.f32 0.0, %v2649
    %v2651 = vpop.f32.mrf.mxu0
    %v2652 = vadd.f32 0.0, %v2651
    %2653 = vmatmul.bf16.gmra.mxu0 %v2570
    %v2654 = vpop.f32.mrf.mxu0
    %v2655 = vadd.f32 0.0, %v2654
    %v2656 = vpop.f32.mrf.mxu0
    %v2657 = vadd.f32 0.0, %v2656
    %2658 = vmatmul.bf16.gmra.mxu0 %v2572
    %v2659 = vpop.f32.mrf.mxu0
    %v2660 = vadd.f32 0.0, %v2659
    %v2661 = vpop.f32.mrf.mxu0
    %v2662 = vadd.f32 0.0, %v2661
    %2663 = vmatmul.bf16.gmra.mxu0 %v2574
    %v2664 = vpop.f32.mrf.mxu0
    %v2665 = vadd.f32 0.0, %v2664
    %v2666 = vpop.f32.mrf.mxu0
    %v2667 = vadd.f32 0.0, %v2666
    %2668 = vmatmul.bf16.gmra.mxu0 %v2576
    %v2669 = vpop.f32.mrf.mxu0
    %v2670 = vadd.f32 0.0, %v2669
    %v2671 = vpop.f32.mrf.mxu0
    %v2672 = vadd.f32 0.0, %v2671
    %2673 = vmatmul.bf16.gmra.mxu0 %v2578
    %v2674 = vpop.f32.mrf.mxu0
    %v2675 = vadd.f32 0.0, %v2674
    %v2676 = vpop.f32.mrf.mxu0
    %v2677 = vadd.f32 0.0, %v2676
    %2678 = vmatmul.bf16.gmra.mxu0 %v2580
    %v2679 = vpop.f32.mrf.mxu0
    %v2680 = vadd.f32 0.0, %v2679
    %v2681 = vpop.f32.mrf.mxu0
    %v2682 = vadd.f32 0.0, %v2681
    %2683 = vmatmul.bf16.gmra.mxu0 %v2582
    %v2684 = vpop.f32.mrf.mxu0
    %v2685 = vadd.f32 0.0, %v2684
    %v2686 = vpop.f32.mrf.mxu0
    %v2687 = vadd.f32 0.0, %v2686
    %2688 = vdwg.mxu0
    %2689 = vmatpush.bf16.msra.mxu0 %v2599
    %2690 = vmatpush.bf16.msra.mxu0 %v2598
    %2691 = vmatpush.bf16.msra.mxu0 %v2597
    %2692 = vmatpush.bf16.msra.mxu0 %v2596
    %2693 = vmatpush.bf16.msra.mxu0 %v2595
    %2694 = vmatpush.bf16.msra.mxu0 %v2594
    %2695 = vmatpush.bf16.msra.mxu0 %v2593
    %2696 = vmatpush.bf16.msra.mxu0 %v2592
    %2697 = vmatmul.bf16.gmra.mxu0 %v2553
    %v2698 = vpop.f32.mrf.mxu0
    %v2699 = vadd.f32 %v2610, %v2698
    %v2700 = vpop.f32.mrf.mxu0
    %v2701 = vadd.f32 %v2612, %v2700
    %2702 = vmatmul.bf16.gmra.mxu0 %v2555
    %v2703 = vpop.f32.mrf.mxu0
    %v2704 = vadd.f32 %v2615, %v2703
    %v2705 = vpop.f32.mrf.mxu0
    %v2706 = vadd.f32 %v2617, %v2705
    %2707 = vmatmul.bf16.gmra.mxu0 %v2557
    %v2708 = vpop.f32.mrf.mxu0
    %v2709 = vadd.f32 %v2620, %v2708
    %v2710 = vpop.f32.mrf.mxu0
    %v2711 = vadd.f32 %v2622, %v2710
    %2712 = vmatmul.bf16.gmra.mxu0 %v2559
    %v2713 = vpop.f32.mrf.mxu0
    %v2714 = vadd.f32 %v2625, %v2713
    %v2715 = vpop.f32.mrf.mxu0
    %v2716 = vadd.f32 %v2627, %v2715
    %2717 = vmatmul.bf16.gmra.mxu0 %v2561
    %v2718 = vpop.f32.mrf.mxu0
    %v2719 = vadd.f32 %v2630, %v2718
    %v2720 = vpop.f32.mrf.mxu0
    %v2721 = vadd.f32 %v2632, %v2720
    %2722 = vmatmul.bf16.gmra.mxu0 %v2563
    %v2723 = vpop.f32.mrf.mxu0
    %v2724 = vadd.f32 %v2635, %v2723
    %v2725 = vpop.f32.mrf.mxu0
    %v2726 = vadd.f32 %v2637, %v2725
    %2727 = vmatmul.bf16.gmra.mxu0 %v2565
    %v2728 = vpop.f32.mrf.mxu0
    %v2729 = vadd.f32 %v2640, %v2728
    %v2730 = vpop.f32.mrf.mxu0
    %v2731 = vadd.f32 %v2642, %v2730
    %2732 = vmatmul.bf16.gmra.mxu0 %v2567
    %v2733 = vpop.f32.mrf.mxu0
    %v2734 = vadd.f32 %v2645, %v2733
    %v2735 = vpop.f32.mrf.mxu0
    %v2736 = vadd.f32 %v2647, %v2735
    %2737 = vmatmul.bf16.gmra.mxu0 %v2569
    %v2738 = vpop.f32.mrf.mxu0
    %v2739 = vadd.f32 %v2650, %v2738
    %v2740 = vpop.f32.mrf.mxu0
    %v2741 = vadd.f32 %v2652, %v2740
    %2742 = vmatmul.bf16.gmra.mxu0 %v2571
    %v2743 = vpop.f32.mrf.mxu0
    %v2744 = vadd.f32 %v2655, %v2743
    %v2745 = vpop.f32.mrf.mxu0
    %v2746 = vadd.f32 %v2657, %v2745
    %2747 = vmatmul.bf16.gmra.mxu0 %v2573
    %v2748 = vpop.f32.mrf.mxu0
    %v2749 = vadd.f32 %v2660, %v2748
    %v2750 = vpop.f32.mrf.mxu0
    %v2751 = vadd.f32 %v2662, %v2750
    %2752 = vmatmul.bf16.gmra.mxu0 %v2575
    %v2753 = vpop.f32.mrf.mxu0
    %v2754 = vadd.f32 %v2665, %v2753
    %v2755 = vpop.f32.mrf.mxu0
    %v2756 = vadd.f32 %v2667, %v2755
    %2757 = vmatmul.bf16.gmra.mxu0 %v2577
    %v2758 = vpop.f32.mrf.mxu0
    %v2759 = vadd.f32 %v2670, %v2758
    %v2760 = vpop.f32.mrf.mxu0
    %v2761 = vadd.f32 %v2672, %v2760
    %2762 = vmatmul.bf16.gmra.mxu0 %v2579
    %v2763 = vpop.f32.mrf.mxu0
    %v2764 = vadd.f32 %v2675, %v2763
    %v2765 = vpop.f32.mrf.mxu0
    %v2766 = vadd.f32 %v2677, %v2765
    %2767 = vmatmul.bf16.gmra.mxu0 %v2581
    %v2768 = vpop.f32.mrf.mxu0
    %v2769 = vadd.f32 %v2680, %v2768
    %v2770 = vpop.f32.mrf.mxu0
    %v2771 = vadd.f32 %v2682, %v2770
    %2772 = vmatmul.bf16.gmra.mxu0 %v2583
    %v2773 = vpop.f32.mrf.mxu0
    %v2774 = vadd.f32 %v2685, %v2773
    %v2775 = vpop.f32.mrf.mxu0
    %v2776 = vadd.f32 %v2687, %v2775
    %2777 = vdwg.mxu0
    %v2778 = vpack.c.bf16 %v2701, %v2699
    %v2779 = vpack.c.bf16 %v2706, %v2704
    %v2780 = vpack.c.bf16 %v2711, %v2709
    %v2781 = vpack.c.bf16 %v2716, %v2714
    %v2782 = vpack.c.bf16 %v2721, %v2719
    %v2783 = vpack.c.bf16 %v2726, %v2724
    %v2784 = vpack.c.bf16 %v2731, %v2729
    %v2785 = vpack.c.bf16 %v2736, %v2734
    %v2786 = vpack.c.bf16 %v2741, %v2739
    %v2787 = vpack.c.bf16 %v2746, %v2744
    %v2788 = vpack.c.bf16 %v2751, %v2749
    %v2789 = vpack.c.bf16 %v2756, %v2754
    %v2790 = vpack.c.bf16 %v2761, %v2759
    %v2791 = vpack.c.bf16 %v2766, %v2764
    %v2792 = vpack.c.bf16 %v2771, %v2769
    %v2793 = vpack.c.bf16 %v2776, %v2774
    %v2794 = vld [vmem:[%s2 + $0x30] sm:$0xf]
    %v2795 = vld [vmem:[%s2 + $0x34] sm:$0xf]
    %v2796 = vld [vmem:[%s2 + $0x38] sm:$0xf]
    %v2797 = vld [vmem:[%s2 + $0x3c] sm:$0xf]
    %v2798 = vld [vmem:[%s3 + $0x5] sm:$0x1]
    %v2799 = vperm.slane %v2798, 0
    %v2804 = vunpack.c.l.b16 %v2794
    %v2805 = vunpack.c.l.b16 %v2795
    %v2806 = vunpack.c.l.b16 %v2796
    %v2807 = vunpack.c.l.b16 %v2797
    %v2808 = vpack.c.b16 %v2805, %v2804
    %v2809 = vpack.c.b16 %v2807, %v2806
    %v2813 = vsel %vm411, %v2778, 0
    %v2816 = vsel %vm411, %v2779, 0
    %v2819 = vsel %vm411, %v2780, 0
    %v2822 = vsel %vm411, %v2781, 0
    %v2825 = vsel %vm411, %v2782, 0
    %v2828 = vsel %vm411, %v2783, 0
    %v2831 = vsel %vm411, %v2784, 0
    %v2834 = vsel %vm411, %v2785, 0
    %v2837 = vsel %vm411, %v2786, 0
    %v2840 = vsel %vm411, %v2787, 0
    %v2843 = vsel %vm411, %v2788, 0
    %v2846 = vsel %vm411, %v2789, 0
    %v2849 = vsel %vm411, %v2790, 0
    %v2852 = vsel %vm411, %v2791, 0
    %v2855 = vsel %vm411, %v2792, 0
    %v2858 = vsel %vm411, %v2793, 0
    %2860 = vmatpush.bf16.msra.mxu0 0
    %2861 = vmatpush.bf16.msra.mxu0 0
    %2862 = vmatpush.bf16.msra.mxu0 0
    %2863 = vmatpush.bf16.msra.mxu0 0
    %2864 = vmatpush.bf16.msra.mxu0 0
    %2865 = vmatpush.bf16.msra.mxu0 0
    %2866 = vmatpush.bf16.msra.mxu0 %v2809
    %2867 = vmatpush.bf16.msra.mxu0 %v2808
    %2868 = vmatmul.bf16.gmra.mxu0 %v2813
    %v2869 = vpop.f32.mrf.mxu0
    %v2870 = vadd.f32 %v2799, %v2869
    %v2871 = vpop.f32.mrf.mxu0
    %v2872 = vadd.f32 %v2799, %v2871
    %2873 = vmatmul.bf16.gmra.mxu0 %v2816
    %v2874 = vpop.f32.mrf.mxu0
    %v2875 = vadd.f32 %v2799, %v2874
    %v2876 = vpop.f32.mrf.mxu0
    %v2877 = vadd.f32 %v2799, %v2876
    %2878 = vmatmul.bf16.gmra.mxu0 %v2819
    %v2879 = vpop.f32.mrf.mxu0
    %v2880 = vadd.f32 %v2799, %v2879
    %v2881 = vpop.f32.mrf.mxu0
    %v2882 = vadd.f32 %v2799, %v2881
    %2883 = vmatmul.bf16.gmra.mxu0 %v2822
    %v2884 = vpop.f32.mrf.mxu0
    %v2885 = vadd.f32 %v2799, %v2884
    %v2886 = vpop.f32.mrf.mxu0
    %v2887 = vadd.f32 %v2799, %v2886
    %2888 = vmatmul.bf16.gmra.mxu0 %v2825
    %v2889 = vpop.f32.mrf.mxu0
    %v2890 = vadd.f32 %v2799, %v2889
    %v2891 = vpop.f32.mrf.mxu0
    %v2892 = vadd.f32 %v2799, %v2891
    %2893 = vmatmul.bf16.gmra.mxu0 %v2828
    %v2894 = vpop.f32.mrf.mxu0
    %v2895 = vadd.f32 %v2799, %v2894
    %v2896 = vpop.f32.mrf.mxu0
    %v2897 = vadd.f32 %v2799, %v2896
    %2898 = vmatmul.bf16.gmra.mxu0 %v2831
    %v2899 = vpop.f32.mrf.mxu0
    %v2900 = vadd.f32 %v2799, %v2899
    %v2901 = vpop.f32.mrf.mxu0
    %v2902 = vadd.f32 %v2799, %v2901
    %2903 = vmatmul.bf16.gmra.mxu0 %v2834
    %v2904 = vpop.f32.mrf.mxu0
    %v2905 = vadd.f32 %v2799, %v2904
    %v2906 = vpop.f32.mrf.mxu0
    %v2907 = vadd.f32 %v2799, %v2906
    %2908 = vmatmul.bf16.gmra.mxu0 %v2837
    %v2909 = vpop.f32.mrf.mxu0
    %v2910 = vadd.f32 %v2799, %v2909
    %v2911 = vpop.f32.mrf.mxu0
    %v2912 = vadd.f32 %v2799, %v2911
    %2913 = vmatmul.bf16.gmra.mxu0 %v2840
    %v2914 = vpop.f32.mrf.mxu0
    %v2915 = vadd.f32 %v2799, %v2914
    %v2916 = vpop.f32.mrf.mxu0
    %v2917 = vadd.f32 %v2799, %v2916
    %2918 = vmatmul.bf16.gmra.mxu0 %v2843
    %v2919 = vpop.f32.mrf.mxu0
    %v2920 = vadd.f32 %v2799, %v2919
    %v2921 = vpop.f32.mrf.mxu0
    %v2922 = vadd.f32 %v2799, %v2921
    %2923 = vmatmul.bf16.gmra.mxu0 %v2846
    %v2924 = vpop.f32.mrf.mxu0
    %v2925 = vadd.f32 %v2799, %v2924
    %v2926 = vpop.f32.mrf.mxu0
    %v2927 = vadd.f32 %v2799, %v2926
    %2928 = vmatmul.bf16.gmra.mxu0 %v2849
    %v2929 = vpop.f32.mrf.mxu0
    %v2930 = vadd.f32 %v2799, %v2929
    %v2931 = vpop.f32.mrf.mxu0
    %v2932 = vadd.f32 %v2799, %v2931
    %2933 = vmatmul.bf16.gmra.mxu0 %v2852
    %v2934 = vpop.f32.mrf.mxu0
    %v2935 = vadd.f32 %v2799, %v2934
    %v2936 = vpop.f32.mrf.mxu0
    %v2937 = vadd.f32 %v2799, %v2936
    %2938 = vmatmul.bf16.gmra.mxu0 %v2855
    %v2939 = vpop.f32.mrf.mxu0
    %v2940 = vadd.f32 %v2799, %v2939
    %v2941 = vpop.f32.mrf.mxu0
    %v2942 = vadd.f32 %v2799, %v2941
    %2943 = vmatmul.bf16.gmra.mxu0 %v2858
    %v2944 = vpop.f32.mrf.mxu0
    %v2945 = vadd.f32 %v2799, %v2944
    %v2946 = vpop.f32.mrf.mxu0
    %v2947 = vadd.f32 %v2799, %v2946
    %2948 = vdwg.mxu0
    %v2949 = vadd.f32 %v1157, %v2870
    %v2950 = vadd.f32 %v1158, %v2872
    %v2951 = vadd.f32 %v1159, %v2875
    %v2952 = vadd.f32 %v1160, %v2877
    %v2953 = vadd.f32 %v1161, %v2880
    %v2954 = vadd.f32 %v1162, %v2882
    %v2955 = vadd.f32 %v1163, %v2885
    %v2956 = vadd.f32 %v1164, %v2887
    %v2957 = vadd.f32 %v1165, %v2890
    %v2958 = vadd.f32 %v1166, %v2892
    %v2959 = vadd.f32 %v1167, %v2895
    %v2960 = vadd.f32 %v1168, %v2897
    %v2961 = vadd.f32 %v1169, %v2900
    %v2962 = vadd.f32 %v1170, %v2902
    %v2963 = vadd.f32 %v1171, %v2905
    %v2964 = vadd.f32 %v1172, %v2907
    %v2965 = vadd.f32 %v1173, %v2910
    %v2966 = vadd.f32 %v1174, %v2912
    %v2967 = vadd.f32 %v1175, %v2915
    %v2968 = vadd.f32 %v1176, %v2917
    %v2969 = vadd.f32 %v1177, %v2920
    %v2970 = vadd.f32 %v1178, %v2922
    %v2971 = vadd.f32 %v1179, %v2925
    %v2972 = vadd.f32 %v1180, %v2927
    %v2973 = vadd.f32 %v1181, %v2930
    %v2974 = vadd.f32 %v1182, %v2932
    %v2975 = vadd.f32 %v1183, %v2935
    %v2976 = vadd.f32 %v1184, %v2937
    %v2977 = vadd.f32 %v1185, %v2940
    %v2978 = vadd.f32 %v1186, %v2942
    %v2979 = vadd.f32 %v1187, %v2945
    %v2980 = vadd.f32 %v1188, %v2947
    %v2981 = vld [vmem:[%s3 + $0x6] sm:$0x1]
    %v2982 = vld [vmem:[%s3 + $0x7] sm:$0x1]
    %v2983 = vsel %vm411, %v2949, 0.0
    %2984 = vadd.xlane.f32.xlu0 %v2983
    %v2985 = vpop.xlane.xlu0 %2984
    %v2986 = vsel %vm411, %v2950, 0.0
    %2987 = vadd.xlane.f32.xlu0 %v2986
    %v2988 = vpop.xlane.xlu0 %2987
    %v2989 = vsel %vm411, %v2951, 0.0
    %2990 = vadd.xlane.f32.xlu0 %v2989
    %v2991 = vpop.xlane.xlu0 %2990
    %v2992 = vsel %vm411, %v2952, 0.0
    %2993 = vadd.xlane.f32.xlu0 %v2992
    %v2994 = vpop.xlane.xlu0 %2993
    %v2995 = vsel %vm411, %v2953, 0.0
    %2996 = vadd.xlane.f32.xlu0 %v2995
    %v2997 = vpop.xlane.xlu0 %2996
    %v2998 = vsel %vm411, %v2954, 0.0
    %2999 = vadd.xlane.f32.xlu0 %v2998
    %v3000 = vpop.xlane.xlu0 %2999
    %v3001 = vsel %vm411, %v2955, 0.0
    %3002 = vadd.xlane.f32.xlu0 %v3001
    %v3003 = vpop.xlane.xlu0 %3002
    %v3004 = vsel %vm411, %v2956, 0.0
    %3005 = vadd.xlane.f32.xlu0 %v3004
    %v3006 = vpop.xlane.xlu0 %3005
    %v3007 = vsel %vm411, %v2957, 0.0
    %3008 = vadd.xlane.f32.xlu0 %v3007
    %v3009 = vpop.xlane.xlu0 %3008
    %v3010 = vsel %vm411, %v2958, 0.0
    %3011 = vadd.xlane.f32.xlu0 %v3010
    %v3012 = vpop.xlane.xlu0 %3011
    %v3013 = vsel %vm411, %v2959, 0.0
    %3014 = vadd.xlane.f32.xlu0 %v3013
    %v3015 = vpop.xlane.xlu0 %3014
    %v3016 = vsel %vm411, %v2960, 0.0
    %3017 = vadd.xlane.f32.xlu0 %v3016
    %v3018 = vpop.xlane.xlu0 %3017
    %v3019 = vsel %vm411, %v2961, 0.0
    %3020 = vadd.xlane.f32.xlu0 %v3019
    %v3021 = vpop.xlane.xlu0 %3020
    %v3022 = vsel %vm411, %v2962, 0.0
    %3023 = vadd.xlane.f32.xlu0 %v3022
    %v3024 = vpop.xlane.xlu0 %3023
    %v3025 = vsel %vm411, %v2963, 0.0
    %3026 = vadd.xlane.f32.xlu0 %v3025
    %v3027 = vpop.xlane.xlu0 %3026
    %v3028 = vsel %vm411, %v2964, 0.0
    %3029 = vadd.xlane.f32.xlu0 %v3028
    %v3030 = vpop.xlane.xlu0 %3029
    %v3031 = vsel %vm411, %v2965, 0.0
    %3032 = vadd.xlane.f32.xlu0 %v3031
    %v3033 = vpop.xlane.xlu0 %3032
    %v3034 = vsel %vm411, %v2966, 0.0
    %3035 = vadd.xlane.f32.xlu0 %v3034
    %v3036 = vpop.xlane.xlu0 %3035
    %v3037 = vsel %vm411, %v2967, 0.0
    %3038 = vadd.xlane.f32.xlu0 %v3037
    %v3039 = vpop.xlane.xlu0 %3038
    %v3040 = vsel %vm411, %v2968, 0.0
    %3041 = vadd.xlane.f32.xlu0 %v3040
    %v3042 = vpop.xlane.xlu0 %3041
    %v3043 = vsel %vm411, %v2969, 0.0
    %3044 = vadd.xlane.f32.xlu0 %v3043
    %v3045 = vpop.xlane.xlu0 %3044
    %v3046 = vsel %vm411, %v2970, 0.0
    %3047 = vadd.xlane.f32.xlu0 %v3046
    %v3048 = vpop.xlane.xlu0 %3047
    %v3049 = vsel %vm411, %v2971, 0.0
    %3050 = vadd.xlane.f32.xlu0 %v3049
    %v3051 = vpop.xlane.xlu0 %3050
    %v3052 = vsel %vm411, %v2972, 0.0
    %3053 = vadd.xlane.f32.xlu0 %v3052
    %v3054 = vpop.xlane.xlu0 %3053
    %v3055 = vsel %vm411, %v2973, 0.0
    %3056 = vadd.xlane.f32.xlu0 %v3055
    %v3057 = vpop.xlane.xlu0 %3056
    %v3058 = vsel %vm411, %v2974, 0.0
    %3059 = vadd.xlane.f32.xlu0 %v3058
    %v3060 = vpop.xlane.xlu0 %3059
    %v3061 = vsel %vm411, %v2975, 0.0
    %3062 = vadd.xlane.f32.xlu0 %v3061
    %v3063 = vpop.xlane.xlu0 %3062
    %v3064 = vsel %vm411, %v2976, 0.0
    %3065 = vadd.xlane.f32.xlu0 %v3064
    %v3066 = vpop.xlane.xlu0 %3065
    %v3067 = vsel %vm411, %v2977, 0.0
    %3068 = vadd.xlane.f32.xlu0 %v3067
    %v3069 = vpop.xlane.xlu0 %3068
    %v3070 = vsel %vm411, %v2978, 0.0
    %3071 = vadd.xlane.f32.xlu0 %v3070
    %v3072 = vpop.xlane.xlu0 %3071
    %v3073 = vsel %vm411, %v2979, 0.0
    %3074 = vadd.xlane.f32.xlu0 %v3073
    %v3075 = vpop.xlane.xlu0 %3074
    %v3076 = vsel %vm411, %v2980, 0.0
    %3077 = vadd.xlane.f32.xlu0 %v3076
    %v3078 = vpop.xlane.xlu0 %3077
    %v3079 = vmul.f32 %v2985, %v514
    %v3080 = vmul.f32 %v2988, %v514
    %v3081 = vmul.f32 %v2991, %v514
    %v3082 = vmul.f32 %v2994, %v514
    %v3083 = vmul.f32 %v2997, %v514
    %v3084 = vmul.f32 %v3000, %v514
    %v3085 = vmul.f32 %v3003, %v514
    %v3086 = vmul.f32 %v3006, %v514
    %v3087 = vmul.f32 %v3009, %v514
    %v3088 = vmul.f32 %v3012, %v514
    %v3089 = vmul.f32 %v3015, %v514
    %v3090 = vmul.f32 %v3018, %v514
    %v3091 = vmul.f32 %v3021, %v514
    %v3092 = vmul.f32 %v3024, %v514
    %v3093 = vmul.f32 %v3027, %v514
    %v3094 = vmul.f32 %v3030, %v514
    %v3095 = vmul.f32 %v3033, %v514
    %v3096 = vmul.f32 %v3036, %v514
    %v3097 = vmul.f32 %v3039, %v514
    %v3098 = vmul.f32 %v3042, %v514
    %v3099 = vmul.f32 %v3045, %v514
    %v3100 = vmul.f32 %v3048, %v514
    %v3101 = vmul.f32 %v3051, %v514
    %v3102 = vmul.f32 %v3054, %v514
    %v3103 = vmul.f32 %v3057, %v514
    %v3104 = vmul.f32 %v3060, %v514
    %v3105 = vmul.f32 %v3063, %v514
    %v3106 = vmul.f32 %v3066, %v514
    %v3107 = vmul.f32 %v3069, %v514
    %v3108 = vmul.f32 %v3072, %v514
    %v3109 = vmul.f32 %v3075, %v514
    %v3110 = vmul.f32 %v3078, %v514
    %v3111 = vsub.f32 %v2949, %v3079
    %v3112 = vsub.f32 %v2950, %v3080
    %v3113 = vsub.f32 %v2951, %v3081
    %v3114 = vsub.f32 %v2952, %v3082
    %v3115 = vsub.f32 %v2953, %v3083
    %v3116 = vsub.f32 %v2954, %v3084
    %v3117 = vsub.f32 %v2955, %v3085
    %v3118 = vsub.f32 %v2956, %v3086
    %v3119 = vsub.f32 %v2957, %v3087
    %v3120 = vsub.f32 %v2958, %v3088
    %v3121 = vsub.f32 %v2959, %v3089
    %v3122 = vsub.f32 %v2960, %v3090
    %v3123 = vsub.f32 %v2961, %v3091
    %v3124 = vsub.f32 %v2962, %v3092
    %v3125 = vsub.f32 %v2963, %v3093
    %v3126 = vsub.f32 %v2964, %v3094
    %v3127 = vsub.f32 %v2965, %v3095
    %v3128 = vsub.f32 %v2966, %v3096
    %v3129 = vsub.f32 %v2967, %v3097
    %v3130 = vsub.f32 %v2968, %v3098
    %v3131 = vsub.f32 %v2969, %v3099
    %v3132 = vsub.f32 %v2970, %v3100
    %v3133 = vsub.f32 %v2971, %v3101
    %v3134 = vsub.f32 %v2972, %v3102
    %v3135 = vsub.f32 %v2973, %v3103
    %v3136 = vsub.f32 %v2974, %v3104
    %v3137 = vsub.f32 %v2975, %v3105
    %v3138 = vsub.f32 %v2976, %v3106
    %v3139 = vsub.f32 %v2977, %v3107
    %v3140 = vsub.f32 %v2978, %v3108
    %v3141 = vsub.f32 %v2979, %v3109
    %v3142 = vsub.f32 %v2980, %v3110
    %v3143 = vmul.f32 %v3111, %v3111
    %v3144 = vmul.f32 %v3112, %v3112
    %v3145 = vmul.f32 %v3113, %v3113
    %v3146 = vmul.f32 %v3114, %v3114
    %v3147 = vmul.f32 %v3115, %v3115
    %v3148 = vmul.f32 %v3116, %v3116
    %v3149 = vmul.f32 %v3117, %v3117
    %v3150 = vmul.f32 %v3118, %v3118
    %v3151 = vmul.f32 %v3119, %v3119
    %v3152 = vmul.f32 %v3120, %v3120
    %v3153 = vmul.f32 %v3121, %v3121
    %v3154 = vmul.f32 %v3122, %v3122
    %v3155 = vmul.f32 %v3123, %v3123
    %v3156 = vmul.f32 %v3124, %v3124
    %v3157 = vmul.f32 %v3125, %v3125
    %v3158 = vmul.f32 %v3126, %v3126
    %v3159 = vmul.f32 %v3127, %v3127
    %v3160 = vmul.f32 %v3128, %v3128
    %v3161 = vmul.f32 %v3129, %v3129
    %v3162 = vmul.f32 %v3130, %v3130
    %v3163 = vmul.f32 %v3131, %v3131
    %v3164 = vmul.f32 %v3132, %v3132
    %v3165 = vmul.f32 %v3133, %v3133
    %v3166 = vmul.f32 %v3134, %v3134
    %v3167 = vmul.f32 %v3135, %v3135
    %v3168 = vmul.f32 %v3136, %v3136
    %v3169 = vmul.f32 %v3137, %v3137
    %v3170 = vmul.f32 %v3138, %v3138
    %v3171 = vmul.f32 %v3139, %v3139
    %v3172 = vmul.f32 %v3140, %v3140
    %v3173 = vmul.f32 %v3141, %v3141
    %v3174 = vmul.f32 %v3142, %v3142
    %v3175 = vsel %vm411, %v3143, 0.0
    %3176 = vadd.xlane.f32.xlu0 %v3175
    %v3177 = vpop.xlane.xlu0 %3176
    %v3178 = vsel %vm411, %v3144, 0.0
    %3179 = vadd.xlane.f32.xlu0 %v3178
    %v3180 = vpop.xlane.xlu0 %3179
    %v3181 = vsel %vm411, %v3145, 0.0
    %3182 = vadd.xlane.f32.xlu0 %v3181
    %v3183 = vpop.xlane.xlu0 %3182
    %v3184 = vsel %vm411, %v3146, 0.0
    %3185 = vadd.xlane.f32.xlu0 %v3184
    %v3186 = vpop.xlane.xlu0 %3185
    %v3187 = vsel %vm411, %v3147, 0.0
    %3188 = vadd.xlane.f32.xlu0 %v3187
    %v3189 = vpop.xlane.xlu0 %3188
    %v3190 = vsel %vm411, %v3148, 0.0
    %3191 = vadd.xlane.f32.xlu0 %v3190
    %v3192 = vpop.xlane.xlu0 %3191
    %v3193 = vsel %vm411, %v3149, 0.0
    %3194 = vadd.xlane.f32.xlu0 %v3193
    %v3195 = vpop.xlane.xlu0 %3194
    %v3196 = vsel %vm411, %v3150, 0.0
    %3197 = vadd.xlane.f32.xlu0 %v3196
    %v3198 = vpop.xlane.xlu0 %3197
    %v3199 = vsel %vm411, %v3151, 0.0
    %3200 = vadd.xlane.f32.xlu0 %v3199
    %v3201 = vpop.xlane.xlu0 %3200
    %v3202 = vsel %vm411, %v3152, 0.0
    %3203 = vadd.xlane.f32.xlu0 %v3202
    %v3204 = vpop.xlane.xlu0 %3203
    %v3205 = vsel %vm411, %v3153, 0.0
    %3206 = vadd.xlane.f32.xlu0 %v3205
    %v3207 = vpop.xlane.xlu0 %3206
    %v3208 = vsel %vm411, %v3154, 0.0
    %3209 = vadd.xlane.f32.xlu0 %v3208
    %v3210 = vpop.xlane.xlu0 %3209
    %v3211 = vsel %vm411, %v3155, 0.0
    %3212 = vadd.xlane.f32.xlu0 %v3211
    %v3213 = vpop.xlane.xlu0 %3212
    %v3214 = vsel %vm411, %v3156, 0.0
    %3215 = vadd.xlane.f32.xlu0 %v3214
    %v3216 = vpop.xlane.xlu0 %3215
    %v3217 = vsel %vm411, %v3157, 0.0
    %3218 = vadd.xlane.f32.xlu0 %v3217
    %v3219 = vpop.xlane.xlu0 %3218
    %v3220 = vsel %vm411, %v3158, 0.0
    %3221 = vadd.xlane.f32.xlu0 %v3220
    %v3222 = vpop.xlane.xlu0 %3221
    %v3223 = vsel %vm411, %v3159, 0.0
    %3224 = vadd.xlane.f32.xlu0 %v3223
    %v3225 = vpop.xlane.xlu0 %3224
    %v3226 = vsel %vm411, %v3160, 0.0
    %3227 = vadd.xlane.f32.xlu0 %v3226
    %v3228 = vpop.xlane.xlu0 %3227
    %v3229 = vsel %vm411, %v3161, 0.0
    %3230 = vadd.xlane.f32.xlu0 %v3229
    %v3231 = vpop.xlane.xlu0 %3230
    %v3232 = vsel %vm411, %v3162, 0.0
    %3233 = vadd.xlane.f32.xlu0 %v3232
    %v3234 = vpop.xlane.xlu0 %3233
    %v3235 = vsel %vm411, %v3163, 0.0
    %3236 = vadd.xlane.f32.xlu0 %v3235
    %v3237 = vpop.xlane.xlu0 %3236
    %v3238 = vsel %vm411, %v3164, 0.0
    %3239 = vadd.xlane.f32.xlu0 %v3238
    %v3240 = vpop.xlane.xlu0 %3239
    %v3241 = vsel %vm411, %v3165, 0.0
    %3242 = vadd.xlane.f32.xlu0 %v3241
    %v3243 = vpop.xlane.xlu0 %3242
    %v3244 = vsel %vm411, %v3166, 0.0
    %3245 = vadd.xlane.f32.xlu0 %v3244
    %v3246 = vpop.xlane.xlu0 %3245
    %v3247 = vsel %vm411, %v3167, 0.0
    %3248 = vadd.xlane.f32.xlu0 %v3247
    %v3249 = vpop.xlane.xlu0 %3248
    %v3250 = vsel %vm411, %v3168, 0.0
    %3251 = vadd.xlane.f32.xlu0 %v3250
    %v3252 = vpop.xlane.xlu0 %3251
    %v3253 = vsel %vm411, %v3169, 0.0
    %3254 = vadd.xlane.f32.xlu0 %v3253
    %v3255 = vpop.xlane.xlu0 %3254
    %v3256 = vsel %vm411, %v3170, 0.0
    %3257 = vadd.xlane.f32.xlu0 %v3256
    %v3258 = vpop.xlane.xlu0 %3257
    %v3259 = vsel %vm411, %v3171, 0.0
    %3260 = vadd.xlane.f32.xlu0 %v3259
    %v3261 = vpop.xlane.xlu0 %3260
    %v3262 = vsel %vm411, %v3172, 0.0
    %3263 = vadd.xlane.f32.xlu0 %v3262
    %v3264 = vpop.xlane.xlu0 %3263
    %v3265 = vsel %vm411, %v3173, 0.0
    %3266 = vadd.xlane.f32.xlu0 %v3265
    %v3267 = vpop.xlane.xlu0 %3266
    %v3268 = vsel %vm411, %v3174, 0.0
    %3269 = vadd.xlane.f32.xlu0 %v3268
    %v3270 = vpop.xlane.xlu0 %3269
    %v3271 = vmul.f32 %v3177, %v514
    %v3272 = vmul.f32 %v3180, %v514
    %v3273 = vmul.f32 %v3183, %v514
    %v3274 = vmul.f32 %v3186, %v514
    %v3275 = vmul.f32 %v3189, %v514
    %v3276 = vmul.f32 %v3192, %v514
    %v3277 = vmul.f32 %v3195, %v514
    %v3278 = vmul.f32 %v3198, %v514
    %v3279 = vmul.f32 %v3201, %v514
    %v3280 = vmul.f32 %v3204, %v514
    %v3281 = vmul.f32 %v3207, %v514
    %v3282 = vmul.f32 %v3210, %v514
    %v3283 = vmul.f32 %v3213, %v514
    %v3284 = vmul.f32 %v3216, %v514
    %v3285 = vmul.f32 %v3219, %v514
    %v3286 = vmul.f32 %v3222, %v514
    %v3287 = vmul.f32 %v3225, %v514
    %v3288 = vmul.f32 %v3228, %v514
    %v3289 = vmul.f32 %v3231, %v514
    %v3290 = vmul.f32 %v3234, %v514
    %v3291 = vmul.f32 %v3237, %v514
    %v3292 = vmul.f32 %v3240, %v514
    %v3293 = vmul.f32 %v3243, %v514
    %v3294 = vmul.f32 %v3246, %v514
    %v3295 = vmul.f32 %v3249, %v514
    %v3296 = vmul.f32 %v3252, %v514
    %v3297 = vmul.f32 %v3255, %v514
    %v3298 = vmul.f32 %v3258, %v514
    %v3299 = vmul.f32 %v3261, %v514
    %v3300 = vmul.f32 %v3264, %v514
    %v3301 = vmul.f32 %v3267, %v514
    %v3302 = vmul.f32 %v3270, %v514
    %v3303 = vadd.f32 %v3271, 1e-12
    %v3304 = vadd.f32 %v3272, 1e-12
    %v3305 = vadd.f32 %v3273, 1e-12
    %v3306 = vadd.f32 %v3274, 1e-12
    %v3307 = vadd.f32 %v3275, 1e-12
    %v3308 = vadd.f32 %v3276, 1e-12
    %v3309 = vadd.f32 %v3277, 1e-12
    %v3310 = vadd.f32 %v3278, 1e-12
    %v3311 = vadd.f32 %v3279, 1e-12
    %v3312 = vadd.f32 %v3280, 1e-12
    %v3313 = vadd.f32 %v3281, 1e-12
    %v3314 = vadd.f32 %v3282, 1e-12
    %v3315 = vadd.f32 %v3283, 1e-12
    %v3316 = vadd.f32 %v3284, 1e-12
    %v3317 = vadd.f32 %v3285, 1e-12
    %v3318 = vadd.f32 %v3286, 1e-12
    %v3319 = vadd.f32 %v3287, 1e-12
    %v3320 = vadd.f32 %v3288, 1e-12
    %v3321 = vadd.f32 %v3289, 1e-12
    %v3322 = vadd.f32 %v3290, 1e-12
    %v3323 = vadd.f32 %v3291, 1e-12
    %v3324 = vadd.f32 %v3292, 1e-12
    %v3325 = vadd.f32 %v3293, 1e-12
    %v3326 = vadd.f32 %v3294, 1e-12
    %v3327 = vadd.f32 %v3295, 1e-12
    %v3328 = vadd.f32 %v3296, 1e-12
    %v3329 = vadd.f32 %v3297, 1e-12
    %v3330 = vadd.f32 %v3298, 1e-12
    %v3331 = vadd.f32 %v3299, 1e-12
    %v3332 = vadd.f32 %v3300, 1e-12
    %v3333 = vadd.f32 %v3301, 1e-12
    %v3334 = vadd.f32 %v3302, 1e-12
    %v3335 = vrsqrt.pop %v3303
    %v3336 = vmul.f32 %v3335, %v3303
    %v3337 = vmul.f32 %v3336, %v3335
    %v3338 = vmul.f32 0.5, %v3337
    %v3339 = vsub.f32 1.5, %v3338
    %v3340 = vmul.f32 %v3335, %v3339
    %vm3341 = vweird.f32 %v3303
    %vm3342 = vweird.f32 %v3335
    %vm3343 = vmor %vm3341, %vm3342
    %v3344 = vsel %vm3343, %v3335, %v3340
    %v3345 = vrsqrt.pop %v3304
    %v3346 = vmul.f32 %v3345, %v3304
    %v3347 = vmul.f32 %v3346, %v3345
    %v3348 = vmul.f32 0.5, %v3347
    %v3349 = vsub.f32 1.5, %v3348
    %v3350 = vmul.f32 %v3345, %v3349
    %vm3351 = vweird.f32 %v3304
    %vm3352 = vweird.f32 %v3345
    %vm3353 = vmor %vm3351, %vm3352
    %v3354 = vsel %vm3353, %v3345, %v3350
    %v3355 = vrsqrt.pop %v3305
    %v3356 = vmul.f32 %v3355, %v3305
    %v3357 = vmul.f32 %v3356, %v3355
    %v3358 = vmul.f32 0.5, %v3357
    %v3359 = vsub.f32 1.5, %v3358
    %v3360 = vmul.f32 %v3355, %v3359
    %vm3361 = vweird.f32 %v3305
    %vm3362 = vweird.f32 %v3355
    %vm3363 = vmor %vm3361, %vm3362
    %v3364 = vsel %vm3363, %v3355, %v3360
    %v3365 = vrsqrt.pop %v3306
    %v3366 = vmul.f32 %v3365, %v3306
    %v3367 = vmul.f32 %v3366, %v3365
    %v3368 = vmul.f32 0.5, %v3367
    %v3369 = vsub.f32 1.5, %v3368
    %v3370 = vmul.f32 %v3365, %v3369
    %vm3371 = vweird.f32 %v3306
    %vm3372 = vweird.f32 %v3365
    %vm3373 = vmor %vm3371, %vm3372
    %v3374 = vsel %vm3373, %v3365, %v3370
    %v3375 = vrsqrt.pop %v3307
    %v3376 = vmul.f32 %v3375, %v3307
    %v3377 = vmul.f32 %v3376, %v3375
    %v3378 = vmul.f32 0.5, %v3377
    %v3379 = vsub.f32 1.5, %v3378
    %v3380 = vmul.f32 %v3375, %v3379
    %vm3381 = vweird.f32 %v3307
    %vm3382 = vweird.f32 %v3375
    %vm3383 = vmor %vm3381, %vm3382
    %v3384 = vsel %vm3383, %v3375, %v3380
    %v3385 = vrsqrt.pop %v3308
    %v3386 = vmul.f32 %v3385, %v3308
    %v3387 = vmul.f32 %v3386, %v3385
    %v3388 = vmul.f32 0.5, %v3387
    %v3389 = vsub.f32 1.5, %v3388
    %v3390 = vmul.f32 %v3385, %v3389
    %vm3391 = vweird.f32 %v3308
    %vm3392 = vweird.f32 %v3385
    %vm3393 = vmor %vm3391, %vm3392
    %v3394 = vsel %vm3393, %v3385, %v3390
    %v3395 = vrsqrt.pop %v3309
    %v3396 = vmul.f32 %v3395, %v3309
    %v3397 = vmul.f32 %v3396, %v3395
    %v3398 = vmul.f32 0.5, %v3397
    %v3399 = vsub.f32 1.5, %v3398
    %v3400 = vmul.f32 %v3395, %v3399
    %vm3401 = vweird.f32 %v3309
    %vm3402 = vweird.f32 %v3395
    %vm3403 = vmor %vm3401, %vm3402
    %v3404 = vsel %vm3403, %v3395, %v3400
    %v3405 = vrsqrt.pop %v3310
    %v3406 = vmul.f32 %v3405, %v3310
    %v3407 = vmul.f32 %v3406, %v3405
    %v3408 = vmul.f32 0.5, %v3407
    %v3409 = vsub.f32 1.5, %v3408
    %v3410 = vmul.f32 %v3405, %v3409
    %vm3411 = vweird.f32 %v3310
    %vm3412 = vweird.f32 %v3405
    %vm3413 = vmor %vm3411, %vm3412
    %v3414 = vsel %vm3413, %v3405, %v3410
    %v3415 = vrsqrt.pop %v3311
    %v3416 = vmul.f32 %v3415, %v3311
    %v3417 = vmul.f32 %v3416, %v3415
    %v3418 = vmul.f32 0.5, %v3417
    %v3419 = vsub.f32 1.5, %v3418
    %v3420 = vmul.f32 %v3415, %v3419
    %vm3421 = vweird.f32 %v3311
    %vm3422 = vweird.f32 %v3415
    %vm3423 = vmor %vm3421, %vm3422
    %v3424 = vsel %vm3423, %v3415, %v3420
    %v3425 = vrsqrt.pop %v3312
    %v3426 = vmul.f32 %v3425, %v3312
    %v3427 = vmul.f32 %v3426, %v3425
    %v3428 = vmul.f32 0.5, %v3427
    %v3429 = vsub.f32 1.5, %v3428
    %v3430 = vmul.f32 %v3425, %v3429
    %vm3431 = vweird.f32 %v3312
    %vm3432 = vweird.f32 %v3425
    %vm3433 = vmor %vm3431, %vm3432
    %v3434 = vsel %vm3433, %v3425, %v3430
    %v3435 = vrsqrt.pop %v3313
    %v3436 = vmul.f32 %v3435, %v3313
    %v3437 = vmul.f32 %v3436, %v3435
    %v3438 = vmul.f32 0.5, %v3437
    %v3439 = vsub.f32 1.5, %v3438
    %v3440 = vmul.f32 %v3435, %v3439
    %vm3441 = vweird.f32 %v3313
    %vm3442 = vweird.f32 %v3435
    %vm3443 = vmor %vm3441, %vm3442
    %v3444 = vsel %vm3443, %v3435, %v3440
    %v3445 = vrsqrt.pop %v3314
    %v3446 = vmul.f32 %v3445, %v3314
    %v3447 = vmul.f32 %v3446, %v3445
    %v3448 = vmul.f32 0.5, %v3447
    %v3449 = vsub.f32 1.5, %v3448
    %v3450 = vmul.f32 %v3445, %v3449
    %vm3451 = vweird.f32 %v3314
    %vm3452 = vweird.f32 %v3445
    %vm3453 = vmor %vm3451, %vm3452
    %v3454 = vsel %vm3453, %v3445, %v3450
    %v3455 = vrsqrt.pop %v3315
    %v3456 = vmul.f32 %v3455, %v3315
    %v3457 = vmul.f32 %v3456, %v3455
    %v3458 = vmul.f32 0.5, %v3457
    %v3459 = vsub.f32 1.5, %v3458
    %v3460 = vmul.f32 %v3455, %v3459
    %vm3461 = vweird.f32 %v3315
    %vm3462 = vweird.f32 %v3455
    %vm3463 = vmor %vm3461, %vm3462
    %v3464 = vsel %vm3463, %v3455, %v3460
    %v3465 = vrsqrt.pop %v3316
    %v3466 = vmul.f32 %v3465, %v3316
    %v3467 = vmul.f32 %v3466, %v3465
    %v3468 = vmul.f32 0.5, %v3467
    %v3469 = vsub.f32 1.5, %v3468
    %v3470 = vmul.f32 %v3465, %v3469
    %vm3471 = vweird.f32 %v3316
    %vm3472 = vweird.f32 %v3465
    %vm3473 = vmor %vm3471, %vm3472
    %v3474 = vsel %vm3473, %v3465, %v3470
    %v3475 = vrsqrt.pop %v3317
    %v3476 = vmul.f32 %v3475, %v3317
    %v3477 = vmul.f32 %v3476, %v3475
    %v3478 = vmul.f32 0.5, %v3477
    %v3479 = vsub.f32 1.5, %v3478
    %v3480 = vmul.f32 %v3475, %v3479
    %vm3481 = vweird.f32 %v3317
    %vm3482 = vweird.f32 %v3475
    %vm3483 = vmor %vm3481, %vm3482
    %v3484 = vsel %vm3483, %v3475, %v3480
    %v3485 = vrsqrt.pop %v3318
    %v3486 = vmul.f32 %v3485, %v3318
    %v3487 = vmul.f32 %v3486, %v3485
    %v3488 = vmul.f32 0.5, %v3487
    %v3489 = vsub.f32 1.5, %v3488
    %v3490 = vmul.f32 %v3485, %v3489
    %vm3491 = vweird.f32 %v3318
    %vm3492 = vweird.f32 %v3485
    %vm3493 = vmor %vm3491, %vm3492
    %v3494 = vsel %vm3493, %v3485, %v3490
    %v3495 = vrsqrt.pop %v3319
    %v3496 = vmul.f32 %v3495, %v3319
    %v3497 = vmul.f32 %v3496, %v3495
    %v3498 = vmul.f32 0.5, %v3497
    %v3499 = vsub.f32 1.5, %v3498
    %v3500 = vmul.f32 %v3495, %v3499
    %vm3501 = vweird.f32 %v3319
    %vm3502 = vweird.f32 %v3495
    %vm3503 = vmor %vm3501, %vm3502
    %v3504 = vsel %vm3503, %v3495, %v3500
    %v3505 = vrsqrt.pop %v3320
    %v3506 = vmul.f32 %v3505, %v3320
    %v3507 = vmul.f32 %v3506, %v3505
    %v3508 = vmul.f32 0.5, %v3507
    %v3509 = vsub.f32 1.5, %v3508
    %v3510 = vmul.f32 %v3505, %v3509
    %vm3511 = vweird.f32 %v3320
    %vm3512 = vweird.f32 %v3505
    %vm3513 = vmor %vm3511, %vm3512
    %v3514 = vsel %vm3513, %v3505, %v3510
    %v3515 = vrsqrt.pop %v3321
    %v3516 = vmul.f32 %v3515, %v3321
    %v3517 = vmul.f32 %v3516, %v3515
    %v3518 = vmul.f32 0.5, %v3517
    %v3519 = vsub.f32 1.5, %v3518
    %v3520 = vmul.f32 %v3515, %v3519
    %vm3521 = vweird.f32 %v3321
    %vm3522 = vweird.f32 %v3515
    %vm3523 = vmor %vm3521, %vm3522
    %v3524 = vsel %vm3523, %v3515, %v3520
    %v3525 = vrsqrt.pop %v3322
    %v3526 = vmul.f32 %v3525, %v3322
    %v3527 = vmul.f32 %v3526, %v3525
    %v3528 = vmul.f32 0.5, %v3527
    %v3529 = vsub.f32 1.5, %v3528
    %v3530 = vmul.f32 %v3525, %v3529
    %vm3531 = vweird.f32 %v3322
    %vm3532 = vweird.f32 %v3525
    %vm3533 = vmor %vm3531, %vm3532
    %v3534 = vsel %vm3533, %v3525, %v3530
    %v3535 = vrsqrt.pop %v3323
    %v3536 = vmul.f32 %v3535, %v3323
    %v3537 = vmul.f32 %v3536, %v3535
    %v3538 = vmul.f32 0.5, %v3537
    %v3539 = vsub.f32 1.5, %v3538
    %v3540 = vmul.f32 %v3535, %v3539
    %vm3541 = vweird.f32 %v3323
    %vm3542 = vweird.f32 %v3535
    %vm3543 = vmor %vm3541, %vm3542
    %v3544 = vsel %vm3543, %v3535, %v3540
    %v3545 = vrsqrt.pop %v3324
    %v3546 = vmul.f32 %v3545, %v3324
    %v3547 = vmul.f32 %v3546, %v3545
    %v3548 = vmul.f32 0.5, %v3547
    %v3549 = vsub.f32 1.5, %v3548
    %v3550 = vmul.f32 %v3545, %v3549
    %vm3551 = vweird.f32 %v3324
    %vm3552 = vweird.f32 %v3545
    %vm3553 = vmor %vm3551, %vm3552
    %v3554 = vsel %vm3553, %v3545, %v3550
    %v3555 = vrsqrt.pop %v3325
    %v3556 = vmul.f32 %v3555, %v3325
    %v3557 = vmul.f32 %v3556, %v3555
    %v3558 = vmul.f32 0.5, %v3557
    %v3559 = vsub.f32 1.5, %v3558
    %v3560 = vmul.f32 %v3555, %v3559
    %vm3561 = vweird.f32 %v3325
    %vm3562 = vweird.f32 %v3555
    %vm3563 = vmor %vm3561, %vm3562
    %v3564 = vsel %vm3563, %v3555, %v3560
    %v3565 = vrsqrt.pop %v3326
    %v3566 = vmul.f32 %v3565, %v3326
    %v3567 = vmul.f32 %v3566, %v3565
    %v3568 = vmul.f32 0.5, %v3567
    %v3569 = vsub.f32 1.5, %v3568
    %v3570 = vmul.f32 %v3565, %v3569
    %vm3571 = vweird.f32 %v3326
    %vm3572 = vweird.f32 %v3565
    %vm3573 = vmor %vm3571, %vm3572
    %v3574 = vsel %vm3573, %v3565, %v3570
    %v3575 = vrsqrt.pop %v3327
    %v3576 = vmul.f32 %v3575, %v3327
    %v3577 = vmul.f32 %v3576, %v3575
    %v3578 = vmul.f32 0.5, %v3577
    %v3579 = vsub.f32 1.5, %v3578
    %v3580 = vmul.f32 %v3575, %v3579
    %vm3581 = vweird.f32 %v3327
    %vm3582 = vweird.f32 %v3575
    %vm3583 = vmor %vm3581, %vm3582
    %v3584 = vsel %vm3583, %v3575, %v3580
    %v3585 = vrsqrt.pop %v3328
    %v3586 = vmul.f32 %v3585, %v3328
    %v3587 = vmul.f32 %v3586, %v3585
    %v3588 = vmul.f32 0.5, %v3587
    %v3589 = vsub.f32 1.5, %v3588
    %v3590 = vmul.f32 %v3585, %v3589
    %vm3591 = vweird.f32 %v3328
    %vm3592 = vweird.f32 %v3585
    %vm3593 = vmor %vm3591, %vm3592
    %v3594 = vsel %vm3593, %v3585, %v3590
    %v3595 = vrsqrt.pop %v3329
    %v3596 = vmul.f32 %v3595, %v3329
    %v3597 = vmul.f32 %v3596, %v3595
    %v3598 = vmul.f32 0.5, %v3597
    %v3599 = vsub.f32 1.5, %v3598
    %v3600 = vmul.f32 %v3595, %v3599
    %vm3601 = vweird.f32 %v3329
    %vm3602 = vweird.f32 %v3595
    %vm3603 = vmor %vm3601, %vm3602
    %v3604 = vsel %vm3603, %v3595, %v3600
    %v3605 = vrsqrt.pop %v3330
    %v3606 = vmul.f32 %v3605, %v3330
    %v3607 = vmul.f32 %v3606, %v3605
    %v3608 = vmul.f32 0.5, %v3607
    %v3609 = vsub.f32 1.5, %v3608
    %v3610 = vmul.f32 %v3605, %v3609
    %vm3611 = vweird.f32 %v3330
    %vm3612 = vweird.f32 %v3605
    %vm3613 = vmor %vm3611, %vm3612
    %v3614 = vsel %vm3613, %v3605, %v3610
    %v3615 = vrsqrt.pop %v3331
    %v3616 = vmul.f32 %v3615, %v3331
    %v3617 = vmul.f32 %v3616, %v3615
    %v3618 = vmul.f32 0.5, %v3617
    %v3619 = vsub.f32 1.5, %v3618
    %v3620 = vmul.f32 %v3615, %v3619
    %vm3621 = vweird.f32 %v3331
    %vm3622 = vweird.f32 %v3615
    %vm3623 = vmor %vm3621, %vm3622
    %v3624 = vsel %vm3623, %v3615, %v3620
    %v3625 = vrsqrt.pop %v3332
    %v3626 = vmul.f32 %v3625, %v3332
    %v3627 = vmul.f32 %v3626, %v3625
    %v3628 = vmul.f32 0.5, %v3627
    %v3629 = vsub.f32 1.5, %v3628
    %v3630 = vmul.f32 %v3625, %v3629
    %vm3631 = vweird.f32 %v3332
    %vm3632 = vweird.f32 %v3625
    %vm3633 = vmor %vm3631, %vm3632
    %v3634 = vsel %vm3633, %v3625, %v3630
    %v3635 = vrsqrt.pop %v3333
    %v3636 = vmul.f32 %v3635, %v3333
    %v3637 = vmul.f32 %v3636, %v3635
    %v3638 = vmul.f32 0.5, %v3637
    %v3639 = vsub.f32 1.5, %v3638
    %v3640 = vmul.f32 %v3635, %v3639
    %vm3641 = vweird.f32 %v3333
    %vm3642 = vweird.f32 %v3635
    %vm3643 = vmor %vm3641, %vm3642
    %v3644 = vsel %vm3643, %v3635, %v3640
    %v3645 = vrsqrt.pop %v3334
    %v3646 = vmul.f32 %v3645, %v3334
    %v3647 = vmul.f32 %v3646, %v3645
    %v3648 = vmul.f32 0.5, %v3647
    %v3649 = vsub.f32 1.5, %v3648
    %v3650 = vmul.f32 %v3645, %v3649
    %vm3651 = vweird.f32 %v3334
    %vm3652 = vweird.f32 %v3645
    %vm3653 = vmor %vm3651, %vm3652
    %v3654 = vsel %vm3653, %v3645, %v3650
    %v3655 = vmul.f32 %v3111, %v3344
    %v3656 = vmul.f32 %v3112, %v3354
    %v3657 = vmul.f32 %v3113, %v3364
    %v3658 = vmul.f32 %v3114, %v3374
    %v3659 = vmul.f32 %v3115, %v3384
    %v3660 = vmul.f32 %v3116, %v3394
    %v3661 = vmul.f32 %v3117, %v3404
    %v3662 = vmul.f32 %v3118, %v3414
    %v3663 = vmul.f32 %v3119, %v3424
    %v3664 = vmul.f32 %v3120, %v3434
    %v3665 = vmul.f32 %v3121, %v3444
    %v3666 = vmul.f32 %v3122, %v3454
    %v3667 = vmul.f32 %v3123, %v3464
    %v3668 = vmul.f32 %v3124, %v3474
    %v3669 = vmul.f32 %v3125, %v3484
    %v3670 = vmul.f32 %v3126, %v3494
    %v3671 = vmul.f32 %v3127, %v3504
    %v3672 = vmul.f32 %v3128, %v3514
    %v3673 = vmul.f32 %v3129, %v3524
    %v3674 = vmul.f32 %v3130, %v3534
    %v3675 = vmul.f32 %v3131, %v3544
    %v3676 = vmul.f32 %v3132, %v3554
    %v3677 = vmul.f32 %v3133, %v3564
    %v3678 = vmul.f32 %v3134, %v3574
    %v3679 = vmul.f32 %v3135, %v3584
    %v3680 = vmul.f32 %v3136, %v3594
    %v3681 = vmul.f32 %v3137, %v3604
    %v3682 = vmul.f32 %v3138, %v3614
    %v3683 = vmul.f32 %v3139, %v3624
    %v3684 = vmul.f32 %v3140, %v3634
    %v3685 = vmul.f32 %v3141, %v3644
    %v3686 = vmul.f32 %v3142, %v3654
    %v3687 = vperm.slane %v2981, 0
    %v3688 = vmul.f32 %v3655, %v3687
    %v3689 = vmul.f32 %v3656, %v3687
    %v3690 = vmul.f32 %v3657, %v3687
    %v3691 = vmul.f32 %v3658, %v3687
    %v3692 = vmul.f32 %v3659, %v3687
    %v3693 = vmul.f32 %v3660, %v3687
    %v3694 = vmul.f32 %v3661, %v3687
    %v3695 = vmul.f32 %v3662, %v3687
    %v3696 = vmul.f32 %v3663, %v3687
    %v3697 = vmul.f32 %v3664, %v3687
    %v3698 = vmul.f32 %v3665, %v3687
    %v3699 = vmul.f32 %v3666, %v3687
    %v3700 = vmul.f32 %v3667, %v3687
    %v3701 = vmul.f32 %v3668, %v3687
    %v3702 = vmul.f32 %v3669, %v3687
    %v3703 = vmul.f32 %v3670, %v3687
    %v3704 = vmul.f32 %v3671, %v3687
    %v3705 = vmul.f32 %v3672, %v3687
    %v3706 = vmul.f32 %v3673, %v3687
    %v3707 = vmul.f32 %v3674, %v3687
    %v3708 = vmul.f32 %v3675, %v3687
    %v3709 = vmul.f32 %v3676, %v3687
    %v3710 = vmul.f32 %v3677, %v3687
    %v3711 = vmul.f32 %v3678, %v3687
    %v3712 = vmul.f32 %v3679, %v3687
    %v3713 = vmul.f32 %v3680, %v3687
    %v3714 = vmul.f32 %v3681, %v3687
    %v3715 = vmul.f32 %v3682, %v3687
    %v3716 = vmul.f32 %v3683, %v3687
    %v3717 = vmul.f32 %v3684, %v3687
    %v3718 = vmul.f32 %v3685, %v3687
    %v3719 = vmul.f32 %v3686, %v3687
    %v3720 = vperm.slane %v2982, 0
    %v3721 = vadd.f32 %v3688, %v3720
    %v3722 = vadd.f32 %v3689, %v3720
    %v3723 = vadd.f32 %v3690, %v3720
    %v3724 = vadd.f32 %v3691, %v3720
    %v3725 = vadd.f32 %v3692, %v3720
    %v3726 = vadd.f32 %v3693, %v3720
    %v3727 = vadd.f32 %v3694, %v3720
    %v3728 = vadd.f32 %v3695, %v3720
    %v3729 = vadd.f32 %v3696, %v3720
    %v3730 = vadd.f32 %v3697, %v3720
    %v3731 = vadd.f32 %v3698, %v3720
    %v3732 = vadd.f32 %v3699, %v3720
    %v3733 = vadd.f32 %v3700, %v3720
    %v3734 = vadd.f32 %v3701, %v3720
    %v3735 = vadd.f32 %v3702, %v3720
    %v3736 = vadd.f32 %v3703, %v3720
    %v3737 = vadd.f32 %v3704, %v3720
    %v3738 = vadd.f32 %v3705, %v3720
    %v3739 = vadd.f32 %v3706, %v3720
    %v3740 = vadd.f32 %v3707, %v3720
    %v3741 = vadd.f32 %v3708, %v3720
    %v3742 = vadd.f32 %v3709, %v3720
    %v3743 = vadd.f32 %v3710, %v3720
    %v3744 = vadd.f32 %v3711, %v3720
    %v3745 = vadd.f32 %v3712, %v3720
    %v3746 = vadd.f32 %v3713, %v3720
    %v3747 = vadd.f32 %v3714, %v3720
    %v3748 = vadd.f32 %v3715, %v3720
    %v3749 = vadd.f32 %v3716, %v3720
    %v3750 = vadd.f32 %v3717, %v3720
    %v3751 = vadd.f32 %v3718, %v3720
    %v3752 = vadd.f32 %v3719, %v3720
    %v3753 = vpack.c.bf16 %v3722, %v3721
    %v3754 = vpack.c.bf16 %v3724, %v3723
    %v3755 = vpack.c.bf16 %v3726, %v3725
    %v3756 = vpack.c.bf16 %v3728, %v3727
    %v3757 = vpack.c.bf16 %v3730, %v3729
    %v3758 = vpack.c.bf16 %v3732, %v3731
    %v3759 = vpack.c.bf16 %v3734, %v3733
    %v3760 = vpack.c.bf16 %v3736, %v3735
    %v3761 = vpack.c.bf16 %v3738, %v3737
    %v3762 = vpack.c.bf16 %v3740, %v3739
    %v3763 = vpack.c.bf16 %v3742, %v3741
    %v3764 = vpack.c.bf16 %v3744, %v3743
    %v3765 = vpack.c.bf16 %v3746, %v3745
    %v3766 = vpack.c.bf16 %v3748, %v3747
    %v3767 = vpack.c.bf16 %v3750, %v3749
    %v3768 = vpack.c.bf16 %v3752, %v3751
    %v3769 = vld [vmem:[%s2 + $0x70] sm:$0xf]
    %v3770 = vld [vmem:[%s2 + $0x74] sm:$0xf]
    %v3771 = vld [vmem:[%s2 + $0x78] sm:$0xf]
    %v3772 = vld [vmem:[%s2 + $0x7c] sm:$0xf]
    %v3773 = vld [vmem:[%s3 + $0x8] sm:$0x1]
    %v3774 = vperm.slane %v3773, 0
    %v3779 = vunpack.c.l.b16 %v3769
    %v3780 = vunpack.c.l.b16 %v3770
    %v3781 = vunpack.c.l.b16 %v3771
    %v3782 = vunpack.c.l.b16 %v3772
    %v3783 = vpack.c.b16 %v3780, %v3779
    %v3784 = vpack.c.b16 %v3782, %v3781
    %v3788 = vsel %vm411, %v3753, 0
    %v3791 = vsel %vm411, %v3754, 0
    %v3794 = vsel %vm411, %v3755, 0
    %v3797 = vsel %vm411, %v3756, 0
    %v3800 = vsel %vm411, %v3757, 0
    %v3803 = vsel %vm411, %v3758, 0
    %v3806 = vsel %vm411, %v3759, 0
    %v3809 = vsel %vm411, %v3760, 0
    %v3812 = vsel %vm411, %v3761, 0
    %v3815 = vsel %vm411, %v3762, 0
    %v3818 = vsel %vm411, %v3763, 0
    %v3821 = vsel %vm411, %v3764, 0
    %v3824 = vsel %vm411, %v3765, 0
    %v3827 = vsel %vm411, %v3766, 0
    %v3830 = vsel %vm411, %v3767, 0
    %v3833 = vsel %vm411, %v3768, 0
    %3835 = vmatpush.bf16.msra.mxu0 0
    %3836 = vmatpush.bf16.msra.mxu0 0
    %3837 = vmatpush.bf16.msra.mxu0 0
    %3838 = vmatpush.bf16.msra.mxu0 0
    %3839 = vmatpush.bf16.msra.mxu0 0
    %3840 = vmatpush.bf16.msra.mxu0 0
    %3841 = vmatpush.bf16.msra.mxu0 %v3784
    %3842 = vmatpush.bf16.msra.mxu0 %v3783
    %3843 = vmatmul.bf16.gmra.mxu0 %v3788
    %v3844 = vpop.f32.mrf.mxu0
    %v3845 = vadd.f32 %v3774, %v3844
    %v3846 = vpop.f32.mrf.mxu0
    %v3847 = vadd.f32 %v3774, %v3846
    %3848 = vmatmul.bf16.gmra.mxu0 %v3791
    %v3849 = vpop.f32.mrf.mxu0
    %v3850 = vadd.f32 %v3774, %v3849
    %v3851 = vpop.f32.mrf.mxu0
    %v3852 = vadd.f32 %v3774, %v3851
    %3853 = vmatmul.bf16.gmra.mxu0 %v3794
    %v3854 = vpop.f32.mrf.mxu0
    %v3855 = vadd.f32 %v3774, %v3854
    %v3856 = vpop.f32.mrf.mxu0
    %v3857 = vadd.f32 %v3774, %v3856
    %3858 = vmatmul.bf16.gmra.mxu0 %v3797
    %v3859 = vpop.f32.mrf.mxu0
    %v3860 = vadd.f32 %v3774, %v3859
    %v3861 = vpop.f32.mrf.mxu0
    %v3862 = vadd.f32 %v3774, %v3861
    %3863 = vmatmul.bf16.gmra.mxu0 %v3800
    %v3864 = vpop.f32.mrf.mxu0
    %v3865 = vadd.f32 %v3774, %v3864
    %v3866 = vpop.f32.mrf.mxu0
    %v3867 = vadd.f32 %v3774, %v3866
    %3868 = vmatmul.bf16.gmra.mxu0 %v3803
    %v3869 = vpop.f32.mrf.mxu0
    %v3870 = vadd.f32 %v3774, %v3869
    %v3871 = vpop.f32.mrf.mxu0
    %v3872 = vadd.f32 %v3774, %v3871
    %3873 = vmatmul.bf16.gmra.mxu0 %v3806
    %v3874 = vpop.f32.mrf.mxu0
    %v3875 = vadd.f32 %v3774, %v3874
    %v3876 = vpop.f32.mrf.mxu0
    %v3877 = vadd.f32 %v3774, %v3876
    %3878 = vmatmul.bf16.gmra.mxu0 %v3809
    %v3879 = vpop.f32.mrf.mxu0
    %v3880 = vadd.f32 %v3774, %v3879
    %v3881 = vpop.f32.mrf.mxu0
    %v3882 = vadd.f32 %v3774, %v3881
    %3883 = vmatmul.bf16.gmra.mxu0 %v3812
    %v3884 = vpop.f32.mrf.mxu0
    %v3885 = vadd.f32 %v3774, %v3884
    %v3886 = vpop.f32.mrf.mxu0
    %v3887 = vadd.f32 %v3774, %v3886
    %3888 = vmatmul.bf16.gmra.mxu0 %v3815
    %v3889 = vpop.f32.mrf.mxu0
    %v3890 = vadd.f32 %v3774, %v3889
    %v3891 = vpop.f32.mrf.mxu0
    %v3892 = vadd.f32 %v3774, %v3891
    %3893 = vmatmul.bf16.gmra.mxu0 %v3818
    %v3894 = vpop.f32.mrf.mxu0
    %v3895 = vadd.f32 %v3774, %v3894
    %v3896 = vpop.f32.mrf.mxu0
    %v3897 = vadd.f32 %v3774, %v3896
    %3898 = vmatmul.bf16.gmra.mxu0 %v3821
    %v3899 = vpop.f32.mrf.mxu0
    %v3900 = vadd.f32 %v3774, %v3899
    %v3901 = vpop.f32.mrf.mxu0
    %v3902 = vadd.f32 %v3774, %v3901
    %3903 = vmatmul.bf16.gmra.mxu0 %v3824
    %v3904 = vpop.f32.mrf.mxu0
    %v3905 = vadd.f32 %v3774, %v3904
    %v3906 = vpop.f32.mrf.mxu0
    %v3907 = vadd.f32 %v3774, %v3906
    %3908 = vmatmul.bf16.gmra.mxu0 %v3827
    %v3909 = vpop.f32.mrf.mxu0
    %v3910 = vadd.f32 %v3774, %v3909
    %v3911 = vpop.f32.mrf.mxu0
    %v3912 = vadd.f32 %v3774, %v3911
    %3913 = vmatmul.bf16.gmra.mxu0 %v3830
    %v3914 = vpop.f32.mrf.mxu0
    %v3915 = vadd.f32 %v3774, %v3914
    %v3916 = vpop.f32.mrf.mxu0
    %v3917 = vadd.f32 %v3774, %v3916
    %3918 = vmatmul.bf16.gmra.mxu0 %v3833
    %v3919 = vpop.f32.mrf.mxu0
    %v3920 = vadd.f32 %v3774, %v3919
    %v3921 = vpop.f32.mrf.mxu0
    %v3922 = vadd.f32 %v3774, %v3921
    %3923 = vdwg.mxu0
    %v3924 = vmax.f32 %v3845, 0.0
    %v3925 = vmax.f32 %v3847, 0.0
    %v3926 = vmax.f32 %v3850, 0.0
    %v3927 = vmax.f32 %v3852, 0.0
    %v3928 = vmax.f32 %v3855, 0.0
    %v3929 = vmax.f32 %v3857, 0.0
    %v3930 = vmax.f32 %v3860, 0.0
    %v3931 = vmax.f32 %v3862, 0.0
    %v3932 = vmax.f32 %v3865, 0.0
    %v3933 = vmax.f32 %v3867, 0.0
    %v3934 = vmax.f32 %v3870, 0.0
    %v3935 = vmax.f32 %v3872, 0.0
    %v3936 = vmax.f32 %v3875, 0.0
    %v3937 = vmax.f32 %v3877, 0.0
    %v3938 = vmax.f32 %v3880, 0.0
    %v3939 = vmax.f32 %v3882, 0.0
    %v3940 = vmax.f32 %v3885, 0.0
    %v3941 = vmax.f32 %v3887, 0.0
    %v3942 = vmax.f32 %v3890, 0.0
    %v3943 = vmax.f32 %v3892, 0.0
    %v3944 = vmax.f32 %v3895, 0.0
    %v3945 = vmax.f32 %v3897, 0.0
    %v3946 = vmax.f32 %v3900, 0.0
    %v3947 = vmax.f32 %v3902, 0.0
    %v3948 = vmax.f32 %v3905, 0.0
    %v3949 = vmax.f32 %v3907, 0.0
    %v3950 = vmax.f32 %v3910, 0.0
    %v3951 = vmax.f32 %v3912, 0.0
    %v3952 = vmax.f32 %v3915, 0.0
    %v3953 = vmax.f32 %v3917, 0.0
    %v3954 = vmax.f32 %v3920, 0.0
    %v3955 = vmax.f32 %v3922, 0.0
    %v3956 = vpack.c.bf16 %v3925, %v3924
    %v3957 = vpack.c.bf16 %v3927, %v3926
    %v3958 = vpack.c.bf16 %v3929, %v3928
    %v3959 = vpack.c.bf16 %v3931, %v3930
    %v3960 = vpack.c.bf16 %v3933, %v3932
    %v3961 = vpack.c.bf16 %v3935, %v3934
    %v3962 = vpack.c.bf16 %v3937, %v3936
    %v3963 = vpack.c.bf16 %v3939, %v3938
    %v3964 = vpack.c.bf16 %v3941, %v3940
    %v3965 = vpack.c.bf16 %v3943, %v3942
    %v3966 = vpack.c.bf16 %v3945, %v3944
    %v3967 = vpack.c.bf16 %v3947, %v3946
    %v3968 = vpack.c.bf16 %v3949, %v3948
    %v3969 = vpack.c.bf16 %v3951, %v3950
    %v3970 = vpack.c.bf16 %v3953, %v3952
    %v3971 = vpack.c.bf16 %v3955, %v3954
    %v3972 = vld [vmem:[%s2 + $0x40] sm:$0xf]
    %v3973 = vld [vmem:[%s2 + $0x44] sm:$0xf]
    %v3974 = vld [vmem:[%s2 + $0x48] sm:$0xf]
    %v3975 = vld [vmem:[%s2 + $0x4c] sm:$0xf]
    %v3976 = vld [vmem:[%s2 + $0x50] sm:$0xf]
    %v3977 = vld [vmem:[%s2 + $0x54] sm:$0xf]
    %v3978 = vld [vmem:[%s2 + $0x58] sm:$0xf]
    %v3979 = vld [vmem:[%s2 + $0x5c] sm:$0xf]
    %v3980 = vld [vmem:[%s3 + $0x9] sm:$0x1]
    %v3981 = vperm.slane %v3980, 0
    %v3990 = vunpack.c.l.b16 %v3972
    %v3991 = vunpack.c.l.b16 %v3973
    %v3992 = vunpack.c.l.b16 %v3974
    %v3993 = vunpack.c.l.b16 %v3975
    %v3994 = vunpack.c.l.b16 %v3976
    %v3995 = vunpack.c.l.b16 %v3977
    %v3996 = vunpack.c.l.b16 %v3978
    %v3997 = vunpack.c.l.b16 %v3979
    %v3998 = vpack.c.b16 %v3991, %v3990
    %v3999 = vpack.c.b16 %v3993, %v3992
    %v4000 = vpack.c.b16 %v3995, %v3994
    %v4001 = vpack.c.b16 %v3997, %v3996
    %vm4006 = vcmask 523264
    %v4008 = vsel %vm4006, %v3956, 0
    %v4011 = vsel %vm4006, %v3957, 0
    %v4014 = vsel %vm4006, %v3958, 0
    %v4017 = vsel %vm4006, %v3959, 0
    %v4020 = vsel %vm4006, %v3960, 0
    %v4023 = vsel %vm4006, %v3961, 0
    %v4026 = vsel %vm4006, %v3962, 0
    %v4029 = vsel %vm4006, %v3963, 0
    %v4032 = vsel %vm4006, %v3964, 0
    %v4035 = vsel %vm4006, %v3965, 0
    %v4038 = vsel %vm4006, %v3966, 0
    %v4041 = vsel %vm4006, %v3967, 0
    %v4044 = vsel %vm4006, %v3968, 0
    %v4047 = vsel %vm4006, %v3969, 0
    %v4050 = vsel %vm4006, %v3970, 0
    %v4053 = vsel %vm4006, %v3971, 0
    %4055 = vmatpush.bf16.msra.mxu0 0
    %4056 = vmatpush.bf16.msra.mxu0 0
    %4057 = vmatpush.bf16.msra.mxu0 0
    %4058 = vmatpush.bf16.msra.mxu0 0
    %4059 = vmatpush.bf16.msra.mxu0 %v4001
    %4060 = vmatpush.bf16.msra.mxu0 %v4000
    %4061 = vmatpush.bf16.msra.mxu0 %v3999
    %4062 = vmatpush.bf16.msra.mxu0 %v3998
    %4063 = vmatmul.bf16.gmra.mxu0 %v4008
    %v4064 = vpop.f32.mrf.mxu0
    %v4065 = vadd.f32 %v3981, %v4064
    %v4066 = vpop.f32.mrf.mxu0
    %v4067 = vadd.f32 %v3981, %v4066
    %4068 = vmatmul.bf16.gmra.mxu0 %v4011
    %v4069 = vpop.f32.mrf.mxu0
    %v4070 = vadd.f32 %v3981, %v4069
    %v4071 = vpop.f32.mrf.mxu0
    %v4072 = vadd.f32 %v3981, %v4071
    %4073 = vmatmul.bf16.gmra.mxu0 %v4014
    %v4074 = vpop.f32.mrf.mxu0
    %v4075 = vadd.f32 %v3981, %v4074
    %v4076 = vpop.f32.mrf.mxu0
    %v4077 = vadd.f32 %v3981, %v4076
    %4078 = vmatmul.bf16.gmra.mxu0 %v4017
    %v4079 = vpop.f32.mrf.mxu0
    %v4080 = vadd.f32 %v3981, %v4079
    %v4081 = vpop.f32.mrf.mxu0
    %v4082 = vadd.f32 %v3981, %v4081
    %4083 = vmatmul.bf16.gmra.mxu0 %v4020
    %v4084 = vpop.f32.mrf.mxu0
    %v4085 = vadd.f32 %v3981, %v4084
    %v4086 = vpop.f32.mrf.mxu0
    %v4087 = vadd.f32 %v3981, %v4086
    %4088 = vmatmul.bf16.gmra.mxu0 %v4023
    %v4089 = vpop.f32.mrf.mxu0
    %v4090 = vadd.f32 %v3981, %v4089
    %v4091 = vpop.f32.mrf.mxu0
    %v4092 = vadd.f32 %v3981, %v4091
    %4093 = vmatmul.bf16.gmra.mxu0 %v4026
    %v4094 = vpop.f32.mrf.mxu0
    %v4095 = vadd.f32 %v3981, %v4094
    %v4096 = vpop.f32.mrf.mxu0
    %v4097 = vadd.f32 %v3981, %v4096
    %4098 = vmatmul.bf16.gmra.mxu0 %v4029
    %v4099 = vpop.f32.mrf.mxu0
    %v4100 = vadd.f32 %v3981, %v4099
    %v4101 = vpop.f32.mrf.mxu0
    %v4102 = vadd.f32 %v3981, %v4101
    %4103 = vmatmul.bf16.gmra.mxu0 %v4032
    %v4104 = vpop.f32.mrf.mxu0
    %v4105 = vadd.f32 %v3981, %v4104
    %v4106 = vpop.f32.mrf.mxu0
    %v4107 = vadd.f32 %v3981, %v4106
    %4108 = vmatmul.bf16.gmra.mxu0 %v4035
    %v4109 = vpop.f32.mrf.mxu0
    %v4110 = vadd.f32 %v3981, %v4109
    %v4111 = vpop.f32.mrf.mxu0
    %v4112 = vadd.f32 %v3981, %v4111
    %4113 = vmatmul.bf16.gmra.mxu0 %v4038
    %v4114 = vpop.f32.mrf.mxu0
    %v4115 = vadd.f32 %v3981, %v4114
    %v4116 = vpop.f32.mrf.mxu0
    %v4117 = vadd.f32 %v3981, %v4116
    %4118 = vmatmul.bf16.gmra.mxu0 %v4041
    %v4119 = vpop.f32.mrf.mxu0
    %v4120 = vadd.f32 %v3981, %v4119
    %v4121 = vpop.f32.mrf.mxu0
    %v4122 = vadd.f32 %v3981, %v4121
    %4123 = vmatmul.bf16.gmra.mxu0 %v4044
    %v4124 = vpop.f32.mrf.mxu0
    %v4125 = vadd.f32 %v3981, %v4124
    %v4126 = vpop.f32.mrf.mxu0
    %v4127 = vadd.f32 %v3981, %v4126
    %4128 = vmatmul.bf16.gmra.mxu0 %v4047
    %v4129 = vpop.f32.mrf.mxu0
    %v4130 = vadd.f32 %v3981, %v4129
    %v4131 = vpop.f32.mrf.mxu0
    %v4132 = vadd.f32 %v3981, %v4131
    %4133 = vmatmul.bf16.gmra.mxu0 %v4050
    %v4134 = vpop.f32.mrf.mxu0
    %v4135 = vadd.f32 %v3981, %v4134
    %v4136 = vpop.f32.mrf.mxu0
    %v4137 = vadd.f32 %v3981, %v4136
    %4138 = vmatmul.bf16.gmra.mxu0 %v4053
    %v4139 = vpop.f32.mrf.mxu0
    %v4140 = vadd.f32 %v3981, %v4139
    %v4141 = vpop.f32.mrf.mxu0
    %v4142 = vadd.f32 %v3981, %v4141
    %4143 = vdwg.mxu0
    %v4144 = vadd.f32 %v3721, %v4065
    %v4145 = vadd.f32 %v3722, %v4067
    %v4146 = vadd.f32 %v3723, %v4070
    %v4147 = vadd.f32 %v3724, %v4072
    %v4148 = vadd.f32 %v3725, %v4075
    %v4149 = vadd.f32 %v3726, %v4077
    %v4150 = vadd.f32 %v3727, %v4080
    %v4151 = vadd.f32 %v3728, %v4082
    %v4152 = vadd.f32 %v3729, %v4085
    %v4153 = vadd.f32 %v3730, %v4087
    %v4154 = vadd.f32 %v3731, %v4090
    %v4155 = vadd.f32 %v3732, %v4092
    %v4156 = vadd.f32 %v3733, %v4095
    %v4157 = vadd.f32 %v3734, %v4097
    %v4158 = vadd.f32 %v3735, %v4100
    %v4159 = vadd.f32 %v3736, %v4102
    %v4160 = vadd.f32 %v3737, %v4105
    %v4161 = vadd.f32 %v3738, %v4107
    %v4162 = vadd.f32 %v3739, %v4110
    %v4163 = vadd.f32 %v3740, %v4112
    %v4164 = vadd.f32 %v3741, %v4115
    %v4165 = vadd.f32 %v3742, %v4117
    %v4166 = vadd.f32 %v3743, %v4120
    %v4167 = vadd.f32 %v3744, %v4122
    %v4168 = vadd.f32 %v3745, %v4125
    %v4169 = vadd.f32 %v3746, %v4127
    %v4170 = vadd.f32 %v3747, %v4130
    %v4171 = vadd.f32 %v3748, %v4132
    %v4172 = vadd.f32 %v3749, %v4135
    %v4173 = vadd.f32 %v3750, %v4137
    %v4174 = vadd.f32 %v3751, %v4140
    %v4175 = vadd.f32 %v3752, %v4142
    %v4176 = vld [vmem:[%s3 + $0xa] sm:$0x1]
    %v4177 = vld [vmem:[%s3 + $0xb] sm:$0x1]
    %v4178 = vsel %vm411, %v4144, 0.0
    %4179 = vadd.xlane.f32.xlu0 %v4178
    %v4180 = vpop.xlane.xlu0 %4179
    %v4181 = vsel %vm411, %v4145, 0.0
    %4182 = vadd.xlane.f32.xlu0 %v4181
    %v4183 = vpop.xlane.xlu0 %4182
    %v4184 = vsel %vm411, %v4146, 0.0
    %4185 = vadd.xlane.f32.xlu0 %v4184
    %v4186 = vpop.xlane.xlu0 %4185
    %v4187 = vsel %vm411, %v4147, 0.0
    %4188 = vadd.xlane.f32.xlu0 %v4187
    %v4189 = vpop.xlane.xlu0 %4188
    %v4190 = vsel %vm411, %v4148, 0.0
    %4191 = vadd.xlane.f32.xlu0 %v4190
    %v4192 = vpop.xlane.xlu0 %4191
    %v4193 = vsel %vm411, %v4149, 0.0
    %4194 = vadd.xlane.f32.xlu0 %v4193
    %v4195 = vpop.xlane.xlu0 %4194
    %v4196 = vsel %vm411, %v4150, 0.0
    %4197 = vadd.xlane.f32.xlu0 %v4196
    %v4198 = vpop.xlane.xlu0 %4197
    %v4199 = vsel %vm411, %v4151, 0.0
    %4200 = vadd.xlane.f32.xlu0 %v4199
    %v4201 = vpop.xlane.xlu0 %4200
    %v4202 = vsel %vm411, %v4152, 0.0
    %4203 = vadd.xlane.f32.xlu0 %v4202
    %v4204 = vpop.xlane.xlu0 %4203
    %v4205 = vsel %vm411, %v4153, 0.0
    %4206 = vadd.xlane.f32.xlu0 %v4205
    %v4207 = vpop.xlane.xlu0 %4206
    %v4208 = vsel %vm411, %v4154, 0.0
    %4209 = vadd.xlane.f32.xlu0 %v4208
    %v4210 = vpop.xlane.xlu0 %4209
    %v4211 = vsel %vm411, %v4155, 0.0
    %4212 = vadd.xlane.f32.xlu0 %v4211
    %v4213 = vpop.xlane.xlu0 %4212
    %v4214 = vsel %vm411, %v4156, 0.0
    %4215 = vadd.xlane.f32.xlu0 %v4214
    %v4216 = vpop.xlane.xlu0 %4215
    %v4217 = vsel %vm411, %v4157, 0.0
    %4218 = vadd.xlane.f32.xlu0 %v4217
    %v4219 = vpop.xlane.xlu0 %4218
    %v4220 = vsel %vm411, %v4158, 0.0
    %4221 = vadd.xlane.f32.xlu0 %v4220
    %v4222 = vpop.xlane.xlu0 %4221
    %v4223 = vsel %vm411, %v4159, 0.0
    %4224 = vadd.xlane.f32.xlu0 %v4223
    %v4225 = vpop.xlane.xlu0 %4224
    %v4226 = vsel %vm411, %v4160, 0.0
    %4227 = vadd.xlane.f32.xlu0 %v4226
    %v4228 = vpop.xlane.xlu0 %4227
    %v4229 = vsel %vm411, %v4161, 0.0
    %4230 = vadd.xlane.f32.xlu0 %v4229
    %v4231 = vpop.xlane.xlu0 %4230
    %v4232 = vsel %vm411, %v4162, 0.0
    %4233 = vadd.xlane.f32.xlu0 %v4232
    %v4234 = vpop.xlane.xlu0 %4233
    %v4235 = vsel %vm411, %v4163, 0.0
    %4236 = vadd.xlane.f32.xlu0 %v4235
    %v4237 = vpop.xlane.xlu0 %4236
    %v4238 = vsel %vm411, %v4164, 0.0
    %4239 = vadd.xlane.f32.xlu0 %v4238
    %v4240 = vpop.xlane.xlu0 %4239
    %v4241 = vsel %vm411, %v4165, 0.0
    %4242 = vadd.xlane.f32.xlu0 %v4241
    %v4243 = vpop.xlane.xlu0 %4242
    %v4244 = vsel %vm411, %v4166, 0.0
    %4245 = vadd.xlane.f32.xlu0 %v4244
    %v4246 = vpop.xlane.xlu0 %4245
    %v4247 = vsel %vm411, %v4167, 0.0
    %4248 = vadd.xlane.f32.xlu0 %v4247
    %v4249 = vpop.xlane.xlu0 %4248
    %v4250 = vsel %vm411, %v4168, 0.0
    %4251 = vadd.xlane.f32.xlu0 %v4250
    %v4252 = vpop.xlane.xlu0 %4251
    %v4253 = vsel %vm411, %v4169, 0.0
    %4254 = vadd.xlane.f32.xlu0 %v4253
    %v4255 = vpop.xlane.xlu0 %4254
    %v4256 = vsel %vm411, %v4170, 0.0
    %4257 = vadd.xlane.f32.xlu0 %v4256
    %v4258 = vpop.xlane.xlu0 %4257
    %v4259 = vsel %vm411, %v4171, 0.0
    %4260 = vadd.xlane.f32.xlu0 %v4259
    %v4261 = vpop.xlane.xlu0 %4260
    %v4262 = vsel %vm411, %v4172, 0.0
    %4263 = vadd.xlane.f32.xlu0 %v4262
    %v4264 = vpop.xlane.xlu0 %4263
    %v4265 = vsel %vm411, %v4173, 0.0
    %4266 = vadd.xlane.f32.xlu0 %v4265
    %v4267 = vpop.xlane.xlu0 %4266
    %v4268 = vsel %vm411, %v4174, 0.0
    %4269 = vadd.xlane.f32.xlu0 %v4268
    %v4270 = vpop.xlane.xlu0 %4269
    %v4271 = vsel %vm411, %v4175, 0.0
    %4272 = vadd.xlane.f32.xlu0 %v4271
    %v4273 = vpop.xlane.xlu0 %4272
    %v4274 = vmul.f32 %v4180, %v514
    %v4275 = vmul.f32 %v4183, %v514
    %v4276 = vmul.f32 %v4186, %v514
    %v4277 = vmul.f32 %v4189, %v514
    %v4278 = vmul.f32 %v4192, %v514
    %v4279 = vmul.f32 %v4195, %v514
    %v4280 = vmul.f32 %v4198, %v514
    %v4281 = vmul.f32 %v4201, %v514
    %v4282 = vmul.f32 %v4204, %v514
    %v4283 = vmul.f32 %v4207, %v514
    %v4284 = vmul.f32 %v4210, %v514
    %v4285 = vmul.f32 %v4213, %v514
    %v4286 = vmul.f32 %v4216, %v514
    %v4287 = vmul.f32 %v4219, %v514
    %v4288 = vmul.f32 %v4222, %v514
    %v4289 = vmul.f32 %v4225, %v514
    %v4290 = vmul.f32 %v4228, %v514
    %v4291 = vmul.f32 %v4231, %v514
    %v4292 = vmul.f32 %v4234, %v514
    %v4293 = vmul.f32 %v4237, %v514
    %v4294 = vmul.f32 %v4240, %v514
    %v4295 = vmul.f32 %v4243, %v514
    %v4296 = vmul.f32 %v4246, %v514
    %v4297 = vmul.f32 %v4249, %v514
    %v4298 = vmul.f32 %v4252, %v514
    %v4299 = vmul.f32 %v4255, %v514
    %v4300 = vmul.f32 %v4258, %v514
    %v4301 = vmul.f32 %v4261, %v514
    %v4302 = vmul.f32 %v4264, %v514
    %v4303 = vmul.f32 %v4267, %v514
    %v4304 = vmul.f32 %v4270, %v514
    %v4305 = vmul.f32 %v4273, %v514
    %v4306 = vsub.f32 %v4144, %v4274
    %v4307 = vsub.f32 %v4145, %v4275
    %v4308 = vsub.f32 %v4146, %v4276
    %v4309 = vsub.f32 %v4147, %v4277
    %v4310 = vsub.f32 %v4148, %v4278
    %v4311 = vsub.f32 %v4149, %v4279
    %v4312 = vsub.f32 %v4150, %v4280
    %v4313 = vsub.f32 %v4151, %v4281
    %v4314 = vsub.f32 %v4152, %v4282
    %v4315 = vsub.f32 %v4153, %v4283
    %v4316 = vsub.f32 %v4154, %v4284
    %v4317 = vsub.f32 %v4155, %v4285
    %v4318 = vsub.f32 %v4156, %v4286
    %v4319 = vsub.f32 %v4157, %v4287
    %v4320 = vsub.f32 %v4158, %v4288
    %v4321 = vsub.f32 %v4159, %v4289
    %v4322 = vsub.f32 %v4160, %v4290
    %v4323 = vsub.f32 %v4161, %v4291
    %v4324 = vsub.f32 %v4162, %v4292
    %v4325 = vsub.f32 %v4163, %v4293
    %v4326 = vsub.f32 %v4164, %v4294
    %v4327 = vsub.f32 %v4165, %v4295
    %v4328 = vsub.f32 %v4166, %v4296
    %v4329 = vsub.f32 %v4167, %v4297
    %v4330 = vsub.f32 %v4168, %v4298
    %v4331 = vsub.f32 %v4169, %v4299
    %v4332 = vsub.f32 %v4170, %v4300
    %v4333 = vsub.f32 %v4171, %v4301
    %v4334 = vsub.f32 %v4172, %v4302
    %v4335 = vsub.f32 %v4173, %v4303
    %v4336 = vsub.f32 %v4174, %v4304
    %v4337 = vsub.f32 %v4175, %v4305
    %v4338 = vmul.f32 %v4306, %v4306
    %v4339 = vmul.f32 %v4307, %v4307
    %v4340 = vmul.f32 %v4308, %v4308
    %v4341 = vmul.f32 %v4309, %v4309
    %v4342 = vmul.f32 %v4310, %v4310
    %v4343 = vmul.f32 %v4311, %v4311
    %v4344 = vmul.f32 %v4312, %v4312
    %v4345 = vmul.f32 %v4313, %v4313
    %v4346 = vmul.f32 %v4314, %v4314
    %v4347 = vmul.f32 %v4315, %v4315
    %v4348 = vmul.f32 %v4316, %v4316
    %v4349 = vmul.f32 %v4317, %v4317
    %v4350 = vmul.f32 %v4318, %v4318
    %v4351 = vmul.f32 %v4319, %v4319
    %v4352 = vmul.f32 %v4320, %v4320
    %v4353 = vmul.f32 %v4321, %v4321
    %v4354 = vmul.f32 %v4322, %v4322
    %v4355 = vmul.f32 %v4323, %v4323
    %v4356 = vmul.f32 %v4324, %v4324
    %v4357 = vmul.f32 %v4325, %v4325
    %v4358 = vmul.f32 %v4326, %v4326
    %v4359 = vmul.f32 %v4327, %v4327
    %v4360 = vmul.f32 %v4328, %v4328
    %v4361 = vmul.f32 %v4329, %v4329
    %v4362 = vmul.f32 %v4330, %v4330
    %v4363 = vmul.f32 %v4331, %v4331
    %v4364 = vmul.f32 %v4332, %v4332
    %v4365 = vmul.f32 %v4333, %v4333
    %v4366 = vmul.f32 %v4334, %v4334
    %v4367 = vmul.f32 %v4335, %v4335
    %v4368 = vmul.f32 %v4336, %v4336
    %v4369 = vmul.f32 %v4337, %v4337
    %v4370 = vsel %vm411, %v4338, 0.0
    %4371 = vadd.xlane.f32.xlu0 %v4370
    %v4372 = vpop.xlane.xlu0 %4371
    %v4373 = vsel %vm411, %v4339, 0.0
    %4374 = vadd.xlane.f32.xlu0 %v4373
    %v4375 = vpop.xlane.xlu0 %4374
    %v4376 = vsel %vm411, %v4340, 0.0
    %4377 = vadd.xlane.f32.xlu0 %v4376
    %v4378 = vpop.xlane.xlu0 %4377
    %v4379 = vsel %vm411, %v4341, 0.0
    %4380 = vadd.xlane.f32.xlu0 %v4379
    %v4381 = vpop.xlane.xlu0 %4380
    %v4382 = vsel %vm411, %v4342, 0.0
    %4383 = vadd.xlane.f32.xlu0 %v4382
    %v4384 = vpop.xlane.xlu0 %4383
    %v4385 = vsel %vm411, %v4343, 0.0
    %4386 = vadd.xlane.f32.xlu0 %v4385
    %v4387 = vpop.xlane.xlu0 %4386
    %v4388 = vsel %vm411, %v4344, 0.0
    %4389 = vadd.xlane.f32.xlu0 %v4388
    %v4390 = vpop.xlane.xlu0 %4389
    %v4391 = vsel %vm411, %v4345, 0.0
    %4392 = vadd.xlane.f32.xlu0 %v4391
    %v4393 = vpop.xlane.xlu0 %4392
    %v4394 = vsel %vm411, %v4346, 0.0
    %4395 = vadd.xlane.f32.xlu0 %v4394
    %v4396 = vpop.xlane.xlu0 %4395
    %v4397 = vsel %vm411, %v4347, 0.0
    %4398 = vadd.xlane.f32.xlu0 %v4397
    %v4399 = vpop.xlane.xlu0 %4398
    %v4400 = vsel %vm411, %v4348, 0.0
    %4401 = vadd.xlane.f32.xlu0 %v4400
    %v4402 = vpop.xlane.xlu0 %4401
    %v4403 = vsel %vm411, %v4349, 0.0
    %4404 = vadd.xlane.f32.xlu0 %v4403
    %v4405 = vpop.xlane.xlu0 %4404
    %v4406 = vsel %vm411, %v4350, 0.0
    %4407 = vadd.xlane.f32.xlu0 %v4406
    %v4408 = vpop.xlane.xlu0 %4407
    %v4409 = vsel %vm411, %v4351, 0.0
    %4410 = vadd.xlane.f32.xlu0 %v4409
    %v4411 = vpop.xlane.xlu0 %4410
    %v4412 = vsel %vm411, %v4352, 0.0
    %4413 = vadd.xlane.f32.xlu0 %v4412
    %v4414 = vpop.xlane.xlu0 %4413
    %v4415 = vsel %vm411, %v4353, 0.0
    %4416 = vadd.xlane.f32.xlu0 %v4415
    %v4417 = vpop.xlane.xlu0 %4416
    %v4418 = vsel %vm411, %v4354, 0.0
    %4419 = vadd.xlane.f32.xlu0 %v4418
    %v4420 = vpop.xlane.xlu0 %4419
    %v4421 = vsel %vm411, %v4355, 0.0
    %4422 = vadd.xlane.f32.xlu0 %v4421
    %v4423 = vpop.xlane.xlu0 %4422
    %v4424 = vsel %vm411, %v4356, 0.0
    %4425 = vadd.xlane.f32.xlu0 %v4424
    %v4426 = vpop.xlane.xlu0 %4425
    %v4427 = vsel %vm411, %v4357, 0.0
    %4428 = vadd.xlane.f32.xlu0 %v4427
    %v4429 = vpop.xlane.xlu0 %4428
    %v4430 = vsel %vm411, %v4358, 0.0
    %4431 = vadd.xlane.f32.xlu0 %v4430
    %v4432 = vpop.xlane.xlu0 %4431
    %v4433 = vsel %vm411, %v4359, 0.0
    %4434 = vadd.xlane.f32.xlu0 %v4433
    %v4435 = vpop.xlane.xlu0 %4434
    %v4436 = vsel %vm411, %v4360, 0.0
    %4437 = vadd.xlane.f32.xlu0 %v4436
    %v4438 = vpop.xlane.xlu0 %4437
    %v4439 = vsel %vm411, %v4361, 0.0
    %4440 = vadd.xlane.f32.xlu0 %v4439
    %v4441 = vpop.xlane.xlu0 %4440
    %v4442 = vsel %vm411, %v4362, 0.0
    %4443 = vadd.xlane.f32.xlu0 %v4442
    %v4444 = vpop.xlane.xlu0 %4443
    %v4445 = vsel %vm411, %v4363, 0.0
    %4446 = vadd.xlane.f32.xlu0 %v4445
    %v4447 = vpop.xlane.xlu0 %4446
    %v4448 = vsel %vm411, %v4364, 0.0
    %4449 = vadd.xlane.f32.xlu0 %v4448
    %v4450 = vpop.xlane.xlu0 %4449
    %v4451 = vsel %vm411, %v4365, 0.0
    %4452 = vadd.xlane.f32.xlu0 %v4451
    %v4453 = vpop.xlane.xlu0 %4452
    %v4454 = vsel %vm411, %v4366, 0.0
    %4455 = vadd.xlane.f32.xlu0 %v4454
    %v4456 = vpop.xlane.xlu0 %4455
    %v4457 = vsel %vm411, %v4367, 0.0
    %4458 = vadd.xlane.f32.xlu0 %v4457
    %v4459 = vpop.xlane.xlu0 %4458
    %v4460 = vsel %vm411, %v4368, 0.0
    %4461 = vadd.xlane.f32.xlu0 %v4460
    %v4462 = vpop.xlane.xlu0 %4461
    %v4463 = vsel %vm411, %v4369, 0.0
    %4464 = vadd.xlane.f32.xlu0 %v4463
    %v4465 = vpop.xlane.xlu0 %4464
    %v4466 = vmul.f32 %v4372, %v514
    %v4467 = vmul.f32 %v4375, %v514
    %v4468 = vmul.f32 %v4378, %v514
    %v4469 = vmul.f32 %v4381, %v514
    %v4470 = vmul.f32 %v4384, %v514
    %v4471 = vmul.f32 %v4387, %v514
    %v4472 = vmul.f32 %v4390, %v514
    %v4473 = vmul.f32 %v4393, %v514
    %v4474 = vmul.f32 %v4396, %v514
    %v4475 = vmul.f32 %v4399, %v514
    %v4476 = vmul.f32 %v4402, %v514
    %v4477 = vmul.f32 %v4405, %v514
    %v4478 = vmul.f32 %v4408, %v514
    %v4479 = vmul.f32 %v4411, %v514
    %v4480 = vmul.f32 %v4414, %v514
    %v4481 = vmul.f32 %v4417, %v514
    %v4482 = vmul.f32 %v4420, %v514
    %v4483 = vmul.f32 %v4423, %v514
    %v4484 = vmul.f32 %v4426, %v514
    %v4485 = vmul.f32 %v4429, %v514
    %v4486 = vmul.f32 %v4432, %v514
    %v4487 = vmul.f32 %v4435, %v514
    %v4488 = vmul.f32 %v4438, %v514
    %v4489 = vmul.f32 %v4441, %v514
    %v4490 = vmul.f32 %v4444, %v514
    %v4491 = vmul.f32 %v4447, %v514
    %v4492 = vmul.f32 %v4450, %v514
    %v4493 = vmul.f32 %v4453, %v514
    %v4494 = vmul.f32 %v4456, %v514
    %v4495 = vmul.f32 %v4459, %v514
    %v4496 = vmul.f32 %v4462, %v514
    %v4497 = vmul.f32 %v4465, %v514
    %v4498 = vadd.f32 %v4466, 1e-12
    %v4499 = vadd.f32 %v4467, 1e-12
    %v4500 = vadd.f32 %v4468, 1e-12
    %v4501 = vadd.f32 %v4469, 1e-12
    %v4502 = vadd.f32 %v4470, 1e-12
    %v4503 = vadd.f32 %v4471, 1e-12
    %v4504 = vadd.f32 %v4472, 1e-12
    %v4505 = vadd.f32 %v4473, 1e-12
    %v4506 = vadd.f32 %v4474, 1e-12
    %v4507 = vadd.f32 %v4475, 1e-12
    %v4508 = vadd.f32 %v4476, 1e-12
    %v4509 = vadd.f32 %v4477, 1e-12
    %v4510 = vadd.f32 %v4478, 1e-12
    %v4511 = vadd.f32 %v4479, 1e-12
    %v4512 = vadd.f32 %v4480, 1e-12
    %v4513 = vadd.f32 %v4481, 1e-12
    %v4514 = vadd.f32 %v4482, 1e-12
    %v4515 = vadd.f32 %v4483, 1e-12
    %v4516 = vadd.f32 %v4484, 1e-12
    %v4517 = vadd.f32 %v4485, 1e-12
    %v4518 = vadd.f32 %v4486, 1e-12
    %v4519 = vadd.f32 %v4487, 1e-12
    %v4520 = vadd.f32 %v4488, 1e-12
    %v4521 = vadd.f32 %v4489, 1e-12
    %v4522 = vadd.f32 %v4490, 1e-12
    %v4523 = vadd.f32 %v4491, 1e-12
    %v4524 = vadd.f32 %v4492, 1e-12
    %v4525 = vadd.f32 %v4493, 1e-12
    %v4526 = vadd.f32 %v4494, 1e-12
    %v4527 = vadd.f32 %v4495, 1e-12
    %v4528 = vadd.f32 %v4496, 1e-12
    %v4529 = vadd.f32 %v4497, 1e-12
    %v4530 = vrsqrt.pop %v4498
    %v4531 = vmul.f32 %v4530, %v4498
    %v4532 = vmul.f32 %v4531, %v4530
    %v4533 = vmul.f32 0.5, %v4532
    %v4534 = vsub.f32 1.5, %v4533
    %v4535 = vmul.f32 %v4530, %v4534
    %vm4536 = vweird.f32 %v4498
    %vm4537 = vweird.f32 %v4530
    %vm4538 = vmor %vm4536, %vm4537
    %v4539 = vsel %vm4538, %v4530, %v4535
    %v4540 = vrsqrt.pop %v4499
    %v4541 = vmul.f32 %v4540, %v4499
    %v4542 = vmul.f32 %v4541, %v4540
    %v4543 = vmul.f32 0.5, %v4542
    %v4544 = vsub.f32 1.5, %v4543
    %v4545 = vmul.f32 %v4540, %v4544
    %vm4546 = vweird.f32 %v4499
    %vm4547 = vweird.f32 %v4540
    %vm4548 = vmor %vm4546, %vm4547
    %v4549 = vsel %vm4548, %v4540, %v4545
    %v4550 = vrsqrt.pop %v4500
    %v4551 = vmul.f32 %v4550, %v4500
    %v4552 = vmul.f32 %v4551, %v4550
    %v4553 = vmul.f32 0.5, %v4552
    %v4554 = vsub.f32 1.5, %v4553
    %v4555 = vmul.f32 %v4550, %v4554
    %vm4556 = vweird.f32 %v4500
    %vm4557 = vweird.f32 %v4550
    %vm4558 = vmor %vm4556, %vm4557
    %v4559 = vsel %vm4558, %v4550, %v4555
    %v4560 = vrsqrt.pop %v4501
    %v4561 = vmul.f32 %v4560, %v4501
    %v4562 = vmul.f32 %v4561, %v4560
    %v4563 = vmul.f32 0.5, %v4562
    %v4564 = vsub.f32 1.5, %v4563
    %v4565 = vmul.f32 %v4560, %v4564
    %vm4566 = vweird.f32 %v4501
    %vm4567 = vweird.f32 %v4560
    %vm4568 = vmor %vm4566, %vm4567
    %v4569 = vsel %vm4568, %v4560, %v4565
    %v4570 = vrsqrt.pop %v4502
    %v4571 = vmul.f32 %v4570, %v4502
    %v4572 = vmul.f32 %v4571, %v4570
    %v4573 = vmul.f32 0.5, %v4572
    %v4574 = vsub.f32 1.5, %v4573
    %v4575 = vmul.f32 %v4570, %v4574
    %vm4576 = vweird.f32 %v4502
    %vm4577 = vweird.f32 %v4570
    %vm4578 = vmor %vm4576, %vm4577
    %v4579 = vsel %vm4578, %v4570, %v4575
    %v4580 = vrsqrt.pop %v4503
    %v4581 = vmul.f32 %v4580, %v4503
    %v4582 = vmul.f32 %v4581, %v4580
    %v4583 = vmul.f32 0.5, %v4582
    %v4584 = vsub.f32 1.5, %v4583
    %v4585 = vmul.f32 %v4580, %v4584
    %vm4586 = vweird.f32 %v4503
    %vm4587 = vweird.f32 %v4580
    %vm4588 = vmor %vm4586, %vm4587
    %v4589 = vsel %vm4588, %v4580, %v4585
    %v4590 = vrsqrt.pop %v4504
    %v4591 = vmul.f32 %v4590, %v4504
    %v4592 = vmul.f32 %v4591, %v4590
    %v4593 = vmul.f32 0.5, %v4592
    %v4594 = vsub.f32 1.5, %v4593
    %v4595 = vmul.f32 %v4590, %v4594
    %vm4596 = vweird.f32 %v4504
    %vm4597 = vweird.f32 %v4590
    %vm4598 = vmor %vm4596, %vm4597
    %v4599 = vsel %vm4598, %v4590, %v4595
    %v4600 = vrsqrt.pop %v4505
    %v4601 = vmul.f32 %v4600, %v4505
    %v4602 = vmul.f32 %v4601, %v4600
    %v4603 = vmul.f32 0.5, %v4602
    %v4604 = vsub.f32 1.5, %v4603
    %v4605 = vmul.f32 %v4600, %v4604
    %vm4606 = vweird.f32 %v4505
    %vm4607 = vweird.f32 %v4600
    %vm4608 = vmor %vm4606, %vm4607
    %v4609 = vsel %vm4608, %v4600, %v4605
    %v4610 = vrsqrt.pop %v4506
    %v4611 = vmul.f32 %v4610, %v4506
    %v4612 = vmul.f32 %v4611, %v4610
    %v4613 = vmul.f32 0.5, %v4612
    %v4614 = vsub.f32 1.5, %v4613
    %v4615 = vmul.f32 %v4610, %v4614
    %vm4616 = vweird.f32 %v4506
    %vm4617 = vweird.f32 %v4610
    %vm4618 = vmor %vm4616, %vm4617
    %v4619 = vsel %vm4618, %v4610, %v4615
    %v4620 = vrsqrt.pop %v4507
    %v4621 = vmul.f32 %v4620, %v4507
    %v4622 = vmul.f32 %v4621, %v4620
    %v4623 = vmul.f32 0.5, %v4622
    %v4624 = vsub.f32 1.5, %v4623
    %v4625 = vmul.f32 %v4620, %v4624
    %vm4626 = vweird.f32 %v4507
    %vm4627 = vweird.f32 %v4620
    %vm4628 = vmor %vm4626, %vm4627
    %v4629 = vsel %vm4628, %v4620, %v4625
    %v4630 = vrsqrt.pop %v4508
    %v4631 = vmul.f32 %v4630, %v4508
    %v4632 = vmul.f32 %v4631, %v4630
    %v4633 = vmul.f32 0.5, %v4632
    %v4634 = vsub.f32 1.5, %v4633
    %v4635 = vmul.f32 %v4630, %v4634
    %vm4636 = vweird.f32 %v4508
    %vm4637 = vweird.f32 %v4630
    %vm4638 = vmor %vm4636, %vm4637
    %v4639 = vsel %vm4638, %v4630, %v4635
    %v4640 = vrsqrt.pop %v4509
    %v4641 = vmul.f32 %v4640, %v4509
    %v4642 = vmul.f32 %v4641, %v4640
    %v4643 = vmul.f32 0.5, %v4642
    %v4644 = vsub.f32 1.5, %v4643
    %v4645 = vmul.f32 %v4640, %v4644
    %vm4646 = vweird.f32 %v4509
    %vm4647 = vweird.f32 %v4640
    %vm4648 = vmor %vm4646, %vm4647
    %v4649 = vsel %vm4648, %v4640, %v4645
    %v4650 = vrsqrt.pop %v4510
    %v4651 = vmul.f32 %v4650, %v4510
    %v4652 = vmul.f32 %v4651, %v4650
    %v4653 = vmul.f32 0.5, %v4652
    %v4654 = vsub.f32 1.5, %v4653
    %v4655 = vmul.f32 %v4650, %v4654
    %vm4656 = vweird.f32 %v4510
    %vm4657 = vweird.f32 %v4650
    %vm4658 = vmor %vm4656, %vm4657
    %v4659 = vsel %vm4658, %v4650, %v4655
    %v4660 = vrsqrt.pop %v4511
    %v4661 = vmul.f32 %v4660, %v4511
    %v4662 = vmul.f32 %v4661, %v4660
    %v4663 = vmul.f32 0.5, %v4662
    %v4664 = vsub.f32 1.5, %v4663
    %v4665 = vmul.f32 %v4660, %v4664
    %vm4666 = vweird.f32 %v4511
    %vm4667 = vweird.f32 %v4660
    %vm4668 = vmor %vm4666, %vm4667
    %v4669 = vsel %vm4668, %v4660, %v4665
    %v4670 = vrsqrt.pop %v4512
    %v4671 = vmul.f32 %v4670, %v4512
    %v4672 = vmul.f32 %v4671, %v4670
    %v4673 = vmul.f32 0.5, %v4672
    %v4674 = vsub.f32 1.5, %v4673
    %v4675 = vmul.f32 %v4670, %v4674
    %vm4676 = vweird.f32 %v4512
    %vm4677 = vweird.f32 %v4670
    %vm4678 = vmor %vm4676, %vm4677
    %v4679 = vsel %vm4678, %v4670, %v4675
    %v4680 = vrsqrt.pop %v4513
    %v4681 = vmul.f32 %v4680, %v4513
    %v4682 = vmul.f32 %v4681, %v4680
    %v4683 = vmul.f32 0.5, %v4682
    %v4684 = vsub.f32 1.5, %v4683
    %v4685 = vmul.f32 %v4680, %v4684
    %vm4686 = vweird.f32 %v4513
    %vm4687 = vweird.f32 %v4680
    %vm4688 = vmor %vm4686, %vm4687
    %v4689 = vsel %vm4688, %v4680, %v4685
    %v4690 = vrsqrt.pop %v4514
    %v4691 = vmul.f32 %v4690, %v4514
    %v4692 = vmul.f32 %v4691, %v4690
    %v4693 = vmul.f32 0.5, %v4692
    %v4694 = vsub.f32 1.5, %v4693
    %v4695 = vmul.f32 %v4690, %v4694
    %vm4696 = vweird.f32 %v4514
    %vm4697 = vweird.f32 %v4690
    %vm4698 = vmor %vm4696, %vm4697
    %v4699 = vsel %vm4698, %v4690, %v4695
    %v4700 = vrsqrt.pop %v4515
    %v4701 = vmul.f32 %v4700, %v4515
    %v4702 = vmul.f32 %v4701, %v4700
    %v4703 = vmul.f32 0.5, %v4702
    %v4704 = vsub.f32 1.5, %v4703
    %v4705 = vmul.f32 %v4700, %v4704
    %vm4706 = vweird.f32 %v4515
    %vm4707 = vweird.f32 %v4700
    %vm4708 = vmor %vm4706, %vm4707
    %v4709 = vsel %vm4708, %v4700, %v4705
    %v4710 = vrsqrt.pop %v4516
    %v4711 = vmul.f32 %v4710, %v4516
    %v4712 = vmul.f32 %v4711, %v4710
    %v4713 = vmul.f32 0.5, %v4712
    %v4714 = vsub.f32 1.5, %v4713
    %v4715 = vmul.f32 %v4710, %v4714
    %vm4716 = vweird.f32 %v4516
    %vm4717 = vweird.f32 %v4710
    %vm4718 = vmor %vm4716, %vm4717
    %v4719 = vsel %vm4718, %v4710, %v4715
    %v4720 = vrsqrt.pop %v4517
    %v4721 = vmul.f32 %v4720, %v4517
    %v4722 = vmul.f32 %v4721, %v4720
    %v4723 = vmul.f32 0.5, %v4722
    %v4724 = vsub.f32 1.5, %v4723
    %v4725 = vmul.f32 %v4720, %v4724
    %vm4726 = vweird.f32 %v4517
    %vm4727 = vweird.f32 %v4720
    %vm4728 = vmor %vm4726, %vm4727
    %v4729 = vsel %vm4728, %v4720, %v4725
    %v4730 = vrsqrt.pop %v4518
    %v4731 = vmul.f32 %v4730, %v4518
    %v4732 = vmul.f32 %v4731, %v4730
    %v4733 = vmul.f32 0.5, %v4732
    %v4734 = vsub.f32 1.5, %v4733
    %v4735 = vmul.f32 %v4730, %v4734
    %vm4736 = vweird.f32 %v4518
    %vm4737 = vweird.f32 %v4730
    %vm4738 = vmor %vm4736, %vm4737
    %v4739 = vsel %vm4738, %v4730, %v4735
    %v4740 = vrsqrt.pop %v4519
    %v4741 = vmul.f32 %v4740, %v4519
    %v4742 = vmul.f32 %v4741, %v4740
    %v4743 = vmul.f32 0.5, %v4742
    %v4744 = vsub.f32 1.5, %v4743
    %v4745 = vmul.f32 %v4740, %v4744
    %vm4746 = vweird.f32 %v4519
    %vm4747 = vweird.f32 %v4740
    %vm4748 = vmor %vm4746, %vm4747
    %v4749 = vsel %vm4748, %v4740, %v4745
    %v4750 = vrsqrt.pop %v4520
    %v4751 = vmul.f32 %v4750, %v4520
    %v4752 = vmul.f32 %v4751, %v4750
    %v4753 = vmul.f32 0.5, %v4752
    %v4754 = vsub.f32 1.5, %v4753
    %v4755 = vmul.f32 %v4750, %v4754
    %vm4756 = vweird.f32 %v4520
    %vm4757 = vweird.f32 %v4750
    %vm4758 = vmor %vm4756, %vm4757
    %v4759 = vsel %vm4758, %v4750, %v4755
    %v4760 = vrsqrt.pop %v4521
    %v4761 = vmul.f32 %v4760, %v4521
    %v4762 = vmul.f32 %v4761, %v4760
    %v4763 = vmul.f32 0.5, %v4762
    %v4764 = vsub.f32 1.5, %v4763
    %v4765 = vmul.f32 %v4760, %v4764
    %vm4766 = vweird.f32 %v4521
    %vm4767 = vweird.f32 %v4760
    %vm4768 = vmor %vm4766, %vm4767
    %v4769 = vsel %vm4768, %v4760, %v4765
    %v4770 = vrsqrt.pop %v4522
    %v4771 = vmul.f32 %v4770, %v4522
    %v4772 = vmul.f32 %v4771, %v4770
    %v4773 = vmul.f32 0.5, %v4772
    %v4774 = vsub.f32 1.5, %v4773
    %v4775 = vmul.f32 %v4770, %v4774
    %vm4776 = vweird.f32 %v4522
    %vm4777 = vweird.f32 %v4770
    %vm4778 = vmor %vm4776, %vm4777
    %v4779 = vsel %vm4778, %v4770, %v4775
    %v4780 = vrsqrt.pop %v4523
    %v4781 = vmul.f32 %v4780, %v4523
    %v4782 = vmul.f32 %v4781, %v4780
    %v4783 = vmul.f32 0.5, %v4782
    %v4784 = vsub.f32 1.5, %v4783
    %v4785 = vmul.f32 %v4780, %v4784
    %vm4786 = vweird.f32 %v4523
    %vm4787 = vweird.f32 %v4780
    %vm4788 = vmor %vm4786, %vm4787
    %v4789 = vsel %vm4788, %v4780, %v4785
    %v4790 = vrsqrt.pop %v4524
    %v4791 = vmul.f32 %v4790, %v4524
    %v4792 = vmul.f32 %v4791, %v4790
    %v4793 = vmul.f32 0.5, %v4792
    %v4794 = vsub.f32 1.5, %v4793
    %v4795 = vmul.f32 %v4790, %v4794
    %vm4796 = vweird.f32 %v4524
    %vm4797 = vweird.f32 %v4790
    %vm4798 = vmor %vm4796, %vm4797
    %v4799 = vsel %vm4798, %v4790, %v4795
    %v4800 = vrsqrt.pop %v4525
    %v4801 = vmul.f32 %v4800, %v4525
    %v4802 = vmul.f32 %v4801, %v4800
    %v4803 = vmul.f32 0.5, %v4802
    %v4804 = vsub.f32 1.5, %v4803
    %v4805 = vmul.f32 %v4800, %v4804
    %vm4806 = vweird.f32 %v4525
    %vm4807 = vweird.f32 %v4800
    %vm4808 = vmor %vm4806, %vm4807
    %v4809 = vsel %vm4808, %v4800, %v4805
    %v4810 = vrsqrt.pop %v4526
    %v4811 = vmul.f32 %v4810, %v4526
    %v4812 = vmul.f32 %v4811, %v4810
    %v4813 = vmul.f32 0.5, %v4812
    %v4814 = vsub.f32 1.5, %v4813
    %v4815 = vmul.f32 %v4810, %v4814
    %vm4816 = vweird.f32 %v4526
    %vm4817 = vweird.f32 %v4810
    %vm4818 = vmor %vm4816, %vm4817
    %v4819 = vsel %vm4818, %v4810, %v4815
    %v4820 = vrsqrt.pop %v4527
    %v4821 = vmul.f32 %v4820, %v4527
    %v4822 = vmul.f32 %v4821, %v4820
    %v4823 = vmul.f32 0.5, %v4822
    %v4824 = vsub.f32 1.5, %v4823
    %v4825 = vmul.f32 %v4820, %v4824
    %vm4826 = vweird.f32 %v4527
    %vm4827 = vweird.f32 %v4820
    %vm4828 = vmor %vm4826, %vm4827
    %v4829 = vsel %vm4828, %v4820, %v4825
    %v4830 = vrsqrt.pop %v4528
    %v4831 = vmul.f32 %v4830, %v4528
    %v4832 = vmul.f32 %v4831, %v4830
    %v4833 = vmul.f32 0.5, %v4832
    %v4834 = vsub.f32 1.5, %v4833
    %v4835 = vmul.f32 %v4830, %v4834
    %vm4836 = vweird.f32 %v4528
    %vm4837 = vweird.f32 %v4830
    %vm4838 = vmor %vm4836, %vm4837
    %v4839 = vsel %vm4838, %v4830, %v4835
    %v4840 = vrsqrt.pop %v4529
    %v4841 = vmul.f32 %v4840, %v4529
    %v4842 = vmul.f32 %v4841, %v4840
    %v4843 = vmul.f32 0.5, %v4842
    %v4844 = vsub.f32 1.5, %v4843
    %v4845 = vmul.f32 %v4840, %v4844
    %vm4846 = vweird.f32 %v4529
    %vm4847 = vweird.f32 %v4840
    %vm4848 = vmor %vm4846, %vm4847
    %v4849 = vsel %vm4848, %v4840, %v4845
    %v4850 = vmul.f32 %v4306, %v4539
    %v4851 = vmul.f32 %v4307, %v4549
    %v4852 = vmul.f32 %v4308, %v4559
    %v4853 = vmul.f32 %v4309, %v4569
    %v4854 = vmul.f32 %v4310, %v4579
    %v4855 = vmul.f32 %v4311, %v4589
    %v4856 = vmul.f32 %v4312, %v4599
    %v4857 = vmul.f32 %v4313, %v4609
    %v4858 = vmul.f32 %v4314, %v4619
    %v4859 = vmul.f32 %v4315, %v4629
    %v4860 = vmul.f32 %v4316, %v4639
    %v4861 = vmul.f32 %v4317, %v4649
    %v4862 = vmul.f32 %v4318, %v4659
    %v4863 = vmul.f32 %v4319, %v4669
    %v4864 = vmul.f32 %v4320, %v4679
    %v4865 = vmul.f32 %v4321, %v4689
    %v4866 = vmul.f32 %v4322, %v4699
    %v4867 = vmul.f32 %v4323, %v4709
    %v4868 = vmul.f32 %v4324, %v4719
    %v4869 = vmul.f32 %v4325, %v4729
    %v4870 = vmul.f32 %v4326, %v4739
    %v4871 = vmul.f32 %v4327, %v4749
    %v4872 = vmul.f32 %v4328, %v4759
    %v4873 = vmul.f32 %v4329, %v4769
    %v4874 = vmul.f32 %v4330, %v4779
    %v4875 = vmul.f32 %v4331, %v4789
    %v4876 = vmul.f32 %v4332, %v4799
    %v4877 = vmul.f32 %v4333, %v4809
    %v4878 = vmul.f32 %v4334, %v4819
    %v4879 = vmul.f32 %v4335, %v4829
    %v4880 = vmul.f32 %v4336, %v4839
    %v4881 = vmul.f32 %v4337, %v4849
    %v4882 = vperm.slane %v4176, 0
    %v4883 = vmul.f32 %v4850, %v4882
    %v4884 = vmul.f32 %v4851, %v4882
    %v4885 = vmul.f32 %v4852, %v4882
    %v4886 = vmul.f32 %v4853, %v4882
    %v4887 = vmul.f32 %v4854, %v4882
    %v4888 = vmul.f32 %v4855, %v4882
    %v4889 = vmul.f32 %v4856, %v4882
    %v4890 = vmul.f32 %v4857, %v4882
    %v4891 = vmul.f32 %v4858, %v4882
    %v4892 = vmul.f32 %v4859, %v4882
    %v4893 = vmul.f32 %v4860, %v4882
    %v4894 = vmul.f32 %v4861, %v4882
    %v4895 = vmul.f32 %v4862, %v4882
    %v4896 = vmul.f32 %v4863, %v4882
    %v4897 = vmul.f32 %v4864, %v4882
    %v4898 = vmul.f32 %v4865, %v4882
    %v4899 = vmul.f32 %v4866, %v4882
    %v4900 = vmul.f32 %v4867, %v4882
    %v4901 = vmul.f32 %v4868, %v4882
    %v4902 = vmul.f32 %v4869, %v4882
    %v4903 = vmul.f32 %v4870, %v4882
    %v4904 = vmul.f32 %v4871, %v4882
    %v4905 = vmul.f32 %v4872, %v4882
    %v4906 = vmul.f32 %v4873, %v4882
    %v4907 = vmul.f32 %v4874, %v4882
    %v4908 = vmul.f32 %v4875, %v4882
    %v4909 = vmul.f32 %v4876, %v4882
    %v4910 = vmul.f32 %v4877, %v4882
    %v4911 = vmul.f32 %v4878, %v4882
    %v4912 = vmul.f32 %v4879, %v4882
    %v4913 = vmul.f32 %v4880, %v4882
    %v4914 = vmul.f32 %v4881, %v4882
    %v4915 = vperm.slane %v4177, 0
    %v4916 = vadd.f32 %v4883, %v4915
    %v4917 = vadd.f32 %v4884, %v4915
    %v4918 = vadd.f32 %v4885, %v4915
    %v4919 = vadd.f32 %v4886, %v4915
    %v4920 = vadd.f32 %v4887, %v4915
    %v4921 = vadd.f32 %v4888, %v4915
    %v4922 = vadd.f32 %v4889, %v4915
    %v4923 = vadd.f32 %v4890, %v4915
    %v4924 = vadd.f32 %v4891, %v4915
    %v4925 = vadd.f32 %v4892, %v4915
    %v4926 = vadd.f32 %v4893, %v4915
    %v4927 = vadd.f32 %v4894, %v4915
    %v4928 = vadd.f32 %v4895, %v4915
    %v4929 = vadd.f32 %v4896, %v4915
    %v4930 = vadd.f32 %v4897, %v4915
    %v4931 = vadd.f32 %v4898, %v4915
    %v4932 = vadd.f32 %v4899, %v4915
    %v4933 = vadd.f32 %v4900, %v4915
    %v4934 = vadd.f32 %v4901, %v4915
    %v4935 = vadd.f32 %v4902, %v4915
    %v4936 = vadd.f32 %v4903, %v4915
    %v4937 = vadd.f32 %v4904, %v4915
    %v4938 = vadd.f32 %v4905, %v4915
    %v4939 = vadd.f32 %v4906, %v4915
    %v4940 = vadd.f32 %v4907, %v4915
    %v4941 = vadd.f32 %v4908, %v4915
    %v4942 = vadd.f32 %v4909, %v4915
    %v4943 = vadd.f32 %v4910, %v4915
    %v4944 = vadd.f32 %v4911, %v4915
    %v4945 = vadd.f32 %v4912, %v4915
    %v4946 = vadd.f32 %v4913, %v4915
    %v4947 = vadd.f32 %v4914, %v4915
    %v4948 = vld [vmem:[%s4 + $0x200] sm:$0xff]
    %v4949 = vld [vmem:[%s4 + $0x208] sm:$0xff]
    %v4950 = vld [vmem:[%s4 + $0x210] sm:$0xff]
    %v4951 = vld [vmem:[%s4 + $0x218] sm:$0xff]
    %v4952 = vld [vmem:[%s4 + $0x220] sm:$0xff]
    %v4953 = vld [vmem:[%s4 + $0x228] sm:$0xff]
    %v4954 = vld [vmem:[%s4 + $0x230] sm:$0xff]
    %v4955 = vld [vmem:[%s4 + $0x238] sm:$0xff]
    %4956 = vmatpush.msra.mxu0 %v4931
    %4957 = vmatpush.msra.mxu0 %v4930
    %4958 = vmatpush.msra.mxu0 %v4929
    %4959 = vmatpush.msra.mxu0 %v4928
    %4960 = vmatpush.msra.mxu0 %v4927
    %4961 = vmatpush.msra.mxu0 %v4926
    %4962 = vmatpush.msra.mxu0 %v4925
    %4963 = vmatpush.msra.mxu0 %v4924
    %4964 = vmatpush.msra.mxu0 %v4923
    %4965 = vmatpush.msra.mxu0 %v4922
    %4966 = vmatpush.msra.mxu0 %v4921
    %4967 = vmatpush.msra.mxu0 %v4920
    %4968 = vmatpush.msra.mxu0 %v4919
    %4969 = vmatpush.msra.mxu0 %v4918
    %4970 = vmatpush.msra.mxu0 %v4917
    %4971 = vmatpush.msra.mxu0 %v4916
    %4972 = vmatmul.f32.gmra.mxu0 %v4948
    %v4973 = vpop.f32.mrf.mxu0
    %v4974 = vadd.f32 0.0, %v4973
    %4975 = vmatmul.f32.gmra.mxu0 %v4950
    %v4976 = vpop.f32.mrf.mxu0
    %v4977 = vadd.f32 0.0, %v4976
    %4978 = vmatmul.f32.gmra.mxu0 %v4952
    %v4979 = vpop.f32.mrf.mxu0
    %v4980 = vadd.f32 0.0, %v4979
    %4981 = vmatmul.f32.gmra.mxu0 %v4954
    %v4982 = vpop.f32.mrf.mxu0
    %v4983 = vadd.f32 0.0, %v4982
    %4984 = vdwg.mxu0
    %4985 = vmatpush.msra.mxu0 %v4947
    %4986 = vmatpush.msra.mxu0 %v4946
    %4987 = vmatpush.msra.mxu0 %v4945
    %4988 = vmatpush.msra.mxu0 %v4944
    %4989 = vmatpush.msra.mxu0 %v4943
    %4990 = vmatpush.msra.mxu0 %v4942
    %4991 = vmatpush.msra.mxu0 %v4941
    %4992 = vmatpush.msra.mxu0 %v4940
    %4993 = vmatpush.msra.mxu0 %v4939
    %4994 = vmatpush.msra.mxu0 %v4938
    %4995 = vmatpush.msra.mxu0 %v4937
    %4996 = vmatpush.msra.mxu0 %v4936
    %4997 = vmatpush.msra.mxu0 %v4935
    %4998 = vmatpush.msra.mxu0 %v4934
    %4999 = vmatpush.msra.mxu0 %v4933
    %5000 = vmatpush.msra.mxu0 %v4932
    %5001 = vmatmul.f32.gmra.mxu0 %v4949
    %v5002 = vpop.f32.mrf.mxu0
    %v5003 = vadd.f32 %v4974, %v5002
    %5004 = vmatmul.f32.gmra.mxu0 %v4951
    %v5005 = vpop.f32.mrf.mxu0
    %v5006 = vadd.f32 %v4977, %v5005
    %5007 = vmatmul.f32.gmra.mxu0 %v4953
    %v5008 = vpop.f32.mrf.mxu0
    %v5009 = vadd.f32 %v4980, %v5008
    %5010 = vmatmul.f32.gmra.mxu0 %v4955
    %v5011 = vpop.f32.mrf.mxu0
    %v5012 = vadd.f32 %v4983, %v5011
    %5013 = vdwg.mxu0
    %v5014 = vpack.c.bf16 %v5006, %v5003
    %v5015 = vpack.c.bf16 %v5012, %v5009
    %v5016 = vld [vmem:[%s2 + $0x60] sm:$0xf]
    %v5017 = vld [vmem:[%s2 + $0x64] sm:$0xf]
    %v5018 = vld [vmem:[%s2 + $0x68] sm:$0xf]
    %v5019 = vld [vmem:[%s2 + $0x6c] sm:$0xf]
    %v5020 = vld [vmem:[%s3 + $0xc] sm:$0x1]
    %v5021 = vperm.slane %v5020, 0
    %v5026 = vunpack.c.l.b16 %v5016
    %v5027 = vunpack.c.l.b16 %v5017
    %v5028 = vunpack.c.l.b16 %v5018
    %v5029 = vunpack.c.l.b16 %v5019
    %v5030 = vpack.c.b16 %v5027, %v5026
    %v5031 = vpack.c.b16 %v5029, %v5028
    %v5035 = vsel %vm411, %v5014, 0
    %v5038 = vsel %vm411, %v5015, 0
    %5040 = vmatpush.bf16.msra.mxu0 0
    %5041 = vmatpush.bf16.msra.mxu0 0
    %5042 = vmatpush.bf16.msra.mxu0 0
    %5043 = vmatpush.bf16.msra.mxu0 0
    %5044 = vmatpush.bf16.msra.mxu0 0
    %5045 = vmatpush.bf16.msra.mxu0 0
    %5046 = vmatpush.bf16.msra.mxu0 %v5031
    %5047 = vmatpush.bf16.msra.mxu0 %v5030
    %5048 = vmatmul.bf16.gmra.mxu0 %v5035
    %v5049 = vpop.f32.mrf.mxu0
    %v5050 = vadd.f32 %v5021, %v5049
    %v5051 = vpop.f32.mrf.mxu0
    %v5052 = vadd.f32 %v5021, %v5051
    %5053 = vmatmul.bf16.gmra.mxu0 %v5038
    %v5054 = vpop.f32.mrf.mxu0
    %v5055 = vadd.f32 %v5021, %v5054
    %v5056 = vpop.f32.mrf.mxu0
    %v5057 = vadd.f32 %v5021, %v5056
    %5058 = vdwg.mxu0
    %v5059 = vmax.f32 %v5050, 0.0
    %v5060 = vmax.f32 %v5052, 0.0
    %v5061 = vmax.f32 %v5055, 0.0
    %v5062 = vmax.f32 %v5057, 0.0
    %v5063 = vpack.c.bf16 %v5060, %v5059
    %v5064 = vpack.c.bf16 %v5062, %v5061
    %v5065 = vld [vmem:[%s2 + $0x80] sm:$0xf]
    %v5066 = vld [vmem:[%s2 + $0x84] sm:$0xf]
    %v5067 = vld [vmem:[%s2 + $0x88] sm:$0xf]
    %v5068 = vld [vmem:[%s2 + $0x8c] sm:$0xf]
    %v5069 = vld [vmem:[%s3 + $0xd] sm:$0x1]
    %v5070 = vperm.slane %v5069, 0
    %v5075 = vunpack.c.l.b16 %v5065
    %v5076 = vunpack.c.l.b16 %v5066
    %v5077 = vunpack.c.l.b16 %v5067
    %v5078 = vunpack.c.l.b16 %v5068
    %v5079 = vpack.c.b16 %v5076, %v5075
    %v5080 = vpack.c.b16 %v5078, %v5077
    %v5084 = vsel %vm411, %v5063, 0
    %v5087 = vsel %vm411, %v5064, 0
    %5089 = vmatpush.bf16.msra.mxu0 0
    %5090 = vmatpush.bf16.msra.mxu0 0
    %5091 = vmatpush.bf16.msra.mxu0 0
    %5092 = vmatpush.bf16.msra.mxu0 0
    %5093 = vmatpush.bf16.msra.mxu0 0
    %5094 = vmatpush.bf16.msra.mxu0 0
    %5095 = vmatpush.bf16.msra.mxu0 %v5080
    %5096 = vmatpush.bf16.msra.mxu0 %v5079
    %5097 = vmatmul.bf16.gmra.mxu0 %v5084
    %v5098 = vpop.f32.mrf.mxu0
    %v5099 = vadd.f32 %v5070, %v5098
    %v5100 = vpop.f32.mrf.mxu0
    %v5101 = vadd.f32 %v5070, %v5100
    %5102 = vmatmul.bf16.gmra.mxu0 %v5087
    %v5103 = vpop.f32.mrf.mxu0
    %v5104 = vadd.f32 %v5070, %v5103
    %v5105 = vpop.f32.mrf.mxu0
    %v5106 = vadd.f32 %v5070, %v5105
    %5107 = vdwg.mxu0
    %5108 = vst [vmem:[#allocation2] sm:$0xff] %v5099
    %5109 = vst [vmem:[#allocation2 + $0x8] sm:$0xff] %v5101
    %5110 = vst [vmem:[#allocation2 + $0x10] sm:$0xff] %v5104
    %5111 = vst [vmem:[#allocation2 + $0x18] sm:$0xff] %v5106
    // Predicated region
    $region22: #{tpu_custom_call.1} parent=1 // pred_check
      _
    $region23: #{tpu_custom_call.1} parent=1 // pred_check_branch
      %5113 = sbr.rel (0) target = $region25
    $region24: #{tpu_custom_call.1} parent=1 // pred_region
      %5115 = vsyncadd [#allocation3], 0
      %s5116 = sshll.u32 [#allocation2], 4
      %s5117 = int_to_ptr.vmem [resolvable:$true] %s5116
      %s5118 = sshll.u32 %s5, 4
      %s5119 = int_to_ptr.hbm [resolvable:$true] %s5118
      %5124 = dma.vmem_to_hbm [thread:$0]  %s5117, 512, %s5119, [#allocation3], 128, 128, 8
    $region25: #{tpu_custom_call.1} parent=1 // pred_fallthru
      _
    // Predicated region
    $region26: #{tpu_custom_call.1} parent=1 // pred_check
      _
    $region27: #{tpu_custom_call.1} parent=1 // pred_check_branch
      %5126 = sbr.rel (0) target = $region29
    $region28: #{tpu_custom_call.1} parent=1 // pred_region
      %5128 = dma.done [#allocation3], 512
    $region29: #{tpu_custom_call.1} parent=1 // pred_fallthru
      _
    %5129 = vsyncpa [#allocation3], 1

// kernel: tpu_custom_call.1
$region0: #{tpu_custom_call.1}
  #allocation0 [shape = 'u32[]', space=smem, size = 0x4, offset = 0x4, fixed_abs, tag = 'smem constant byte address 0x4 - core index']
  #allocation1 [shape = 'u32[72,128]{1,0:T(1,128)}', space=vmem, size = 0x9000, scoped, tag = 'internal scratch']
  %s0 = inlined_call_operand.vmem [shape: s32[256,1], index: 0, kind: input, shape index: {}]
  %s1 = inlined_call_operand.vmem [shape: f32[384,32], index: 1, kind: input, shape index: {}]
  %s2 = inlined_call_operand.vmem [shape: bf16[288,128], index: 2, kind: input, shape index: {}]
  %s3 = inlined_call_operand.vmem [shape: f32[16,128], index: 3, kind: input, shape index: {}]
  %s4 = inlined_call_operand.vmem [shape: f32[288,256], index: 4, kind: input, shape index: {}]
  %s5 = inlined_call_operand.hbm [shape: f32[32,128], index: 5, kind: output, shape index: {}]
  %s6 = sld [smem:[#allocation0]]
  $region30: #{tpu_custom_call.1} parent=0
    _
  %s8 = ssub.s32 1, %s6
  %s9 = scalar_select 0, %s8, %s6
  $region1: #{tpu_custom_call.1} parent=0
    #allocation2 [shape = 'u8[16384]{0}', space=vmem, size = 0x4000, scoped, tag = 'output window, operand 0, single buffered']
    #allocation3 [shape = 's32[1]{0}', space=sflag, size = 0x4, scoped, tag = 'scoped memory for tpu_custom_call.1']
    %10 = vsyncpa [#allocation3], 0
    // Predicated region
    $region2: #{tpu_custom_call.1} parent=1 // pred_check
      _
    $region3: #{tpu_custom_call.1} parent=1 // pred_check_branch
      %12 = sbr.rel (0) target = $region5
    $region4: #{tpu_custom_call.1} parent=1 // pred_region
      _
    $region5: #{tpu_custom_call.1} parent=1 // pred_fallthru
      _
    // Predicated region
    $region6: #{tpu_custom_call.1} parent=1 // pred_check
      _
    $region7: #{tpu_custom_call.1} parent=1 // pred_check_branch
      %14 = sbr.rel (0) target = $region9
    $region8: #{tpu_custom_call.1} parent=1 // pred_region
      _
    $region9: #{tpu_custom_call.1} parent=1 // pred_fallthru
      _
    // Predicated region
    $region10: #{tpu_custom_call.1} parent=1 // pred_check
      _
    $region11: #{tpu_custom_call.1} parent=1 // pred_check_branch
      %16 = sbr.rel (0) target = $region13
    $region12: #{tpu_custom_call.1} parent=1 // pred_region
      _
    $region13: #{tpu_custom_call.1} parent=1 // pred_fallthru
      _
    // Predicated region
    $region14: #{tpu_custom_call.1} parent=1 // pred_check
      _
    $region15: #{tpu_custom_call.1} parent=1 // pred_check_branch
      %18 = sbr.rel (0) target = $region17
    $region16: #{tpu_custom_call.1} parent=1 // pred_region
      _
    $region17: #{tpu_custom_call.1} parent=1 // pred_fallthru
      _
    // Predicated region
    $region18: #{tpu_custom_call.1} parent=1 // pred_check
      _
    $region19: #{tpu_custom_call.1} parent=1 // pred_check_branch
      %20 = sbr.rel (0) target = $region21
    $region20: #{tpu_custom_call.1} parent=1 // pred_region
      _
    $region21: #{tpu_custom_call.1} parent=1 // pred_fallthru
      _
    %v22 = vld [vmem:[%s0] sm:$0xff]
    %v23 = vld [vmem:[%s0 + $0x8] sm:$0xff]
    %v24 = vld [vmem:[%s0 + $0x10] sm:$0xff]
    %v25 = vld [vmem:[%s0 + $0x18] sm:$0xff]
    %v26 = vld [vmem:[%s0 + $0x20] sm:$0xff]
    %v27 = vld [vmem:[%s0 + $0x28] sm:$0xff]
    %v28 = vld [vmem:[%s0 + $0x30] sm:$0xff]
    %v29 = vld [vmem:[%s0 + $0x38] sm:$0xff]
    %v30 = vld [vmem:[%s0 + $0x40] sm:$0xff]
    %v31 = vld [vmem:[%s0 + $0x48] sm:$0xff]
    %v32 = vld [vmem:[%s0 + $0x50] sm:$0xff]
    %v33 = vld [vmem:[%s0 + $0x58] sm:$0xff]
    %v34 = vld [vmem:[%s0 + $0x60] sm:$0xff]
    %v35 = vld [vmem:[%s0 + $0x68] sm:$0xff]
    %v36 = vld [vmem:[%s0 + $0x70] sm:$0xff]
    %v37 = vld [vmem:[%s0 + $0x78] sm:$0xff]
    %v38 = vld [vmem:[%s0 + $0x80] sm:$0xff]
    %v39 = vld [vmem:[%s0 + $0x88] sm:$0xff]
    %v40 = vld [vmem:[%s0 + $0x90] sm:$0xff]
    %v41 = vld [vmem:[%s0 + $0x98] sm:$0xff]
    %v42 = vld [vmem:[%s0 + $0xa0] sm:$0xff]
    %v43 = vld [vmem:[%s0 + $0xa8] sm:$0xff]
    %v44 = vld [vmem:[%s0 + $0xb0] sm:$0xff]
    %v45 = vld [vmem:[%s0 + $0xb8] sm:$0xff]
    %v46 = vld [vmem:[%s0 + $0xc0] sm:$0xff]
    %v47 = vld [vmem:[%s0 + $0xc8] sm:$0xff]
    %v48 = vld [vmem:[%s0 + $0xd0] sm:$0xff]
    %v49 = vld [vmem:[%s0 + $0xd8] sm:$0xff]
    %v50 = vld [vmem:[%s0 + $0xe0] sm:$0xff]
    %v51 = vld [vmem:[%s0 + $0xe8] sm:$0xff]
    %v52 = vld [vmem:[%s0 + $0xf0] sm:$0xff]
    %v53 = vld [vmem:[%s0 + $0xf8] sm:$0xff]
    %v54 = vlaneseq
    %v55 = vand.u32 %v54, 127
    %56 = vset.pattern.permute.xlu0 0
    %57 = vperm.xlu0 %56, %v22
    %v58 = vpop.permute.xlu0 %57
    %59 = vset.pattern.permute.xlu0 0
    %60 = vperm.xlu0 %59, %v23
    %v61 = vpop.permute.xlu0 %60
    %62 = vset.pattern.permute.xlu0 0
    %63 = vperm.xlu0 %62, %v24
    %v64 = vpop.permute.xlu0 %63
    %65 = vset.pattern.permute.xlu0 0
    %66 = vperm.xlu0 %65, %v25
    %v67 = vpop.permute.xlu0 %66
    %68 = vset.pattern.permute.xlu0 0
    %69 = vperm.xlu0 %68, %v26
    %v70 = vpop.permute.xlu0 %69
    %71 = vset.pattern.permute.xlu0 0
    %72 = vperm.xlu0 %71, %v27
    %v73 = vpop.permute.xlu0 %72
    %74 = vset.pattern.permute.xlu0 0
    %75 = vperm.xlu0 %74, %v28
    %v76 = vpop.permute.xlu0 %75
    %77 = vset.pattern.permute.xlu0 0
    %78 = vperm.xlu0 %77, %v29
    %v79 = vpop.permute.xlu0 %78
    %80 = vset.pattern.permute.xlu0 0
    %81 = vperm.xlu0 %80, %v30
    %v82 = vpop.permute.xlu0 %81
    %83 = vset.pattern.permute.xlu0 0
    %84 = vperm.xlu0 %83, %v31
    %v85 = vpop.permute.xlu0 %84
    %86 = vset.pattern.permute.xlu0 0
    %87 = vperm.xlu0 %86, %v32
    %v88 = vpop.permute.xlu0 %87
    %89 = vset.pattern.permute.xlu0 0
    %90 = vperm.xlu0 %89, %v33
    %v91 = vpop.permute.xlu0 %90
    %92 = vset.pattern.permute.xlu0 0
    %93 = vperm.xlu0 %92, %v34
    %v94 = vpop.permute.xlu0 %93
    %95 = vset.pattern.permute.xlu0 0
    %96 = vperm.xlu0 %95, %v35
    %v97 = vpop.permute.xlu0 %96
    %98 = vset.pattern.permute.xlu0 0
    %99 = vperm.xlu0 %98, %v36
    %v100 = vpop.permute.xlu0 %99
    %101 = vset.pattern.permute.xlu0 0
    %102 = vperm.xlu0 %101, %v37
    %v103 = vpop.permute.xlu0 %102
    %104 = vset.pattern.permute.xlu0 0
    %105 = vperm.xlu0 %104, %v38
    %v106 = vpop.permute.xlu0 %105
    %107 = vset.pattern.permute.xlu0 0
    %108 = vperm.xlu0 %107, %v39
    %v109 = vpop.permute.xlu0 %108
    %110 = vset.pattern.permute.xlu0 0
    %111 = vperm.xlu0 %110, %v40
    %v112 = vpop.permute.xlu0 %111
    %113 = vset.pattern.permute.xlu0 0
    %114 = vperm.xlu0 %113, %v41
    %v115 = vpop.permute.xlu0 %114
    %116 = vset.pattern.permute.xlu0 0
    %117 = vperm.xlu0 %116, %v42
    %v118 = vpop.permute.xlu0 %117
    %119 = vset.pattern.permute.xlu0 0
    %120 = vperm.xlu0 %119, %v43
    %v121 = vpop.permute.xlu0 %120
    %122 = vset.pattern.permute.xlu0 0
    %123 = vperm.xlu0 %122, %v44
    %v124 = vpop.permute.xlu0 %123
    %125 = vset.pattern.permute.xlu0 0
    %126 = vperm.xlu0 %125, %v45
    %v127 = vpop.permute.xlu0 %126
    %128 = vset.pattern.permute.xlu0 0
    %129 = vperm.xlu0 %128, %v46
    %v130 = vpop.permute.xlu0 %129
    %131 = vset.pattern.permute.xlu0 0
    %132 = vperm.xlu0 %131, %v47
    %v133 = vpop.permute.xlu0 %132
    %134 = vset.pattern.permute.xlu0 0
    %135 = vperm.xlu0 %134, %v48
    %v136 = vpop.permute.xlu0 %135
    %137 = vset.pattern.permute.xlu0 0
    %138 = vperm.xlu0 %137, %v49
    %v139 = vpop.permute.xlu0 %138
    %140 = vset.pattern.permute.xlu0 0
    %141 = vperm.xlu0 %140, %v50
    %v142 = vpop.permute.xlu0 %141
    %143 = vset.pattern.permute.xlu0 0
    %144 = vperm.xlu0 %143, %v51
    %v145 = vpop.permute.xlu0 %144
    %146 = vset.pattern.permute.xlu0 0
    %147 = vperm.xlu0 %146, %v52
    %v148 = vpop.permute.xlu0 %147
    %149 = vset.pattern.permute.xlu0 0
    %150 = vperm.xlu0 %149, %v53
    %v151 = vpop.permute.xlu0 %150
    %vm152 = vcmp.eq.s32.totalorder %v55, %v58
    %vm153 = vcmp.eq.s32.totalorder %v55, %v61
    %vm154 = vcmp.eq.s32.totalorder %v55, %v64
    %vm155 = vcmp.eq.s32.totalorder %v55, %v67
    %vm156 = vcmp.eq.s32.totalorder %v55, %v70
    %vm157 = vcmp.eq.s32.totalorder %v55, %v73
    %vm158 = vcmp.eq.s32.totalorder %v55, %v76
    %vm159 = vcmp.eq.s32.totalorder %v55, %v79
    %vm160 = vcmp.eq.s32.totalorder %v55, %v82
    %vm161 = vcmp.eq.s32.totalorder %v55, %v85
    %vm162 = vcmp.eq.s32.totalorder %v55, %v88
    %vm163 = vcmp.eq.s32.totalorder %v55, %v91
    %vm164 = vcmp.eq.s32.totalorder %v55, %v94
    %vm165 = vcmp.eq.s32.totalorder %v55, %v97
    %vm166 = vcmp.eq.s32.totalorder %v55, %v100
    %vm167 = vcmp.eq.s32.totalorder %v55, %v103
    %vm168 = vcmp.eq.s32.totalorder %v55, %v106
    %vm169 = vcmp.eq.s32.totalorder %v55, %v109
    %vm170 = vcmp.eq.s32.totalorder %v55, %v112
    %vm171 = vcmp.eq.s32.totalorder %v55, %v115
    %vm172 = vcmp.eq.s32.totalorder %v55, %v118
    %vm173 = vcmp.eq.s32.totalorder %v55, %v121
    %vm174 = vcmp.eq.s32.totalorder %v55, %v124
    %vm175 = vcmp.eq.s32.totalorder %v55, %v127
    %vm176 = vcmp.eq.s32.totalorder %v55, %v130
    %vm177 = vcmp.eq.s32.totalorder %v55, %v133
    %vm178 = vcmp.eq.s32.totalorder %v55, %v136
    %vm179 = vcmp.eq.s32.totalorder %v55, %v139
    %vm180 = vcmp.eq.s32.totalorder %v55, %v142
    %vm181 = vcmp.eq.s32.totalorder %v55, %v145
    %vm182 = vcmp.eq.s32.totalorder %v55, %v148
    %vm183 = vcmp.eq.s32.totalorder %v55, %v151
    %v184 = vsel %vm152, 1, 0
    %v185 = vsel %vm153, 1, 0
    %v186 = vsel %vm154, 1, 0
    %v187 = vsel %vm155, 1, 0
    %v188 = vsel %vm156, 1, 0
    %v189 = vsel %vm157, 1, 0
    %v190 = vsel %vm158, 1, 0
    %v191 = vsel %vm159, 1, 0
    %v192 = vsel %vm160, 1, 0
    %v193 = vsel %vm161, 1, 0
    %v194 = vsel %vm162, 1, 0
    %v195 = vsel %vm163, 1, 0
    %v196 = vsel %vm164, 1, 0
    %v197 = vsel %vm165, 1, 0
    %v198 = vsel %vm166, 1, 0
    %v199 = vsel %vm167, 1, 0
    %v200 = vsel %vm168, 1, 0
    %v201 = vsel %vm169, 1, 0
    %v202 = vsel %vm170, 1, 0
    %v203 = vsel %vm171, 1, 0
    %v204 = vsel %vm172, 1, 0
    %v205 = vsel %vm173, 1, 0
    %v206 = vsel %vm174, 1, 0
    %v207 = vsel %vm175, 1, 0
    %v208 = vsel %vm176, 1, 0
    %v209 = vsel %vm177, 1, 0
    %v210 = vsel %vm178, 1, 0
    %v211 = vsel %vm179, 1, 0
    %v212 = vsel %vm180, 1, 0
    %v213 = vsel %vm181, 1, 0
    %v214 = vsel %vm182, 1, 0
    %v215 = vsel %vm183, 1, 0
    %v216 = vcvt.s32.f32 %v184
    %v217 = vcvt.s32.f32 %v185
    %v218 = vcvt.s32.f32 %v186
    %v219 = vcvt.s32.f32 %v187
    %v220 = vcvt.s32.f32 %v188
    %v221 = vcvt.s32.f32 %v189
    %v222 = vcvt.s32.f32 %v190
    %v223 = vcvt.s32.f32 %v191
    %v224 = vcvt.s32.f32 %v192
    %v225 = vcvt.s32.f32 %v193
    %v226 = vcvt.s32.f32 %v194
    %v227 = vcvt.s32.f32 %v195
    %v228 = vcvt.s32.f32 %v196
    %v229 = vcvt.s32.f32 %v197
    %v230 = vcvt.s32.f32 %v198
    %v231 = vcvt.s32.f32 %v199
    %v232 = vcvt.s32.f32 %v200
    %v233 = vcvt.s32.f32 %v201
    %v234 = vcvt.s32.f32 %v202
    %v235 = vcvt.s32.f32 %v203
    %v236 = vcvt.s32.f32 %v204
    %v237 = vcvt.s32.f32 %v205
    %v238 = vcvt.s32.f32 %v206
    %v239 = vcvt.s32.f32 %v207
    %v240 = vcvt.s32.f32 %v208
    %v241 = vcvt.s32.f32 %v209
    %v242 = vcvt.s32.f32 %v210
    %v243 = vcvt.s32.f32 %v211
    %v244 = vcvt.s32.f32 %v212
    %v245 = vcvt.s32.f32 %v213
    %v246 = vcvt.s32.f32 %v214
    %v247 = vcvt.s32.f32 %v215
    %v248 = vld [vmem:[%s1] sm:$0xff]
    %v249 = vld [vmem:[%s1 + $0x8] sm:$0xff]
    %v250 = vld [vmem:[%s1 + $0x10] sm:$0xff]
    %v251 = vld [vmem:[%s1 + $0x18] sm:$0xff]
    %v252 = vld [vmem:[%s1 + $0x20] sm:$0xff]
    %v253 = vld [vmem:[%s1 + $0x28] sm:$0xff]
    %v254 = vld [vmem:[%s1 + $0x30] sm:$0xff]
    %v255 = vld [vmem:[%s1 + $0x38] sm:$0xff]
    %v256 = vld [vmem:[%s1 + $0x40] sm:$0xff]
    %v257 = vld [vmem:[%s1 + $0x48] sm:$0xff]
    %v258 = vld [vmem:[%s1 + $0x50] sm:$0xff]
    %v259 = vld [vmem:[%s1 + $0x58] sm:$0xff]
    %v260 = vld [vmem:[%s1 + $0x60] sm:$0xff]
    %v261 = vld [vmem:[%s1 + $0x68] sm:$0xff]
    %v262 = vld [vmem:[%s1 + $0x70] sm:$0xff]
    %v263 = vld [vmem:[%s1 + $0x78] sm:$0xff]
    %v264 = vld [vmem:[%s1 + $0x80] sm:$0xff]
    %v265 = vld [vmem:[%s1 + $0x88] sm:$0xff]
    %v266 = vld [vmem:[%s1 + $0x90] sm:$0xff]
    %v267 = vld [vmem:[%s1 + $0x98] sm:$0xff]
    %v268 = vld [vmem:[%s1 + $0xa0] sm:$0xff]
    %v269 = vld [vmem:[%s1 + $0xa8] sm:$0xff]
    %v270 = vld [vmem:[%s1 + $0xb0] sm:$0xff]
    %v271 = vld [vmem:[%s1 + $0xb8] sm:$0xff]
    %v272 = vld [vmem:[%s1 + $0xc0] sm:$0xff]
    %v273 = vld [vmem:[%s1 + $0xc8] sm:$0xff]
    %v274 = vld [vmem:[%s1 + $0xd0] sm:$0xff]
    %v275 = vld [vmem:[%s1 + $0xd8] sm:$0xff]
    %v276 = vld [vmem:[%s1 + $0xe0] sm:$0xff]
    %v277 = vld [vmem:[%s1 + $0xe8] sm:$0xff]
    %v278 = vld [vmem:[%s1 + $0xf0] sm:$0xff]
    %v279 = vld [vmem:[%s1 + $0xf8] sm:$0xff]
    %v280 = vld [vmem:[%s1 + $0x100] sm:$0xff]
    %v281 = vld [vmem:[%s1 + $0x108] sm:$0xff]
    %v282 = vld [vmem:[%s1 + $0x110] sm:$0xff]
    %v283 = vld [vmem:[%s1 + $0x118] sm:$0xff]
    %v284 = vld [vmem:[%s1 + $0x120] sm:$0xff]
    %v285 = vld [vmem:[%s1 + $0x128] sm:$0xff]
    %v286 = vld [vmem:[%s1 + $0x130] sm:$0xff]
    %v287 = vld [vmem:[%s1 + $0x138] sm:$0xff]
    %v288 = vld [vmem:[%s1 + $0x140] sm:$0xff]
    %v289 = vld [vmem:[%s1 + $0x148] sm:$0xff]
    %v290 = vld [vmem:[%s1 + $0x150] sm:$0xff]
    %v291 = vld [vmem:[%s1 + $0x158] sm:$0xff]
    %v292 = vld [vmem:[%s1 + $0x160] sm:$0xff]
    %v293 = vld [vmem:[%s1 + $0x168] sm:$0xff]
    %v294 = vld [vmem:[%s1 + $0x170] sm:$0xff]
    %v295 = vld [vmem:[%s1 + $0x178] sm:$0xff]
    %296 = vmatpush.msra.mxu0 %v263
    %297 = vmatpush.msra.mxu0 %v262
    %298 = vmatpush.msra.mxu0 %v261
    %299 = vmatpush.msra.mxu0 %v260
    %300 = vmatpush.msra.mxu0 %v259
    %301 = vmatpush.msra.mxu0 %v258
    %302 = vmatpush.msra.mxu0 %v257
    %303 = vmatpush.msra.mxu0 %v256
    %304 = vmatpush.msra.mxu0 %v255
    %305 = vmatpush.msra.mxu0 %v254
    %306 = vmatpush.msra.mxu0 %v253
    %307 = vmatpush.msra.mxu0 %v252
    %308 = vmatpush.msra.mxu0 %v251
    %309 = vmatpush.msra.mxu0 %v250
    %310 = vmatpush.msra.mxu0 %v249
    %311 = vmatpush.msra.mxu0 %v248
    %312 = vmatmul.f32.gmra.mxu0 %v216
    %v313 = vpop.f32.mrf.mxu0
    %v314 = vadd.f32 %v264, %v313
    %315 = vmatmul.f32.gmra.mxu0 %v217
    %v316 = vpop.f32.mrf.mxu0
    %v317 = vadd.f32 %v265, %v316
    %318 = vmatmul.f32.gmra.mxu0 %v218
    %v319 = vpop.f32.mrf.mxu0
    %v320 = vadd.f32 %v266, %v319
    %321 = vmatmul.f32.gmra.mxu0 %v219
    %v322 = vpop.f32.mrf.mxu0
    %v323 = vadd.f32 %v267, %v322
    %324 = vmatmul.f32.gmra.mxu0 %v220
    %v325 = vpop.f32.mrf.mxu0
    %v326 = vadd.f32 %v268, %v325
    %327 = vmatmul.f32.gmra.mxu0 %v221
    %v328 = vpop.f32.mrf.mxu0
    %v329 = vadd.f32 %v269, %v328
    %330 = vmatmul.f32.gmra.mxu0 %v222
    %v331 = vpop.f32.mrf.mxu0
    %v332 = vadd.f32 %v270, %v331
    %333 = vmatmul.f32.gmra.mxu0 %v223
    %v334 = vpop.f32.mrf.mxu0
    %v335 = vadd.f32 %v271, %v334
    %336 = vmatmul.f32.gmra.mxu0 %v224
    %v337 = vpop.f32.mrf.mxu0
    %v338 = vadd.f32 %v272, %v337
    %339 = vmatmul.f32.gmra.mxu0 %v225
    %v340 = vpop.f32.mrf.mxu0
    %v341 = vadd.f32 %v273, %v340
    %342 = vmatmul.f32.gmra.mxu0 %v226
    %v343 = vpop.f32.mrf.mxu0
    %v344 = vadd.f32 %v274, %v343
    %345 = vmatmul.f32.gmra.mxu0 %v227
    %v346 = vpop.f32.mrf.mxu0
    %v347 = vadd.f32 %v275, %v346
    %348 = vmatmul.f32.gmra.mxu0 %v228
    %v349 = vpop.f32.mrf.mxu0
    %v350 = vadd.f32 %v276, %v349
    %351 = vmatmul.f32.gmra.mxu0 %v229
    %v352 = vpop.f32.mrf.mxu0
    %v353 = vadd.f32 %v277, %v352
    %354 = vmatmul.f32.gmra.mxu0 %v230
    %v355 = vpop.f32.mrf.mxu0
    %v356 = vadd.f32 %v278, %v355
    %357 = vmatmul.f32.gmra.mxu0 %v231
    %v358 = vpop.f32.mrf.mxu0
    %v359 = vadd.f32 %v279, %v358
    %360 = vmatmul.f32.gmra.mxu0 %v232
    %v361 = vpop.f32.mrf.mxu0
    %v362 = vadd.f32 %v280, %v361
    %363 = vmatmul.f32.gmra.mxu0 %v233
    %v364 = vpop.f32.mrf.mxu0
    %v365 = vadd.f32 %v281, %v364
    %366 = vmatmul.f32.gmra.mxu0 %v234
    %v367 = vpop.f32.mrf.mxu0
    %v368 = vadd.f32 %v282, %v367
    %369 = vmatmul.f32.gmra.mxu0 %v235
    %v370 = vpop.f32.mrf.mxu0
    %v371 = vadd.f32 %v283, %v370
    %372 = vmatmul.f32.gmra.mxu0 %v236
    %v373 = vpop.f32.mrf.mxu0
    %v374 = vadd.f32 %v284, %v373
    %375 = vmatmul.f32.gmra.mxu0 %v237
    %v376 = vpop.f32.mrf.mxu0
    %v377 = vadd.f32 %v285, %v376
    %378 = vmatmul.f32.gmra.mxu0 %v238
    %v379 = vpop.f32.mrf.mxu0
    %v380 = vadd.f32 %v286, %v379
    %381 = vmatmul.f32.gmra.mxu0 %v239
    %v382 = vpop.f32.mrf.mxu0
    %v383 = vadd.f32 %v287, %v382
    %384 = vmatmul.f32.gmra.mxu0 %v240
    %v385 = vpop.f32.mrf.mxu0
    %v386 = vadd.f32 %v288, %v385
    %387 = vmatmul.f32.gmra.mxu0 %v241
    %v388 = vpop.f32.mrf.mxu0
    %v389 = vadd.f32 %v289, %v388
    %390 = vmatmul.f32.gmra.mxu0 %v242
    %v391 = vpop.f32.mrf.mxu0
    %v392 = vadd.f32 %v290, %v391
    %393 = vmatmul.f32.gmra.mxu0 %v243
    %v394 = vpop.f32.mrf.mxu0
    %v395 = vadd.f32 %v291, %v394
    %396 = vmatmul.f32.gmra.mxu0 %v244
    %v397 = vpop.f32.mrf.mxu0
    %v398 = vadd.f32 %v292, %v397
    %399 = vmatmul.f32.gmra.mxu0 %v245
    %v400 = vpop.f32.mrf.mxu0
    %v401 = vadd.f32 %v293, %v400
    %402 = vmatmul.f32.gmra.mxu0 %v246
    %v403 = vpop.f32.mrf.mxu0
    %v404 = vadd.f32 %v294, %v403
    %405 = vmatmul.f32.gmra.mxu0 %v247
    %v406 = vpop.f32.mrf.mxu0
    %v407 = vadd.f32 %v295, %v406
    %408 = vdwg.mxu0
    %v409 = vld [vmem:[%s3] sm:$0x1]
    %v410 = vld [vmem:[%s3 + $0x1] sm:$0x1]
    %vm411 = vcmask 261120
    %v412 = vsel %vm411, %v314, 0.0
    %413 = vadd.xlane.f32.xlu0 %v412
    %v414 = vpop.xlane.xlu0 %413
    %v415 = vsel %vm411, %v317, 0.0
    %416 = vadd.xlane.f32.xlu0 %v415
    %v417 = vpop.xlane.xlu0 %416
    %v418 = vsel %vm411, %v320, 0.0
    %419 = vadd.xlane.f32.xlu0 %v418
    %v420 = vpop.xlane.xlu0 %419
    %v421 = vsel %vm411, %v323, 0.0
    %422 = vadd.xlane.f32.xlu0 %v421
    %v423 = vpop.xlane.xlu0 %422
    %v424 = vsel %vm411, %v326, 0.0
    %425 = vadd.xlane.f32.xlu0 %v424
    %v426 = vpop.xlane.xlu0 %425
    %v427 = vsel %vm411, %v329, 0.0
    %428 = vadd.xlane.f32.xlu0 %v427
    %v429 = vpop.xlane.xlu0 %428
    %v430 = vsel %vm411, %v332, 0.0
    %431 = vadd.xlane.f32.xlu0 %v430
    %v432 = vpop.xlane.xlu0 %431
    %v433 = vsel %vm411, %v335, 0.0
    %434 = vadd.xlane.f32.xlu0 %v433
    %v435 = vpop.xlane.xlu0 %434
    %v436 = vsel %vm411, %v338, 0.0
    %437 = vadd.xlane.f32.xlu0 %v436
    %v438 = vpop.xlane.xlu0 %437
    %v439 = vsel %vm411, %v341, 0.0
    %440 = vadd.xlane.f32.xlu0 %v439
    %v441 = vpop.xlane.xlu0 %440
    %v442 = vsel %vm411, %v344, 0.0
    %443 = vadd.xlane.f32.xlu0 %v442
    %v444 = vpop.xlane.xlu0 %443
    %v445 = vsel %vm411, %v347, 0.0
    %446 = vadd.xlane.f32.xlu0 %v445
    %v447 = vpop.xlane.xlu0 %446
    %v448 = vsel %vm411, %v350, 0.0
    %449 = vadd.xlane.f32.xlu0 %v448
    %v450 = vpop.xlane.xlu0 %449
    %v451 = vsel %vm411, %v353, 0.0
    %452 = vadd.xlane.f32.xlu0 %v451
    %v453 = vpop.xlane.xlu0 %452
    %v454 = vsel %vm411, %v356, 0.0
    %455 = vadd.xlane.f32.xlu0 %v454
    %v456 = vpop.xlane.xlu0 %455
    %v457 = vsel %vm411, %v359, 0.0
    %458 = vadd.xlane.f32.xlu0 %v457
    %v459 = vpop.xlane.xlu0 %458
    %v460 = vsel %vm411, %v362, 0.0
    %461 = vadd.xlane.f32.xlu0 %v460
    %v462 = vpop.xlane.xlu0 %461
    %v463 = vsel %vm411, %v365, 0.0
    %464 = vadd.xlane.f32.xlu0 %v463
    %v465 = vpop.xlane.xlu0 %464
    %v466 = vsel %vm411, %v368, 0.0
    %467 = vadd.xlane.f32.xlu0 %v466
    %v468 = vpop.xlane.xlu0 %467
    %v469 = vsel %vm411, %v371, 0.0
    %470 = vadd.xlane.f32.xlu0 %v469
    %v471 = vpop.xlane.xlu0 %470
    %v472 = vsel %vm411, %v374, 0.0
    %473 = vadd.xlane.f32.xlu0 %v472
    %v474 = vpop.xlane.xlu0 %473
    %v475 = vsel %vm411, %v377, 0.0
    %476 = vadd.xlane.f32.xlu0 %v475
    %v477 = vpop.xlane.xlu0 %476
    %v478 = vsel %vm411, %v380, 0.0
    %479 = vadd.xlane.f32.xlu0 %v478
    %v480 = vpop.xlane.xlu0 %479
    %v481 = vsel %vm411, %v383, 0.0
    %482 = vadd.xlane.f32.xlu0 %v481
    %v483 = vpop.xlane.xlu0 %482
    %v484 = vsel %vm411, %v386, 0.0
    %485 = vadd.xlane.f32.xlu0 %v484
    %v486 = vpop.xlane.xlu0 %485
    %v487 = vsel %vm411, %v389, 0.0
    %488 = vadd.xlane.f32.xlu0 %v487
    %v489 = vpop.xlane.xlu0 %488
    %v490 = vsel %vm411, %v392, 0.0
    %491 = vadd.xlane.f32.xlu0 %v490
    %v492 = vpop.xlane.xlu0 %491
    %v493 = vsel %vm411, %v395, 0.0
    %494 = vadd.xlane.f32.xlu0 %v493
    %v495 = vpop.xlane.xlu0 %494
    %v496 = vsel %vm411, %v398, 0.0
    %497 = vadd.xlane.f32.xlu0 %v496
    %v498 = vpop.xlane.xlu0 %497
    %v499 = vsel %vm411, %v401, 0.0
    %500 = vadd.xlane.f32.xlu0 %v499
    %v501 = vpop.xlane.xlu0 %500
    %v502 = vsel %vm411, %v404, 0.0
    %503 = vadd.xlane.f32.xlu0 %v502
    %v504 = vpop.xlane.xlu0 %503
    %v505 = vsel %vm411, %v407, 0.0
    %506 = vadd.xlane.f32.xlu0 %v505
    %v507 = vpop.xlane.xlu0 %506
    %v508 = vrcp.pop 32.0
    %v509 = vmul.f32 32.0, %v508
    %v510 = vsub.f32 1.0, %v509
    %v511 = vmul.f32 %v508, %v510
    %v512 = vadd.f32 %v508, %v511
    %vm513 = vweird.f32 %v508
    %v514 = vsel %vm513, %v508, %v512
    %v515 = vmul.f32 %v414, %v514
    %v516 = vmul.f32 %v417, %v514
    %v517 = vmul.f32 %v420, %v514
    %v518 = vmul.f32 %v423, %v514
    %v519 = vmul.f32 %v426, %v514
    %v520 = vmul.f32 %v429, %v514
    %v521 = vmul.f32 %v432, %v514
    %v522 = vmul.f32 %v435, %v514
    %v523 = vmul.f32 %v438, %v514
    %v524 = vmul.f32 %v441, %v514
    %v525 = vmul.f32 %v444, %v514
    %v526 = vmul.f32 %v447, %v514
    %v527 = vmul.f32 %v450, %v514
    %v528 = vmul.f32 %v453, %v514
    %v529 = vmul.f32 %v456, %v514
    %v530 = vmul.f32 %v459, %v514
    %v531 = vmul.f32 %v462, %v514
    %v532 = vmul.f32 %v465, %v514
    %v533 = vmul.f32 %v468, %v514
    %v534 = vmul.f32 %v471, %v514
    %v535 = vmul.f32 %v474, %v514
    %v536 = vmul.f32 %v477, %v514
    %v537 = vmul.f32 %v480, %v514
    %v538 = vmul.f32 %v483, %v514
    %v539 = vmul.f32 %v486, %v514
    %v540 = vmul.f32 %v489, %v514
    %v541 = vmul.f32 %v492, %v514
    %v542 = vmul.f32 %v495, %v514
    %v543 = vmul.f32 %v498, %v514
    %v544 = vmul.f32 %v501, %v514
    %v545 = vmul.f32 %v504, %v514
    %v546 = vmul.f32 %v507, %v514
    %v547 = vsub.f32 %v314, %v515
    %v548 = vsub.f32 %v317, %v516
    %v549 = vsub.f32 %v320, %v517
    %v550 = vsub.f32 %v323, %v518
    %v551 = vsub.f32 %v326, %v519
    %v552 = vsub.f32 %v329, %v520
    %v553 = vsub.f32 %v332, %v521
    %v554 = vsub.f32 %v335, %v522
    %v555 = vsub.f32 %v338, %v523
    %v556 = vsub.f32 %v341, %v524
    %v557 = vsub.f32 %v344, %v525
    %v558 = vsub.f32 %v347, %v526
    %v559 = vsub.f32 %v350, %v527
    %v560 = vsub.f32 %v353, %v528
    %v561 = vsub.f32 %v356, %v529
    %v562 = vsub.f32 %v359, %v530
    %v563 = vsub.f32 %v362, %v531
    %v564 = vsub.f32 %v365, %v532
    %v565 = vsub.f32 %v368, %v533
    %v566 = vsub.f32 %v371, %v534
    %v567 = vsub.f32 %v374, %v535
    %v568 = vsub.f32 %v377, %v536
    %v569 = vsub.f32 %v380, %v537
    %v570 = vsub.f32 %v383, %v538
    %v571 = vsub.f32 %v386, %v539
    %v572 = vsub.f32 %v389, %v540
    %v573 = vsub.f32 %v392, %v541
    %v574 = vsub.f32 %v395, %v542
    %v575 = vsub.f32 %v398, %v543
    %v576 = vsub.f32 %v401, %v544
    %v577 = vsub.f32 %v404, %v545
    %v578 = vsub.f32 %v407, %v546
    %v579 = vmul.f32 %v547, %v547
    %v580 = vmul.f32 %v548, %v548
    %v581 = vmul.f32 %v549, %v549
    %v582 = vmul.f32 %v550, %v550
    %v583 = vmul.f32 %v551, %v551
    %v584 = vmul.f32 %v552, %v552
    %v585 = vmul.f32 %v553, %v553
    %v586 = vmul.f32 %v554, %v554
    %v587 = vmul.f32 %v555, %v555
    %v588 = vmul.f32 %v556, %v556
    %v589 = vmul.f32 %v557, %v557
    %v590 = vmul.f32 %v558, %v558
    %v591 = vmul.f32 %v559, %v559
    %v592 = vmul.f32 %v560, %v560
    %v593 = vmul.f32 %v561, %v561
    %v594 = vmul.f32 %v562, %v562
    %v595 = vmul.f32 %v563, %v563
    %v596 = vmul.f32 %v564, %v564
    %v597 = vmul.f32 %v565, %v565
    %v598 = vmul.f32 %v566, %v566
    %v599 = vmul.f32 %v567, %v567
    %v600 = vmul.f32 %v568, %v568
    %v601 = vmul.f32 %v569, %v569
    %v602 = vmul.f32 %v570, %v570
    %v603 = vmul.f32 %v571, %v571
    %v604 = vmul.f32 %v572, %v572
    %v605 = vmul.f32 %v573, %v573
    %v606 = vmul.f32 %v574, %v574
    %v607 = vmul.f32 %v575, %v575
    %v608 = vmul.f32 %v576, %v576
    %v609 = vmul.f32 %v577, %v577
    %v610 = vmul.f32 %v578, %v578
    %v611 = vsel %vm411, %v579, 0.0
    %612 = vadd.xlane.f32.xlu0 %v611
    %v613 = vpop.xlane.xlu0 %612
    %v614 = vsel %vm411, %v580, 0.0
    %615 = vadd.xlane.f32.xlu0 %v614
    %v616 = vpop.xlane.xlu0 %615
    %v617 = vsel %vm411, %v581, 0.0
    %618 = vadd.xlane.f32.xlu0 %v617
    %v619 = vpop.xlane.xlu0 %618
    %v620 = vsel %vm411, %v582, 0.0
    %621 = vadd.xlane.f32.xlu0 %v620
    %v622 = vpop.xlane.xlu0 %621
    %v623 = vsel %vm411, %v583, 0.0
    %624 = vadd.xlane.f32.xlu0 %v623
    %v625 = vpop.xlane.xlu0 %624
    %v626 = vsel %vm411, %v584, 0.0
    %627 = vadd.xlane.f32.xlu0 %v626
    %v628 = vpop.xlane.xlu0 %627
    %v629 = vsel %vm411, %v585, 0.0
    %630 = vadd.xlane.f32.xlu0 %v629
    %v631 = vpop.xlane.xlu0 %630
    %v632 = vsel %vm411, %v586, 0.0
    %633 = vadd.xlane.f32.xlu0 %v632
    %v634 = vpop.xlane.xlu0 %633
    %v635 = vsel %vm411, %v587, 0.0
    %636 = vadd.xlane.f32.xlu0 %v635
    %v637 = vpop.xlane.xlu0 %636
    %v638 = vsel %vm411, %v588, 0.0
    %639 = vadd.xlane.f32.xlu0 %v638
    %v640 = vpop.xlane.xlu0 %639
    %v641 = vsel %vm411, %v589, 0.0
    %642 = vadd.xlane.f32.xlu0 %v641
    %v643 = vpop.xlane.xlu0 %642
    %v644 = vsel %vm411, %v590, 0.0
    %645 = vadd.xlane.f32.xlu0 %v644
    %v646 = vpop.xlane.xlu0 %645
    %v647 = vsel %vm411, %v591, 0.0
    %648 = vadd.xlane.f32.xlu0 %v647
    %v649 = vpop.xlane.xlu0 %648
    %v650 = vsel %vm411, %v592, 0.0
    %651 = vadd.xlane.f32.xlu0 %v650
    %v652 = vpop.xlane.xlu0 %651
    %v653 = vsel %vm411, %v593, 0.0
    %654 = vadd.xlane.f32.xlu0 %v653
    %v655 = vpop.xlane.xlu0 %654
    %v656 = vsel %vm411, %v594, 0.0
    %657 = vadd.xlane.f32.xlu0 %v656
    %v658 = vpop.xlane.xlu0 %657
    %v659 = vsel %vm411, %v595, 0.0
    %660 = vadd.xlane.f32.xlu0 %v659
    %v661 = vpop.xlane.xlu0 %660
    %v662 = vsel %vm411, %v596, 0.0
    %663 = vadd.xlane.f32.xlu0 %v662
    %v664 = vpop.xlane.xlu0 %663
    %v665 = vsel %vm411, %v597, 0.0
    %666 = vadd.xlane.f32.xlu0 %v665
    %v667 = vpop.xlane.xlu0 %666
    %v668 = vsel %vm411, %v598, 0.0
    %669 = vadd.xlane.f32.xlu0 %v668
    %v670 = vpop.xlane.xlu0 %669
    %v671 = vsel %vm411, %v599, 0.0
    %672 = vadd.xlane.f32.xlu0 %v671
    %v673 = vpop.xlane.xlu0 %672
    %v674 = vsel %vm411, %v600, 0.0
    %675 = vadd.xlane.f32.xlu0 %v674
    %v676 = vpop.xlane.xlu0 %675
    %v677 = vsel %vm411, %v601, 0.0
    %678 = vadd.xlane.f32.xlu0 %v677
    %v679 = vpop.xlane.xlu0 %678
    %v680 = vsel %vm411, %v602, 0.0
    %681 = vadd.xlane.f32.xlu0 %v680
    %v682 = vpop.xlane.xlu0 %681
    %v683 = vsel %vm411, %v603, 0.0
    %684 = vadd.xlane.f32.xlu0 %v683
    %v685 = vpop.xlane.xlu0 %684
    %v686 = vsel %vm411, %v604, 0.0
    %687 = vadd.xlane.f32.xlu0 %v686
    %v688 = vpop.xlane.xlu0 %687
    %v689 = vsel %vm411, %v605, 0.0
    %690 = vadd.xlane.f32.xlu0 %v689
    %v691 = vpop.xlane.xlu0 %690
    %v692 = vsel %vm411, %v606, 0.0
    %693 = vadd.xlane.f32.xlu0 %v692
    %v694 = vpop.xlane.xlu0 %693
    %v695 = vsel %vm411, %v607, 0.0
    %696 = vadd.xlane.f32.xlu0 %v695
    %v697 = vpop.xlane.xlu0 %696
    %v698 = vsel %vm411, %v608, 0.0
    %699 = vadd.xlane.f32.xlu0 %v698
    %v700 = vpop.xlane.xlu0 %699
    %v701 = vsel %vm411, %v609, 0.0
    %702 = vadd.xlane.f32.xlu0 %v701
    %v703 = vpop.xlane.xlu0 %702
    %v704 = vsel %vm411, %v610, 0.0
    %705 = vadd.xlane.f32.xlu0 %v704
    %v706 = vpop.xlane.xlu0 %705
    %v707 = vmul.f32 %v613, %v514
    %v708 = vmul.f32 %v616, %v514
    %v709 = vmul.f32 %v619, %v514
    %v710 = vmul.f32 %v622, %v514
    %v711 = vmul.f32 %v625, %v514
    %v712 = vmul.f32 %v628, %v514
    %v713 = vmul.f32 %v631, %v514
    %v714 = vmul.f32 %v634, %v514
    %v715 = vmul.f32 %v637, %v514
    %v716 = vmul.f32 %v640, %v514
    %v717 = vmul.f32 %v643, %v514
    %v718 = vmul.f32 %v646, %v514
    %v719 = vmul.f32 %v649, %v514
    %v720 = vmul.f32 %v652, %v514
    %v721 = vmul.f32 %v655, %v514
    %v722 = vmul.f32 %v658, %v514
    %v723 = vmul.f32 %v661, %v514
    %v724 = vmul.f32 %v664, %v514
    %v725 = vmul.f32 %v667, %v514
    %v726 = vmul.f32 %v670, %v514
    %v727 = vmul.f32 %v673, %v514
    %v728 = vmul.f32 %v676, %v514
    %v729 = vmul.f32 %v679, %v514
    %v730 = vmul.f32 %v682, %v514
    %v731 = vmul.f32 %v685, %v514
    %v732 = vmul.f32 %v688, %v514
    %v733 = vmul.f32 %v691, %v514
    %v734 = vmul.f32 %v694, %v514
    %v735 = vmul.f32 %v697, %v514
    %v736 = vmul.f32 %v700, %v514
    %v737 = vmul.f32 %v703, %v514
    %v738 = vmul.f32 %v706, %v514
    %v739 = vadd.f32 %v707, 1e-12
    %v740 = vadd.f32 %v708, 1e-12
    %v741 = vadd.f32 %v709, 1e-12
    %v742 = vadd.f32 %v710, 1e-12
    %v743 = vadd.f32 %v711, 1e-12
    %v744 = vadd.f32 %v712, 1e-12
    %v745 = vadd.f32 %v713, 1e-12
    %v746 = vadd.f32 %v714, 1e-12
    %v747 = vadd.f32 %v715, 1e-12
    %v748 = vadd.f32 %v716, 1e-12
    %v749 = vadd.f32 %v717, 1e-12
    %v750 = vadd.f32 %v718, 1e-12
    %v751 = vadd.f32 %v719, 1e-12
    %v752 = vadd.f32 %v720, 1e-12
    %v753 = vadd.f32 %v721, 1e-12
    %v754 = vadd.f32 %v722, 1e-12
    %v755 = vadd.f32 %v723, 1e-12
    %v756 = vadd.f32 %v724, 1e-12
    %v757 = vadd.f32 %v725, 1e-12
    %v758 = vadd.f32 %v726, 1e-12
    %v759 = vadd.f32 %v727, 1e-12
    %v760 = vadd.f32 %v728, 1e-12
    %v761 = vadd.f32 %v729, 1e-12
    %v762 = vadd.f32 %v730, 1e-12
    %v763 = vadd.f32 %v731, 1e-12
    %v764 = vadd.f32 %v732, 1e-12
    %v765 = vadd.f32 %v733, 1e-12
    %v766 = vadd.f32 %v734, 1e-12
    %v767 = vadd.f32 %v735, 1e-12
    %v768 = vadd.f32 %v736, 1e-12
    %v769 = vadd.f32 %v737, 1e-12
    %v770 = vadd.f32 %v738, 1e-12
    %v771 = vrsqrt.pop %v739
    %v772 = vmul.f32 %v771, %v739
    %v773 = vmul.f32 %v772, %v771
    %v774 = vmul.f32 0.5, %v773
    %v775 = vsub.f32 1.5, %v774
    %v776 = vmul.f32 %v771, %v775
    %vm777 = vweird.f32 %v739
    %vm778 = vweird.f32 %v771
    %vm779 = vmor %vm777, %vm778
    %v780 = vsel %vm779, %v771, %v776
    %v781 = vrsqrt.pop %v740
    %v782 = vmul.f32 %v781, %v740
    %v783 = vmul.f32 %v782, %v781
    %v784 = vmul.f32 0.5, %v783
    %v785 = vsub.f32 1.5, %v784
    %v786 = vmul.f32 %v781, %v785
    %vm787 = vweird.f32 %v740
    %vm788 = vweird.f32 %v781
    %vm789 = vmor %vm787, %vm788
    %v790 = vsel %vm789, %v781, %v786
    %v791 = vrsqrt.pop %v741
    %v792 = vmul.f32 %v791, %v741
    %v793 = vmul.f32 %v792, %v791
    %v794 = vmul.f32 0.5, %v793
    %v795 = vsub.f32 1.5, %v794
    %v796 = vmul.f32 %v791, %v795
    %vm797 = vweird.f32 %v741
    %vm798 = vweird.f32 %v791
    %vm799 = vmor %vm797, %vm798
    %v800 = vsel %vm799, %v791, %v796
    %v801 = vrsqrt.pop %v742
    %v802 = vmul.f32 %v801, %v742
    %v803 = vmul.f32 %v802, %v801
    %v804 = vmul.f32 0.5, %v803
    %v805 = vsub.f32 1.5, %v804
    %v806 = vmul.f32 %v801, %v805
    %vm807 = vweird.f32 %v742
    %vm808 = vweird.f32 %v801
    %vm809 = vmor %vm807, %vm808
    %v810 = vsel %vm809, %v801, %v806
    %v811 = vrsqrt.pop %v743
    %v812 = vmul.f32 %v811, %v743
    %v813 = vmul.f32 %v812, %v811
    %v814 = vmul.f32 0.5, %v813
    %v815 = vsub.f32 1.5, %v814
    %v816 = vmul.f32 %v811, %v815
    %vm817 = vweird.f32 %v743
    %vm818 = vweird.f32 %v811
    %vm819 = vmor %vm817, %vm818
    %v820 = vsel %vm819, %v811, %v816
    %v821 = vrsqrt.pop %v744
    %v822 = vmul.f32 %v821, %v744
    %v823 = vmul.f32 %v822, %v821
    %v824 = vmul.f32 0.5, %v823
    %v825 = vsub.f32 1.5, %v824
    %v826 = vmul.f32 %v821, %v825
    %vm827 = vweird.f32 %v744
    %vm828 = vweird.f32 %v821
    %vm829 = vmor %vm827, %vm828
    %v830 = vsel %vm829, %v821, %v826
    %v831 = vrsqrt.pop %v745
    %v832 = vmul.f32 %v831, %v745
    %v833 = vmul.f32 %v832, %v831
    %v834 = vmul.f32 0.5, %v833
    %v835 = vsub.f32 1.5, %v834
    %v836 = vmul.f32 %v831, %v835
    %vm837 = vweird.f32 %v745
    %vm838 = vweird.f32 %v831
    %vm839 = vmor %vm837, %vm838
    %v840 = vsel %vm839, %v831, %v836
    %v841 = vrsqrt.pop %v746
    %v842 = vmul.f32 %v841, %v746
    %v843 = vmul.f32 %v842, %v841
    %v844 = vmul.f32 0.5, %v843
    %v845 = vsub.f32 1.5, %v844
    %v846 = vmul.f32 %v841, %v845
    %vm847 = vweird.f32 %v746
    %vm848 = vweird.f32 %v841
    %vm849 = vmor %vm847, %vm848
    %v850 = vsel %vm849, %v841, %v846
    %v851 = vrsqrt.pop %v747
    %v852 = vmul.f32 %v851, %v747
    %v853 = vmul.f32 %v852, %v851
    %v854 = vmul.f32 0.5, %v853
    %v855 = vsub.f32 1.5, %v854
    %v856 = vmul.f32 %v851, %v855
    %vm857 = vweird.f32 %v747
    %vm858 = vweird.f32 %v851
    %vm859 = vmor %vm857, %vm858
    %v860 = vsel %vm859, %v851, %v856
    %v861 = vrsqrt.pop %v748
    %v862 = vmul.f32 %v861, %v748
    %v863 = vmul.f32 %v862, %v861
    %v864 = vmul.f32 0.5, %v863
    %v865 = vsub.f32 1.5, %v864
    %v866 = vmul.f32 %v861, %v865
    %vm867 = vweird.f32 %v748
    %vm868 = vweird.f32 %v861
    %vm869 = vmor %vm867, %vm868
    %v870 = vsel %vm869, %v861, %v866
    %v871 = vrsqrt.pop %v749
    %v872 = vmul.f32 %v871, %v749
    %v873 = vmul.f32 %v872, %v871
    %v874 = vmul.f32 0.5, %v873
    %v875 = vsub.f32 1.5, %v874
    %v876 = vmul.f32 %v871, %v875
    %vm877 = vweird.f32 %v749
    %vm878 = vweird.f32 %v871
    %vm879 = vmor %vm877, %vm878
    %v880 = vsel %vm879, %v871, %v876
    %v881 = vrsqrt.pop %v750
    %v882 = vmul.f32 %v881, %v750
    %v883 = vmul.f32 %v882, %v881
    %v884 = vmul.f32 0.5, %v883
    %v885 = vsub.f32 1.5, %v884
    %v886 = vmul.f32 %v881, %v885
    %vm887 = vweird.f32 %v750
    %vm888 = vweird.f32 %v881
    %vm889 = vmor %vm887, %vm888
    %v890 = vsel %vm889, %v881, %v886
    %v891 = vrsqrt.pop %v751
    %v892 = vmul.f32 %v891, %v751
    %v893 = vmul.f32 %v892, %v891
    %v894 = vmul.f32 0.5, %v893
    %v895 = vsub.f32 1.5, %v894
    %v896 = vmul.f32 %v891, %v895
    %vm897 = vweird.f32 %v751
    %vm898 = vweird.f32 %v891
    %vm899 = vmor %vm897, %vm898
    %v900 = vsel %vm899, %v891, %v896
    %v901 = vrsqrt.pop %v752
    %v902 = vmul.f32 %v901, %v752
    %v903 = vmul.f32 %v902, %v901
    %v904 = vmul.f32 0.5, %v903
    %v905 = vsub.f32 1.5, %v904
    %v906 = vmul.f32 %v901, %v905
    %vm907 = vweird.f32 %v752
    %vm908 = vweird.f32 %v901
    %vm909 = vmor %vm907, %vm908
    %v910 = vsel %vm909, %v901, %v906
    %v911 = vrsqrt.pop %v753
    %v912 = vmul.f32 %v911, %v753
    %v913 = vmul.f32 %v912, %v911
    %v914 = vmul.f32 0.5, %v913
    %v915 = vsub.f32 1.5, %v914
    %v916 = vmul.f32 %v911, %v915
    %vm917 = vweird.f32 %v753
    %vm918 = vweird.f32 %v911
    %vm919 = vmor %vm917, %vm918
    %v920 = vsel %vm919, %v911, %v916
    %v921 = vrsqrt.pop %v754
    %v922 = vmul.f32 %v921, %v754
    %v923 = vmul.f32 %v922, %v921
    %v924 = vmul.f32 0.5, %v923
    %v925 = vsub.f32 1.5, %v924
    %v926 = vmul.f32 %v921, %v925
    %vm927 = vweird.f32 %v754
    %vm928 = vweird.f32 %v921
    %vm929 = vmor %vm927, %vm928
    %v930 = vsel %vm929, %v921, %v926
    %v931 = vrsqrt.pop %v755
    %v932 = vmul.f32 %v931, %v755
    %v933 = vmul.f32 %v932, %v931
    %v934 = vmul.f32 0.5, %v933
    %v935 = vsub.f32 1.5, %v934
    %v936 = vmul.f32 %v931, %v935
    %vm937 = vweird.f32 %v755
    %vm938 = vweird.f32 %v931
    %vm939 = vmor %vm937, %vm938
    %v940 = vsel %vm939, %v931, %v936
    %v941 = vrsqrt.pop %v756
    %v942 = vmul.f32 %v941, %v756
    %v943 = vmul.f32 %v942, %v941
    %v944 = vmul.f32 0.5, %v943
    %v945 = vsub.f32 1.5, %v944
    %v946 = vmul.f32 %v941, %v945
    %vm947 = vweird.f32 %v756
    %vm948 = vweird.f32 %v941
    %vm949 = vmor %vm947, %vm948
    %v950 = vsel %vm949, %v941, %v946
    %v951 = vrsqrt.pop %v757
    %v952 = vmul.f32 %v951, %v757
    %v953 = vmul.f32 %v952, %v951
    %v954 = vmul.f32 0.5, %v953
    %v955 = vsub.f32 1.5, %v954
    %v956 = vmul.f32 %v951, %v955
    %vm957 = vweird.f32 %v757
    %vm958 = vweird.f32 %v951
    %vm959 = vmor %vm957, %vm958
    %v960 = vsel %vm959, %v951, %v956
    %v961 = vrsqrt.pop %v758
    %v962 = vmul.f32 %v961, %v758
    %v963 = vmul.f32 %v962, %v961
    %v964 = vmul.f32 0.5, %v963
    %v965 = vsub.f32 1.5, %v964
    %v966 = vmul.f32 %v961, %v965
    %vm967 = vweird.f32 %v758
    %vm968 = vweird.f32 %v961
    %vm969 = vmor %vm967, %vm968
    %v970 = vsel %vm969, %v961, %v966
    %v971 = vrsqrt.pop %v759
    %v972 = vmul.f32 %v971, %v759
    %v973 = vmul.f32 %v972, %v971
    %v974 = vmul.f32 0.5, %v973
    %v975 = vsub.f32 1.5, %v974
    %v976 = vmul.f32 %v971, %v975
    %vm977 = vweird.f32 %v759
    %vm978 = vweird.f32 %v971
    %vm979 = vmor %vm977, %vm978
    %v980 = vsel %vm979, %v971, %v976
    %v981 = vrsqrt.pop %v760
    %v982 = vmul.f32 %v981, %v760
    %v983 = vmul.f32 %v982, %v981
    %v984 = vmul.f32 0.5, %v983
    %v985 = vsub.f32 1.5, %v984
    %v986 = vmul.f32 %v981, %v985
    %vm987 = vweird.f32 %v760
    %vm988 = vweird.f32 %v981
    %vm989 = vmor %vm987, %vm988
    %v990 = vsel %vm989, %v981, %v986
    %v991 = vrsqrt.pop %v761
    %v992 = vmul.f32 %v991, %v761
    %v993 = vmul.f32 %v992, %v991
    %v994 = vmul.f32 0.5, %v993
    %v995 = vsub.f32 1.5, %v994
    %v996 = vmul.f32 %v991, %v995
    %vm997 = vweird.f32 %v761
    %vm998 = vweird.f32 %v991
    %vm999 = vmor %vm997, %vm998
    %v1000 = vsel %vm999, %v991, %v996
    %v1001 = vrsqrt.pop %v762
    %v1002 = vmul.f32 %v1001, %v762
    %v1003 = vmul.f32 %v1002, %v1001
    %v1004 = vmul.f32 0.5, %v1003
    %v1005 = vsub.f32 1.5, %v1004
    %v1006 = vmul.f32 %v1001, %v1005
    %vm1007 = vweird.f32 %v762
    %vm1008 = vweird.f32 %v1001
    %vm1009 = vmor %vm1007, %vm1008
    %v1010 = vsel %vm1009, %v1001, %v1006
    %v1011 = vrsqrt.pop %v763
    %v1012 = vmul.f32 %v1011, %v763
    %v1013 = vmul.f32 %v1012, %v1011
    %v1014 = vmul.f32 0.5, %v1013
    %v1015 = vsub.f32 1.5, %v1014
    %v1016 = vmul.f32 %v1011, %v1015
    %vm1017 = vweird.f32 %v763
    %vm1018 = vweird.f32 %v1011
    %vm1019 = vmor %vm1017, %vm1018
    %v1020 = vsel %vm1019, %v1011, %v1016
    %v1021 = vrsqrt.pop %v764
    %v1022 = vmul.f32 %v1021, %v764
    %v1023 = vmul.f32 %v1022, %v1021
    %v1024 = vmul.f32 0.5, %v1023
    %v1025 = vsub.f32 1.5, %v1024
    %v1026 = vmul.f32 %v1021, %v1025
    %vm1027 = vweird.f32 %v764
    %vm1028 = vweird.f32 %v1021
    %vm1029 = vmor %vm1027, %vm1028
    %v1030 = vsel %vm1029, %v1021, %v1026
    %v1031 = vrsqrt.pop %v765
    %v1032 = vmul.f32 %v1031, %v765
    %v1033 = vmul.f32 %v1032, %v1031
    %v1034 = vmul.f32 0.5, %v1033
    %v1035 = vsub.f32 1.5, %v1034
    %v1036 = vmul.f32 %v1031, %v1035
    %vm1037 = vweird.f32 %v765
    %vm1038 = vweird.f32 %v1031
    %vm1039 = vmor %vm1037, %vm1038
    %v1040 = vsel %vm1039, %v1031, %v1036
    %v1041 = vrsqrt.pop %v766
    %v1042 = vmul.f32 %v1041, %v766
    %v1043 = vmul.f32 %v1042, %v1041
    %v1044 = vmul.f32 0.5, %v1043
    %v1045 = vsub.f32 1.5, %v1044
    %v1046 = vmul.f32 %v1041, %v1045
    %vm1047 = vweird.f32 %v766
    %vm1048 = vweird.f32 %v1041
    %vm1049 = vmor %vm1047, %vm1048
    %v1050 = vsel %vm1049, %v1041, %v1046
    %v1051 = vrsqrt.pop %v767
    %v1052 = vmul.f32 %v1051, %v767
    %v1053 = vmul.f32 %v1052, %v1051
    %v1054 = vmul.f32 0.5, %v1053
    %v1055 = vsub.f32 1.5, %v1054
    %v1056 = vmul.f32 %v1051, %v1055
    %vm1057 = vweird.f32 %v767
    %vm1058 = vweird.f32 %v1051
    %vm1059 = vmor %vm1057, %vm1058
    %v1060 = vsel %vm1059, %v1051, %v1056
    %v1061 = vrsqrt.pop %v768
    %v1062 = vmul.f32 %v1061, %v768
    %v1063 = vmul.f32 %v1062, %v1061
    %v1064 = vmul.f32 0.5, %v1063
    %v1065 = vsub.f32 1.5, %v1064
    %v1066 = vmul.f32 %v1061, %v1065
    %vm1067 = vweird.f32 %v768
    %vm1068 = vweird.f32 %v1061
    %vm1069 = vmor %vm1067, %vm1068
    %v1070 = vsel %vm1069, %v1061, %v1066
    %v1071 = vrsqrt.pop %v769
    %v1072 = vmul.f32 %v1071, %v769
    %v1073 = vmul.f32 %v1072, %v1071
    %v1074 = vmul.f32 0.5, %v1073
    %v1075 = vsub.f32 1.5, %v1074
    %v1076 = vmul.f32 %v1071, %v1075
    %vm1077 = vweird.f32 %v769
    %vm1078 = vweird.f32 %v1071
    %vm1079 = vmor %vm1077, %vm1078
    %v1080 = vsel %vm1079, %v1071, %v1076
    %v1081 = vrsqrt.pop %v770
    %v1082 = vmul.f32 %v1081, %v770
    %v1083 = vmul.f32 %v1082, %v1081
    %v1084 = vmul.f32 0.5, %v1083
    %v1085 = vsub.f32 1.5, %v1084
    %v1086 = vmul.f32 %v1081, %v1085
    %vm1087 = vweird.f32 %v770
    %vm1088 = vweird.f32 %v1081
    %vm1089 = vmor %vm1087, %vm1088
    %v1090 = vsel %vm1089, %v1081, %v1086
    %v1091 = vmul.f32 %v547, %v780
    %v1092 = vmul.f32 %v548, %v790
    %v1093 = vmul.f32 %v549, %v800
    %v1094 = vmul.f32 %v550, %v810
    %v1095 = vmul.f32 %v551, %v820
    %v1096 = vmul.f32 %v552, %v830
    %v1097 = vmul.f32 %v553, %v840
    %v1098 = vmul.f32 %v554, %v850
    %v1099 = vmul.f32 %v555, %v860
    %v1100 = vmul.f32 %v556, %v870
    %v1101 = vmul.f32 %v557, %v880
    %v1102 = vmul.f32 %v558, %v890
    %v1103 = vmul.f32 %v559, %v900
    %v1104 = vmul.f32 %v560, %v910
    %v1105 = vmul.f32 %v561, %v920
    %v1106 = vmul.f32 %v562, %v930
    %v1107 = vmul.f32 %v563, %v940
    %v1108 = vmul.f32 %v564, %v950
    %v1109 = vmul.f32 %v565, %v960
    %v1110 = vmul.f32 %v566, %v970
    %v1111 = vmul.f32 %v567, %v980
    %v1112 = vmul.f32 %v568, %v990
    %v1113 = vmul.f32 %v569, %v1000
    %v1114 = vmul.f32 %v570, %v1010
    %v1115 = vmul.f32 %v571, %v1020
    %v1116 = vmul.f32 %v572, %v1030
    %v1117 = vmul.f32 %v573, %v1040
    %v1118 = vmul.f32 %v574, %v1050
    %v1119 = vmul.f32 %v575, %v1060
    %v1120 = vmul.f32 %v576, %v1070
    %v1121 = vmul.f32 %v577, %v1080
    %v1122 = vmul.f32 %v578, %v1090
    %v1123 = vperm.slane %v409, 0
    %v1124 = vmul.f32 %v1091, %v1123
    %v1125 = vmul.f32 %v1092, %v1123
    %v1126 = vmul.f32 %v1093, %v1123
    %v1127 = vmul.f32 %v1094, %v1123
    %v1128 = vmul.f32 %v1095, %v1123
    %v1129 = vmul.f32 %v1096, %v1123
    %v1130 = vmul.f32 %v1097, %v1123
    %v1131 = vmul.f32 %v1098, %v1123
    %v1132 = vmul.f32 %v1099, %v1123
    %v1133 = vmul.f32 %v1100, %v1123
    %v1134 = vmul.f32 %v1101, %v1123
    %v1135 = vmul.f32 %v1102, %v1123
    %v1136 = vmul.f32 %v1103, %v1123
    %v1137 = vmul.f32 %v1104, %v1123
    %v1138 = vmul.f32 %v1105, %v1123
    %v1139 = vmul.f32 %v1106, %v1123
    %v1140 = vmul.f32 %v1107, %v1123
    %v1141 = vmul.f32 %v1108, %v1123
    %v1142 = vmul.f32 %v1109, %v1123
    %v1143 = vmul.f32 %v1110, %v1123
    %v1144 = vmul.f32 %v1111, %v1123
    %v1145 = vmul.f32 %v1112, %v1123
    %v1146 = vmul.f32 %v1113, %v1123
    %v1147 = vmul.f32 %v1114, %v1123
    %v1148 = vmul.f32 %v1115, %v1123
    %v1149 = vmul.f32 %v1116, %v1123
    %v1150 = vmul.f32 %v1117, %v1123
    %v1151 = vmul.f32 %v1118, %v1123
    %v1152 = vmul.f32 %v1119, %v1123
    %v1153 = vmul.f32 %v1120, %v1123
    %v1154 = vmul.f32 %v1121, %v1123
    %v1155 = vmul.f32 %v1122, %v1123
    %v1156 = vperm.slane %v410, 0
    %v1157 = vadd.f32 %v1124, %v1156
    %v1158 = vadd.f32 %v1125, %v1156
    %v1159 = vadd.f32 %v1126, %v1156
    %v1160 = vadd.f32 %v1127, %v1156
    %v1161 = vadd.f32 %v1128, %v1156
    %v1162 = vadd.f32 %v1129, %v1156
    %v1163 = vadd.f32 %v1130, %v1156
    %v1164 = vadd.f32 %v1131, %v1156
    %v1165 = vadd.f32 %v1132, %v1156
    %v1166 = vadd.f32 %v1133, %v1156
    %v1167 = vadd.f32 %v1134, %v1156
    %v1168 = vadd.f32 %v1135, %v1156
    %v1169 = vadd.f32 %v1136, %v1156
    %v1170 = vadd.f32 %v1137, %v1156
    %v1171 = vadd.f32 %v1138, %v1156
    %v1172 = vadd.f32 %v1139, %v1156
    %v1173 = vadd.f32 %v1140, %v1156
    %v1174 = vadd.f32 %v1141, %v1156
    %v1175 = vadd.f32 %v1142, %v1156
    %v1176 = vadd.f32 %v1143, %v1156
    %v1177 = vadd.f32 %v1144, %v1156
    %v1178 = vadd.f32 %v1145, %v1156
    %v1179 = vadd.f32 %v1146, %v1156
    %v1180 = vadd.f32 %v1147, %v1156
    %v1181 = vadd.f32 %v1148, %v1156
    %v1182 = vadd.f32 %v1149, %v1156
    %v1183 = vadd.f32 %v1150, %v1156
    %v1184 = vadd.f32 %v1151, %v1156
    %v1185 = vadd.f32 %v1152, %v1156
    %v1186 = vadd.f32 %v1153, %v1156
    %v1187 = vadd.f32 %v1154, %v1156
    %v1188 = vadd.f32 %v1155, %v1156
    %v1189 = vpack.c.bf16 %v1158, %v1157
    %v1190 = vpack.c.bf16 %v1160, %v1159
    %v1191 = vpack.c.bf16 %v1162, %v1161
    %v1192 = vpack.c.bf16 %v1164, %v1163
    %v1193 = vpack.c.bf16 %v1166, %v1165
    %v1194 = vpack.c.bf16 %v1168, %v1167
    %v1195 = vpack.c.bf16 %v1170, %v1169
    %v1196 = vpack.c.bf16 %v1172, %v1171
    %v1197 = vpack.c.bf16 %v1174, %v1173
    %v1198 = vpack.c.bf16 %v1176, %v1175
    %v1199 = vpack.c.bf16 %v1178, %v1177
    %v1200 = vpack.c.bf16 %v1180, %v1179
    %v1201 = vpack.c.bf16 %v1182, %v1181
    %v1202 = vpack.c.bf16 %v1184, %v1183
    %v1203 = vpack.c.bf16 %v1186, %v1185
    %v1204 = vpack.c.bf16 %v1188, %v1187
    %v1205 = vld [vmem:[%s2] sm:$0xf]
    %v1206 = vld [vmem:[%s2 + $0x4] sm:$0xf]
    %v1207 = vld [vmem:[%s2 + $0x8] sm:$0xf]
    %v1208 = vld [vmem:[%s2 + $0xc] sm:$0xf]
    %v1209 = vld [vmem:[%s3 + $0x2] sm:$0x1]
    %v1210 = vperm.slane %v1209, 0
    %v1215 = vunpack.c.l.b16 %v1205
    %v1216 = vunpack.c.l.b16 %v1206
    %v1217 = vunpack.c.l.b16 %v1207
    %v1218 = vunpack.c.l.b16 %v1208
    %v1219 = vpack.c.b16 %v1216, %v1215
    %v1220 = vpack.c.b16 %v1218, %v1217
    %v1224 = vsel %vm411, %v1189, 0
    %v1227 = vsel %vm411, %v1190, 0
    %v1230 = vsel %vm411, %v1191, 0
    %v1233 = vsel %vm411, %v1192, 0
    %v1236 = vsel %vm411, %v1193, 0
    %v1239 = vsel %vm411, %v1194, 0
    %v1242 = vsel %vm411, %v1195, 0
    %v1245 = vsel %vm411, %v1196, 0
    %v1248 = vsel %vm411, %v1197, 0
    %v1251 = vsel %vm411, %v1198, 0
    %v1254 = vsel %vm411, %v1199, 0
    %v1257 = vsel %vm411, %v1200, 0
    %v1260 = vsel %vm411, %v1201, 0
    %v1263 = vsel %vm411, %v1202, 0
    %v1266 = vsel %vm411, %v1203, 0
    %v1269 = vsel %vm411, %v1204, 0
    %1271 = vmatpush.bf16.msra.mxu0 0
    %1272 = vmatpush.bf16.msra.mxu0 0
    %1273 = vmatpush.bf16.msra.mxu0 0
    %1274 = vmatpush.bf16.msra.mxu0 0
    %1275 = vmatpush.bf16.msra.mxu0 0
    %1276 = vmatpush.bf16.msra.mxu0 0
    %1277 = vmatpush.bf16.msra.mxu0 %v1220
    %1278 = vmatpush.bf16.msra.mxu0 %v1219
    %1279 = vmatmul.bf16.gmra.mxu0 %v1224
    %v1280 = vpop.f32.mrf.mxu0
    %v1281 = vadd.f32 %v1210, %v1280
    %v1282 = vpop.f32.mrf.mxu0
    %v1283 = vadd.f32 %v1210, %v1282
    %1284 = vmatmul.bf16.gmra.mxu0 %v1227
    %v1285 = vpop.f32.mrf.mxu0
    %v1286 = vadd.f32 %v1210, %v1285
    %v1287 = vpop.f32.mrf.mxu0
    %v1288 = vadd.f32 %v1210, %v1287
    %1289 = vmatmul.bf16.gmra.mxu0 %v1230
    %v1290 = vpop.f32.mrf.mxu0
    %v1291 = vadd.f32 %v1210, %v1290
    %v1292 = vpop.f32.mrf.mxu0
    %v1293 = vadd.f32 %v1210, %v1292
    %1294 = vmatmul.bf16.gmra.mxu0 %v1233
    %v1295 = vpop.f32.mrf.mxu0
    %v1296 = vadd.f32 %v1210, %v1295
    %v1297 = vpop.f32.mrf.mxu0
    %v1298 = vadd.f32 %v1210, %v1297
    %1299 = vmatmul.bf16.gmra.mxu0 %v1236
    %v1300 = vpop.f32.mrf.mxu0
    %v1301 = vadd.f32 %v1210, %v1300
    %v1302 = vpop.f32.mrf.mxu0
    %v1303 = vadd.f32 %v1210, %v1302
    %1304 = vmatmul.bf16.gmra.mxu0 %v1239
    %v1305 = vpop.f32.mrf.mxu0
    %v1306 = vadd.f32 %v1210, %v1305
    %v1307 = vpop.f32.mrf.mxu0
    %v1308 = vadd.f32 %v1210, %v1307
    %1309 = vmatmul.bf16.gmra.mxu0 %v1242
    %v1310 = vpop.f32.mrf.mxu0
    %v1311 = vadd.f32 %v1210, %v1310
    %v1312 = vpop.f32.mrf.mxu0
    %v1313 = vadd.f32 %v1210, %v1312
    %1314 = vmatmul.bf16.gmra.mxu0 %v1245
    %v1315 = vpop.f32.mrf.mxu0
    %v1316 = vadd.f32 %v1210, %v1315
    %v1317 = vpop.f32.mrf.mxu0
    %v1318 = vadd.f32 %v1210, %v1317
    %1319 = vmatmul.bf16.gmra.mxu0 %v1248
    %v1320 = vpop.f32.mrf.mxu0
    %v1321 = vadd.f32 %v1210, %v1320
    %v1322 = vpop.f32.mrf.mxu0
    %v1323 = vadd.f32 %v1210, %v1322
    %1324 = vmatmul.bf16.gmra.mxu0 %v1251
    %v1325 = vpop.f32.mrf.mxu0
    %v1326 = vadd.f32 %v1210, %v1325
    %v1327 = vpop.f32.mrf.mxu0
    %v1328 = vadd.f32 %v1210, %v1327
    %1329 = vmatmul.bf16.gmra.mxu0 %v1254
    %v1330 = vpop.f32.mrf.mxu0
    %v1331 = vadd.f32 %v1210, %v1330
    %v1332 = vpop.f32.mrf.mxu0
    %v1333 = vadd.f32 %v1210, %v1332
    %1334 = vmatmul.bf16.gmra.mxu0 %v1257
    %v1335 = vpop.f32.mrf.mxu0
    %v1336 = vadd.f32 %v1210, %v1335
    %v1337 = vpop.f32.mrf.mxu0
    %v1338 = vadd.f32 %v1210, %v1337
    %1339 = vmatmul.bf16.gmra.mxu0 %v1260
    %v1340 = vpop.f32.mrf.mxu0
    %v1341 = vadd.f32 %v1210, %v1340
    %v1342 = vpop.f32.mrf.mxu0
    %v1343 = vadd.f32 %v1210, %v1342
    %1344 = vmatmul.bf16.gmra.mxu0 %v1263
    %v1345 = vpop.f32.mrf.mxu0
    %v1346 = vadd.f32 %v1210, %v1345
    %v1347 = vpop.f32.mrf.mxu0
    %v1348 = vadd.f32 %v1210, %v1347
    %1349 = vmatmul.bf16.gmra.mxu0 %v1266
    %v1350 = vpop.f32.mrf.mxu0
    %v1351 = vadd.f32 %v1210, %v1350
    %v1352 = vpop.f32.mrf.mxu0
    %v1353 = vadd.f32 %v1210, %v1352
    %1354 = vmatmul.bf16.gmra.mxu0 %v1269
    %v1355 = vpop.f32.mrf.mxu0
    %v1356 = vadd.f32 %v1210, %v1355
    %v1357 = vpop.f32.mrf.mxu0
    %v1358 = vadd.f32 %v1210, %v1357
    %1359 = vdwg.mxu0
    %v1360 = vld [vmem:[%s2 + $0x10] sm:$0xf]
    %v1361 = vld [vmem:[%s2 + $0x14] sm:$0xf]
    %v1362 = vld [vmem:[%s2 + $0x18] sm:$0xf]
    %v1363 = vld [vmem:[%s2 + $0x1c] sm:$0xf]
    %v1364 = vld [vmem:[%s3 + $0x3] sm:$0x1]
    %v1365 = vperm.slane %v1364, 0
    %v1370 = vunpack.c.l.b16 %v1360
    %v1371 = vunpack.c.l.b16 %v1361
    %v1372 = vunpack.c.l.b16 %v1362
    %v1373 = vunpack.c.l.b16 %v1363
    %v1374 = vpack.c.b16 %v1371, %v1370
    %v1375 = vpack.c.b16 %v1373, %v1372
    %1378 = vmatpush.bf16.msra.mxu0 0
    %1379 = vmatpush.bf16.msra.mxu0 0
    %1380 = vmatpush.bf16.msra.mxu0 0
    %1381 = vmatpush.bf16.msra.mxu0 0
    %1382 = vmatpush.bf16.msra.mxu0 0
    %1383 = vmatpush.bf16.msra.mxu0 0
    %1384 = vmatpush.bf16.msra.mxu0 %v1375
    %1385 = vmatpush.bf16.msra.mxu0 %v1374
    %1386 = vmatmul.bf16.gmra.mxu0 %v1224
    %v1387 = vpop.f32.mrf.mxu0
    %v1388 = vadd.f32 %v1365, %v1387
    %v1389 = vpop.f32.mrf.mxu0
    %v1390 = vadd.f32 %v1365, %v1389
    %1391 = vmatmul.bf16.gmra.mxu0 %v1227
    %v1392 = vpop.f32.mrf.mxu0
    %v1393 = vadd.f32 %v1365, %v1392
    %v1394 = vpop.f32.mrf.mxu0
    %v1395 = vadd.f32 %v1365, %v1394
    %1396 = vmatmul.bf16.gmra.mxu0 %v1230
    %v1397 = vpop.f32.mrf.mxu0
    %v1398 = vadd.f32 %v1365, %v1397
    %v1399 = vpop.f32.mrf.mxu0
    %v1400 = vadd.f32 %v1365, %v1399
    %1401 = vmatmul.bf16.gmra.mxu0 %v1233
    %v1402 = vpop.f32.mrf.mxu0
    %v1403 = vadd.f32 %v1365, %v1402
    %v1404 = vpop.f32.mrf.mxu0
    %v1405 = vadd.f32 %v1365, %v1404
    %1406 = vmatmul.bf16.gmra.mxu0 %v1236
    %v1407 = vpop.f32.mrf.mxu0
    %v1408 = vadd.f32 %v1365, %v1407
    %v1409 = vpop.f32.mrf.mxu0
    %v1410 = vadd.f32 %v1365, %v1409
    %1411 = vmatmul.bf16.gmra.mxu0 %v1239
    %v1412 = vpop.f32.mrf.mxu0
    %v1413 = vadd.f32 %v1365, %v1412
    %v1414 = vpop.f32.mrf.mxu0
    %v1415 = vadd.f32 %v1365, %v1414
    %1416 = vmatmul.bf16.gmra.mxu0 %v1242
    %v1417 = vpop.f32.mrf.mxu0
    %v1418 = vadd.f32 %v1365, %v1417
    %v1419 = vpop.f32.mrf.mxu0
    %v1420 = vadd.f32 %v1365, %v1419
    %1421 = vmatmul.bf16.gmra.mxu0 %v1245
    %v1422 = vpop.f32.mrf.mxu0
    %v1423 = vadd.f32 %v1365, %v1422
    %v1424 = vpop.f32.mrf.mxu0
    %v1425 = vadd.f32 %v1365, %v1424
    %1426 = vmatmul.bf16.gmra.mxu0 %v1248
    %v1427 = vpop.f32.mrf.mxu0
    %v1428 = vadd.f32 %v1365, %v1427
    %v1429 = vpop.f32.mrf.mxu0
    %v1430 = vadd.f32 %v1365, %v1429
    %1431 = vmatmul.bf16.gmra.mxu0 %v1251
    %v1432 = vpop.f32.mrf.mxu0
    %v1433 = vadd.f32 %v1365, %v1432
    %v1434 = vpop.f32.mrf.mxu0
    %v1435 = vadd.f32 %v1365, %v1434
    %1436 = vmatmul.bf16.gmra.mxu0 %v1254
    %v1437 = vpop.f32.mrf.mxu0
    %v1438 = vadd.f32 %v1365, %v1437
    %v1439 = vpop.f32.mrf.mxu0
    %v1440 = vadd.f32 %v1365, %v1439
    %1441 = vmatmul.bf16.gmra.mxu0 %v1257
    %v1442 = vpop.f32.mrf.mxu0
    %v1443 = vadd.f32 %v1365, %v1442
    %v1444 = vpop.f32.mrf.mxu0
    %v1445 = vadd.f32 %v1365, %v1444
    %1446 = vmatmul.bf16.gmra.mxu0 %v1260
    %v1447 = vpop.f32.mrf.mxu0
    %v1448 = vadd.f32 %v1365, %v1447
    %v1449 = vpop.f32.mrf.mxu0
    %v1450 = vadd.f32 %v1365, %v1449
    %1451 = vmatmul.bf16.gmra.mxu0 %v1263
    %v1452 = vpop.f32.mrf.mxu0
    %v1453 = vadd.f32 %v1365, %v1452
    %v1454 = vpop.f32.mrf.mxu0
    %v1455 = vadd.f32 %v1365, %v1454
    %1456 = vmatmul.bf16.gmra.mxu0 %v1266
    %v1457 = vpop.f32.mrf.mxu0
    %v1458 = vadd.f32 %v1365, %v1457
    %v1459 = vpop.f32.mrf.mxu0
    %v1460 = vadd.f32 %v1365, %v1459
    %1461 = vmatmul.bf16.gmra.mxu0 %v1269
    %v1462 = vpop.f32.mrf.mxu0
    %v1463 = vadd.f32 %v1365, %v1462
    %v1464 = vpop.f32.mrf.mxu0
    %v1465 = vadd.f32 %v1365, %v1464
    %1466 = vdwg.mxu0
    %v1467 = vld [vmem:[%s2 + $0x20] sm:$0xf]
    %v1468 = vld [vmem:[%s2 + $0x24] sm:$0xf]
    %v1469 = vld [vmem:[%s2 + $0x28] sm:$0xf]
    %v1470 = vld [vmem:[%s2 + $0x2c] sm:$0xf]
    %v1471 = vld [vmem:[%s3 + $0x4] sm:$0x1]
    %v1472 = vperm.slane %v1471, 0
    %v1477 = vunpack.c.l.b16 %v1467
    %v1478 = vunpack.c.l.b16 %v1468
    %v1479 = vunpack.c.l.b16 %v1469
    %v1480 = vunpack.c.l.b16 %v1470
    %v1481 = vpack.c.b16 %v1478, %v1477
    %v1482 = vpack.c.b16 %v1480, %v1479
    %1485 = vmatpush.bf16.msra.mxu0 0
    %1486 = vmatpush.bf16.msra.mxu0 0
    %1487 = vmatpush.bf16.msra.mxu0 0
    %1488 = vmatpush.bf16.msra.mxu0 0
    %1489 = vmatpush.bf16.msra.mxu0 0
    %1490 = vmatpush.bf16.msra.mxu0 0
    %1491 = vmatpush.bf16.msra.mxu0 %v1482
    %1492 = vmatpush.bf16.msra.mxu0 %v1481
    %1493 = vmatmul.bf16.gmra.mxu0 %v1224
    %v1494 = vpop.f32.mrf.mxu0
    %v1495 = vadd.f32 %v1472, %v1494
    %v1496 = vpop.f32.mrf.mxu0
    %v1497 = vadd.f32 %v1472, %v1496
    %1498 = vmatmul.bf16.gmra.mxu0 %v1227
    %v1499 = vpop.f32.mrf.mxu0
    %v1500 = vadd.f32 %v1472, %v1499
    %v1501 = vpop.f32.mrf.mxu0
    %v1502 = vadd.f32 %v1472, %v1501
    %1503 = vmatmul.bf16.gmra.mxu0 %v1230
    %v1504 = vpop.f32.mrf.mxu0
    %v1505 = vadd.f32 %v1472, %v1504
    %v1506 = vpop.f32.mrf.mxu0
    %v1507 = vadd.f32 %v1472, %v1506
    %1508 = vmatmul.bf16.gmra.mxu0 %v1233
    %v1509 = vpop.f32.mrf.mxu0
    %v1510 = vadd.f32 %v1472, %v1509
    %v1511 = vpop.f32.mrf.mxu0
    %v1512 = vadd.f32 %v1472, %v1511
    %1513 = vmatmul.bf16.gmra.mxu0 %v1236
    %v1514 = vpop.f32.mrf.mxu0
    %v1515 = vadd.f32 %v1472, %v1514
    %v1516 = vpop.f32.mrf.mxu0
    %v1517 = vadd.f32 %v1472, %v1516
    %1518 = vmatmul.bf16.gmra.mxu0 %v1239
    %v1519 = vpop.f32.mrf.mxu0
    %v1520 = vadd.f32 %v1472, %v1519
    %v1521 = vpop.f32.mrf.mxu0
    %v1522 = vadd.f32 %v1472, %v1521
    %1523 = vmatmul.bf16.gmra.mxu0 %v1242
    %v1524 = vpop.f32.mrf.mxu0
    %v1525 = vadd.f32 %v1472, %v1524
    %v1526 = vpop.f32.mrf.mxu0
    %v1527 = vadd.f32 %v1472, %v1526
    %1528 = vmatmul.bf16.gmra.mxu0 %v1245
    %v1529 = vpop.f32.mrf.mxu0
    %v1530 = vadd.f32 %v1472, %v1529
    %v1531 = vpop.f32.mrf.mxu0
    %v1532 = vadd.f32 %v1472, %v1531
    %1533 = vmatmul.bf16.gmra.mxu0 %v1248
    %v1534 = vpop.f32.mrf.mxu0
    %v1535 = vadd.f32 %v1472, %v1534
    %v1536 = vpop.f32.mrf.mxu0
    %v1537 = vadd.f32 %v1472, %v1536
    %1538 = vmatmul.bf16.gmra.mxu0 %v1251
    %v1539 = vpop.f32.mrf.mxu0
    %v1540 = vadd.f32 %v1472, %v1539
    %v1541 = vpop.f32.mrf.mxu0
    %v1542 = vadd.f32 %v1472, %v1541
    %1543 = vmatmul.bf16.gmra.mxu0 %v1254
    %v1544 = vpop.f32.mrf.mxu0
    %v1545 = vadd.f32 %v1472, %v1544
    %v1546 = vpop.f32.mrf.mxu0
    %v1547 = vadd.f32 %v1472, %v1546
    %1548 = vmatmul.bf16.gmra.mxu0 %v1257
    %v1549 = vpop.f32.mrf.mxu0
    %v1550 = vadd.f32 %v1472, %v1549
    %v1551 = vpop.f32.mrf.mxu0
    %v1552 = vadd.f32 %v1472, %v1551
    %1553 = vmatmul.bf16.gmra.mxu0 %v1260
    %v1554 = vpop.f32.mrf.mxu0
    %v1555 = vadd.f32 %v1472, %v1554
    %v1556 = vpop.f32.mrf.mxu0
    %v1557 = vadd.f32 %v1472, %v1556
    %1558 = vmatmul.bf16.gmra.mxu0 %v1263
    %v1559 = vpop.f32.mrf.mxu0
    %v1560 = vadd.f32 %v1472, %v1559
    %v1561 = vpop.f32.mrf.mxu0
    %v1562 = vadd.f32 %v1472, %v1561
    %1563 = vmatmul.bf16.gmra.mxu0 %v1266
    %v1564 = vpop.f32.mrf.mxu0
    %v1565 = vadd.f32 %v1472, %v1564
    %v1566 = vpop.f32.mrf.mxu0
    %v1567 = vadd.f32 %v1472, %v1566
    %1568 = vmatmul.bf16.gmra.mxu0 %v1269
    %v1569 = vpop.f32.mrf.mxu0
    %v1570 = vadd.f32 %v1472, %v1569
    %v1571 = vpop.f32.mrf.mxu0
    %v1572 = vadd.f32 %v1472, %v1571
    %1573 = vdwg.mxu0
    %v1574 = vpack.c.bf16 %v1283, %v1281
    %v1575 = vpack.c.bf16 %v1288, %v1286
    %v1576 = vpack.c.bf16 %v1293, %v1291
    %v1577 = vpack.c.bf16 %v1298, %v1296
    %v1578 = vpack.c.bf16 %v1303, %v1301
    %v1579 = vpack.c.bf16 %v1308, %v1306
    %v1580 = vpack.c.bf16 %v1313, %v1311
    %v1581 = vpack.c.bf16 %v1318, %v1316
    %v1582 = vpack.c.bf16 %v1323, %v1321
    %v1583 = vpack.c.bf16 %v1328, %v1326
    %v1584 = vpack.c.bf16 %v1333, %v1331
    %v1585 = vpack.c.bf16 %v1338, %v1336
    %v1586 = vpack.c.bf16 %v1343, %v1341
    %v1587 = vpack.c.bf16 %v1348, %v1346
    %v1588 = vpack.c.bf16 %v1353, %v1351
    %v1589 = vpack.c.bf16 %v1358, %v1356
    %v1590 = vpack.c.bf16 %v1390, %v1388
    %v1591 = vpack.c.bf16 %v1395, %v1393
    %v1592 = vpack.c.bf16 %v1400, %v1398
    %v1593 = vpack.c.bf16 %v1405, %v1403
    %v1594 = vpack.c.bf16 %v1410, %v1408
    %v1595 = vpack.c.bf16 %v1415, %v1413
    %v1596 = vpack.c.bf16 %v1420, %v1418
    %v1597 = vpack.c.bf16 %v1425, %v1423
    %v1598 = vpack.c.bf16 %v1430, %v1428
    %v1599 = vpack.c.bf16 %v1435, %v1433
    %v1600 = vpack.c.bf16 %v1440, %v1438
    %v1601 = vpack.c.bf16 %v1445, %v1443
    %v1602 = vpack.c.bf16 %v1450, %v1448
    %v1603 = vpack.c.bf16 %v1455, %v1453
    %v1604 = vpack.c.bf16 %v1460, %v1458
    %v1605 = vpack.c.bf16 %v1465, %v1463
    %v1607 = vsel %vm411, %v1574, 0
    %v1610 = vsel %vm411, %v1575, 0
    %v1613 = vsel %vm411, %v1576, 0
    %v1616 = vsel %vm411, %v1577, 0
    %v1619 = vsel %vm411, %v1578, 0
    %v1622 = vsel %vm411, %v1579, 0
    %v1625 = vsel %vm411, %v1580, 0
    %v1628 = vsel %vm411, %v1581, 0
    %v1631 = vsel %vm411, %v1582, 0
    %v1634 = vsel %vm411, %v1583, 0
    %v1637 = vsel %vm411, %v1584, 0
    %v1640 = vsel %vm411, %v1585, 0
    %v1643 = vsel %vm411, %v1586, 0
    %v1646 = vsel %vm411, %v1587, 0
    %v1649 = vsel %vm411, %v1588, 0
    %v1652 = vsel %vm411, %v1589, 0
    %v1655 = vsel %vm411, %v1590, 0
    %v1658 = vsel %vm411, %v1591, 0
    %v1661 = vsel %vm411, %v1592, 0
    %v1664 = vsel %vm411, %v1593, 0
    %v1667 = vsel %vm411, %v1594, 0
    %v1670 = vsel %vm411, %v1595, 0
    %v1673 = vsel %vm411, %v1596, 0
    %v1676 = vsel %vm411, %v1597, 0
    %v1679 = vsel %vm411, %v1598, 0
    %v1682 = vsel %vm411, %v1599, 0
    %v1685 = vsel %vm411, %v1600, 0
    %v1688 = vsel %vm411, %v1601, 0
    %v1691 = vsel %vm411, %v1602, 0
    %v1694 = vsel %vm411, %v1603, 0
    %v1697 = vsel %vm411, %v1604, 0
    %v1700 = vsel %vm411, %v1605, 0
    %1702 = vmatpush.bf16.xpose.msra.mxu0 %v1676
    %1703 = vmatpush.bf16.xpose.msra.mxu0 %v1673
    %1704 = vmatpush.bf16.xpose.msra.mxu0 %v1670
    %1705 = vmatpush.bf16.xpose.msra.mxu0 %v1667
    %1706 = vmatpush.bf16.xpose.msra.mxu0 %v1664
    %1707 = vmatpush.bf16.xpose.msra.mxu0 %v1661
    %1708 = vmatpush.bf16.xpose.msra.mxu0 %v1658
    %1709 = vmatpush.bf16.xpose.msra.mxu0 %v1655
    %1710 = vmatmul.bf16.gmra.mxu0 %v1607
    %v1711 = vpop.f32.mrf.mxu0
    %v1712 = vadd.f32 0.0, %v1711
    %v1713 = vpop.f32.mrf.mxu0
    %v1714 = vadd.f32 0.0, %v1713
    %1715 = vmatmul.bf16.gmra.mxu0 %v1610
    %v1716 = vpop.f32.mrf.mxu0
    %v1717 = vadd.f32 0.0, %v1716
    %v1718 = vpop.f32.mrf.mxu0
    %v1719 = vadd.f32 0.0, %v1718
    %1720 = vmatmul.bf16.gmra.mxu0 %v1613
    %v1721 = vpop.f32.mrf.mxu0
    %v1722 = vadd.f32 0.0, %v1721
    %v1723 = vpop.f32.mrf.mxu0
    %v1724 = vadd.f32 0.0, %v1723
    %1725 = vmatmul.bf16.gmra.mxu0 %v1616
    %v1726 = vpop.f32.mrf.mxu0
    %v1727 = vadd.f32 0.0, %v1726
    %v1728 = vpop.f32.mrf.mxu0
    %v1729 = vadd.f32 0.0, %v1728
    %1730 = vmatmul.bf16.gmra.mxu0 %v1619
    %v1731 = vpop.f32.mrf.mxu0
    %v1732 = vadd.f32 0.0, %v1731
    %v1733 = vpop.f32.mrf.mxu0
    %v1734 = vadd.f32 0.0, %v1733
    %1735 = vmatmul.bf16.gmra.mxu0 %v1622
    %v1736 = vpop.f32.mrf.mxu0
    %v1737 = vadd.f32 0.0, %v1736
    %v1738 = vpop.f32.mrf.mxu0
    %v1739 = vadd.f32 0.0, %v1738
    %1740 = vmatmul.bf16.gmra.mxu0 %v1625
    %v1741 = vpop.f32.mrf.mxu0
    %v1742 = vadd.f32 0.0, %v1741
    %v1743 = vpop.f32.mrf.mxu0
    %v1744 = vadd.f32 0.0, %v1743
    %1745 = vmatmul.bf16.gmra.mxu0 %v1628
    %v1746 = vpop.f32.mrf.mxu0
    %v1747 = vadd.f32 0.0, %v1746
    %v1748 = vpop.f32.mrf.mxu0
    %v1749 = vadd.f32 0.0, %v1748
    %1750 = vmatmul.bf16.gmra.mxu0 %v1631
    %v1751 = vpop.f32.mrf.mxu0
    %v1752 = vadd.f32 0.0, %v1751
    %v1753 = vpop.f32.mrf.mxu0
    %v1754 = vadd.f32 0.0, %v1753
    %1755 = vmatmul.bf16.gmra.mxu0 %v1634
    %v1756 = vpop.f32.mrf.mxu0
    %v1757 = vadd.f32 0.0, %v1756
    %v1758 = vpop.f32.mrf.mxu0
    %v1759 = vadd.f32 0.0, %v1758
    %1760 = vmatmul.bf16.gmra.mxu0 %v1637
    %v1761 = vpop.f32.mrf.mxu0
    %v1762 = vadd.f32 0.0, %v1761
    %v1763 = vpop.f32.mrf.mxu0
    %v1764 = vadd.f32 0.0, %v1763
    %1765 = vmatmul.bf16.gmra.mxu0 %v1640
    %v1766 = vpop.f32.mrf.mxu0
    %v1767 = vadd.f32 0.0, %v1766
    %v1768 = vpop.f32.mrf.mxu0
    %v1769 = vadd.f32 0.0, %v1768
    %1770 = vmatmul.bf16.gmra.mxu0 %v1643
    %v1771 = vpop.f32.mrf.mxu0
    %v1772 = vadd.f32 0.0, %v1771
    %v1773 = vpop.f32.mrf.mxu0
    %v1774 = vadd.f32 0.0, %v1773
    %1775 = vmatmul.bf16.gmra.mxu0 %v1646
    %v1776 = vpop.f32.mrf.mxu0
    %v1777 = vadd.f32 0.0, %v1776
    %v1778 = vpop.f32.mrf.mxu0
    %v1779 = vadd.f32 0.0, %v1778
    %1780 = vmatmul.bf16.gmra.mxu0 %v1649
    %v1781 = vpop.f32.mrf.mxu0
    %v1782 = vadd.f32 0.0, %v1781
    %v1783 = vpop.f32.mrf.mxu0
    %v1784 = vadd.f32 0.0, %v1783
    %1785 = vmatmul.bf16.gmra.mxu0 %v1652
    %v1786 = vpop.f32.mrf.mxu0
    %v1787 = vadd.f32 0.0, %v1786
    %v1788 = vpop.f32.mrf.mxu0
    %v1789 = vadd.f32 0.0, %v1788
    %1790 = vdwg.mxu0
    %1791 = vmatpush.bf16.xpose.msra.mxu0 %v1700
    %1792 = vmatpush.bf16.xpose.msra.mxu0 %v1697
    %1793 = vmatpush.bf16.xpose.msra.mxu0 %v1694
    %1794 = vmatpush.bf16.xpose.msra.mxu0 %v1691
    %1795 = vmatpush.bf16.xpose.msra.mxu0 %v1688
    %1796 = vmatpush.bf16.xpose.msra.mxu0 %v1685
    %1797 = vmatpush.bf16.xpose.msra.mxu0 %v1682
    %1798 = vmatpush.bf16.xpose.msra.mxu0 %v1679
    %1799 = vmatmul.bf16.gmra.mxu0 %v1607
    %v1800 = vpop.f32.mrf.mxu0
    %v1801 = vadd.f32 0.0, %v1800
    %v1802 = vpop.f32.mrf.mxu0
    %v1803 = vadd.f32 0.0, %v1802
    %1804 = vmatmul.bf16.gmra.mxu0 %v1610
    %v1805 = vpop.f32.mrf.mxu0
    %v1806 = vadd.f32 0.0, %v1805
    %v1807 = vpop.f32.mrf.mxu0
    %v1808 = vadd.f32 0.0, %v1807
    %1809 = vmatmul.bf16.gmra.mxu0 %v1613
    %v1810 = vpop.f32.mrf.mxu0
    %v1811 = vadd.f32 0.0, %v1810
    %v1812 = vpop.f32.mrf.mxu0
    %v1813 = vadd.f32 0.0, %v1812
    %1814 = vmatmul.bf16.gmra.mxu0 %v1616
    %v1815 = vpop.f32.mrf.mxu0
    %v1816 = vadd.f32 0.0, %v1815
    %v1817 = vpop.f32.mrf.mxu0
    %v1818 = vadd.f32 0.0, %v1817
    %1819 = vmatmul.bf16.gmra.mxu0 %v1619
    %v1820 = vpop.f32.mrf.mxu0
    %v1821 = vadd.f32 0.0, %v1820
    %v1822 = vpop.f32.mrf.mxu0
    %v1823 = vadd.f32 0.0, %v1822
    %1824 = vmatmul.bf16.gmra.mxu0 %v1622
    %v1825 = vpop.f32.mrf.mxu0
    %v1826 = vadd.f32 0.0, %v1825
    %v1827 = vpop.f32.mrf.mxu0
    %v1828 = vadd.f32 0.0, %v1827
    %1829 = vmatmul.bf16.gmra.mxu0 %v1625
    %v1830 = vpop.f32.mrf.mxu0
    %v1831 = vadd.f32 0.0, %v1830
    %v1832 = vpop.f32.mrf.mxu0
    %v1833 = vadd.f32 0.0, %v1832
    %1834 = vmatmul.bf16.gmra.mxu0 %v1628
    %v1835 = vpop.f32.mrf.mxu0
    %v1836 = vadd.f32 0.0, %v1835
    %v1837 = vpop.f32.mrf.mxu0
    %v1838 = vadd.f32 0.0, %v1837
    %1839 = vmatmul.bf16.gmra.mxu0 %v1631
    %v1840 = vpop.f32.mrf.mxu0
    %v1841 = vadd.f32 0.0, %v1840
    %v1842 = vpop.f32.mrf.mxu0
    %v1843 = vadd.f32 0.0, %v1842
    %1844 = vmatmul.bf16.gmra.mxu0 %v1634
    %v1845 = vpop.f32.mrf.mxu0
    %v1846 = vadd.f32 0.0, %v1845
    %v1847 = vpop.f32.mrf.mxu0
    %v1848 = vadd.f32 0.0, %v1847
    %1849 = vmatmul.bf16.gmra.mxu0 %v1637
    %v1850 = vpop.f32.mrf.mxu0
    %v1851 = vadd.f32 0.0, %v1850
    %v1852 = vpop.f32.mrf.mxu0
    %v1853 = vadd.f32 0.0, %v1852
    %1854 = vmatmul.bf16.gmra.mxu0 %v1640
    %v1855 = vpop.f32.mrf.mxu0
    %v1856 = vadd.f32 0.0, %v1855
    %v1857 = vpop.f32.mrf.mxu0
    %v1858 = vadd.f32 0.0, %v1857
    %1859 = vmatmul.bf16.gmra.mxu0 %v1643
    %v1860 = vpop.f32.mrf.mxu0
    %v1861 = vadd.f32 0.0, %v1860
    %v1862 = vpop.f32.mrf.mxu0
    %v1863 = vadd.f32 0.0, %v1862
    %1864 = vmatmul.bf16.gmra.mxu0 %v1646
    %v1865 = vpop.f32.mrf.mxu0
    %v1866 = vadd.f32 0.0, %v1865
    %v1867 = vpop.f32.mrf.mxu0
    %v1868 = vadd.f32 0.0, %v1867
    %1869 = vmatmul.bf16.gmra.mxu0 %v1649
    %v1870 = vpop.f32.mrf.mxu0
    %v1871 = vadd.f32 0.0, %v1870
    %v1872 = vpop.f32.mrf.mxu0
    %v1873 = vadd.f32 0.0, %v1872
    %1874 = vmatmul.bf16.gmra.mxu0 %v1652
    %v1875 = vpop.f32.mrf.mxu0
    %v1876 = vadd.f32 0.0, %v1875
    %v1877 = vpop.f32.mrf.mxu0
    %v1878 = vadd.f32 0.0, %v1877
    %1879 = vdwg.mxu0
    %v1880 = vmul.f32 %v1712, 0.17677669
    %v1881 = vmul.f32 %v1801, 0.17677669
    %v1882 = vmul.f32 %v1714, 0.17677669
    %v1883 = vmul.f32 %v1803, 0.17677669
    %v1884 = vmul.f32 %v1717, 0.17677669
    %v1885 = vmul.f32 %v1806, 0.17677669
    %v1886 = vmul.f32 %v1719, 0.17677669
    %v1887 = vmul.f32 %v1808, 0.17677669
    %v1888 = vmul.f32 %v1722, 0.17677669
    %v1889 = vmul.f32 %v1811, 0.17677669
    %v1890 = vmul.f32 %v1724, 0.17677669
    %v1891 = vmul.f32 %v1813, 0.17677669
    %v1892 = vmul.f32 %v1727, 0.17677669
    %v1893 = vmul.f32 %v1816, 0.17677669
    %v1894 = vmul.f32 %v1729, 0.17677669
    %v1895 = vmul.f32 %v1818, 0.17677669
    %v1896 = vmul.f32 %v1732, 0.17677669
    %v1897 = vmul.f32 %v1821, 0.17677669
    %v1898 = vmul.f32 %v1734, 0.17677669
    %v1899 = vmul.f32 %v1823, 0.17677669
    %v1900 = vmul.f32 %v1737, 0.17677669
    %v1901 = vmul.f32 %v1826, 0.17677669
    %v1902 = vmul.f32 %v1739, 0.17677669
    %v1903 = vmul.f32 %v1828, 0.17677669
    %v1904 = vmul.f32 %v1742, 0.17677669
    %v1905 = vmul.f32 %v1831, 0.17677669
    %v1906 = vmul.f32 %v1744, 0.17677669
    %v1907 = vmul.f32 %v1833, 0.17677669
    %v1908 = vmul.f32 %v1747, 0.17677669
    %v1909 = vmul.f32 %v1836, 0.17677669
    %v1910 = vmul.f32 %v1749, 0.17677669
    %v1911 = vmul.f32 %v1838, 0.17677669
    %v1912 = vmul.f32 %v1752, 0.17677669
    %v1913 = vmul.f32 %v1841, 0.17677669
    %v1914 = vmul.f32 %v1754, 0.17677669
    %v1915 = vmul.f32 %v1843, 0.17677669
    %v1916 = vmul.f32 %v1757, 0.17677669
    %v1917 = vmul.f32 %v1846, 0.17677669
    %v1918 = vmul.f32 %v1759, 0.17677669
    %v1919 = vmul.f32 %v1848, 0.17677669
    %v1920 = vmul.f32 %v1762, 0.17677669
    %v1921 = vmul.f32 %v1851, 0.17677669
    %v1922 = vmul.f32 %v1764, 0.17677669
    %v1923 = vmul.f32 %v1853, 0.17677669
    %v1924 = vmul.f32 %v1767, 0.17677669
    %v1925 = vmul.f32 %v1856, 0.17677669
    %v1926 = vmul.f32 %v1769, 0.17677669
    %v1927 = vmul.f32 %v1858, 0.17677669
    %v1928 = vmul.f32 %v1772, 0.17677669
    %v1929 = vmul.f32 %v1861, 0.17677669
    %v1930 = vmul.f32 %v1774, 0.17677669
    %v1931 = vmul.f32 %v1863, 0.17677669
    %v1932 = vmul.f32 %v1777, 0.17677669
    %v1933 = vmul.f32 %v1866, 0.17677669
    %v1934 = vmul.f32 %v1779, 0.17677669
    %v1935 = vmul.f32 %v1868, 0.17677669
    %v1936 = vmul.f32 %v1782, 0.17677669
    %v1937 = vmul.f32 %v1871, 0.17677669
    %v1938 = vmul.f32 %v1784, 0.17677669
    %v1939 = vmul.f32 %v1873, 0.17677669
    %v1940 = vmul.f32 %v1787, 0.17677669
    %v1941 = vmul.f32 %v1876, 0.17677669
    %v1942 = vmul.f32 %v1789, 0.17677669
    %v1943 = vmul.f32 %v1878, 0.17677669
    %v1944 = vld [vmem:[%s4] sm:$0xff]
    %v1945 = vld [vmem:[%s4 + $0x8] sm:$0xff]
    %v1946 = vld [vmem:[%s4 + $0x10] sm:$0xff]
    %v1947 = vld [vmem:[%s4 + $0x18] sm:$0xff]
    %v1948 = vld [vmem:[%s4 + $0x20] sm:$0xff]
    %v1949 = vld [vmem:[%s4 + $0x28] sm:$0xff]
    %v1950 = vld [vmem:[%s4 + $0x30] sm:$0xff]
    %v1951 = vld [vmem:[%s4 + $0x38] sm:$0xff]
    %v1952 = vld [vmem:[%s4 + $0x40] sm:$0xff]
    %v1953 = vld [vmem:[%s4 + $0x48] sm:$0xff]
    %v1954 = vld [vmem:[%s4 + $0x50] sm:$0xff]
    %v1955 = vld [vmem:[%s4 + $0x58] sm:$0xff]
    %v1956 = vld [vmem:[%s4 + $0x60] sm:$0xff]
    %v1957 = vld [vmem:[%s4 + $0x68] sm:$0xff]
    %v1958 = vld [vmem:[%s4 + $0x70] sm:$0xff]
    %v1959 = vld [vmem:[%s4 + $0x78] sm:$0xff]
    %v1960 = vld [vmem:[%s4 + $0x80] sm:$0xff]
    %v1961 = vld [vmem:[%s4 + $0x88] sm:$0xff]
    %v1962 = vld [vmem:[%s4 + $0x90] sm:$0xff]
    %v1963 = vld [vmem:[%s4 + $0x98] sm:$0xff]
    %v1964 = vld [vmem:[%s4 + $0xa0] sm:$0xff]
    %v1965 = vld [vmem:[%s4 + $0xa8] sm:$0xff]
    %v1966 = vld [vmem:[%s4 + $0xb0] sm:$0xff]
    %v1967 = vld [vmem:[%s4 + $0xb8] sm:$0xff]
    %v1968 = vld [vmem:[%s4 + $0xc0] sm:$0xff]
    %v1969 = vld [vmem:[%s4 + $0xc8] sm:$0xff]
    %v1970 = vld [vmem:[%s4 + $0xd0] sm:$0xff]
    %v1971 = vld [vmem:[%s4 + $0xd8] sm:$0xff]
    %v1972 = vld [vmem:[%s4 + $0xe0] sm:$0xff]
    %v1973 = vld [vmem:[%s4 + $0xe8] sm:$0xff]
    %v1974 = vld [vmem:[%s4 + $0xf0] sm:$0xff]
    %v1975 = vld [vmem:[%s4 + $0xf8] sm:$0xff]
    %v1976 = vld [vmem:[%s4 + $0x100] sm:$0xff]
    %v1977 = vld [vmem:[%s4 + $0x108] sm:$0xff]
    %v1978 = vld [vmem:[%s4 + $0x110] sm:$0xff]
    %v1979 = vld [vmem:[%s4 + $0x118] sm:$0xff]
    %v1980 = vld [vmem:[%s4 + $0x120] sm:$0xff]
    %v1981 = vld [vmem:[%s4 + $0x128] sm:$0xff]
    %v1982 = vld [vmem:[%s4 + $0x130] sm:$0xff]
    %v1983 = vld [vmem:[%s4 + $0x138] sm:$0xff]
    %v1984 = vld [vmem:[%s4 + $0x140] sm:$0xff]
    %v1985 = vld [vmem:[%s4 + $0x148] sm:$0xff]
    %v1986 = vld [vmem:[%s4 + $0x150] sm:$0xff]
    %v1987 = vld [vmem:[%s4 + $0x158] sm:$0xff]
    %v1988 = vld [vmem:[%s4 + $0x160] sm:$0xff]
    %v1989 = vld [vmem:[%s4 + $0x168] sm:$0xff]
    %v1990 = vld [vmem:[%s4 + $0x170] sm:$0xff]
    %v1991 = vld [vmem:[%s4 + $0x178] sm:$0xff]
    %v1992 = vld [vmem:[%s4 + $0x180] sm:$0xff]
    %v1993 = vld [vmem:[%s4 + $0x188] sm:$0xff]
    %v1994 = vld [vmem:[%s4 + $0x190] sm:$0xff]
    %v1995 = vld [vmem:[%s4 + $0x198] sm:$0xff]
    %v1996 = vld [vmem:[%s4 + $0x1a0] sm:$0xff]
    %v1997 = vld [vmem:[%s4 + $0x1a8] sm:$0xff]
    %v1998 = vld [vmem:[%s4 + $0x1b0] sm:$0xff]
    %v1999 = vld [vmem:[%s4 + $0x1b8] sm:$0xff]
    %v2000 = vld [vmem:[%s4 + $0x1c0] sm:$0xff]
    %v2001 = vld [vmem:[%s4 + $0x1c8] sm:$0xff]
    %v2002 = vld [vmem:[%s4 + $0x1d0] sm:$0xff]
    %v2003 = vld [vmem:[%s4 + $0x1d8] sm:$0xff]
    %v2004 = vld [vmem:[%s4 + $0x1e0] sm:$0xff]
    %v2005 = vld [vmem:[%s4 + $0x1e8] sm:$0xff]
    %v2006 = vld [vmem:[%s4 + $0x1f0] sm:$0xff]
    %v2007 = vld [vmem:[%s4 + $0x1f8] sm:$0xff]
    %v2008 = vadd.f32 %v1880, %v1944
    %v2009 = vadd.f32 %v1881, %v1945
    %v2010 = vadd.f32 %v1882, %v1946
    %v2011 = vadd.f32 %v1883, %v1947
    %v2012 = vadd.f32 %v1884, %v1948
    %v2013 = vadd.f32 %v1885, %v1949
    %v2014 = vadd.f32 %v1886, %v1950
    %v2015 = vadd.f32 %v1887, %v1951
    %v2016 = vadd.f32 %v1888, %v1952
    %v2017 = vadd.f32 %v1889, %v1953
    %v2018 = vadd.f32 %v1890, %v1954
    %v2019 = vadd.f32 %v1891, %v1955
    %v2020 = vadd.f32 %v1892, %v1956
    %v2021 = vadd.f32 %v1893, %v1957
    %v2022 = vadd.f32 %v1894, %v1958
    %v2023 = vadd.f32 %v1895, %v1959
    %v2024 = vadd.f32 %v1896, %v1960
    %v2025 = vadd.f32 %v1897, %v1961
    %v2026 = vadd.f32 %v1898, %v1962
    %v2027 = vadd.f32 %v1899, %v1963
    %v2028 = vadd.f32 %v1900, %v1964
    %v2029 = vadd.f32 %v1901, %v1965
    %v2030 = vadd.f32 %v1902, %v1966
    %v2031 = vadd.f32 %v1903, %v1967
    %v2032 = vadd.f32 %v1904, %v1968
    %v2033 = vadd.f32 %v1905, %v1969
    %v2034 = vadd.f32 %v1906, %v1970
    %v2035 = vadd.f32 %v1907, %v1971
    %v2036 = vadd.f32 %v1908, %v1972
    %v2037 = vadd.f32 %v1909, %v1973
    %v2038 = vadd.f32 %v1910, %v1974
    %v2039 = vadd.f32 %v1911, %v1975
    %v2040 = vadd.f32 %v1912, %v1976
    %v2041 = vadd.f32 %v1913, %v1977
    %v2042 = vadd.f32 %v1914, %v1978
    %v2043 = vadd.f32 %v1915, %v1979
    %v2044 = vadd.f32 %v1916, %v1980
    %v2045 = vadd.f32 %v1917, %v1981
    %v2046 = vadd.f32 %v1918, %v1982
    %v2047 = vadd.f32 %v1919, %v1983
    %v2048 = vadd.f32 %v1920, %v1984
    %v2049 = vadd.f32 %v1921, %v1985
    %v2050 = vadd.f32 %v1922, %v1986
    %v2051 = vadd.f32 %v1923, %v1987
    %v2052 = vadd.f32 %v1924, %v1988
    %v2053 = vadd.f32 %v1925, %v1989
    %v2054 = vadd.f32 %v1926, %v1990
    %v2055 = vadd.f32 %v1927, %v1991
    %v2056 = vadd.f32 %v1928, %v1992
    %v2057 = vadd.f32 %v1929, %v1993
    %v2058 = vadd.f32 %v1930, %v1994
    %v2059 = vadd.f32 %v1931, %v1995
    %v2060 = vadd.f32 %v1932, %v1996
    %v2061 = vadd.f32 %v1933, %v1997
    %v2062 = vadd.f32 %v1934, %v1998
    %v2063 = vadd.f32 %v1935, %v1999
    %v2064 = vadd.f32 %v1936, %v2000
    %v2065 = vadd.f32 %v1937, %v2001
    %v2066 = vadd.f32 %v1938, %v2002
    %v2067 = vadd.f32 %v1939, %v2003
    %v2068 = vadd.f32 %v1940, %v2004
    %v2069 = vadd.f32 %v1941, %v2005
    %v2070 = vadd.f32 %v1942, %v2006
    %v2071 = vadd.f32 %v1943, %v2007
    %v2072 = vmax.f32 %v2008, %v2009
    %2073 = vmax.xlane.f32.xlu0 %v2072
    %v2074 = vpop.xlane.xlu0 %2073
    %v2075 = vmax.f32 %v2010, %v2011
    %2076 = vmax.xlane.f32.xlu0 %v2075
    %v2077 = vpop.xlane.xlu0 %2076
    %v2078 = vmax.f32 %v2012, %v2013
    %2079 = vmax.xlane.f32.xlu0 %v2078
    %v2080 = vpop.xlane.xlu0 %2079
    %v2081 = vmax.f32 %v2014, %v2015
    %2082 = vmax.xlane.f32.xlu0 %v2081
    %v2083 = vpop.xlane.xlu0 %2082
    %v2084 = vmax.f32 %v2016, %v2017
    %2085 = vmax.xlane.f32.xlu0 %v2084
    %v2086 = vpop.xlane.xlu0 %2085
    %v2087 = vmax.f32 %v2018, %v2019
    %2088 = vmax.xlane.f32.xlu0 %v2087
    %v2089 = vpop.xlane.xlu0 %2088
    %v2090 = vmax.f32 %v2020, %v2021
    %2091 = vmax.xlane.f32.xlu0 %v2090
    %v2092 = vpop.xlane.xlu0 %2091
    %v2093 = vmax.f32 %v2022, %v2023
    %2094 = vmax.xlane.f32.xlu0 %v2093
    %v2095 = vpop.xlane.xlu0 %2094
    %v2096 = vmax.f32 %v2024, %v2025
    %2097 = vmax.xlane.f32.xlu0 %v2096
    %v2098 = vpop.xlane.xlu0 %2097
    %v2099 = vmax.f32 %v2026, %v2027
    %2100 = vmax.xlane.f32.xlu0 %v2099
    %v2101 = vpop.xlane.xlu0 %2100
    %v2102 = vmax.f32 %v2028, %v2029
    %2103 = vmax.xlane.f32.xlu0 %v2102
    %v2104 = vpop.xlane.xlu0 %2103
    %v2105 = vmax.f32 %v2030, %v2031
    %2106 = vmax.xlane.f32.xlu0 %v2105
    %v2107 = vpop.xlane.xlu0 %2106
    %v2108 = vmax.f32 %v2032, %v2033
    %2109 = vmax.xlane.f32.xlu0 %v2108
    %v2110 = vpop.xlane.xlu0 %2109
    %v2111 = vmax.f32 %v2034, %v2035
    %2112 = vmax.xlane.f32.xlu0 %v2111
    %v2113 = vpop.xlane.xlu0 %2112
    %v2114 = vmax.f32 %v2036, %v2037
    %2115 = vmax.xlane.f32.xlu0 %v2114
    %v2116 = vpop.xlane.xlu0 %2115
    %v2117 = vmax.f32 %v2038, %v2039
    %2118 = vmax.xlane.f32.xlu0 %v2117
    %v2119 = vpop.xlane.xlu0 %2118
    %v2120 = vmax.f32 %v2040, %v2041
    %2121 = vmax.xlane.f32.xlu0 %v2120
    %v2122 = vpop.xlane.xlu0 %2121
    %v2123 = vmax.f32 %v2042, %v2043
    %2124 = vmax.xlane.f32.xlu0 %v2123
    %v2125 = vpop.xlane.xlu0 %2124
    %v2126 = vmax.f32 %v2044, %v2045
    %2127 = vmax.xlane.f32.xlu0 %v2126
    %v2128 = vpop.xlane.xlu0 %2127
    %v2129 = vmax.f32 %v2046, %v2047
    %2130 = vmax.xlane.f32.xlu0 %v2129
    %v2131 = vpop.xlane.xlu0 %2130
    %v2132 = vmax.f32 %v2048, %v2049
    %2133 = vmax.xlane.f32.xlu0 %v2132
    %v2134 = vpop.xlane.xlu0 %2133
    %v2135 = vmax.f32 %v2050, %v2051
    %2136 = vmax.xlane.f32.xlu0 %v2135
    %v2137 = vpop.xlane.xlu0 %2136
    %v2138 = vmax.f32 %v2052, %v2053
    %2139 = vmax.xlane.f32.xlu0 %v2138
    %v2140 = vpop.xlane.xlu0 %2139
    %v2141 = vmax.f32 %v2054, %v2055
    %2142 = vmax.xlane.f32.xlu0 %v2141
    %v2143 = vpop.xlane.xlu0 %2142
    %v2144 = vmax.f32 %v2056, %v2057
    %2145 = vmax.xlane.f32.xlu0 %v2144
    %v2146 = vpop.xlane.xlu0 %2145
    %v2147 = vmax.f32 %v2058, %v2059
    %2148 = vmax.xlane.f32.xlu0 %v2147
    %v2149 = vpop.xlane.xlu0 %2148
    %v2150 = vmax.f32 %v2060, %v2061
    %2151 = vmax.xlane.f32.xlu0 %v2150
    %v2152 = vpop.xlane.xlu0 %2151
    %v2153 = vmax.f32 %v2062, %v2063
    %2154 = vmax.xlane.f32.xlu0 %v2153
    %v2155 = vpop.xlane.xlu0 %2154
    %v2156 = vmax.f32 %v2064, %v2065
    %2157 = vmax.xlane.f32.xlu0 %v2156
    %v2158 = vpop.xlane.xlu0 %2157
    %v2159 = vmax.f32 %v2066, %v2067
    %2160 = vmax.xlane.f32.xlu0 %v2159
    %v2161 = vpop.xlane.xlu0 %2160
    %v2162 = vmax.f32 %v2068, %v2069
    %2163 = vmax.xlane.f32.xlu0 %v2162
    %v2164 = vpop.xlane.xlu0 %2163
    %v2165 = vmax.f32 %v2070, %v2071
    %2166 = vmax.xlane.f32.xlu0 %v2165
    %v2167 = vpop.xlane.xlu0 %2166
    %v2168 = vsub.f32 %v2008, %v2074
    %v2169 = vsub.f32 %v2009, %v2074
    %v2170 = vsub.f32 %v2010, %v2077
    %v2171 = vsub.f32 %v2011, %v2077
    %v2172 = vsub.f32 %v2012, %v2080
    %v2173 = vsub.f32 %v2013, %v2080
    %v2174 = vsub.f32 %v2014, %v2083
    %v2175 = vsub.f32 %v2015, %v2083
    %v2176 = vsub.f32 %v2016, %v2086
    %v2177 = vsub.f32 %v2017, %v2086
    %v2178 = vsub.f32 %v2018, %v2089
    %v2179 = vsub.f32 %v2019, %v2089
    %v2180 = vsub.f32 %v2020, %v2092
    %v2181 = vsub.f32 %v2021, %v2092
    %v2182 = vsub.f32 %v2022, %v2095
    %v2183 = vsub.f32 %v2023, %v2095
    %v2184 = vsub.f32 %v2024, %v2098
    %v2185 = vsub.f32 %v2025, %v2098
    %v2186 = vsub.f32 %v2026, %v2101
    %v2187 = vsub.f32 %v2027, %v2101
    %v2188 = vsub.f32 %v2028, %v2104
    %v2189 = vsub.f32 %v2029, %v2104
    %v2190 = vsub.f32 %v2030, %v2107
    %v2191 = vsub.f32 %v2031, %v2107
    %v2192 = vsub.f32 %v2032, %v2110
    %v2193 = vsub.f32 %v2033, %v2110
    %v2194 = vsub.f32 %v2034, %v2113
    %v2195 = vsub.f32 %v2035, %v2113
    %v2196 = vsub.f32 %v2036, %v2116
    %v2197 = vsub.f32 %v2037, %v2116
    %v2198 = vsub.f32 %v2038, %v2119
    %v2199 = vsub.f32 %v2039, %v2119
    %v2200 = vsub.f32 %v2040, %v2122
    %v2201 = vsub.f32 %v2041, %v2122
    %v2202 = vsub.f32 %v2042, %v2125
    %v2203 = vsub.f32 %v2043, %v2125
    %v2204 = vsub.f32 %v2044, %v2128
    %v2205 = vsub.f32 %v2045, %v2128
    %v2206 = vsub.f32 %v2046, %v2131
    %v2207 = vsub.f32 %v2047, %v2131
    %v2208 = vsub.f32 %v2048, %v2134
    %v2209 = vsub.f32 %v2049, %v2134
    %v2210 = vsub.f32 %v2050, %v2137
    %v2211 = vsub.f32 %v2051, %v2137
    %v2212 = vsub.f32 %v2052, %v2140
    %v2213 = vsub.f32 %v2053, %v2140
    %v2214 = vsub.f32 %v2054, %v2143
    %v2215 = vsub.f32 %v2055, %v2143
    %v2216 = vsub.f32 %v2056, %v2146
    %v2217 = vsub.f32 %v2057, %v2146
    %v2218 = vsub.f32 %v2058, %v2149
    %v2219 = vsub.f32 %v2059, %v2149
    %v2220 = vsub.f32 %v2060, %v2152
    %v2221 = vsub.f32 %v2061, %v2152
    %v2222 = vsub.f32 %v2062, %v2155
    %v2223 = vsub.f32 %v2063, %v2155
    %v2224 = vsub.f32 %v2064, %v2158
    %v2225 = vsub.f32 %v2065, %v2158
    %v2226 = vsub.f32 %v2066, %v2161
    %v2227 = vsub.f32 %v2067, %v2161
    %v2228 = vsub.f32 %v2068, %v2164
    %v2229 = vsub.f32 %v2069, %v2164
    %v2230 = vsub.f32 %v2070, %v2167
    %v2231 = vsub.f32 %v2071, %v2167
    %v2232 = vmul.f32 %v2168, 1.442695
    %v2233 = vpow.pop %v2232
    %v2234 = vmul.f32 %v2169, 1.442695
    %v2235 = vpow.pop %v2234
    %v2236 = vmul.f32 %v2170, 1.442695
    %v2237 = vpow.pop %v2236
    %v2238 = vmul.f32 %v2171, 1.442695
    %v2239 = vpow.pop %v2238
    %v2240 = vmul.f32 %v2172, 1.442695
    %v2241 = vpow.pop %v2240
    %v2242 = vmul.f32 %v2173, 1.442695
    %v2243 = vpow.pop %v2242
    %v2244 = vmul.f32 %v2174, 1.442695
    %v2245 = vpow.pop %v2244
    %v2246 = vmul.f32 %v2175, 1.442695
    %v2247 = vpow.pop %v2246
    %v2248 = vmul.f32 %v2176, 1.442695
    %v2249 = vpow.pop %v2248
    %v2250 = vmul.f32 %v2177, 1.442695
    %v2251 = vpow.pop %v2250
    %v2252 = vmul.f32 %v2178, 1.442695
    %v2253 = vpow.pop %v2252
    %v2254 = vmul.f32 %v2179, 1.442695
    %v2255 = vpow.pop %v2254
    %v2256 = vmul.f32 %v2180, 1.442695
    %v2257 = vpow.pop %v2256
    %v2258 = vmul.f32 %v2181, 1.442695
    %v2259 = vpow.pop %v2258
    %v2260 = vmul.f32 %v2182, 1.442695
    %v2261 = vpow.pop %v2260
    %v2262 = vmul.f32 %v2183, 1.442695
    %v2263 = vpow.pop %v2262
    %v2264 = vmul.f32 %v2184, 1.442695
    %v2265 = vpow.pop %v2264
    %v2266 = vmul.f32 %v2185, 1.442695
    %v2267 = vpow.pop %v2266
    %v2268 = vmul.f32 %v2186, 1.442695
    %v2269 = vpow.pop %v2268
    %v2270 = vmul.f32 %v2187, 1.442695
    %v2271 = vpow.pop %v2270
    %v2272 = vmul.f32 %v2188, 1.442695
    %v2273 = vpow.pop %v2272
    %v2274 = vmul.f32 %v2189, 1.442695
    %v2275 = vpow.pop %v2274
    %v2276 = vmul.f32 %v2190, 1.442695
    %v2277 = vpow.pop %v2276
    %v2278 = vmul.f32 %v2191, 1.442695
    %v2279 = vpow.pop %v2278
    %v2280 = vmul.f32 %v2192, 1.442695
    %v2281 = vpow.pop %v2280
    %v2282 = vmul.f32 %v2193, 1.442695
    %v2283 = vpow.pop %v2282
    %v2284 = vmul.f32 %v2194, 1.442695
    %v2285 = vpow.pop %v2284
    %v2286 = vmul.f32 %v2195, 1.442695
    %v2287 = vpow.pop %v2286
    %v2288 = vmul.f32 %v2196, 1.442695
    %v2289 = vpow.pop %v2288
    %v2290 = vmul.f32 %v2197, 1.442695
    %v2291 = vpow.pop %v2290
    %v2292 = vmul.f32 %v2198, 1.442695
    %v2293 = vpow.pop %v2292
    %v2294 = vmul.f32 %v2199, 1.442695
    %v2295 = vpow.pop %v2294
    %v2296 = vmul.f32 %v2200, 1.442695
    %v2297 = vpow.pop %v2296
    %v2298 = vmul.f32 %v2201, 1.442695
    %v2299 = vpow.pop %v2298
    %v2300 = vmul.f32 %v2202, 1.442695
    %v2301 = vpow.pop %v2300
    %v2302 = vmul.f32 %v2203, 1.442695
    %v2303 = vpow.pop %v2302
    %v2304 = vmul.f32 %v2204, 1.442695
    %v2305 = vpow.pop %v2304
    %v2306 = vmul.f32 %v2205, 1.442695
    %v2307 = vpow.pop %v2306
    %v2308 = vmul.f32 %v2206, 1.442695
    %v2309 = vpow.pop %v2308
    %v2310 = vmul.f32 %v2207, 1.442695
    %v2311 = vpow.pop %v2310
    %v2312 = vmul.f32 %v2208, 1.442695
    %v2313 = vpow.pop %v2312
    %v2314 = vmul.f32 %v2209, 1.442695
    %v2315 = vpow.pop %v2314
    %v2316 = vmul.f32 %v2210, 1.442695
    %v2317 = vpow.pop %v2316
    %v2318 = vmul.f32 %v2211, 1.442695
    %v2319 = vpow.pop %v2318
    %v2320 = vmul.f32 %v2212, 1.442695
    %v2321 = vpow.pop %v2320
    %v2322 = vmul.f32 %v2213, 1.442695
    %v2323 = vpow.pop %v2322
    %v2324 = vmul.f32 %v2214, 1.442695
    %v2325 = vpow.pop %v2324
    %v2326 = vmul.f32 %v2215, 1.442695
    %v2327 = vpow.pop %v2326
    %v2328 = vmul.f32 %v2216, 1.442695
    %v2329 = vpow.pop %v2328
    %v2330 = vmul.f32 %v2217, 1.442695
    %v2331 = vpow.pop %v2330
    %v2332 = vmul.f32 %v2218, 1.442695
    %v2333 = vpow.pop %v2332
    %v2334 = vmul.f32 %v2219, 1.442695
    %v2335 = vpow.pop %v2334
    %v2336 = vmul.f32 %v2220, 1.442695
    %v2337 = vpow.pop %v2336
    %v2338 = vmul.f32 %v2221, 1.442695
    %v2339 = vpow.pop %v2338
    %v2340 = vmul.f32 %v2222, 1.442695
    %v2341 = vpow.pop %v2340
    %v2342 = vmul.f32 %v2223, 1.442695
    %v2343 = vpow.pop %v2342
    %v2344 = vmul.f32 %v2224, 1.442695
    %v2345 = vpow.pop %v2344
    %v2346 = vmul.f32 %v2225, 1.442695
    %v2347 = vpow.pop %v2346
    %v2348 = vmul.f32 %v2226, 1.442695
    %v2349 = vpow.pop %v2348
    %v2350 = vmul.f32 %v2227, 1.442695
    %v2351 = vpow.pop %v2350
    %v2352 = vmul.f32 %v2228, 1.442695
    %v2353 = vpow.pop %v2352
    %v2354 = vmul.f32 %v2229, 1.442695
    %v2355 = vpow.pop %v2354
    %v2356 = vmul.f32 %v2230, 1.442695
    %v2357 = vpow.pop %v2356
    %v2358 = vmul.f32 %v2231, 1.442695
    %v2359 = vpow.pop %v2358
    %v2360 = vadd.f32 %v2233, %v2235
    %2361 = vadd.xlane.f32.xlu0 %v2360
    %v2362 = vpop.xlane.xlu0 %2361
    %v2363 = vadd.f32 %v2237, %v2239
    %2364 = vadd.xlane.f32.xlu0 %v2363
    %v2365 = vpop.xlane.xlu0 %2364
    %v2366 = vadd.f32 %v2241, %v2243
    %2367 = vadd.xlane.f32.xlu0 %v2366
    %v2368 = vpop.xlane.xlu0 %2367
    %v2369 = vadd.f32 %v2245, %v2247
    %2370 = vadd.xlane.f32.xlu0 %v2369
    %v2371 = vpop.xlane.xlu0 %2370
    %v2372 = vadd.f32 %v2249, %v2251
    %2373 = vadd.xlane.f32.xlu0 %v2372
    %v2374 = vpop.xlane.xlu0 %2373
    %v2375 = vadd.f32 %v2253, %v2255
    %2376 = vadd.xlane.f32.xlu0 %v2375
    %v2377 = vpop.xlane.xlu0 %2376
    %v2378 = vadd.f32 %v2257, %v2259
    %2379 = vadd.xlane.f32.xlu0 %v2378
    %v2380 = vpop.xlane.xlu0 %2379
    %v2381 = vadd.f32 %v2261, %v2263
    %2382 = vadd.xlane.f32.xlu0 %v2381
    %v2383 = vpop.xlane.xlu0 %2382
    %v2384 = vadd.f32 %v2265, %v2267
    %2385 = vadd.xlane.f32.xlu0 %v2384
    %v2386 = vpop.xlane.xlu0 %2385
    %v2387 = vadd.f32 %v2269, %v2271
    %2388 = vadd.xlane.f32.xlu0 %v2387
    %v2389 = vpop.xlane.xlu0 %2388
    %v2390 = vadd.f32 %v2273, %v2275
    %2391 = vadd.xlane.f32.xlu0 %v2390
    %v2392 = vpop.xlane.xlu0 %2391
    %v2393 = vadd.f32 %v2277, %v2279
    %2394 = vadd.xlane.f32.xlu0 %v2393
    %v2395 = vpop.xlane.xlu0 %2394
    %v2396 = vadd.f32 %v2281, %v2283
    %2397 = vadd.xlane.f32.xlu0 %v2396
    %v2398 = vpop.xlane.xlu0 %2397
    %v2399 = vadd.f32 %v2285, %v2287
    %2400 = vadd.xlane.f32.xlu0 %v2399
    %v2401 = vpop.xlane.xlu0 %2400
    %v2402 = vadd.f32 %v2289, %v2291
    %2403 = vadd.xlane.f32.xlu0 %v2402
    %v2404 = vpop.xlane.xlu0 %2403
    %v2405 = vadd.f32 %v2293, %v2295
    %2406 = vadd.xlane.f32.xlu0 %v2405
    %v2407 = vpop.xlane.xlu0 %2406
    %v2408 = vadd.f32 %v2297, %v2299
    %2409 = vadd.xlane.f32.xlu0 %v2408
    %v2410 = vpop.xlane.xlu0 %2409
    %v2411 = vadd.f32 %v2301, %v2303
    %2412 = vadd.xlane.f32.xlu0 %v2411
    %v2413 = vpop.xlane.xlu0 %2412
    %v2414 = vadd.f32 %v2305, %v2307
    %2415 = vadd.xlane.f32.xlu0 %v2414
    %v2416 = vpop.xlane.xlu0 %2415
    %v2417 = vadd.f32 %v2309, %v2311
    %2418 = vadd.xlane.f32.xlu0 %v2417
    %v2419 = vpop.xlane.xlu0 %2418
    %v2420 = vadd.f32 %v2313, %v2315
    %2421 = vadd.xlane.f32.xlu0 %v2420
    %v2422 = vpop.xlane.xlu0 %2421
    %v2423 = vadd.f32 %v2317, %v2319
    %2424 = vadd.xlane.f32.xlu0 %v2423
    %v2425 = vpop.xlane.xlu0 %2424
    %v2426 = vadd.f32 %v2321, %v2323
    %2427 = vadd.xlane.f32.xlu0 %v2426
    %v2428 = vpop.xlane.xlu0 %2427
    %v2429 = vadd.f32 %v2325, %v2327
    %2430 = vadd.xlane.f32.xlu0 %v2429
    %v2431 = vpop.xlane.xlu0 %2430
    %v2432 = vadd.f32 %v2329, %v2331
    %2433 = vadd.xlane.f32.xlu0 %v2432
    %v2434 = vpop.xlane.xlu0 %2433
    %v2435 = vadd.f32 %v2333, %v2335
    %2436 = vadd.xlane.f32.xlu0 %v2435
    %v2437 = vpop.xlane.xlu0 %2436
    %v2438 = vadd.f32 %v2337, %v2339
    %2439 = vadd.xlane.f32.xlu0 %v2438
    %v2440 = vpop.xlane.xlu0 %2439
    %v2441 = vadd.f32 %v2341, %v2343
    %2442 = vadd.xlane.f32.xlu0 %v2441
    %v2443 = vpop.xlane.xlu0 %2442
    %v2444 = vadd.f32 %v2345, %v2347
    %2445 = vadd.xlane.f32.xlu0 %v2444
    %v2446 = vpop.xlane.xlu0 %2445
    %v2447 = vadd.f32 %v2349, %v2351
    %2448 = vadd.xlane.f32.xlu0 %v2447
    %v2449 = vpop.xlane.xlu0 %2448
    %v2450 = vadd.f32 %v2353, %v2355
    %2451 = vadd.xlane.f32.xlu0 %v2450
    %v2452 = vpop.xlane.xlu0 %2451
    %v2453 = vadd.f32 %v2357, %v2359
    %2454 = vadd.xlane.f32.xlu0 %v2453
    %v2455 = vpop.xlane.xlu0 %2454
    %v2456 = vrcp.pop %v2362
    %v2457 = vrcp.pop %v2365
    %v2458 = vrcp.pop %v2368
    %v2459 = vrcp.pop %v2371
    %v2460 = vrcp.pop %v2374
    %v2461 = vrcp.pop %v2377
    %v2462 = vrcp.pop %v2380
    %v2463 = vrcp.pop %v2383
    %v2464 = vrcp.pop %v2386
    %v2465 = vrcp.pop %v2389
    %v2466 = vrcp.pop %v2392
    %v2467 = vrcp.pop %v2395
    %v2468 = vrcp.pop %v2398
    %v2469 = vrcp.pop %v2401
    %v2470 = vrcp.pop %v2404
    %v2471 = vrcp.pop %v2407
    %v2472 = vrcp.pop %v2410
    %v2473 = vrcp.pop %v2413
    %v2474 = vrcp.pop %v2416
    %v2475 = vrcp.pop %v2419
    %v2476 = vrcp.pop %v2422
    %v2477 = vrcp.pop %v2425
    %v2478 = vrcp.pop %v2428
    %v2479 = vrcp.pop %v2431
    %v2480 = vrcp.pop %v2434
    %v2481 = vrcp.pop %v2437
    %v2482 = vrcp.pop %v2440
    %v2483 = vrcp.pop %v2443
    %v2484 = vrcp.pop %v2446
    %v2485 = vrcp.pop %v2449
    %v2486 = vrcp.pop %v2452
    %v2487 = vrcp.pop %v2455
    %v2488 = vmul.f32 %v2233, %v2456
    %v2489 = vmul.f32 %v2235, %v2456
    %v2490 = vmul.f32 %v2237, %v2457
    %v2491 = vmul.f32 %v2239, %v2457
    %v2492 = vmul.f32 %v2241, %v2458
    %v2493 = vmul.f32 %v2243, %v2458
    %v2494 = vmul.f32 %v2245, %v2459
    %v2495 = vmul.f32 %v2247, %v2459
    %v2496 = vmul.f32 %v2249, %v2460
    %v2497 = vmul.f32 %v2251, %v2460
    %v2498 = vmul.f32 %v2253, %v2461
    %v2499 = vmul.f32 %v2255, %v2461
    %v2500 = vmul.f32 %v2257, %v2462
    %v2501 = vmul.f32 %v2259, %v2462
    %v2502 = vmul.f32 %v2261, %v2463
    %v2503 = vmul.f32 %v2263, %v2463
    %v2504 = vmul.f32 %v2265, %v2464
    %v2505 = vmul.f32 %v2267, %v2464
    %v2506 = vmul.f32 %v2269, %v2465
    %v2507 = vmul.f32 %v2271, %v2465
    %v2508 = vmul.f32 %v2273, %v2466
    %v2509 = vmul.f32 %v2275, %v2466
    %v2510 = vmul.f32 %v2277, %v2467
    %v2511 = vmul.f32 %v2279, %v2467
    %v2512 = vmul.f32 %v2281, %v2468
    %v2513 = vmul.f32 %v2283, %v2468
    %v2514 = vmul.f32 %v2285, %v2469
    %v2515 = vmul.f32 %v2287, %v2469
    %v2516 = vmul.f32 %v2289, %v2470
    %v2517 = vmul.f32 %v2291, %v2470
    %v2518 = vmul.f32 %v2293, %v2471
    %v2519 = vmul.f32 %v2295, %v2471
    %v2520 = vmul.f32 %v2297, %v2472
    %v2521 = vmul.f32 %v2299, %v2472
    %v2522 = vmul.f32 %v2301, %v2473
    %v2523 = vmul.f32 %v2303, %v2473
    %v2524 = vmul.f32 %v2305, %v2474
    %v2525 = vmul.f32 %v2307, %v2474
    %v2526 = vmul.f32 %v2309, %v2475
    %v2527 = vmul.f32 %v2311, %v2475
    %v2528 = vmul.f32 %v2313, %v2476
    %v2529 = vmul.f32 %v2315, %v2476
    %v2530 = vmul.f32 %v2317, %v2477
    %v2531 = vmul.f32 %v2319, %v2477
    %v2532 = vmul.f32 %v2321, %v2478
    %v2533 = vmul.f32 %v2323, %v2478
    %v2534 = vmul.f32 %v2325, %v2479
    %v2535 = vmul.f32 %v2327, %v2479
    %v2536 = vmul.f32 %v2329, %v2480
    %v2537 = vmul.f32 %v2331, %v2480
    %v2538 = vmul.f32 %v2333, %v2481
    %v2539 = vmul.f32 %v2335, %v2481
    %v2540 = vmul.f32 %v2337, %v2482
    %v2541 = vmul.f32 %v2339, %v2482
    %v2542 = vmul.f32 %v2341, %v2483
    %v2543 = vmul.f32 %v2343, %v2483
    %v2544 = vmul.f32 %v2345, %v2484
    %v2545 = vmul.f32 %v2347, %v2484
    %v2546 = vmul.f32 %v2349, %v2485
    %v2547 = vmul.f32 %v2351, %v2485
    %v2548 = vmul.f32 %v2353, %v2486
    %v2549 = vmul.f32 %v2355, %v2486
    %v2550 = vmul.f32 %v2357, %v2487
    %v2551 = vmul.f32 %v2359, %v2487
    %v2552 = vpack.c.bf16 %v2490, %v2488
    %v2553 = vpack.c.bf16 %v2491, %v2489
    %v2554 = vpack.c.bf16 %v2494, %v2492
    %v2555 = vpack.c.bf16 %v2495, %v2493
    %v2556 = vpack.c.bf16 %v2498, %v2496
    %v2557 = vpack.c.bf16 %v2499, %v2497
    %v2558 = vpack.c.bf16 %v2502, %v2500
    %v2559 = vpack.c.bf16 %v2503, %v2501
    %v2560 = vpack.c.bf16 %v2506, %v2504
    %v2561 = vpack.c.bf16 %v2507, %v2505
    %v2562 = vpack.c.bf16 %v2510, %v2508
    %v2563 = vpack.c.bf16 %v2511, %v2509
    %v2564 = vpack.c.bf16 %v2514, %v2512
    %v2565 = vpack.c.bf16 %v2515, %v2513
    %v2566 = vpack.c.bf16 %v2518, %v2516
    %v2567 = vpack.c.bf16 %v2519, %v2517
    %v2568 = vpack.c.bf16 %v2522, %v2520
    %v2569 = vpack.c.bf16 %v2523, %v2521
    %v2570 = vpack.c.bf16 %v2526, %v2524
    %v2571 = vpack.c.bf16 %v2527, %v2525
    %v2572 = vpack.c.bf16 %v2530, %v2528
    %v2573 = vpack.c.bf16 %v2531, %v2529
    %v2574 = vpack.c.bf16 %v2534, %v2532
    %v2575 = vpack.c.bf16 %v2535, %v2533
    %v2576 = vpack.c.bf16 %v2538, %v2536
    %v2577 = vpack.c.bf16 %v2539, %v2537
    %v2578 = vpack.c.bf16 %v2542, %v2540
    %v2579 = vpack.c.bf16 %v2543, %v2541
    %v2580 = vpack.c.bf16 %v2546, %v2544
    %v2581 = vpack.c.bf16 %v2547, %v2545
    %v2582 = vpack.c.bf16 %v2550, %v2548
    %v2583 = vpack.c.bf16 %v2551, %v2549
    %v2584 = vpack.c.bf16 %v1497, %v1495
    %v2585 = vpack.c.bf16 %v1502, %v1500
    %v2586 = vpack.c.bf16 %v1507, %v1505
    %v2587 = vpack.c.bf16 %v1512, %v1510
    %v2588 = vpack.c.bf16 %v1517, %v1515
    %v2589 = vpack.c.bf16 %v1522, %v1520
    %v2590 = vpack.c.bf16 %v1527, %v1525
    %v2591 = vpack.c.bf16 %v1532, %v1530
    %v2592 = vpack.c.bf16 %v1537, %v1535
    %v2593 = vpack.c.bf16 %v1542, %v1540
    %v2594 = vpack.c.bf16 %v1547, %v1545
    %v2595 = vpack.c.bf16 %v1552, %v1550
    %v2596 = vpack.c.bf16 %v1557, %v1555
    %v2597 = vpack.c.bf16 %v1562, %v1560
    %v2598 = vpack.c.bf16 %v1567, %v1565
    %v2599 = vpack.c.bf16 %v1572, %v1570
    %2600 = vmatpush.bf16.msra.mxu0 %v2591
    %2601 = vmatpush.bf16.msra.mxu0 %v2590
    %2602 = vmatpush.bf16.msra.mxu0 %v2589
    %2603 = vmatpush.bf16.msra.mxu0 %v2588
    %2604 = vmatpush.bf16.msra.mxu0 %v2587
    %2605 = vmatpush.bf16.msra.mxu0 %v2586
    %2606 = vmatpush.bf16.msra.mxu0 %v2585
    %2607 = vmatpush.bf16.msra.mxu0 %v2584
    %2608 = vmatmul.bf16.gmra.mxu0 %v2552
    %v2609 = vpop.f32.mrf.mxu0
    %v2610 = vadd.f32 0.0, %v2609
    %v2611 = vpop.f32.mrf.mxu0
    %v2612 = vadd.f32 0.0, %v2611
    %2613 = vmatmul.bf16.gmra.mxu0 %v2554
    %v2614 = vpop.f32.mrf.mxu0
    %v2615 = vadd.f32 0.0, %v2614
    %v2616 = vpop.f32.mrf.mxu0
    %v2617 = vadd.f32 0.0, %v2616
    %2618 = vmatmul.bf16.gmra.mxu0 %v2556
    %v2619 = vpop.f32.mrf.mxu0
    %v2620 = vadd.f32 0.0, %v2619
    %v2621 = vpop.f32.mrf.mxu0
    %v2622 = vadd.f32 0.0, %v2621
    %2623 = vmatmul.bf16.gmra.mxu0 %v2558
    %v2624 = vpop.f32.mrf.mxu0
    %v2625 = vadd.f32 0.0, %v2624
    %v2626 = vpop.f32.mrf.mxu0
    %v2627 = vadd.f32 0.0, %v2626
    %2628 = vmatmul.bf16.gmra.mxu0 %v2560
    %v2629 = vpop.f32.mrf.mxu0
    %v2630 = vadd.f32 0.0, %v2629
    %v2631 = vpop.f32.mrf.mxu0
    %v2632 = vadd.f32 0.0, %v2631
    %2633 = vmatmul.bf16.gmra.mxu0 %v2562
    %v2634 = vpop.f32.mrf.mxu0
    %v2635 = vadd.f32 0.0, %v2634
    %v2636 = vpop.f32.mrf.mxu0
    %v2637 = vadd.f32 0.0, %v2636
    %2638 = vmatmul.bf16.gmra.mxu0 %v2564
    %v2639 = vpop.f32.mrf.mxu0
    %v2640 = vadd.f32 0.0, %v2639
    %v2641 = vpop.f32.mrf.mxu0
    %v2642 = vadd.f32 0.0, %v2641
    %2643 = vmatmul.bf16.gmra.mxu0 %v2566
    %v2644 = vpop.f32.mrf.mxu0
    %v2645 = vadd.f32 0.0, %v2644
    %v2646 = vpop.f32.mrf.mxu0
    %v2647 = vadd.f32 0.0, %v2646
    %2648 = vmatmul.bf16.gmra.mxu0 %v2568
    %v2649 = vpop.f32.mrf.mxu0
    %v2650 = vadd.f32 0.0, %v2649
    %v2651 = vpop.f32.mrf.mxu0
    %v2652 = vadd.f32 0.0, %v2651
    %2653 = vmatmul.bf16.gmra.mxu0 %v2570
    %v2654 = vpop.f32.mrf.mxu0
    %v2655 = vadd.f32 0.0, %v2654
    %v2656 = vpop.f32.mrf.mxu0
    %v2657 = vadd.f32 0.0, %v2656
    %2658 = vmatmul.bf16.gmra.mxu0 %v2572
    %v2659 = vpop.f32.mrf.mxu0
    %v2660 = vadd.f32 0.0, %v2659
    %v2661 = vpop.f32.mrf.mxu0
    %v2662 = vadd.f32 0.0, %v2661
    %2663 = vmatmul.bf16.gmra.mxu0 %v2574
    %v2664 = vpop.f32.mrf.mxu0
    %v2665 = vadd.f32 0.0, %v2664
    %v2666 = vpop.f32.mrf.mxu0
    %v2667 = vadd.f32 0.0, %v2666
    %2668 = vmatmul.bf16.gmra.mxu0 %v2576
    %v2669 = vpop.f32.mrf.mxu0
    %v2670 = vadd.f32 0.0, %v2669
    %v2671 = vpop.f32.mrf.mxu0
    %v2672 = vadd.f32 0.0, %v2671
    %2673 = vmatmul.bf16.gmra.mxu0 %v2578
    %v2674 = vpop.f32.mrf.mxu0
    %v2675 = vadd.f32 0.0, %v2674
    %v2676 = vpop.f32.mrf.mxu0
    %v2677 = vadd.f32 0.0, %v2676
    %2678 = vmatmul.bf16.gmra.mxu0 %v2580
    %v2679 = vpop.f32.mrf.mxu0
    %v2680 = vadd.f32 0.0, %v2679
    %v2681 = vpop.f32.mrf.mxu0
    %v2682 = vadd.f32 0.0, %v2681
    %2683 = vmatmul.bf16.gmra.mxu0 %v2582
    %v2684 = vpop.f32.mrf.mxu0
    %v2685 = vadd.f32 0.0, %v2684
    %v2686 = vpop.f32.mrf.mxu0
    %v2687 = vadd.f32 0.0, %v2686
    %2688 = vdwg.mxu0
    %2689 = vmatpush.bf16.msra.mxu0 %v2599
    %2690 = vmatpush.bf16.msra.mxu0 %v2598
    %2691 = vmatpush.bf16.msra.mxu0 %v2597
    %2692 = vmatpush.bf16.msra.mxu0 %v2596
    %2693 = vmatpush.bf16.msra.mxu0 %v2595
    %2694 = vmatpush.bf16.msra.mxu0 %v2594
    %2695 = vmatpush.bf16.msra.mxu0 %v2593
    %2696 = vmatpush.bf16.msra.mxu0 %v2592
    %2697 = vmatmul.bf16.gmra.mxu0 %v2553
    %v2698 = vpop.f32.mrf.mxu0
    %v2699 = vadd.f32 %v2610, %v2698
    %v2700 = vpop.f32.mrf.mxu0
    %v2701 = vadd.f32 %v2612, %v2700
    %2702 = vmatmul.bf16.gmra.mxu0 %v2555
    %v2703 = vpop.f32.mrf.mxu0
    %v2704 = vadd.f32 %v2615, %v2703
    %v2705 = vpop.f32.mrf.mxu0
    %v2706 = vadd.f32 %v2617, %v2705
    %2707 = vmatmul.bf16.gmra.mxu0 %v2557
    %v2708 = vpop.f32.mrf.mxu0
    %v2709 = vadd.f32 %v2620, %v2708
    %v2710 = vpop.f32.mrf.mxu0
    %v2711 = vadd.f32 %v2622, %v2710
    %2712 = vmatmul.bf16.gmra.mxu0 %v2559
    %v2713 = vpop.f32.mrf.mxu0
    %v2714 = vadd.f32 %v2625, %v2713
    %v2715 = vpop.f32.mrf.mxu0
    %v2716 = vadd.f32 %v2627, %v2715
    %2717 = vmatmul.bf16.gmra.mxu0 %v2561
    %v2718 = vpop.f32.mrf.mxu0
    %v2719 = vadd.f32 %v2630, %v2718
    %v2720 = vpop.f32.mrf.mxu0
    %v2721 = vadd.f32 %v2632, %v2720
    %2722 = vmatmul.bf16.gmra.mxu0 %v2563
    %v2723 = vpop.f32.mrf.mxu0
    %v2724 = vadd.f32 %v2635, %v2723
    %v2725 = vpop.f32.mrf.mxu0
    %v2726 = vadd.f32 %v2637, %v2725
    %2727 = vmatmul.bf16.gmra.mxu0 %v2565
    %v2728 = vpop.f32.mrf.mxu0
    %v2729 = vadd.f32 %v2640, %v2728
    %v2730 = vpop.f32.mrf.mxu0
    %v2731 = vadd.f32 %v2642, %v2730
    %2732 = vmatmul.bf16.gmra.mxu0 %v2567
    %v2733 = vpop.f32.mrf.mxu0
    %v2734 = vadd.f32 %v2645, %v2733
    %v2735 = vpop.f32.mrf.mxu0
    %v2736 = vadd.f32 %v2647, %v2735
    %2737 = vmatmul.bf16.gmra.mxu0 %v2569
    %v2738 = vpop.f32.mrf.mxu0
    %v2739 = vadd.f32 %v2650, %v2738
    %v2740 = vpop.f32.mrf.mxu0
    %v2741 = vadd.f32 %v2652, %v2740
    %2742 = vmatmul.bf16.gmra.mxu0 %v2571
    %v2743 = vpop.f32.mrf.mxu0
    %v2744 = vadd.f32 %v2655, %v2743
    %v2745 = vpop.f32.mrf.mxu0
    %v2746 = vadd.f32 %v2657, %v2745
    %2747 = vmatmul.bf16.gmra.mxu0 %v2573
    %v2748 = vpop.f32.mrf.mxu0
    %v2749 = vadd.f32 %v2660, %v2748
    %v2750 = vpop.f32.mrf.mxu0
    %v2751 = vadd.f32 %v2662, %v2750
    %2752 = vmatmul.bf16.gmra.mxu0 %v2575
    %v2753 = vpop.f32.mrf.mxu0
    %v2754 = vadd.f32 %v2665, %v2753
    %v2755 = vpop.f32.mrf.mxu0
    %v2756 = vadd.f32 %v2667, %v2755
    %2757 = vmatmul.bf16.gmra.mxu0 %v2577
    %v2758 = vpop.f32.mrf.mxu0
    %v2759 = vadd.f32 %v2670, %v2758
    %v2760 = vpop.f32.mrf.mxu0
    %v2761 = vadd.f32 %v2672, %v2760
    %2762 = vmatmul.bf16.gmra.mxu0 %v2579
    %v2763 = vpop.f32.mrf.mxu0
    %v2764 = vadd.f32 %v2675, %v2763
    %v2765 = vpop.f32.mrf.mxu0
    %v2766 = vadd.f32 %v2677, %v2765
    %2767 = vmatmul.bf16.gmra.mxu0 %v2581
    %v2768 = vpop.f32.mrf.mxu0
    %v2769 = vadd.f32 %v2680, %v2768
    %v2770 = vpop.f32.mrf.mxu0
    %v2771 = vadd.f32 %v2682, %v2770
    %2772 = vmatmul.bf16.gmra.mxu0 %v2583
    %v2773 = vpop.f32.mrf.mxu0
    %v2774 = vadd.f32 %v2685, %v2773
    %v2775 = vpop.f32.mrf.mxu0
    %v2776 = vadd.f32 %v2687, %v2775
    %2777 = vdwg.mxu0
    %v2778 = vpack.c.bf16 %v2701, %v2699
    %v2779 = vpack.c.bf16 %v2706, %v2704
    %v2780 = vpack.c.bf16 %v2711, %v2709
    %v2781 = vpack.c.bf16 %v2716, %v2714
    %v2782 = vpack.c.bf16 %v2721, %v2719
    %v2783 = vpack.c.bf16 %v2726, %v2724
    %v2784 = vpack.c.bf16 %v2731, %v2729
    %v2785 = vpack.c.bf16 %v2736, %v2734
    %v2786 = vpack.c.bf16 %v2741, %v2739
    %v2787 = vpack.c.bf16 %v2746, %v2744
    %v2788 = vpack.c.bf16 %v2751, %v2749
    %v2789 = vpack.c.bf16 %v2756, %v2754
    %v2790 = vpack.c.bf16 %v2761, %v2759
    %v2791 = vpack.c.bf16 %v2766, %v2764
    %v2792 = vpack.c.bf16 %v2771, %v2769
    %v2793 = vpack.c.bf16 %v2776, %v2774
    %v2794 = vld [vmem:[%s2 + $0x30] sm:$0xf]
    %v2795 = vld [vmem:[%s2 + $0x34] sm:$0xf]
    %v2796 = vld [vmem:[%s2 + $0x38] sm:$0xf]
    %v2797 = vld [vmem:[%s2 + $0x3c] sm:$0xf]
    %v2798 = vld [vmem:[%s3 + $0x5] sm:$0x1]
    %v2799 = vperm.slane %v2798, 0
    %v2804 = vunpack.c.l.b16 %v2794
    %v2805 = vunpack.c.l.b16 %v2795
    %v2806 = vunpack.c.l.b16 %v2796
    %v2807 = vunpack.c.l.b16 %v2797
    %v2808 = vpack.c.b16 %v2805, %v2804
    %v2809 = vpack.c.b16 %v2807, %v2806
    %v2813 = vsel %vm411, %v2778, 0
    %v2816 = vsel %vm411, %v2779, 0
    %v2819 = vsel %vm411, %v2780, 0
    %v2822 = vsel %vm411, %v2781, 0
    %v2825 = vsel %vm411, %v2782, 0
    %v2828 = vsel %vm411, %v2783, 0
    %v2831 = vsel %vm411, %v2784, 0
    %v2834 = vsel %vm411, %v2785, 0
    %v2837 = vsel %vm411, %v2786, 0
    %v2840 = vsel %vm411, %v2787, 0
    %v2843 = vsel %vm411, %v2788, 0
    %v2846 = vsel %vm411, %v2789, 0
    %v2849 = vsel %vm411, %v2790, 0
    %v2852 = vsel %vm411, %v2791, 0
    %v2855 = vsel %vm411, %v2792, 0
    %v2858 = vsel %vm411, %v2793, 0
    %2860 = vmatpush.bf16.msra.mxu0 0
    %2861 = vmatpush.bf16.msra.mxu0 0
    %2862 = vmatpush.bf16.msra.mxu0 0
    %2863 = vmatpush.bf16.msra.mxu0 0
    %2864 = vmatpush.bf16.msra.mxu0 0
    %2865 = vmatpush.bf16.msra.mxu0 0
    %2866 = vmatpush.bf16.msra.mxu0 %v2809
    %2867 = vmatpush.bf16.msra.mxu0 %v2808
    %2868 = vmatmul.bf16.gmra.mxu0 %v2813
    %v2869 = vpop.f32.mrf.mxu0
    %v2870 = vadd.f32 %v2799, %v2869
    %v2871 = vpop.f32.mrf.mxu0
    %v2872 = vadd.f32 %v2799, %v2871
    %2873 = vmatmul.bf16.gmra.mxu0 %v2816
    %v2874 = vpop.f32.mrf.mxu0
    %v2875 = vadd.f32 %v2799, %v2874
    %v2876 = vpop.f32.mrf.mxu0
    %v2877 = vadd.f32 %v2799, %v2876
    %2878 = vmatmul.bf16.gmra.mxu0 %v2819
    %v2879 = vpop.f32.mrf.mxu0
    %v2880 = vadd.f32 %v2799, %v2879
    %v2881 = vpop.f32.mrf.mxu0
    %v2882 = vadd.f32 %v2799, %v2881
    %2883 = vmatmul.bf16.gmra.mxu0 %v2822
    %v2884 = vpop.f32.mrf.mxu0
    %v2885 = vadd.f32 %v2799, %v2884
    %v2886 = vpop.f32.mrf.mxu0
    %v2887 = vadd.f32 %v2799, %v2886
    %2888 = vmatmul.bf16.gmra.mxu0 %v2825
    %v2889 = vpop.f32.mrf.mxu0
    %v2890 = vadd.f32 %v2799, %v2889
    %v2891 = vpop.f32.mrf.mxu0
    %v2892 = vadd.f32 %v2799, %v2891
    %2893 = vmatmul.bf16.gmra.mxu0 %v2828
    %v2894 = vpop.f32.mrf.mxu0
    %v2895 = vadd.f32 %v2799, %v2894
    %v2896 = vpop.f32.mrf.mxu0
    %v2897 = vadd.f32 %v2799, %v2896
    %2898 = vmatmul.bf16.gmra.mxu0 %v2831
    %v2899 = vpop.f32.mrf.mxu0
    %v2900 = vadd.f32 %v2799, %v2899
    %v2901 = vpop.f32.mrf.mxu0
    %v2902 = vadd.f32 %v2799, %v2901
    %2903 = vmatmul.bf16.gmra.mxu0 %v2834
    %v2904 = vpop.f32.mrf.mxu0
    %v2905 = vadd.f32 %v2799, %v2904
    %v2906 = vpop.f32.mrf.mxu0
    %v2907 = vadd.f32 %v2799, %v2906
    %2908 = vmatmul.bf16.gmra.mxu0 %v2837
    %v2909 = vpop.f32.mrf.mxu0
    %v2910 = vadd.f32 %v2799, %v2909
    %v2911 = vpop.f32.mrf.mxu0
    %v2912 = vadd.f32 %v2799, %v2911
    %2913 = vmatmul.bf16.gmra.mxu0 %v2840
    %v2914 = vpop.f32.mrf.mxu0
    %v2915 = vadd.f32 %v2799, %v2914
    %v2916 = vpop.f32.mrf.mxu0
    %v2917 = vadd.f32 %v2799, %v2916
    %2918 = vmatmul.bf16.gmra.mxu0 %v2843
    %v2919 = vpop.f32.mrf.mxu0
    %v2920 = vadd.f32 %v2799, %v2919
    %v2921 = vpop.f32.mrf.mxu0
    %v2922 = vadd.f32 %v2799, %v2921
    %2923 = vmatmul.bf16.gmra.mxu0 %v2846
    %v2924 = vpop.f32.mrf.mxu0
    %v2925 = vadd.f32 %v2799, %v2924
    %v2926 = vpop.f32.mrf.mxu0
    %v2927 = vadd.f32 %v2799, %v2926
    %2928 = vmatmul.bf16.gmra.mxu0 %v2849
    %v2929 = vpop.f32.mrf.mxu0
    %v2930 = vadd.f32 %v2799, %v2929
    %v2931 = vpop.f32.mrf.mxu0
    %v2932 = vadd.f32 %v2799, %v2931
    %2933 = vmatmul.bf16.gmra.mxu0 %v2852
    %v2934 = vpop.f32.mrf.mxu0
    %v2935 = vadd.f32 %v2799, %v2934
    %v2936 = vpop.f32.mrf.mxu0
    %v2937 = vadd.f32 %v2799, %v2936
    %2938 = vmatmul.bf16.gmra.mxu0 %v2855
    %v2939 = vpop.f32.mrf.mxu0
    %v2940 = vadd.f32 %v2799, %v2939
    %v2941 = vpop.f32.mrf.mxu0
    %v2942 = vadd.f32 %v2799, %v2941
    %2943 = vmatmul.bf16.gmra.mxu0 %v2858
    %v2944 = vpop.f32.mrf.mxu0
    %v2945 = vadd.f32 %v2799, %v2944
    %v2946 = vpop.f32.mrf.mxu0
    %v2947 = vadd.f32 %v2799, %v2946
    %2948 = vdwg.mxu0
    %v2949 = vadd.f32 %v1157, %v2870
    %v2950 = vadd.f32 %v1158, %v2872
    %v2951 = vadd.f32 %v1159, %v2875
    %v2952 = vadd.f32 %v1160, %v2877
    %v2953 = vadd.f32 %v1161, %v2880
    %v2954 = vadd.f32 %v1162, %v2882
    %v2955 = vadd.f32 %v1163, %v2885
    %v2956 = vadd.f32 %v1164, %v2887
    %v2957 = vadd.f32 %v1165, %v2890
    %v2958 = vadd.f32 %v1166, %v2892
    %v2959 = vadd.f32 %v1167, %v2895
    %v2960 = vadd.f32 %v1168, %v2897
    %v2961 = vadd.f32 %v1169, %v2900
    %v2962 = vadd.f32 %v1170, %v2902
    %v2963 = vadd.f32 %v1171, %v2905
    %v2964 = vadd.f32 %v1172, %v2907
    %v2965 = vadd.f32 %v1173, %v2910
    %v2966 = vadd.f32 %v1174, %v2912
    %v2967 = vadd.f32 %v1175, %v2915
    %v2968 = vadd.f32 %v1176, %v2917
    %v2969 = vadd.f32 %v1177, %v2920
    %v2970 = vadd.f32 %v1178, %v2922
    %v2971 = vadd.f32 %v1179, %v2925
    %v2972 = vadd.f32 %v1180, %v2927
    %v2973 = vadd.f32 %v1181, %v2930
    %v2974 = vadd.f32 %v1182, %v2932
    %v2975 = vadd.f32 %v1183, %v2935
    %v2976 = vadd.f32 %v1184, %v2937
    %v2977 = vadd.f32 %v1185, %v2940
    %v2978 = vadd.f32 %v1186, %v2942
    %v2979 = vadd.f32 %v1187, %v2945
    %v2980 = vadd.f32 %v1188, %v2947
    %v2981 = vld [vmem:[%s3 + $0x6] sm:$0x1]
    %v2982 = vld [vmem:[%s3 + $0x7] sm:$0x1]
    %v2983 = vsel %vm411, %v2949, 0.0
    %2984 = vadd.xlane.f32.xlu0 %v2983
    %v2985 = vpop.xlane.xlu0 %2984
    %v2986 = vsel %vm411, %v2950, 0.0
    %2987 = vadd.xlane.f32.xlu0 %v2986
    %v2988 = vpop.xlane.xlu0 %2987
    %v2989 = vsel %vm411, %v2951, 0.0
    %2990 = vadd.xlane.f32.xlu0 %v2989
    %v2991 = vpop.xlane.xlu0 %2990
    %v2992 = vsel %vm411, %v2952, 0.0
    %2993 = vadd.xlane.f32.xlu0 %v2992
    %v2994 = vpop.xlane.xlu0 %2993
    %v2995 = vsel %vm411, %v2953, 0.0
    %2996 = vadd.xlane.f32.xlu0 %v2995
    %v2997 = vpop.xlane.xlu0 %2996
    %v2998 = vsel %vm411, %v2954, 0.0
    %2999 = vadd.xlane.f32.xlu0 %v2998
    %v3000 = vpop.xlane.xlu0 %2999
    %v3001 = vsel %vm411, %v2955, 0.0
    %3002 = vadd.xlane.f32.xlu0 %v3001
    %v3003 = vpop.xlane.xlu0 %3002
    %v3004 = vsel %vm411, %v2956, 0.0
    %3005 = vadd.xlane.f32.xlu0 %v3004
    %v3006 = vpop.xlane.xlu0 %3005
    %v3007 = vsel %vm411, %v2957, 0.0
    %3008 = vadd.xlane.f32.xlu0 %v3007
    %v3009 = vpop.xlane.xlu0 %3008
    %v3010 = vsel %vm411, %v2958, 0.0
    %3011 = vadd.xlane.f32.xlu0 %v3010
    %v3012 = vpop.xlane.xlu0 %3011
    %v3013 = vsel %vm411, %v2959, 0.0
    %3014 = vadd.xlane.f32.xlu0 %v3013
    %v3015 = vpop.xlane.xlu0 %3014
    %v3016 = vsel %vm411, %v2960, 0.0
    %3017 = vadd.xlane.f32.xlu0 %v3016
    %v3018 = vpop.xlane.xlu0 %3017
    %v3019 = vsel %vm411, %v2961, 0.0
    %3020 = vadd.xlane.f32.xlu0 %v3019
    %v3021 = vpop.xlane.xlu0 %3020
    %v3022 = vsel %vm411, %v2962, 0.0
    %3023 = vadd.xlane.f32.xlu0 %v3022
    %v3024 = vpop.xlane.xlu0 %3023
    %v3025 = vsel %vm411, %v2963, 0.0
    %3026 = vadd.xlane.f32.xlu0 %v3025
    %v3027 = vpop.xlane.xlu0 %3026
    %v3028 = vsel %vm411, %v2964, 0.0
    %3029 = vadd.xlane.f32.xlu0 %v3028
    %v3030 = vpop.xlane.xlu0 %3029
    %v3031 = vsel %vm411, %v2965, 0.0
    %3032 = vadd.xlane.f32.xlu0 %v3031
    %v3033 = vpop.xlane.xlu0 %3032
    %v3034 = vsel %vm411, %v2966, 0.0
    %3035 = vadd.xlane.f32.xlu0 %v3034
    %v3036 = vpop.xlane.xlu0 %3035
    %v3037 = vsel %vm411, %v2967, 0.0
    %3038 = vadd.xlane.f32.xlu0 %v3037
    %v3039 = vpop.xlane.xlu0 %3038
    %v3040 = vsel %vm411, %v2968, 0.0
    %3041 = vadd.xlane.f32.xlu0 %v3040
    %v3042 = vpop.xlane.xlu0 %3041
    %v3043 = vsel %vm411, %v2969, 0.0
    %3044 = vadd.xlane.f32.xlu0 %v3043
    %v3045 = vpop.xlane.xlu0 %3044
    %v3046 = vsel %vm411, %v2970, 0.0
    %3047 = vadd.xlane.f32.xlu0 %v3046
    %v3048 = vpop.xlane.xlu0 %3047
    %v3049 = vsel %vm411, %v2971, 0.0
    %3050 = vadd.xlane.f32.xlu0 %v3049
    %v3051 = vpop.xlane.xlu0 %3050
    %v3052 = vsel %vm411, %v2972, 0.0
    %3053 = vadd.xlane.f32.xlu0 %v3052
    %v3054 = vpop.xlane.xlu0 %3053
    %v3055 = vsel %vm411, %v2973, 0.0
    %3056 = vadd.xlane.f32.xlu0 %v3055
    %v3057 = vpop.xlane.xlu0 %3056
    %v3058 = vsel %vm411, %v2974, 0.0
    %3059 = vadd.xlane.f32.xlu0 %v3058
    %v3060 = vpop.xlane.xlu0 %3059
    %v3061 = vsel %vm411, %v2975, 0.0
    %3062 = vadd.xlane.f32.xlu0 %v3061
    %v3063 = vpop.xlane.xlu0 %3062
    %v3064 = vsel %vm411, %v2976, 0.0
    %3065 = vadd.xlane.f32.xlu0 %v3064
    %v3066 = vpop.xlane.xlu0 %3065
    %v3067 = vsel %vm411, %v2977, 0.0
    %3068 = vadd.xlane.f32.xlu0 %v3067
    %v3069 = vpop.xlane.xlu0 %3068
    %v3070 = vsel %vm411, %v2978, 0.0
    %3071 = vadd.xlane.f32.xlu0 %v3070
    %v3072 = vpop.xlane.xlu0 %3071
    %v3073 = vsel %vm411, %v2979, 0.0
    %3074 = vadd.xlane.f32.xlu0 %v3073
    %v3075 = vpop.xlane.xlu0 %3074
    %v3076 = vsel %vm411, %v2980, 0.0
    %3077 = vadd.xlane.f32.xlu0 %v3076
    %v3078 = vpop.xlane.xlu0 %3077
    %v3079 = vmul.f32 %v2985, %v514
    %v3080 = vmul.f32 %v2988, %v514
    %v3081 = vmul.f32 %v2991, %v514
    %v3082 = vmul.f32 %v2994, %v514
    %v3083 = vmul.f32 %v2997, %v514
    %v3084 = vmul.f32 %v3000, %v514
    %v3085 = vmul.f32 %v3003, %v514
    %v3086 = vmul.f32 %v3006, %v514
    %v3087 = vmul.f32 %v3009, %v514
    %v3088 = vmul.f32 %v3012, %v514
    %v3089 = vmul.f32 %v3015, %v514
    %v3090 = vmul.f32 %v3018, %v514
    %v3091 = vmul.f32 %v3021, %v514
    %v3092 = vmul.f32 %v3024, %v514
    %v3093 = vmul.f32 %v3027, %v514
    %v3094 = vmul.f32 %v3030, %v514
    %v3095 = vmul.f32 %v3033, %v514
    %v3096 = vmul.f32 %v3036, %v514
    %v3097 = vmul.f32 %v3039, %v514
    %v3098 = vmul.f32 %v3042, %v514
    %v3099 = vmul.f32 %v3045, %v514
    %v3100 = vmul.f32 %v3048, %v514
    %v3101 = vmul.f32 %v3051, %v514
    %v3102 = vmul.f32 %v3054, %v514
    %v3103 = vmul.f32 %v3057, %v514
    %v3104 = vmul.f32 %v3060, %v514
    %v3105 = vmul.f32 %v3063, %v514
    %v3106 = vmul.f32 %v3066, %v514
    %v3107 = vmul.f32 %v3069, %v514
    %v3108 = vmul.f32 %v3072, %v514
    %v3109 = vmul.f32 %v3075, %v514
    %v3110 = vmul.f32 %v3078, %v514
    %v3111 = vsub.f32 %v2949, %v3079
    %v3112 = vsub.f32 %v2950, %v3080
    %v3113 = vsub.f32 %v2951, %v3081
    %v3114 = vsub.f32 %v2952, %v3082
    %v3115 = vsub.f32 %v2953, %v3083
    %v3116 = vsub.f32 %v2954, %v3084
    %v3117 = vsub.f32 %v2955, %v3085
    %v3118 = vsub.f32 %v2956, %v3086
    %v3119 = vsub.f32 %v2957, %v3087
    %v3120 = vsub.f32 %v2958, %v3088
    %v3121 = vsub.f32 %v2959, %v3089
    %v3122 = vsub.f32 %v2960, %v3090
    %v3123 = vsub.f32 %v2961, %v3091
    %v3124 = vsub.f32 %v2962, %v3092
    %v3125 = vsub.f32 %v2963, %v3093
    %v3126 = vsub.f32 %v2964, %v3094
    %v3127 = vsub.f32 %v2965, %v3095
    %v3128 = vsub.f32 %v2966, %v3096
    %v3129 = vsub.f32 %v2967, %v3097
    %v3130 = vsub.f32 %v2968, %v3098
    %v3131 = vsub.f32 %v2969, %v3099
    %v3132 = vsub.f32 %v2970, %v3100
    %v3133 = vsub.f32 %v2971, %v3101
    %v3134 = vsub.f32 %v2972, %v3102
    %v3135 = vsub.f32 %v2973, %v3103
    %v3136 = vsub.f32 %v2974, %v3104
    %v3137 = vsub.f32 %v2975, %v3105
    %v3138 = vsub.f32 %v2976, %v3106
    %v3139 = vsub.f32 %v2977, %v3107
    %v3140 = vsub.f32 %v2978, %v3108
    %v3141 = vsub.f32 %v2979, %v3109
    %v3142 = vsub.f32 %v2980, %v3110
    %v3143 = vmul.f32 %v3111, %v3111
    %v3144 = vmul.f32 %v3112, %v3112
    %v3145 = vmul.f32 %v3113, %v3113
    %v3146 = vmul.f32 %v3114, %v3114
    %v3147 = vmul.f32 %v3115, %v3115
    %v3148 = vmul.f32 %v3116, %v3116
    %v3149 = vmul.f32 %v3117, %v3117
    %v3150 = vmul.f32 %v3118, %v3118
    %v3151 = vmul.f32 %v3119, %v3119
    %v3152 = vmul.f32 %v3120, %v3120
    %v3153 = vmul.f32 %v3121, %v3121
    %v3154 = vmul.f32 %v3122, %v3122
    %v3155 = vmul.f32 %v3123, %v3123
    %v3156 = vmul.f32 %v3124, %v3124
    %v3157 = vmul.f32 %v3125, %v3125
    %v3158 = vmul.f32 %v3126, %v3126
    %v3159 = vmul.f32 %v3127, %v3127
    %v3160 = vmul.f32 %v3128, %v3128
    %v3161 = vmul.f32 %v3129, %v3129
    %v3162 = vmul.f32 %v3130, %v3130
    %v3163 = vmul.f32 %v3131, %v3131
    %v3164 = vmul.f32 %v3132, %v3132
    %v3165 = vmul.f32 %v3133, %v3133
    %v3166 = vmul.f32 %v3134, %v3134
    %v3167 = vmul.f32 %v3135, %v3135
    %v3168 = vmul.f32 %v3136, %v3136
    %v3169 = vmul.f32 %v3137, %v3137
    %v3170 = vmul.f32 %v3138, %v3138
    %v3171 = vmul.f32 %v3139, %v3139
    %v3172 = vmul.f32 %v3140, %v3140
    %v3173 = vmul.f32 %v3141, %v3141
    %v3174 = vmul.f32 %v3142, %v3142
    %v3175 = vsel %vm411, %v3143, 0.0
    %3176 = vadd.xlane.f32.xlu0 %v3175
    %v3177 = vpop.xlane.xlu0 %3176
    %v3178 = vsel %vm411, %v3144, 0.0
    %3179 = vadd.xlane.f32.xlu0 %v3178
    %v3180 = vpop.xlane.xlu0 %3179
    %v3181 = vsel %vm411, %v3145, 0.0
    %3182 = vadd.xlane.f32.xlu0 %v3181
    %v3183 = vpop.xlane.xlu0 %3182
    %v3184 = vsel %vm411, %v3146, 0.0
    %3185 = vadd.xlane.f32.xlu0 %v3184
    %v3186 = vpop.xlane.xlu0 %3185
    %v3187 = vsel %vm411, %v3147, 0.0
    %3188 = vadd.xlane.f32.xlu0 %v3187
    %v3189 = vpop.xlane.xlu0 %3188
    %v3190 = vsel %vm411, %v3148, 0.0
    %3191 = vadd.xlane.f32.xlu0 %v3190
    %v3192 = vpop.xlane.xlu0 %3191
    %v3193 = vsel %vm411, %v3149, 0.0
    %3194 = vadd.xlane.f32.xlu0 %v3193
    %v3195 = vpop.xlane.xlu0 %3194
    %v3196 = vsel %vm411, %v3150, 0.0
    %3197 = vadd.xlane.f32.xlu0 %v3196
    %v3198 = vpop.xlane.xlu0 %3197
    %v3199 = vsel %vm411, %v3151, 0.0
    %3200 = vadd.xlane.f32.xlu0 %v3199
    %v3201 = vpop.xlane.xlu0 %3200
    %v3202 = vsel %vm411, %v3152, 0.0
    %3203 = vadd.xlane.f32.xlu0 %v3202
    %v3204 = vpop.xlane.xlu0 %3203
    %v3205 = vsel %vm411, %v3153, 0.0
    %3206 = vadd.xlane.f32.xlu0 %v3205
    %v3207 = vpop.xlane.xlu0 %3206
    %v3208 = vsel %vm411, %v3154, 0.0
    %3209 = vadd.xlane.f32.xlu0 %v3208
    %v3210 = vpop.xlane.xlu0 %3209
    %v3211 = vsel %vm411, %v3155, 0.0
    %3212 = vadd.xlane.f32.xlu0 %v3211
    %v3213 = vpop.xlane.xlu0 %3212
    %v3214 = vsel %vm411, %v3156, 0.0
    %3215 = vadd.xlane.f32.xlu0 %v3214
    %v3216 = vpop.xlane.xlu0 %3215
    %v3217 = vsel %vm411, %v3157, 0.0
    %3218 = vadd.xlane.f32.xlu0 %v3217
    %v3219 = vpop.xlane.xlu0 %3218
    %v3220 = vsel %vm411, %v3158, 0.0
    %3221 = vadd.xlane.f32.xlu0 %v3220
    %v3222 = vpop.xlane.xlu0 %3221
    %v3223 = vsel %vm411, %v3159, 0.0
    %3224 = vadd.xlane.f32.xlu0 %v3223
    %v3225 = vpop.xlane.xlu0 %3224
    %v3226 = vsel %vm411, %v3160, 0.0
    %3227 = vadd.xlane.f32.xlu0 %v3226
    %v3228 = vpop.xlane.xlu0 %3227
    %v3229 = vsel %vm411, %v3161, 0.0
    %3230 = vadd.xlane.f32.xlu0 %v3229
    %v3231 = vpop.xlane.xlu0 %3230
    %v3232 = vsel %vm411, %v3162, 0.0
    %3233 = vadd.xlane.f32.xlu0 %v3232
    %v3234 = vpop.xlane.xlu0 %3233
    %v3235 = vsel %vm411, %v3163, 0.0
    %3236 = vadd.xlane.f32.xlu0 %v3235
    %v3237 = vpop.xlane.xlu0 %3236
    %v3238 = vsel %vm411, %v3164, 0.0
    %3239 = vadd.xlane.f32.xlu0 %v3238
    %v3240 = vpop.xlane.xlu0 %3239
    %v3241 = vsel %vm411, %v3165, 0.0
    %3242 = vadd.xlane.f32.xlu0 %v3241
    %v3243 = vpop.xlane.xlu0 %3242
    %v3244 = vsel %vm411, %v3166, 0.0
    %3245 = vadd.xlane.f32.xlu0 %v3244
    %v3246 = vpop.xlane.xlu0 %3245
    %v3247 = vsel %vm411, %v3167, 0.0
    %3248 = vadd.xlane.f32.xlu0 %v3247
    %v3249 = vpop.xlane.xlu0 %3248
    %v3250 = vsel %vm411, %v3168, 0.0
    %3251 = vadd.xlane.f32.xlu0 %v3250
    %v3252 = vpop.xlane.xlu0 %3251
    %v3253 = vsel %vm411, %v3169, 0.0
    %3254 = vadd.xlane.f32.xlu0 %v3253
    %v3255 = vpop.xlane.xlu0 %3254
    %v3256 = vsel %vm411, %v3170, 0.0
    %3257 = vadd.xlane.f32.xlu0 %v3256
    %v3258 = vpop.xlane.xlu0 %3257
    %v3259 = vsel %vm411, %v3171, 0.0
    %3260 = vadd.xlane.f32.xlu0 %v3259
    %v3261 = vpop.xlane.xlu0 %3260
    %v3262 = vsel %vm411, %v3172, 0.0
    %3263 = vadd.xlane.f32.xlu0 %v3262
    %v3264 = vpop.xlane.xlu0 %3263
    %v3265 = vsel %vm411, %v3173, 0.0
    %3266 = vadd.xlane.f32.xlu0 %v3265
    %v3267 = vpop.xlane.xlu0 %3266
    %v3268 = vsel %vm411, %v3174, 0.0
    %3269 = vadd.xlane.f32.xlu0 %v3268
    %v3270 = vpop.xlane.xlu0 %3269
    %v3271 = vmul.f32 %v3177, %v514
    %v3272 = vmul.f32 %v3180, %v514
    %v3273 = vmul.f32 %v3183, %v514
    %v3274 = vmul.f32 %v3186, %v514
    %v3275 = vmul.f32 %v3189, %v514
    %v3276 = vmul.f32 %v3192, %v514
    %v3277 = vmul.f32 %v3195, %v514
    %v3278 = vmul.f32 %v3198, %v514
    %v3279 = vmul.f32 %v3201, %v514
    %v3280 = vmul.f32 %v3204, %v514
    %v3281 = vmul.f32 %v3207, %v514
    %v3282 = vmul.f32 %v3210, %v514
    %v3283 = vmul.f32 %v3213, %v514
    %v3284 = vmul.f32 %v3216, %v514
    %v3285 = vmul.f32 %v3219, %v514
    %v3286 = vmul.f32 %v3222, %v514
    %v3287 = vmul.f32 %v3225, %v514
    %v3288 = vmul.f32 %v3228, %v514
    %v3289 = vmul.f32 %v3231, %v514
    %v3290 = vmul.f32 %v3234, %v514
    %v3291 = vmul.f32 %v3237, %v514
    %v3292 = vmul.f32 %v3240, %v514
    %v3293 = vmul.f32 %v3243, %v514
    %v3294 = vmul.f32 %v3246, %v514
    %v3295 = vmul.f32 %v3249, %v514
    %v3296 = vmul.f32 %v3252, %v514
    %v3297 = vmul.f32 %v3255, %v514
    %v3298 = vmul.f32 %v3258, %v514
    %v3299 = vmul.f32 %v3261, %v514
    %v3300 = vmul.f32 %v3264, %v514
    %v3301 = vmul.f32 %v3267, %v514
    %v3302 = vmul.f32 %v3270, %v514
    %v3303 = vadd.f32 %v3271, 1e-12
    %v3304 = vadd.f32 %v3272, 1e-12
    %v3305 = vadd.f32 %v3273, 1e-12
    %v3306 = vadd.f32 %v3274, 1e-12
    %v3307 = vadd.f32 %v3275, 1e-12
    %v3308 = vadd.f32 %v3276, 1e-12
    %v3309 = vadd.f32 %v3277, 1e-12
    %v3310 = vadd.f32 %v3278, 1e-12
    %v3311 = vadd.f32 %v3279, 1e-12
    %v3312 = vadd.f32 %v3280, 1e-12
    %v3313 = vadd.f32 %v3281, 1e-12
    %v3314 = vadd.f32 %v3282, 1e-12
    %v3315 = vadd.f32 %v3283, 1e-12
    %v3316 = vadd.f32 %v3284, 1e-12
    %v3317 = vadd.f32 %v3285, 1e-12
    %v3318 = vadd.f32 %v3286, 1e-12
    %v3319 = vadd.f32 %v3287, 1e-12
    %v3320 = vadd.f32 %v3288, 1e-12
    %v3321 = vadd.f32 %v3289, 1e-12
    %v3322 = vadd.f32 %v3290, 1e-12
    %v3323 = vadd.f32 %v3291, 1e-12
    %v3324 = vadd.f32 %v3292, 1e-12
    %v3325 = vadd.f32 %v3293, 1e-12
    %v3326 = vadd.f32 %v3294, 1e-12
    %v3327 = vadd.f32 %v3295, 1e-12
    %v3328 = vadd.f32 %v3296, 1e-12
    %v3329 = vadd.f32 %v3297, 1e-12
    %v3330 = vadd.f32 %v3298, 1e-12
    %v3331 = vadd.f32 %v3299, 1e-12
    %v3332 = vadd.f32 %v3300, 1e-12
    %v3333 = vadd.f32 %v3301, 1e-12
    %v3334 = vadd.f32 %v3302, 1e-12
    %v3335 = vrsqrt.pop %v3303
    %v3336 = vmul.f32 %v3335, %v3303
    %v3337 = vmul.f32 %v3336, %v3335
    %v3338 = vmul.f32 0.5, %v3337
    %v3339 = vsub.f32 1.5, %v3338
    %v3340 = vmul.f32 %v3335, %v3339
    %vm3341 = vweird.f32 %v3303
    %vm3342 = vweird.f32 %v3335
    %vm3343 = vmor %vm3341, %vm3342
    %v3344 = vsel %vm3343, %v3335, %v3340
    %v3345 = vrsqrt.pop %v3304
    %v3346 = vmul.f32 %v3345, %v3304
    %v3347 = vmul.f32 %v3346, %v3345
    %v3348 = vmul.f32 0.5, %v3347
    %v3349 = vsub.f32 1.5, %v3348
    %v3350 = vmul.f32 %v3345, %v3349
    %vm3351 = vweird.f32 %v3304
    %vm3352 = vweird.f32 %v3345
    %vm3353 = vmor %vm3351, %vm3352
    %v3354 = vsel %vm3353, %v3345, %v3350
    %v3355 = vrsqrt.pop %v3305
    %v3356 = vmul.f32 %v3355, %v3305
    %v3357 = vmul.f32 %v3356, %v3355
    %v3358 = vmul.f32 0.5, %v3357
    %v3359 = vsub.f32 1.5, %v3358
    %v3360 = vmul.f32 %v3355, %v3359
    %vm3361 = vweird.f32 %v3305
    %vm3362 = vweird.f32 %v3355
    %vm3363 = vmor %vm3361, %vm3362
    %v3364 = vsel %vm3363, %v3355, %v3360
    %v3365 = vrsqrt.pop %v3306
    %v3366 = vmul.f32 %v3365, %v3306
    %v3367 = vmul.f32 %v3366, %v3365
    %v3368 = vmul.f32 0.5, %v3367
    %v3369 = vsub.f32 1.5, %v3368
    %v3370 = vmul.f32 %v3365, %v3369
    %vm3371 = vweird.f32 %v3306
    %vm3372 = vweird.f32 %v3365
    %vm3373 = vmor %vm3371, %vm3372
    %v3374 = vsel %vm3373, %v3365, %v3370
    %v3375 = vrsqrt.pop %v3307
    %v3376 = vmul.f32 %v3375, %v3307
    %v3377 = vmul.f32 %v3376, %v3375
    %v3378 = vmul.f32 0.5, %v3377
    %v3379 = vsub.f32 1.5, %v3378
    %v3380 = vmul.f32 %v3375, %v3379
    %vm3381 = vweird.f32 %v3307
    %vm3382 = vweird.f32 %v3375
    %vm3383 = vmor %vm3381, %vm3382
    %v3384 = vsel %vm3383, %v3375, %v3380
    %v3385 = vrsqrt.pop %v3308
    %v3386 = vmul.f32 %v3385, %v3308
    %v3387 = vmul.f32 %v3386, %v3385
    %v3388 = vmul.f32 0.5, %v3387
    %v3389 = vsub.f32 1.5, %v3388
    %v3390 = vmul.f32 %v3385, %v3389
    %vm3391 = vweird.f32 %v3308
    %vm3392 = vweird.f32 %v3385
    %vm3393 = vmor %vm3391, %vm3392
    %v3394 = vsel %vm3393, %v3385, %v3390
    %v3395 = vrsqrt.pop %v3309
    %v3396 = vmul.f32 %v3395, %v3309
    %v3397 = vmul.f32 %v3396, %v3395
    %v3398 = vmul.f32 0.5, %v3397
    %v3399 = vsub.f32 1.5, %v3398
    %v3400 = vmul.f32 %v3395, %v3399
    %vm3401 = vweird.f32 %v3309
    %vm3402 = vweird.f32 %v3395
    %vm3403 = vmor %vm3401, %vm3402
    %v3404 = vsel %vm3403, %v3395, %v3400
    %v3405 = vrsqrt.pop %v3310
    %v3406 = vmul.f32 %v3405, %v3310
    %v3407 = vmul.f32 %v3406, %v3405
    %v3408 = vmul.f32 0.5, %v3407
    %v3409 = vsub.f32 1.5, %v3408
    %v3410 = vmul.f32 %v3405, %v3409
    %vm3411 = vweird.f32 %v3310
    %vm3412 = vweird.f32 %v3405
    %vm3413 = vmor %vm3411, %vm3412
    %v3414 = vsel %vm3413, %v3405, %v3410
    %v3415 = vrsqrt.pop %v3311
    %v3416 = vmul.f32 %v3415, %v3311
    %v3417 = vmul.f32 %v3416, %v3415
    %v3418 = vmul.f32 0.5, %v3417
    %v3419 = vsub.f32 1.5, %v3418
    %v3420 = vmul.f32 %v3415, %v3419
    %vm3421 = vweird.f32 %v3311
    %vm3422 = vweird.f32 %v3415
    %vm3423 = vmor %vm3421, %vm3422
    %v3424 = vsel %vm3423, %v3415, %v3420
    %v3425 = vrsqrt.pop %v3312
    %v3426 = vmul.f32 %v3425, %v3312
    %v3427 = vmul.f32 %v3426, %v3425
    %v3428 = vmul.f32 0.5, %v3427
    %v3429 = vsub.f32 1.5, %v3428
    %v3430 = vmul.f32 %v3425, %v3429
    %vm3431 = vweird.f32 %v3312
    %vm3432 = vweird.f32 %v3425
    %vm3433 = vmor %vm3431, %vm3432
    %v3434 = vsel %vm3433, %v3425, %v3430
    %v3435 = vrsqrt.pop %v3313
    %v3436 = vmul.f32 %v3435, %v3313
    %v3437 = vmul.f32 %v3436, %v3435
    %v3438 = vmul.f32 0.5, %v3437
    %v3439 = vsub.f32 1.5, %v3438
    %v3440 = vmul.f32 %v3435, %v3439
    %vm3441 = vweird.f32 %v3313
    %vm3442 = vweird.f32 %v3435
    %vm3443 = vmor %vm3441, %vm3442
    %v3444 = vsel %vm3443, %v3435, %v3440
    %v3445 = vrsqrt.pop %v3314
    %v3446 = vmul.f32 %v3445, %v3314
    %v3447 = vmul.f32 %v3446, %v3445
    %v3448 = vmul.f32 0.5, %v3447
    %v3449 = vsub.f32 1.5, %v3448
    %v3450 = vmul.f32 %v3445, %v3449
    %vm3451 = vweird.f32 %v3314
    %vm3452 = vweird.f32 %v3445
    %vm3453 = vmor %vm3451, %vm3452
    %v3454 = vsel %vm3453, %v3445, %v3450
    %v3455 = vrsqrt.pop %v3315
    %v3456 = vmul.f32 %v3455, %v3315
    %v3457 = vmul.f32 %v3456, %v3455
    %v3458 = vmul.f32 0.5, %v3457
    %v3459 = vsub.f32 1.5, %v3458
    %v3460 = vmul.f32 %v3455, %v3459
    %vm3461 = vweird.f32 %v3315
    %vm3462 = vweird.f32 %v3455
    %vm3463 = vmor %vm3461, %vm3462
    %v3464 = vsel %vm3463, %v3455, %v3460
    %v3465 = vrsqrt.pop %v3316
    %v3466 = vmul.f32 %v3465, %v3316
    %v3467 = vmul.f32 %v3466, %v3465
    %v3468 = vmul.f32 0.5, %v3467
    %v3469 = vsub.f32 1.5, %v3468
    %v3470 = vmul.f32 %v3465, %v3469
    %vm3471 = vweird.f32 %v3316
    %vm3472 = vweird.f32 %v3465
    %vm3473 = vmor %vm3471, %vm3472
    %v3474 = vsel %vm3473, %v3465, %v3470
    %v3475 = vrsqrt.pop %v3317
    %v3476 = vmul.f32 %v3475, %v3317
    %v3477 = vmul.f32 %v3476, %v3475
    %v3478 = vmul.f32 0.5, %v3477
    %v3479 = vsub.f32 1.5, %v3478
    %v3480 = vmul.f32 %v3475, %v3479
    %vm3481 = vweird.f32 %v3317
    %vm3482 = vweird.f32 %v3475
    %vm3483 = vmor %vm3481, %vm3482
    %v3484 = vsel %vm3483, %v3475, %v3480
    %v3485 = vrsqrt.pop %v3318
    %v3486 = vmul.f32 %v3485, %v3318
    %v3487 = vmul.f32 %v3486, %v3485
    %v3488 = vmul.f32 0.5, %v3487
    %v3489 = vsub.f32 1.5, %v3488
    %v3490 = vmul.f32 %v3485, %v3489
    %vm3491 = vweird.f32 %v3318
    %vm3492 = vweird.f32 %v3485
    %vm3493 = vmor %vm3491, %vm3492
    %v3494 = vsel %vm3493, %v3485, %v3490
    %v3495 = vrsqrt.pop %v3319
    %v3496 = vmul.f32 %v3495, %v3319
    %v3497 = vmul.f32 %v3496, %v3495
    %v3498 = vmul.f32 0.5, %v3497
    %v3499 = vsub.f32 1.5, %v3498
    %v3500 = vmul.f32 %v3495, %v3499
    %vm3501 = vweird.f32 %v3319
    %vm3502 = vweird.f32 %v3495
    %vm3503 = vmor %vm3501, %vm3502
    %v3504 = vsel %vm3503, %v3495, %v3500
    %v3505 = vrsqrt.pop %v3320
    %v3506 = vmul.f32 %v3505, %v3320
    %v3507 = vmul.f32 %v3506, %v3505
    %v3508 = vmul.f32 0.5, %v3507
    %v3509 = vsub.f32 1.5, %v3508
    %v3510 = vmul.f32 %v3505, %v3509
    %vm3511 = vweird.f32 %v3320
    %vm3512 = vweird.f32 %v3505
    %vm3513 = vmor %vm3511, %vm3512
    %v3514 = vsel %vm3513, %v3505, %v3510
    %v3515 = vrsqrt.pop %v3321
    %v3516 = vmul.f32 %v3515, %v3321
    %v3517 = vmul.f32 %v3516, %v3515
    %v3518 = vmul.f32 0.5, %v3517
    %v3519 = vsub.f32 1.5, %v3518
    %v3520 = vmul.f32 %v3515, %v3519
    %vm3521 = vweird.f32 %v3321
    %vm3522 = vweird.f32 %v3515
    %vm3523 = vmor %vm3521, %vm3522
    %v3524 = vsel %vm3523, %v3515, %v3520
    %v3525 = vrsqrt.pop %v3322
    %v3526 = vmul.f32 %v3525, %v3322
    %v3527 = vmul.f32 %v3526, %v3525
    %v3528 = vmul.f32 0.5, %v3527
    %v3529 = vsub.f32 1.5, %v3528
    %v3530 = vmul.f32 %v3525, %v3529
    %vm3531 = vweird.f32 %v3322
    %vm3532 = vweird.f32 %v3525
    %vm3533 = vmor %vm3531, %vm3532
    %v3534 = vsel %vm3533, %v3525, %v3530
    %v3535 = vrsqrt.pop %v3323
    %v3536 = vmul.f32 %v3535, %v3323
    %v3537 = vmul.f32 %v3536, %v3535
    %v3538 = vmul.f32 0.5, %v3537
    %v3539 = vsub.f32 1.5, %v3538
    %v3540 = vmul.f32 %v3535, %v3539
    %vm3541 = vweird.f32 %v3323
    %vm3542 = vweird.f32 %v3535
    %vm3543 = vmor %vm3541, %vm3542
    %v3544 = vsel %vm3543, %v3535, %v3540
    %v3545 = vrsqrt.pop %v3324
    %v3546 = vmul.f32 %v3545, %v3324
    %v3547 = vmul.f32 %v3546, %v3545
    %v3548 = vmul.f32 0.5, %v3547
    %v3549 = vsub.f32 1.5, %v3548
    %v3550 = vmul.f32 %v3545, %v3549
    %vm3551 = vweird.f32 %v3324
    %vm3552 = vweird.f32 %v3545
    %vm3553 = vmor %vm3551, %vm3552
    %v3554 = vsel %vm3553, %v3545, %v3550
    %v3555 = vrsqrt.pop %v3325
    %v3556 = vmul.f32 %v3555, %v3325
    %v3557 = vmul.f32 %v3556, %v3555
    %v3558 = vmul.f32 0.5, %v3557
    %v3559 = vsub.f32 1.5, %v3558
    %v3560 = vmul.f32 %v3555, %v3559
    %vm3561 = vweird.f32 %v3325
    %vm3562 = vweird.f32 %v3555
    %vm3563 = vmor %vm3561, %vm3562
    %v3564 = vsel %vm3563, %v3555, %v3560
    %v3565 = vrsqrt.pop %v3326
    %v3566 = vmul.f32 %v3565, %v3326
    %v3567 = vmul.f32 %v3566, %v3565
    %v3568 = vmul.f32 0.5, %v3567
    %v3569 = vsub.f32 1.5, %v3568
    %v3570 = vmul.f32 %v3565, %v3569
    %vm3571 = vweird.f32 %v3326
    %vm3572 = vweird.f32 %v3565
    %vm3573 = vmor %vm3571, %vm3572
    %v3574 = vsel %vm3573, %v3565, %v3570
    %v3575 = vrsqrt.pop %v3327
    %v3576 = vmul.f32 %v3575, %v3327
    %v3577 = vmul.f32 %v3576, %v3575
    %v3578 = vmul.f32 0.5, %v3577
    %v3579 = vsub.f32 1.5, %v3578
    %v3580 = vmul.f32 %v3575, %v3579
    %vm3581 = vweird.f32 %v3327
    %vm3582 = vweird.f32 %v3575
    %vm3583 = vmor %vm3581, %vm3582
    %v3584 = vsel %vm3583, %v3575, %v3580
    %v3585 = vrsqrt.pop %v3328
    %v3586 = vmul.f32 %v3585, %v3328
    %v3587 = vmul.f32 %v3586, %v3585
    %v3588 = vmul.f32 0.5, %v3587
    %v3589 = vsub.f32 1.5, %v3588
    %v3590 = vmul.f32 %v3585, %v3589
    %vm3591 = vweird.f32 %v3328
    %vm3592 = vweird.f32 %v3585
    %vm3593 = vmor %vm3591, %vm3592
    %v3594 = vsel %vm3593, %v3585, %v3590
    %v3595 = vrsqrt.pop %v3329
    %v3596 = vmul.f32 %v3595, %v3329
    %v3597 = vmul.f32 %v3596, %v3595
    %v3598 = vmul.f32 0.5, %v3597
    %v3599 = vsub.f32 1.5, %v3598
    %v3600 = vmul.f32 %v3595, %v3599
    %vm3601 = vweird.f32 %v3329
    %vm3602 = vweird.f32 %v3595
    %vm3603 = vmor %vm3601, %vm3602
    %v3604 = vsel %vm3603, %v3595, %v3600
    %v3605 = vrsqrt.pop %v3330
    %v3606 = vmul.f32 %v3605, %v3330
    %v3607 = vmul.f32 %v3606, %v3605
    %v3608 = vmul.f32 0.5, %v3607
    %v3609 = vsub.f32 1.5, %v3608
    %v3610 = vmul.f32 %v3605, %v3609
    %vm3611 = vweird.f32 %v3330
    %vm3612 = vweird.f32 %v3605
    %vm3613 = vmor %vm3611, %vm3612
    %v3614 = vsel %vm3613, %v3605, %v3610
    %v3615 = vrsqrt.pop %v3331
    %v3616 = vmul.f32 %v3615, %v3331
    %v3617 = vmul.f32 %v3616, %v3615
    %v3618 = vmul.f32 0.5, %v3617
    %v3619 = vsub.f32 1.5, %v3618
    %v3620 = vmul.f32 %v3615, %v3619
    %vm3621 = vweird.f32 %v3331
    %vm3622 = vweird.f32 %v3615
    %vm3623 = vmor %vm3621, %vm3622
    %v3624 = vsel %vm3623, %v3615, %v3620
    %v3625 = vrsqrt.pop %v3332
    %v3626 = vmul.f32 %v3625, %v3332
    %v3627 = vmul.f32 %v3626, %v3625
    %v3628 = vmul.f32 0.5, %v3627
    %v3629 = vsub.f32 1.5, %v3628
    %v3630 = vmul.f32 %v3625, %v3629
    %vm3631 = vweird.f32 %v3332
    %vm3632 = vweird.f32 %v3625
    %vm3633 = vmor %vm3631, %vm3632
    %v3634 = vsel %vm3633, %v3625, %v3630
    %v3635 = vrsqrt.pop %v3333
    %v3636 = vmul.f32 %v3635, %v3333
    %v3637 = vmul.f32 %v3636, %v3635
    %v3638 = vmul.f32 0.5, %v3637
    %v3639 = vsub.f32 1.5, %v3638
    %v3640 = vmul.f32 %v3635, %v3639
    %vm3641 = vweird.f32 %v3333
    %vm3642 = vweird.f32 %v3635
    %vm3643 = vmor %vm3641, %vm3642
    %v3644 = vsel %vm3643, %v3635, %v3640
    %v3645 = vrsqrt.pop %v3334
    %v3646 = vmul.f32 %v3645, %v3334
    %v3647 = vmul.f32 %v3646, %v3645
    %v3648 = vmul.f32 0.5, %v3647
    %v3649 = vsub.f32 1.5, %v3648
    %v3650 = vmul.f32 %v3645, %v3649
    %vm3651 = vweird.f32 %v3334
    %vm3652 = vweird.f32 %v3645
    %vm3653 = vmor %vm3651, %vm3652
    %v3654 = vsel %vm3653, %v3645, %v3650
    %v3655 = vmul.f32 %v3111, %v3344
    %v3656 = vmul.f32 %v3112, %v3354
    %v3657 = vmul.f32 %v3113, %v3364
    %v3658 = vmul.f32 %v3114, %v3374
    %v3659 = vmul.f32 %v3115, %v3384
    %v3660 = vmul.f32 %v3116, %v3394
    %v3661 = vmul.f32 %v3117, %v3404
    %v3662 = vmul.f32 %v3118, %v3414
    %v3663 = vmul.f32 %v3119, %v3424
    %v3664 = vmul.f32 %v3120, %v3434
    %v3665 = vmul.f32 %v3121, %v3444
    %v3666 = vmul.f32 %v3122, %v3454
    %v3667 = vmul.f32 %v3123, %v3464
    %v3668 = vmul.f32 %v3124, %v3474
    %v3669 = vmul.f32 %v3125, %v3484
    %v3670 = vmul.f32 %v3126, %v3494
    %v3671 = vmul.f32 %v3127, %v3504
    %v3672 = vmul.f32 %v3128, %v3514
    %v3673 = vmul.f32 %v3129, %v3524
    %v3674 = vmul.f32 %v3130, %v3534
    %v3675 = vmul.f32 %v3131, %v3544
    %v3676 = vmul.f32 %v3132, %v3554
    %v3677 = vmul.f32 %v3133, %v3564
    %v3678 = vmul.f32 %v3134, %v3574
    %v3679 = vmul.f32 %v3135, %v3584
    %v3680 = vmul.f32 %v3136, %v3594
    %v3681 = vmul.f32 %v3137, %v3604
    %v3682 = vmul.f32 %v3138, %v3614
    %v3683 = vmul.f32 %v3139, %v3624
    %v3684 = vmul.f32 %v3140, %v3634
    %v3685 = vmul.f32 %v3141, %v3644
    %v3686 = vmul.f32 %v3142, %v3654
    %v3687 = vperm.slane %v2981, 0
    %v3688 = vmul.f32 %v3655, %v3687
    %v3689 = vmul.f32 %v3656, %v3687
    %v3690 = vmul.f32 %v3657, %v3687
    %v3691 = vmul.f32 %v3658, %v3687
    %v3692 = vmul.f32 %v3659, %v3687
    %v3693 = vmul.f32 %v3660, %v3687
    %v3694 = vmul.f32 %v3661, %v3687
    %v3695 = vmul.f32 %v3662, %v3687
    %v3696 = vmul.f32 %v3663, %v3687
    %v3697 = vmul.f32 %v3664, %v3687
    %v3698 = vmul.f32 %v3665, %v3687
    %v3699 = vmul.f32 %v3666, %v3687
    %v3700 = vmul.f32 %v3667, %v3687
    %v3701 = vmul.f32 %v3668, %v3687
    %v3702 = vmul.f32 %v3669, %v3687
    %v3703 = vmul.f32 %v3670, %v3687
    %v3704 = vmul.f32 %v3671, %v3687
    %v3705 = vmul.f32 %v3672, %v3687
    %v3706 = vmul.f32 %v3673, %v3687
    %v3707 = vmul.f32 %v3674, %v3687
    %v3708 = vmul.f32 %v3675, %v3687
    %v3709 = vmul.f32 %v3676, %v3687
    %v3710 = vmul.f32 %v3677, %v3687
    %v3711 = vmul.f32 %v3678, %v3687
    %v3712 = vmul.f32 %v3679, %v3687
    %v3713 = vmul.f32 %v3680, %v3687
    %v3714 = vmul.f32 %v3681, %v3687
    %v3715 = vmul.f32 %v3682, %v3687
    %v3716 = vmul.f32 %v3683, %v3687
    %v3717 = vmul.f32 %v3684, %v3687
    %v3718 = vmul.f32 %v3685, %v3687
    %v3719 = vmul.f32 %v3686, %v3687
    %v3720 = vperm.slane %v2982, 0
    %v3721 = vadd.f32 %v3688, %v3720
    %v3722 = vadd.f32 %v3689, %v3720
    %v3723 = vadd.f32 %v3690, %v3720
    %v3724 = vadd.f32 %v3691, %v3720
    %v3725 = vadd.f32 %v3692, %v3720
    %v3726 = vadd.f32 %v3693, %v3720
    %v3727 = vadd.f32 %v3694, %v3720
    %v3728 = vadd.f32 %v3695, %v3720
    %v3729 = vadd.f32 %v3696, %v3720
    %v3730 = vadd.f32 %v3697, %v3720
    %v3731 = vadd.f32 %v3698, %v3720
    %v3732 = vadd.f32 %v3699, %v3720
    %v3733 = vadd.f32 %v3700, %v3720
    %v3734 = vadd.f32 %v3701, %v3720
    %v3735 = vadd.f32 %v3702, %v3720
    %v3736 = vadd.f32 %v3703, %v3720
    %v3737 = vadd.f32 %v3704, %v3720
    %v3738 = vadd.f32 %v3705, %v3720
    %v3739 = vadd.f32 %v3706, %v3720
    %v3740 = vadd.f32 %v3707, %v3720
    %v3741 = vadd.f32 %v3708, %v3720
    %v3742 = vadd.f32 %v3709, %v3720
    %v3743 = vadd.f32 %v3710, %v3720
    %v3744 = vadd.f32 %v3711, %v3720
    %v3745 = vadd.f32 %v3712, %v3720
    %v3746 = vadd.f32 %v3713, %v3720
    %v3747 = vadd.f32 %v3714, %v3720
    %v3748 = vadd.f32 %v3715, %v3720
    %v3749 = vadd.f32 %v3716, %v3720
    %v3750 = vadd.f32 %v3717, %v3720
    %v3751 = vadd.f32 %v3718, %v3720
    %v3752 = vadd.f32 %v3719, %v3720
    %v3753 = vpack.c.bf16 %v3722, %v3721
    %v3754 = vpack.c.bf16 %v3724, %v3723
    %v3755 = vpack.c.bf16 %v3726, %v3725
    %v3756 = vpack.c.bf16 %v3728, %v3727
    %v3757 = vpack.c.bf16 %v3730, %v3729
    %v3758 = vpack.c.bf16 %v3732, %v3731
    %v3759 = vpack.c.bf16 %v3734, %v3733
    %v3760 = vpack.c.bf16 %v3736, %v3735
    %v3761 = vpack.c.bf16 %v3738, %v3737
    %v3762 = vpack.c.bf16 %v3740, %v3739
    %v3763 = vpack.c.bf16 %v3742, %v3741
    %v3764 = vpack.c.bf16 %v3744, %v3743
    %v3765 = vpack.c.bf16 %v3746, %v3745
    %v3766 = vpack.c.bf16 %v3748, %v3747
    %v3767 = vpack.c.bf16 %v3750, %v3749
    %v3768 = vpack.c.bf16 %v3752, %v3751
    %v3769 = vld [vmem:[%s2 + $0x70] sm:$0xf]
    %v3770 = vld [vmem:[%s2 + $0x74] sm:$0xf]
    %v3771 = vld [vmem:[%s2 + $0x78] sm:$0xf]
    %v3772 = vld [vmem:[%s2 + $0x7c] sm:$0xf]
    %v3773 = vld [vmem:[%s3 + $0x8] sm:$0x1]
    %v3774 = vperm.slane %v3773, 0
    %v3779 = vunpack.c.l.b16 %v3769
    %v3780 = vunpack.c.l.b16 %v3770
    %v3781 = vunpack.c.l.b16 %v3771
    %v3782 = vunpack.c.l.b16 %v3772
    %v3783 = vpack.c.b16 %v3780, %v3779
    %v3784 = vpack.c.b16 %v3782, %v3781
    %v3788 = vsel %vm411, %v3753, 0
    %v3791 = vsel %vm411, %v3754, 0
    %v3794 = vsel %vm411, %v3755, 0
    %v3797 = vsel %vm411, %v3756, 0
    %v3800 = vsel %vm411, %v3757, 0
    %v3803 = vsel %vm411, %v3758, 0
    %v3806 = vsel %vm411, %v3759, 0
    %v3809 = vsel %vm411, %v3760, 0
    %v3812 = vsel %vm411, %v3761, 0
    %v3815 = vsel %vm411, %v3762, 0
    %v3818 = vsel %vm411, %v3763, 0
    %v3821 = vsel %vm411, %v3764, 0
    %v3824 = vsel %vm411, %v3765, 0
    %v3827 = vsel %vm411, %v3766, 0
    %v3830 = vsel %vm411, %v3767, 0
    %v3833 = vsel %vm411, %v3768, 0
    %3835 = vmatpush.bf16.msra.mxu0 0
    %3836 = vmatpush.bf16.msra.mxu0 0
    %3837 = vmatpush.bf16.msra.mxu0 0
    %3838 = vmatpush.bf16.msra.mxu0 0
    %3839 = vmatpush.bf16.msra.mxu0 0
    %3840 = vmatpush.bf16.msra.mxu0 0
    %3841 = vmatpush.bf16.msra.mxu0 %v3784
    %3842 = vmatpush.bf16.msra.mxu0 %v3783
    %3843 = vmatmul.bf16.gmra.mxu0 %v3788
    %v3844 = vpop.f32.mrf.mxu0
    %v3845 = vadd.f32 %v3774, %v3844
    %v3846 = vpop.f32.mrf.mxu0
    %v3847 = vadd.f32 %v3774, %v3846
    %3848 = vmatmul.bf16.gmra.mxu0 %v3791
    %v3849 = vpop.f32.mrf.mxu0
    %v3850 = vadd.f32 %v3774, %v3849
    %v3851 = vpop.f32.mrf.mxu0
    %v3852 = vadd.f32 %v3774, %v3851
    %3853 = vmatmul.bf16.gmra.mxu0 %v3794
    %v3854 = vpop.f32.mrf.mxu0
    %v3855 = vadd.f32 %v3774, %v3854
    %v3856 = vpop.f32.mrf.mxu0
    %v3857 = vadd.f32 %v3774, %v3856
    %3858 = vmatmul.bf16.gmra.mxu0 %v3797
    %v3859 = vpop.f32.mrf.mxu0
    %v3860 = vadd.f32 %v3774, %v3859
    %v3861 = vpop.f32.mrf.mxu0
    %v3862 = vadd.f32 %v3774, %v3861
    %3863 = vmatmul.bf16.gmra.mxu0 %v3800
    %v3864 = vpop.f32.mrf.mxu0
    %v3865 = vadd.f32 %v3774, %v3864
    %v3866 = vpop.f32.mrf.mxu0
    %v3867 = vadd.f32 %v3774, %v3866
    %3868 = vmatmul.bf16.gmra.mxu0 %v3803
    %v3869 = vpop.f32.mrf.mxu0
    %v3870 = vadd.f32 %v3774, %v3869
    %v3871 = vpop.f32.mrf.mxu0
    %v3872 = vadd.f32 %v3774, %v3871
    %3873 = vmatmul.bf16.gmra.mxu0 %v3806
    %v3874 = vpop.f32.mrf.mxu0
    %v3875 = vadd.f32 %v3774, %v3874
    %v3876 = vpop.f32.mrf.mxu0
    %v3877 = vadd.f32 %v3774, %v3876
    %3878 = vmatmul.bf16.gmra.mxu0 %v3809
    %v3879 = vpop.f32.mrf.mxu0
    %v3880 = vadd.f32 %v3774, %v3879
    %v3881 = vpop.f32.mrf.mxu0
    %v3882 = vadd.f32 %v3774, %v3881
    %3883 = vmatmul.bf16.gmra.mxu0 %v3812
    %v3884 = vpop.f32.mrf.mxu0
    %v3885 = vadd.f32 %v3774, %v3884
    %v3886 = vpop.f32.mrf.mxu0
    %v3887 = vadd.f32 %v3774, %v3886
    %3888 = vmatmul.bf16.gmra.mxu0 %v3815
    %v3889 = vpop.f32.mrf.mxu0
    %v3890 = vadd.f32 %v3774, %v3889
    %v3891 = vpop.f32.mrf.mxu0
    %v3892 = vadd.f32 %v3774, %v3891
    %3893 = vmatmul.bf16.gmra.mxu0 %v3818
    %v3894 = vpop.f32.mrf.mxu0
    %v3895 = vadd.f32 %v3774, %v3894
    %v3896 = vpop.f32.mrf.mxu0
    %v3897 = vadd.f32 %v3774, %v3896
    %3898 = vmatmul.bf16.gmra.mxu0 %v3821
    %v3899 = vpop.f32.mrf.mxu0
    %v3900 = vadd.f32 %v3774, %v3899
    %v3901 = vpop.f32.mrf.mxu0
    %v3902 = vadd.f32 %v3774, %v3901
    %3903 = vmatmul.bf16.gmra.mxu0 %v3824
    %v3904 = vpop.f32.mrf.mxu0
    %v3905 = vadd.f32 %v3774, %v3904
    %v3906 = vpop.f32.mrf.mxu0
    %v3907 = vadd.f32 %v3774, %v3906
    %3908 = vmatmul.bf16.gmra.mxu0 %v3827
    %v3909 = vpop.f32.mrf.mxu0
    %v3910 = vadd.f32 %v3774, %v3909
    %v3911 = vpop.f32.mrf.mxu0
    %v3912 = vadd.f32 %v3774, %v3911
    %3913 = vmatmul.bf16.gmra.mxu0 %v3830
    %v3914 = vpop.f32.mrf.mxu0
    %v3915 = vadd.f32 %v3774, %v3914
    %v3916 = vpop.f32.mrf.mxu0
    %v3917 = vadd.f32 %v3774, %v3916
    %3918 = vmatmul.bf16.gmra.mxu0 %v3833
    %v3919 = vpop.f32.mrf.mxu0
    %v3920 = vadd.f32 %v3774, %v3919
    %v3921 = vpop.f32.mrf.mxu0
    %v3922 = vadd.f32 %v3774, %v3921
    %3923 = vdwg.mxu0
    %v3924 = vmax.f32 %v3845, 0.0
    %v3925 = vmax.f32 %v3847, 0.0
    %v3926 = vmax.f32 %v3850, 0.0
    %v3927 = vmax.f32 %v3852, 0.0
    %v3928 = vmax.f32 %v3855, 0.0
    %v3929 = vmax.f32 %v3857, 0.0
    %v3930 = vmax.f32 %v3860, 0.0
    %v3931 = vmax.f32 %v3862, 0.0
    %v3932 = vmax.f32 %v3865, 0.0
    %v3933 = vmax.f32 %v3867, 0.0
    %v3934 = vmax.f32 %v3870, 0.0
    %v3935 = vmax.f32 %v3872, 0.0
    %v3936 = vmax.f32 %v3875, 0.0
    %v3937 = vmax.f32 %v3877, 0.0
    %v3938 = vmax.f32 %v3880, 0.0
    %v3939 = vmax.f32 %v3882, 0.0
    %v3940 = vmax.f32 %v3885, 0.0
    %v3941 = vmax.f32 %v3887, 0.0
    %v3942 = vmax.f32 %v3890, 0.0
    %v3943 = vmax.f32 %v3892, 0.0
    %v3944 = vmax.f32 %v3895, 0.0
    %v3945 = vmax.f32 %v3897, 0.0
    %v3946 = vmax.f32 %v3900, 0.0
    %v3947 = vmax.f32 %v3902, 0.0
    %v3948 = vmax.f32 %v3905, 0.0
    %v3949 = vmax.f32 %v3907, 0.0
    %v3950 = vmax.f32 %v3910, 0.0
    %v3951 = vmax.f32 %v3912, 0.0
    %v3952 = vmax.f32 %v3915, 0.0
    %v3953 = vmax.f32 %v3917, 0.0
    %v3954 = vmax.f32 %v3920, 0.0
    %v3955 = vmax.f32 %v3922, 0.0
    %v3956 = vpack.c.bf16 %v3925, %v3924
    %v3957 = vpack.c.bf16 %v3927, %v3926
    %v3958 = vpack.c.bf16 %v3929, %v3928
    %v3959 = vpack.c.bf16 %v3931, %v3930
    %v3960 = vpack.c.bf16 %v3933, %v3932
    %v3961 = vpack.c.bf16 %v3935, %v3934
    %v3962 = vpack.c.bf16 %v3937, %v3936
    %v3963 = vpack.c.bf16 %v3939, %v3938
    %v3964 = vpack.c.bf16 %v3941, %v3940
    %v3965 = vpack.c.bf16 %v3943, %v3942
    %v3966 = vpack.c.bf16 %v3945, %v3944
    %v3967 = vpack.c.bf16 %v3947, %v3946
    %v3968 = vpack.c.bf16 %v3949, %v3948
    %v3969 = vpack.c.bf16 %v3951, %v3950
    %v3970 = vpack.c.bf16 %v3953, %v3952
    %v3971 = vpack.c.bf16 %v3955, %v3954
    %v3972 = vld [vmem:[%s2 + $0x40] sm:$0xf]
    %v3973 = vld [vmem:[%s2 + $0x44] sm:$0xf]
    %v3974 = vld [vmem:[%s2 + $0x48] sm:$0xf]
    %v3975 = vld [vmem:[%s2 + $0x4c] sm:$0xf]
    %v3976 = vld [vmem:[%s2 + $0x50] sm:$0xf]
    %v3977 = vld [vmem:[%s2 + $0x54] sm:$0xf]
    %v3978 = vld [vmem:[%s2 + $0x58] sm:$0xf]
    %v3979 = vld [vmem:[%s2 + $0x5c] sm:$0xf]
    %v3980 = vld [vmem:[%s3 + $0x9] sm:$0x1]
    %v3981 = vperm.slane %v3980, 0
    %v3990 = vunpack.c.l.b16 %v3972
    %v3991 = vunpack.c.l.b16 %v3973
    %v3992 = vunpack.c.l.b16 %v3974
    %v3993 = vunpack.c.l.b16 %v3975
    %v3994 = vunpack.c.l.b16 %v3976
    %v3995 = vunpack.c.l.b16 %v3977
    %v3996 = vunpack.c.l.b16 %v3978
    %v3997 = vunpack.c.l.b16 %v3979
    %v3998 = vpack.c.b16 %v3991, %v3990
    %v3999 = vpack.c.b16 %v3993, %v3992
    %v4000 = vpack.c.b16 %v3995, %v3994
    %v4001 = vpack.c.b16 %v3997, %v3996
    %vm4006 = vcmask 523264
    %v4008 = vsel %vm4006, %v3956, 0
    %v4011 = vsel %vm4006, %v3957, 0
    %v4014 = vsel %vm4006, %v3958, 0
    %v4017 = vsel %vm4006, %v3959, 0
    %v4020 = vsel %vm4006, %v3960, 0
    %v4023 = vsel %vm4006, %v3961, 0
    %v4026 = vsel %vm4006, %v3962, 0
    %v4029 = vsel %vm4006, %v3963, 0
    %v4032 = vsel %vm4006, %v3964, 0
    %v4035 = vsel %vm4006, %v3965, 0
    %v4038 = vsel %vm4006, %v3966, 0
    %v4041 = vsel %vm4006, %v3967, 0
    %v4044 = vsel %vm4006, %v3968, 0
    %v4047 = vsel %vm4006, %v3969, 0
    %v4050 = vsel %vm4006, %v3970, 0
    %v4053 = vsel %vm4006, %v3971, 0
    %4055 = vmatpush.bf16.msra.mxu0 0
    %4056 = vmatpush.bf16.msra.mxu0 0
    %4057 = vmatpush.bf16.msra.mxu0 0
    %4058 = vmatpush.bf16.msra.mxu0 0
    %4059 = vmatpush.bf16.msra.mxu0 %v4001
    %4060 = vmatpush.bf16.msra.mxu0 %v4000
    %4061 = vmatpush.bf16.msra.mxu0 %v3999
    %4062 = vmatpush.bf16.msra.mxu0 %v3998
    %4063 = vmatmul.bf16.gmra.mxu0 %v4008
    %v4064 = vpop.f32.mrf.mxu0
    %v4065 = vadd.f32 %v3981, %v4064
    %v4066 = vpop.f32.mrf.mxu0
    %v4067 = vadd.f32 %v3981, %v4066
    %4068 = vmatmul.bf16.gmra.mxu0 %v4011
    %v4069 = vpop.f32.mrf.mxu0
    %v4070 = vadd.f32 %v3981, %v4069
    %v4071 = vpop.f32.mrf.mxu0
    %v4072 = vadd.f32 %v3981, %v4071
    %4073 = vmatmul.bf16.gmra.mxu0 %v4014
    %v4074 = vpop.f32.mrf.mxu0
    %v4075 = vadd.f32 %v3981, %v4074
    %v4076 = vpop.f32.mrf.mxu0
    %v4077 = vadd.f32 %v3981, %v4076
    %4078 = vmatmul.bf16.gmra.mxu0 %v4017
    %v4079 = vpop.f32.mrf.mxu0
    %v4080 = vadd.f32 %v3981, %v4079
    %v4081 = vpop.f32.mrf.mxu0
    %v4082 = vadd.f32 %v3981, %v4081
    %4083 = vmatmul.bf16.gmra.mxu0 %v4020
    %v4084 = vpop.f32.mrf.mxu0
    %v4085 = vadd.f32 %v3981, %v4084
    %v4086 = vpop.f32.mrf.mxu0
    %v4087 = vadd.f32 %v3981, %v4086
    %4088 = vmatmul.bf16.gmra.mxu0 %v4023
    %v4089 = vpop.f32.mrf.mxu0
    %v4090 = vadd.f32 %v3981, %v4089
    %v4091 = vpop.f32.mrf.mxu0
    %v4092 = vadd.f32 %v3981, %v4091
    %4093 = vmatmul.bf16.gmra.mxu0 %v4026
    %v4094 = vpop.f32.mrf.mxu0
    %v4095 = vadd.f32 %v3981, %v4094
    %v4096 = vpop.f32.mrf.mxu0
    %v4097 = vadd.f32 %v3981, %v4096
    %4098 = vmatmul.bf16.gmra.mxu0 %v4029
    %v4099 = vpop.f32.mrf.mxu0
    %v4100 = vadd.f32 %v3981, %v4099
    %v4101 = vpop.f32.mrf.mxu0
    %v4102 = vadd.f32 %v3981, %v4101
    %4103 = vmatmul.bf16.gmra.mxu0 %v4032
    %v4104 = vpop.f32.mrf.mxu0
    %v4105 = vadd.f32 %v3981, %v4104
    %v4106 = vpop.f32.mrf.mxu0
    %v4107 = vadd.f32 %v3981, %v4106
    %4108 = vmatmul.bf16.gmra.mxu0 %v4035
    %v4109 = vpop.f32.mrf.mxu0
    %v4110 = vadd.f32 %v3981, %v4109
    %v4111 = vpop.f32.mrf.mxu0
    %v4112 = vadd.f32 %v3981, %v4111
    %4113 = vmatmul.bf16.gmra.mxu0 %v4038
    %v4114 = vpop.f32.mrf.mxu0
    %v4115 = vadd.f32 %v3981, %v4114
    %v4116 = vpop.f32.mrf.mxu0
    %v4117 = vadd.f32 %v3981, %v4116
    %4118 = vmatmul.bf16.gmra.mxu0 %v4041
    %v4119 = vpop.f32.mrf.mxu0
    %v4120 = vadd.f32 %v3981, %v4119
    %v4121 = vpop.f32.mrf.mxu0
    %v4122 = vadd.f32 %v3981, %v4121
    %4123 = vmatmul.bf16.gmra.mxu0 %v4044
    %v4124 = vpop.f32.mrf.mxu0
    %v4125 = vadd.f32 %v3981, %v4124
    %v4126 = vpop.f32.mrf.mxu0
    %v4127 = vadd.f32 %v3981, %v4126
    %4128 = vmatmul.bf16.gmra.mxu0 %v4047
    %v4129 = vpop.f32.mrf.mxu0
    %v4130 = vadd.f32 %v3981, %v4129
    %v4131 = vpop.f32.mrf.mxu0
    %v4132 = vadd.f32 %v3981, %v4131
    %4133 = vmatmul.bf16.gmra.mxu0 %v4050
    %v4134 = vpop.f32.mrf.mxu0
    %v4135 = vadd.f32 %v3981, %v4134
    %v4136 = vpop.f32.mrf.mxu0
    %v4137 = vadd.f32 %v3981, %v4136
    %4138 = vmatmul.bf16.gmra.mxu0 %v4053
    %v4139 = vpop.f32.mrf.mxu0
    %v4140 = vadd.f32 %v3981, %v4139
    %v4141 = vpop.f32.mrf.mxu0
    %v4142 = vadd.f32 %v3981, %v4141
    %4143 = vdwg.mxu0
    %v4144 = vadd.f32 %v3721, %v4065
    %v4145 = vadd.f32 %v3722, %v4067
    %v4146 = vadd.f32 %v3723, %v4070
    %v4147 = vadd.f32 %v3724, %v4072
    %v4148 = vadd.f32 %v3725, %v4075
    %v4149 = vadd.f32 %v3726, %v4077
    %v4150 = vadd.f32 %v3727, %v4080
    %v4151 = vadd.f32 %v3728, %v4082
    %v4152 = vadd.f32 %v3729, %v4085
    %v4153 = vadd.f32 %v3730, %v4087
    %v4154 = vadd.f32 %v3731, %v4090
    %v4155 = vadd.f32 %v3732, %v4092
    %v4156 = vadd.f32 %v3733, %v4095
    %v4157 = vadd.f32 %v3734, %v4097
    %v4158 = vadd.f32 %v3735, %v4100
    %v4159 = vadd.f32 %v3736, %v4102
    %v4160 = vadd.f32 %v3737, %v4105
    %v4161 = vadd.f32 %v3738, %v4107
    %v4162 = vadd.f32 %v3739, %v4110
    %v4163 = vadd.f32 %v3740, %v4112
    %v4164 = vadd.f32 %v3741, %v4115
    %v4165 = vadd.f32 %v3742, %v4117
    %v4166 = vadd.f32 %v3743, %v4120
    %v4167 = vadd.f32 %v3744, %v4122
    %v4168 = vadd.f32 %v3745, %v4125
    %v4169 = vadd.f32 %v3746, %v4127
    %v4170 = vadd.f32 %v3747, %v4130
    %v4171 = vadd.f32 %v3748, %v4132
    %v4172 = vadd.f32 %v3749, %v4135
    %v4173 = vadd.f32 %v3750, %v4137
    %v4174 = vadd.f32 %v3751, %v4140
    %v4175 = vadd.f32 %v3752, %v4142
    %v4176 = vld [vmem:[%s3 + $0xa] sm:$0x1]
    %v4177 = vld [vmem:[%s3 + $0xb] sm:$0x1]
    %v4178 = vsel %vm411, %v4144, 0.0
    %4179 = vadd.xlane.f32.xlu0 %v4178
    %v4180 = vpop.xlane.xlu0 %4179
    %v4181 = vsel %vm411, %v4145, 0.0
    %4182 = vadd.xlane.f32.xlu0 %v4181
    %v4183 = vpop.xlane.xlu0 %4182
    %v4184 = vsel %vm411, %v4146, 0.0
    %4185 = vadd.xlane.f32.xlu0 %v4184
    %v4186 = vpop.xlane.xlu0 %4185
    %v4187 = vsel %vm411, %v4147, 0.0
    %4188 = vadd.xlane.f32.xlu0 %v4187
    %v4189 = vpop.xlane.xlu0 %4188
    %v4190 = vsel %vm411, %v4148, 0.0
    %4191 = vadd.xlane.f32.xlu0 %v4190
    %v4192 = vpop.xlane.xlu0 %4191
    %v4193 = vsel %vm411, %v4149, 0.0
    %4194 = vadd.xlane.f32.xlu0 %v4193
    %v4195 = vpop.xlane.xlu0 %4194
    %v4196 = vsel %vm411, %v4150, 0.0
    %4197 = vadd.xlane.f32.xlu0 %v4196
    %v4198 = vpop.xlane.xlu0 %4197
    %v4199 = vsel %vm411, %v4151, 0.0
    %4200 = vadd.xlane.f32.xlu0 %v4199
    %v4201 = vpop.xlane.xlu0 %4200
    %v4202 = vsel %vm411, %v4152, 0.0
    %4203 = vadd.xlane.f32.xlu0 %v4202
    %v4204 = vpop.xlane.xlu0 %4203
    %v4205 = vsel %vm411, %v4153, 0.0
    %4206 = vadd.xlane.f32.xlu0 %v4205
    %v4207 = vpop.xlane.xlu0 %4206
    %v4208 = vsel %vm411, %v4154, 0.0
    %4209 = vadd.xlane.f32.xlu0 %v4208
    %v4210 = vpop.xlane.xlu0 %4209
    %v4211 = vsel %vm411, %v4155, 0.0
    %4212 = vadd.xlane.f32.xlu0 %v4211
    %v4213 = vpop.xlane.xlu0 %4212
    %v4214 = vsel %vm411, %v4156, 0.0
    %4215 = vadd.xlane.f32.xlu0 %v4214
    %v4216 = vpop.xlane.xlu0 %4215
    %v4217 = vsel %vm411, %v4157, 0.0
    %4218 = vadd.xlane.f32.xlu0 %v4217
    %v4219 = vpop.xlane.xlu0 %4218
    %v4220 = vsel %vm411, %v4158, 0.0
    %4221 = vadd.xlane.f32.xlu0 %v4220
    %v4222 = vpop.xlane.xlu0 %4221
    %v4223 = vsel %vm411, %v4159, 0.0
    %4224 = vadd.xlane.f32.xlu0 %v4223
    %v4225 = vpop.xlane.xlu0 %4224
    %v4226 = vsel %vm411, %v4160, 0.0
    %4227 = vadd.xlane.f32.xlu0 %v4226
    %v4228 = vpop.xlane.xlu0 %4227
    %v4229 = vsel %vm411, %v4161, 0.0
    %4230 = vadd.xlane.f32.xlu0 %v4229
    %v4231 = vpop.xlane.xlu0 %4230
    %v4232 = vsel %vm411, %v4162, 0.0
    %4233 = vadd.xlane.f32.xlu0 %v4232
    %v4234 = vpop.xlane.xlu0 %4233
    %v4235 = vsel %vm411, %v4163, 0.0
    %4236 = vadd.xlane.f32.xlu0 %v4235
    %v4237 = vpop.xlane.xlu0 %4236
    %v4238 = vsel %vm411, %v4164, 0.0
    %4239 = vadd.xlane.f32.xlu0 %v4238
    %v4240 = vpop.xlane.xlu0 %4239
    %v4241 = vsel %vm411, %v4165, 0.0
    %4242 = vadd.xlane.f32.xlu0 %v4241
    %v4243 = vpop.xlane.xlu0 %4242
    %v4244 = vsel %vm411, %v4166, 0.0
    %4245 = vadd.xlane.f32.xlu0 %v4244
    %v4246 = vpop.xlane.xlu0 %4245
    %v4247 = vsel %vm411, %v4167, 0.0
    %4248 = vadd.xlane.f32.xlu0 %v4247
    %v4249 = vpop.xlane.xlu0 %4248
    %v4250 = vsel %vm411, %v4168, 0.0
    %4251 = vadd.xlane.f32.xlu0 %v4250
    %v4252 = vpop.xlane.xlu0 %4251
    %v4253 = vsel %vm411, %v4169, 0.0
    %4254 = vadd.xlane.f32.xlu0 %v4253
    %v4255 = vpop.xlane.xlu0 %4254
    %v4256 = vsel %vm411, %v4170, 0.0
    %4257 = vadd.xlane.f32.xlu0 %v4256
    %v4258 = vpop.xlane.xlu0 %4257
    %v4259 = vsel %vm411, %v4171, 0.0
    %4260 = vadd.xlane.f32.xlu0 %v4259
    %v4261 = vpop.xlane.xlu0 %4260
    %v4262 = vsel %vm411, %v4172, 0.0
    %4263 = vadd.xlane.f32.xlu0 %v4262
    %v4264 = vpop.xlane.xlu0 %4263
    %v4265 = vsel %vm411, %v4173, 0.0
    %4266 = vadd.xlane.f32.xlu0 %v4265
    %v4267 = vpop.xlane.xlu0 %4266
    %v4268 = vsel %vm411, %v4174, 0.0
    %4269 = vadd.xlane.f32.xlu0 %v4268
    %v4270 = vpop.xlane.xlu0 %4269
    %v4271 = vsel %vm411, %v4175, 0.0
    %4272 = vadd.xlane.f32.xlu0 %v4271
    %v4273 = vpop.xlane.xlu0 %4272
    %v4274 = vmul.f32 %v4180, %v514
    %v4275 = vmul.f32 %v4183, %v514
    %v4276 = vmul.f32 %v4186, %v514
    %v4277 = vmul.f32 %v4189, %v514
    %v4278 = vmul.f32 %v4192, %v514
    %v4279 = vmul.f32 %v4195, %v514
    %v4280 = vmul.f32 %v4198, %v514
    %v4281 = vmul.f32 %v4201, %v514
    %v4282 = vmul.f32 %v4204, %v514
    %v4283 = vmul.f32 %v4207, %v514
    %v4284 = vmul.f32 %v4210, %v514
    %v4285 = vmul.f32 %v4213, %v514
    %v4286 = vmul.f32 %v4216, %v514
    %v4287 = vmul.f32 %v4219, %v514
    %v4288 = vmul.f32 %v4222, %v514
    %v4289 = vmul.f32 %v4225, %v514
    %v4290 = vmul.f32 %v4228, %v514
    %v4291 = vmul.f32 %v4231, %v514
    %v4292 = vmul.f32 %v4234, %v514
    %v4293 = vmul.f32 %v4237, %v514
    %v4294 = vmul.f32 %v4240, %v514
    %v4295 = vmul.f32 %v4243, %v514
    %v4296 = vmul.f32 %v4246, %v514
    %v4297 = vmul.f32 %v4249, %v514
    %v4298 = vmul.f32 %v4252, %v514
    %v4299 = vmul.f32 %v4255, %v514
    %v4300 = vmul.f32 %v4258, %v514
    %v4301 = vmul.f32 %v4261, %v514
    %v4302 = vmul.f32 %v4264, %v514
    %v4303 = vmul.f32 %v4267, %v514
    %v4304 = vmul.f32 %v4270, %v514
    %v4305 = vmul.f32 %v4273, %v514
    %v4306 = vsub.f32 %v4144, %v4274
    %v4307 = vsub.f32 %v4145, %v4275
    %v4308 = vsub.f32 %v4146, %v4276
    %v4309 = vsub.f32 %v4147, %v4277
    %v4310 = vsub.f32 %v4148, %v4278
    %v4311 = vsub.f32 %v4149, %v4279
    %v4312 = vsub.f32 %v4150, %v4280
    %v4313 = vsub.f32 %v4151, %v4281
    %v4314 = vsub.f32 %v4152, %v4282
    %v4315 = vsub.f32 %v4153, %v4283
    %v4316 = vsub.f32 %v4154, %v4284
    %v4317 = vsub.f32 %v4155, %v4285
    %v4318 = vsub.f32 %v4156, %v4286
    %v4319 = vsub.f32 %v4157, %v4287
    %v4320 = vsub.f32 %v4158, %v4288
    %v4321 = vsub.f32 %v4159, %v4289
    %v4322 = vsub.f32 %v4160, %v4290
    %v4323 = vsub.f32 %v4161, %v4291
    %v4324 = vsub.f32 %v4162, %v4292
    %v4325 = vsub.f32 %v4163, %v4293
    %v4326 = vsub.f32 %v4164, %v4294
    %v4327 = vsub.f32 %v4165, %v4295
    %v4328 = vsub.f32 %v4166, %v4296
    %v4329 = vsub.f32 %v4167, %v4297
    %v4330 = vsub.f32 %v4168, %v4298
    %v4331 = vsub.f32 %v4169, %v4299
    %v4332 = vsub.f32 %v4170, %v4300
    %v4333 = vsub.f32 %v4171, %v4301
    %v4334 = vsub.f32 %v4172, %v4302
    %v4335 = vsub.f32 %v4173, %v4303
    %v4336 = vsub.f32 %v4174, %v4304
    %v4337 = vsub.f32 %v4175, %v4305
    %v4338 = vmul.f32 %v4306, %v4306
    %v4339 = vmul.f32 %v4307, %v4307
    %v4340 = vmul.f32 %v4308, %v4308
    %v4341 = vmul.f32 %v4309, %v4309
    %v4342 = vmul.f32 %v4310, %v4310
    %v4343 = vmul.f32 %v4311, %v4311
    %v4344 = vmul.f32 %v4312, %v4312
    %v4345 = vmul.f32 %v4313, %v4313
    %v4346 = vmul.f32 %v4314, %v4314
    %v4347 = vmul.f32 %v4315, %v4315
    %v4348 = vmul.f32 %v4316, %v4316
    %v4349 = vmul.f32 %v4317, %v4317
    %v4350 = vmul.f32 %v4318, %v4318
    %v4351 = vmul.f32 %v4319, %v4319
    %v4352 = vmul.f32 %v4320, %v4320
    %v4353 = vmul.f32 %v4321, %v4321
    %v4354 = vmul.f32 %v4322, %v4322
    %v4355 = vmul.f32 %v4323, %v4323
    %v4356 = vmul.f32 %v4324, %v4324
    %v4357 = vmul.f32 %v4325, %v4325
    %v4358 = vmul.f32 %v4326, %v4326
    %v4359 = vmul.f32 %v4327, %v4327
    %v4360 = vmul.f32 %v4328, %v4328
    %v4361 = vmul.f32 %v4329, %v4329
    %v4362 = vmul.f32 %v4330, %v4330
    %v4363 = vmul.f32 %v4331, %v4331
    %v4364 = vmul.f32 %v4332, %v4332
    %v4365 = vmul.f32 %v4333, %v4333
    %v4366 = vmul.f32 %v4334, %v4334
    %v4367 = vmul.f32 %v4335, %v4335
    %v4368 = vmul.f32 %v4336, %v4336
    %v4369 = vmul.f32 %v4337, %v4337
    %v4370 = vsel %vm411, %v4338, 0.0
    %4371 = vadd.xlane.f32.xlu0 %v4370
    %v4372 = vpop.xlane.xlu0 %4371
    %v4373 = vsel %vm411, %v4339, 0.0
    %4374 = vadd.xlane.f32.xlu0 %v4373
    %v4375 = vpop.xlane.xlu0 %4374
    %v4376 = vsel %vm411, %v4340, 0.0
    %4377 = vadd.xlane.f32.xlu0 %v4376
    %v4378 = vpop.xlane.xlu0 %4377
    %v4379 = vsel %vm411, %v4341, 0.0
    %4380 = vadd.xlane.f32.xlu0 %v4379
    %v4381 = vpop.xlane.xlu0 %4380
    %v4382 = vsel %vm411, %v4342, 0.0
    %4383 = vadd.xlane.f32.xlu0 %v4382
    %v4384 = vpop.xlane.xlu0 %4383
    %v4385 = vsel %vm411, %v4343, 0.0
    %4386 = vadd.xlane.f32.xlu0 %v4385
    %v4387 = vpop.xlane.xlu0 %4386
    %v4388 = vsel %vm411, %v4344, 0.0
    %4389 = vadd.xlane.f32.xlu0 %v4388
    %v4390 = vpop.xlane.xlu0 %4389
    %v4391 = vsel %vm411, %v4345, 0.0
    %4392 = vadd.xlane.f32.xlu0 %v4391
    %v4393 = vpop.xlane.xlu0 %4392
    %v4394 = vsel %vm411, %v4346, 0.0
    %4395 = vadd.xlane.f32.xlu0 %v4394
    %v4396 = vpop.xlane.xlu0 %4395
    %v4397 = vsel %vm411, %v4347, 0.0
    %4398 = vadd.xlane.f32.xlu0 %v4397
    %v4399 = vpop.xlane.xlu0 %4398
    %v4400 = vsel %vm411, %v4348, 0.0
    %4401 = vadd.xlane.f32.xlu0 %v4400
    %v4402 = vpop.xlane.xlu0 %4401
    %v4403 = vsel %vm411, %v4349, 0.0
    %4404 = vadd.xlane.f32.xlu0 %v4403
    %v4405 = vpop.xlane.xlu0 %4404
    %v4406 = vsel %vm411, %v4350, 0.0
    %4407 = vadd.xlane.f32.xlu0 %v4406
    %v4408 = vpop.xlane.xlu0 %4407
    %v4409 = vsel %vm411, %v4351, 0.0
    %4410 = vadd.xlane.f32.xlu0 %v4409
    %v4411 = vpop.xlane.xlu0 %4410
    %v4412 = vsel %vm411, %v4352, 0.0
    %4413 = vadd.xlane.f32.xlu0 %v4412
    %v4414 = vpop.xlane.xlu0 %4413
    %v4415 = vsel %vm411, %v4353, 0.0
    %4416 = vadd.xlane.f32.xlu0 %v4415
    %v4417 = vpop.xlane.xlu0 %4416
    %v4418 = vsel %vm411, %v4354, 0.0
    %4419 = vadd.xlane.f32.xlu0 %v4418
    %v4420 = vpop.xlane.xlu0 %4419
    %v4421 = vsel %vm411, %v4355, 0.0
    %4422 = vadd.xlane.f32.xlu0 %v4421
    %v4423 = vpop.xlane.xlu0 %4422
    %v4424 = vsel %vm411, %v4356, 0.0
    %4425 = vadd.xlane.f32.xlu0 %v4424
    %v4426 = vpop.xlane.xlu0 %4425
    %v4427 = vsel %vm411, %v4357, 0.0
    %4428 = vadd.xlane.f32.xlu0 %v4427
    %v4429 = vpop.xlane.xlu0 %4428
    %v4430 = vsel %vm411, %v4358, 0.0
    %4431 = vadd.xlane.f32.xlu0 %v4430
    %v4432 = vpop.xlane.xlu0 %4431
    %v4433 = vsel %vm411, %v4359, 0.0
    %4434 = vadd.xlane.f32.xlu0 %v4433
    %v4435 = vpop.xlane.xlu0 %4434
    %v4436 = vsel %vm411, %v4360, 0.0
    %4437 = vadd.xlane.f32.xlu0 %v4436
    %v4438 = vpop.xlane.xlu0 %4437
    %v4439 = vsel %vm411, %v4361, 0.0
    %4440 = vadd.xlane.f32.xlu0 %v4439
    %v4441 = vpop.xlane.xlu0 %4440
    %v4442 = vsel %vm411, %v4362, 0.0
    %4443 = vadd.xlane.f32.xlu0 %v4442
    %v4444 = vpop.xlane.xlu0 %4443
    %v4445 = vsel %vm411, %v4363, 0.0
    %4446 = vadd.xlane.f32.xlu0 %v4445
    %v4447 = vpop.xlane.xlu0 %4446
    %v4448 = vsel %vm411, %v4364, 0.0
    %4449 = vadd.xlane.f32.xlu0 %v4448
    %v4450 = vpop.xlane.xlu0 %4449
    %v4451 = vsel %vm411, %v4365, 0.0
    %4452 = vadd.xlane.f32.xlu0 %v4451
    %v4453 = vpop.xlane.xlu0 %4452
    %v4454 = vsel %vm411, %v4366, 0.0
    %4455 = vadd.xlane.f32.xlu0 %v4454
    %v4456 = vpop.xlane.xlu0 %4455
    %v4457 = vsel %vm411, %v4367, 0.0
    %4458 = vadd.xlane.f32.xlu0 %v4457
    %v4459 = vpop.xlane.xlu0 %4458
    %v4460 = vsel %vm411, %v4368, 0.0
    %4461 = vadd.xlane.f32.xlu0 %v4460
    %v4462 = vpop.xlane.xlu0 %4461
    %v4463 = vsel %vm411, %v4369, 0.0
    %4464 = vadd.xlane.f32.xlu0 %v4463
    %v4465 = vpop.xlane.xlu0 %4464
    %v4466 = vmul.f32 %v4372, %v514
    %v4467 = vmul.f32 %v4375, %v514
    %v4468 = vmul.f32 %v4378, %v514
    %v4469 = vmul.f32 %v4381, %v514
    %v4470 = vmul.f32 %v4384, %v514
    %v4471 = vmul.f32 %v4387, %v514
    %v4472 = vmul.f32 %v4390, %v514
    %v4473 = vmul.f32 %v4393, %v514
    %v4474 = vmul.f32 %v4396, %v514
    %v4475 = vmul.f32 %v4399, %v514
    %v4476 = vmul.f32 %v4402, %v514
    %v4477 = vmul.f32 %v4405, %v514
    %v4478 = vmul.f32 %v4408, %v514
    %v4479 = vmul.f32 %v4411, %v514
    %v4480 = vmul.f32 %v4414, %v514
    %v4481 = vmul.f32 %v4417, %v514
    %v4482 = vmul.f32 %v4420, %v514
    %v4483 = vmul.f32 %v4423, %v514
    %v4484 = vmul.f32 %v4426, %v514
    %v4485 = vmul.f32 %v4429, %v514
    %v4486 = vmul.f32 %v4432, %v514
    %v4487 = vmul.f32 %v4435, %v514
    %v4488 = vmul.f32 %v4438, %v514
    %v4489 = vmul.f32 %v4441, %v514
    %v4490 = vmul.f32 %v4444, %v514
    %v4491 = vmul.f32 %v4447, %v514
    %v4492 = vmul.f32 %v4450, %v514
    %v4493 = vmul.f32 %v4453, %v514
    %v4494 = vmul.f32 %v4456, %v514
    %v4495 = vmul.f32 %v4459, %v514
    %v4496 = vmul.f32 %v4462, %v514
    %v4497 = vmul.f32 %v4465, %v514
    %v4498 = vadd.f32 %v4466, 1e-12
    %v4499 = vadd.f32 %v4467, 1e-12
    %v4500 = vadd.f32 %v4468, 1e-12
    %v4501 = vadd.f32 %v4469, 1e-12
    %v4502 = vadd.f32 %v4470, 1e-12
    %v4503 = vadd.f32 %v4471, 1e-12
    %v4504 = vadd.f32 %v4472, 1e-12
    %v4505 = vadd.f32 %v4473, 1e-12
    %v4506 = vadd.f32 %v4474, 1e-12
    %v4507 = vadd.f32 %v4475, 1e-12
    %v4508 = vadd.f32 %v4476, 1e-12
    %v4509 = vadd.f32 %v4477, 1e-12
    %v4510 = vadd.f32 %v4478, 1e-12
    %v4511 = vadd.f32 %v4479, 1e-12
    %v4512 = vadd.f32 %v4480, 1e-12
    %v4513 = vadd.f32 %v4481, 1e-12
    %v4514 = vadd.f32 %v4482, 1e-12
    %v4515 = vadd.f32 %v4483, 1e-12
    %v4516 = vadd.f32 %v4484, 1e-12
    %v4517 = vadd.f32 %v4485, 1e-12
    %v4518 = vadd.f32 %v4486, 1e-12
    %v4519 = vadd.f32 %v4487, 1e-12
    %v4520 = vadd.f32 %v4488, 1e-12
    %v4521 = vadd.f32 %v4489, 1e-12
    %v4522 = vadd.f32 %v4490, 1e-12
    %v4523 = vadd.f32 %v4491, 1e-12
    %v4524 = vadd.f32 %v4492, 1e-12
    %v4525 = vadd.f32 %v4493, 1e-12
    %v4526 = vadd.f32 %v4494, 1e-12
    %v4527 = vadd.f32 %v4495, 1e-12
    %v4528 = vadd.f32 %v4496, 1e-12
    %v4529 = vadd.f32 %v4497, 1e-12
    %v4530 = vrsqrt.pop %v4498
    %v4531 = vmul.f32 %v4530, %v4498
    %v4532 = vmul.f32 %v4531, %v4530
    %v4533 = vmul.f32 0.5, %v4532
    %v4534 = vsub.f32 1.5, %v4533
    %v4535 = vmul.f32 %v4530, %v4534
    %vm4536 = vweird.f32 %v4498
    %vm4537 = vweird.f32 %v4530
    %vm4538 = vmor %vm4536, %vm4537
    %v4539 = vsel %vm4538, %v4530, %v4535
    %v4540 = vrsqrt.pop %v4499
    %v4541 = vmul.f32 %v4540, %v4499
    %v4542 = vmul.f32 %v4541, %v4540
    %v4543 = vmul.f32 0.5, %v4542
    %v4544 = vsub.f32 1.5, %v4543
    %v4545 = vmul.f32 %v4540, %v4544
    %vm4546 = vweird.f32 %v4499
    %vm4547 = vweird.f32 %v4540
    %vm4548 = vmor %vm4546, %vm4547
    %v4549 = vsel %vm4548, %v4540, %v4545
    %v4550 = vrsqrt.pop %v4500
    %v4551 = vmul.f32 %v4550, %v4500
    %v4552 = vmul.f32 %v4551, %v4550
    %v4553 = vmul.f32 0.5, %v4552
    %v4554 = vsub.f32 1.5, %v4553
    %v4555 = vmul.f32 %v4550, %v4554
    %vm4556 = vweird.f32 %v4500
    %vm4557 = vweird.f32 %v4550
    %vm4558 = vmor %vm4556, %vm4557
    %v4559 = vsel %vm4558, %v4550, %v4555
    %v4560 = vrsqrt.pop %v4501
    %v4561 = vmul.f32 %v4560, %v4501
    %v4562 = vmul.f32 %v4561, %v4560
    %v4563 = vmul.f32 0.5, %v4562
    %v4564 = vsub.f32 1.5, %v4563
    %v4565 = vmul.f32 %v4560, %v4564
    %vm4566 = vweird.f32 %v4501
    %vm4567 = vweird.f32 %v4560
    %vm4568 = vmor %vm4566, %vm4567
    %v4569 = vsel %vm4568, %v4560, %v4565
    %v4570 = vrsqrt.pop %v4502
    %v4571 = vmul.f32 %v4570, %v4502
    %v4572 = vmul.f32 %v4571, %v4570
    %v4573 = vmul.f32 0.5, %v4572
    %v4574 = vsub.f32 1.5, %v4573
    %v4575 = vmul.f32 %v4570, %v4574
    %vm4576 = vweird.f32 %v4502
    %vm4577 = vweird.f32 %v4570
    %vm4578 = vmor %vm4576, %vm4577
    %v4579 = vsel %vm4578, %v4570, %v4575
    %v4580 = vrsqrt.pop %v4503
    %v4581 = vmul.f32 %v4580, %v4503
    %v4582 = vmul.f32 %v4581, %v4580
    %v4583 = vmul.f32 0.5, %v4582
    %v4584 = vsub.f32 1.5, %v4583
    %v4585 = vmul.f32 %v4580, %v4584
    %vm4586 = vweird.f32 %v4503
    %vm4587 = vweird.f32 %v4580
    %vm4588 = vmor %vm4586, %vm4587
    %v4589 = vsel %vm4588, %v4580, %v4585
    %v4590 = vrsqrt.pop %v4504
    %v4591 = vmul.f32 %v4590, %v4504
    %v4592 = vmul.f32 %v4591, %v4590
    %v4593 = vmul.f32 0.5, %v4592
    %v4594 = vsub.f32 1.5, %v4593
    %v4595 = vmul.f32 %v4590, %v4594
    %vm4596 = vweird.f32 %v4504
    %vm4597 = vweird.f32 %v4590
    %vm4598 = vmor %vm4596, %vm4597
    %v4599 = vsel %vm4598, %v4590, %v4595
    %v4600 = vrsqrt.pop %v4505
    %v4601 = vmul.f32 %v4600, %v4505
    %v4602 = vmul.f32 %v4601, %v4600
    %v4603 = vmul.f32 0.5, %v4602
    %v4604 = vsub.f32 1.5, %v4603
    %v4605 = vmul.f32 %v4600, %v4604
    %vm4606 = vweird.f32 %v4505
    %vm4607 = vweird.f32 %v4600
    %vm4608 = vmor %vm4606, %vm4607
    %v4609 = vsel %vm4608, %v4600, %v4605
    %v4610 = vrsqrt.pop %v4506
    %v4611 = vmul.f32 %v4610, %v4506
    %v4612 = vmul.f32 %v4611, %v4610
    %v4613 = vmul.f32 0.5, %v4612
    %v4614 = vsub.f32 1.5, %v4613
    %v4615 = vmul.f32 %v4610, %v4614
    %vm4616 = vweird.f32 %v4506
    %vm4617 = vweird.f32 %v4610
    %vm4618 = vmor %vm4616, %vm4617
    %v4619 = vsel %vm4618, %v4610, %v4615
    %v4620 = vrsqrt.pop %v4507
    %v4621 = vmul.f32 %v4620, %v4507
    %v4622 = vmul.f32 %v4621, %v4620
    %v4623 = vmul.f32 0.5, %v4622
    %v4624 = vsub.f32 1.5, %v4623
    %v4625 = vmul.f32 %v4620, %v4624
    %vm4626 = vweird.f32 %v4507
    %vm4627 = vweird.f32 %v4620
    %vm4628 = vmor %vm4626, %vm4627
    %v4629 = vsel %vm4628, %v4620, %v4625
    %v4630 = vrsqrt.pop %v4508
    %v4631 = vmul.f32 %v4630, %v4508
    %v4632 = vmul.f32 %v4631, %v4630
    %v4633 = vmul.f32 0.5, %v4632
    %v4634 = vsub.f32 1.5, %v4633
    %v4635 = vmul.f32 %v4630, %v4634
    %vm4636 = vweird.f32 %v4508
    %vm4637 = vweird.f32 %v4630
    %vm4638 = vmor %vm4636, %vm4637
    %v4639 = vsel %vm4638, %v4630, %v4635
    %v4640 = vrsqrt.pop %v4509
    %v4641 = vmul.f32 %v4640, %v4509
    %v4642 = vmul.f32 %v4641, %v4640
    %v4643 = vmul.f32 0.5, %v4642
    %v4644 = vsub.f32 1.5, %v4643
    %v4645 = vmul.f32 %v4640, %v4644
    %vm4646 = vweird.f32 %v4509
    %vm4647 = vweird.f32 %v4640
    %vm4648 = vmor %vm4646, %vm4647
    %v4649 = vsel %vm4648, %v4640, %v4645
    %v4650 = vrsqrt.pop %v4510
    %v4651 = vmul.f32 %v4650, %v4510
    %v4652 = vmul.f32 %v4651, %v4650
    %v4653 = vmul.f32 0.5, %v4652
    %v4654 = vsub.f32 1.5, %v4653
    %v4655 = vmul.f32 %v4650, %v4654
    %vm4656 = vweird.f32 %v4510
    %vm4657 = vweird.f32 %v4650
    %vm4658 = vmor %vm4656, %vm4657
    %v4659 = vsel %vm4658, %v4650, %v4655
    %v4660 = vrsqrt.pop %v4511
    %v4661 = vmul.f32 %v4660, %v4511
    %v4662 = vmul.f32 %v4661, %v4660
    %v4663 = vmul.f32 0.5, %v4662
    %v4664 = vsub.f32 1.5, %v4663
    %v4665 = vmul.f32 %v4660, %v4664
    %vm4666 = vweird.f32 %v4511
    %vm4667 = vweird.f32 %v4660
    %vm4668 = vmor %vm4666, %vm4667
    %v4669 = vsel %vm4668, %v4660, %v4665
    %v4670 = vrsqrt.pop %v4512
    %v4671 = vmul.f32 %v4670, %v4512
    %v4672 = vmul.f32 %v4671, %v4670
    %v4673 = vmul.f32 0.5, %v4672
    %v4674 = vsub.f32 1.5, %v4673
    %v4675 = vmul.f32 %v4670, %v4674
    %vm4676 = vweird.f32 %v4512
    %vm4677 = vweird.f32 %v4670
    %vm4678 = vmor %vm4676, %vm4677
    %v4679 = vsel %vm4678, %v4670, %v4675
    %v4680 = vrsqrt.pop %v4513
    %v4681 = vmul.f32 %v4680, %v4513
    %v4682 = vmul.f32 %v4681, %v4680
    %v4683 = vmul.f32 0.5, %v4682
    %v4684 = vsub.f32 1.5, %v4683
    %v4685 = vmul.f32 %v4680, %v4684
    %vm4686 = vweird.f32 %v4513
    %vm4687 = vweird.f32 %v4680
    %vm4688 = vmor %vm4686, %vm4687
    %v4689 = vsel %vm4688, %v4680, %v4685
    %v4690 = vrsqrt.pop %v4514
    %v4691 = vmul.f32 %v4690, %v4514
    %v4692 = vmul.f32 %v4691, %v4690
    %v4693 = vmul.f32 0.5, %v4692
    %v4694 = vsub.f32 1.5, %v4693
    %v4695 = vmul.f32 %v4690, %v4694
    %vm4696 = vweird.f32 %v4514
    %vm4697 = vweird.f32 %v4690
    %vm4698 = vmor %vm4696, %vm4697
    %v4699 = vsel %vm4698, %v4690, %v4695
    %v4700 = vrsqrt.pop %v4515
    %v4701 = vmul.f32 %v4700, %v4515
    %v4702 = vmul.f32 %v4701, %v4700
    %v4703 = vmul.f32 0.5, %v4702
    %v4704 = vsub.f32 1.5, %v4703
    %v4705 = vmul.f32 %v4700, %v4704
    %vm4706 = vweird.f32 %v4515
    %vm4707 = vweird.f32 %v4700
    %vm4708 = vmor %vm4706, %vm4707
    %v4709 = vsel %vm4708, %v4700, %v4705
    %v4710 = vrsqrt.pop %v4516
    %v4711 = vmul.f32 %v4710, %v4516
    %v4712 = vmul.f32 %v4711, %v4710
    %v4713 = vmul.f32 0.5, %v4712
    %v4714 = vsub.f32 1.5, %v4713
    %v4715 = vmul.f32 %v4710, %v4714
    %vm4716 = vweird.f32 %v4516
    %vm4717 = vweird.f32 %v4710
    %vm4718 = vmor %vm4716, %vm4717
    %v4719 = vsel %vm4718, %v4710, %v4715
    %v4720 = vrsqrt.pop %v4517
    %v4721 = vmul.f32 %v4720, %v4517
    %v4722 = vmul.f32 %v4721, %v4720
    %v4723 = vmul.f32 0.5, %v4722
    %v4724 = vsub.f32 1.5, %v4723
    %v4725 = vmul.f32 %v4720, %v4724
    %vm4726 = vweird.f32 %v4517
    %vm4727 = vweird.f32 %v4720
    %vm4728 = vmor %vm4726, %vm4727
    %v4729 = vsel %vm4728, %v4720, %v4725
    %v4730 = vrsqrt.pop %v4518
    %v4731 = vmul.f32 %v4730, %v4518
    %v4732 = vmul.f32 %v4731, %v4730
    %v4733 = vmul.f32 0.5, %v4732
    %v4734 = vsub.f32 1.5, %v4733
    %v4735 = vmul.f32 %v4730, %v4734
    %vm4736 = vweird.f32 %v4518
    %vm4737 = vweird.f32 %v4730
    %vm4738 = vmor %vm4736, %vm4737
    %v4739 = vsel %vm4738, %v4730, %v4735
    %v4740 = vrsqrt.pop %v4519
    %v4741 = vmul.f32 %v4740, %v4519
    %v4742 = vmul.f32 %v4741, %v4740
    %v4743 = vmul.f32 0.5, %v4742
    %v4744 = vsub.f32 1.5, %v4743
    %v4745 = vmul.f32 %v4740, %v4744
    %vm4746 = vweird.f32 %v4519
    %vm4747 = vweird.f32 %v4740
    %vm4748 = vmor %vm4746, %vm4747
    %v4749 = vsel %vm4748, %v4740, %v4745
    %v4750 = vrsqrt.pop %v4520
    %v4751 = vmul.f32 %v4750, %v4520
    %v4752 = vmul.f32 %v4751, %v4750
    %v4753 = vmul.f32 0.5, %v4752
    %v4754 = vsub.f32 1.5, %v4753
    %v4755 = vmul.f32 %v4750, %v4754
    %vm4756 = vweird.f32 %v4520
    %vm4757 = vweird.f32 %v4750
    %vm4758 = vmor %vm4756, %vm4757
    %v4759 = vsel %vm4758, %v4750, %v4755
    %v4760 = vrsqrt.pop %v4521
    %v4761 = vmul.f32 %v4760, %v4521
    %v4762 = vmul.f32 %v4761, %v4760
    %v4763 = vmul.f32 0.5, %v4762
    %v4764 = vsub.f32 1.5, %v4763
    %v4765 = vmul.f32 %v4760, %v4764
    %vm4766 = vweird.f32 %v4521
    %vm4767 = vweird.f32 %v4760
    %vm4768 = vmor %vm4766, %vm4767
    %v4769 = vsel %vm4768, %v4760, %v4765
    %v4770 = vrsqrt.pop %v4522
    %v4771 = vmul.f32 %v4770, %v4522
    %v4772 = vmul.f32 %v4771, %v4770
    %v4773 = vmul.f32 0.5, %v4772
    %v4774 = vsub.f32 1.5, %v4773
    %v4775 = vmul.f32 %v4770, %v4774
    %vm4776 = vweird.f32 %v4522
    %vm4777 = vweird.f32 %v4770
    %vm4778 = vmor %vm4776, %vm4777
    %v4779 = vsel %vm4778, %v4770, %v4775
    %v4780 = vrsqrt.pop %v4523
    %v4781 = vmul.f32 %v4780, %v4523
    %v4782 = vmul.f32 %v4781, %v4780
    %v4783 = vmul.f32 0.5, %v4782
    %v4784 = vsub.f32 1.5, %v4783
    %v4785 = vmul.f32 %v4780, %v4784
    %vm4786 = vweird.f32 %v4523
    %vm4787 = vweird.f32 %v4780
    %vm4788 = vmor %vm4786, %vm4787
    %v4789 = vsel %vm4788, %v4780, %v4785
    %v4790 = vrsqrt.pop %v4524
    %v4791 = vmul.f32 %v4790, %v4524
    %v4792 = vmul.f32 %v4791, %v4790
    %v4793 = vmul.f32 0.5, %v4792
    %v4794 = vsub.f32 1.5, %v4793
    %v4795 = vmul.f32 %v4790, %v4794
    %vm4796 = vweird.f32 %v4524
    %vm4797 = vweird.f32 %v4790
    %vm4798 = vmor %vm4796, %vm4797
    %v4799 = vsel %vm4798, %v4790, %v4795
    %v4800 = vrsqrt.pop %v4525
    %v4801 = vmul.f32 %v4800, %v4525
    %v4802 = vmul.f32 %v4801, %v4800
    %v4803 = vmul.f32 0.5, %v4802
    %v4804 = vsub.f32 1.5, %v4803
    %v4805 = vmul.f32 %v4800, %v4804
    %vm4806 = vweird.f32 %v4525
    %vm4807 = vweird.f32 %v4800
    %vm4808 = vmor %vm4806, %vm4807
    %v4809 = vsel %vm4808, %v4800, %v4805
    %v4810 = vrsqrt.pop %v4526
    %v4811 = vmul.f32 %v4810, %v4526
    %v4812 = vmul.f32 %v4811, %v4810
    %v4813 = vmul.f32 0.5, %v4812
    %v4814 = vsub.f32 1.5, %v4813
    %v4815 = vmul.f32 %v4810, %v4814
    %vm4816 = vweird.f32 %v4526
    %vm4817 = vweird.f32 %v4810
    %vm4818 = vmor %vm4816, %vm4817
    %v4819 = vsel %vm4818, %v4810, %v4815
    %v4820 = vrsqrt.pop %v4527
    %v4821 = vmul.f32 %v4820, %v4527
    %v4822 = vmul.f32 %v4821, %v4820
    %v4823 = vmul.f32 0.5, %v4822
    %v4824 = vsub.f32 1.5, %v4823
    %v4825 = vmul.f32 %v4820, %v4824
    %vm4826 = vweird.f32 %v4527
    %vm4827 = vweird.f32 %v4820
    %vm4828 = vmor %vm4826, %vm4827
    %v4829 = vsel %vm4828, %v4820, %v4825
    %v4830 = vrsqrt.pop %v4528
    %v4831 = vmul.f32 %v4830, %v4528
    %v4832 = vmul.f32 %v4831, %v4830
    %v4833 = vmul.f32 0.5, %v4832
    %v4834 = vsub.f32 1.5, %v4833
    %v4835 = vmul.f32 %v4830, %v4834
    %vm4836 = vweird.f32 %v4528
    %vm4837 = vweird.f32 %v4830
    %vm4838 = vmor %vm4836, %vm4837
    %v4839 = vsel %vm4838, %v4830, %v4835
    %v4840 = vrsqrt.pop %v4529
    %v4841 = vmul.f32 %v4840, %v4529
    %v4842 = vmul.f32 %v4841, %v4840
    %v4843 = vmul.f32 0.5, %v4842
    %v4844 = vsub.f32 1.5, %v4843
    %v4845 = vmul.f32 %v4840, %v4844
    %vm4846 = vweird.f32 %v4529
    %vm4847 = vweird.f32 %v4840
    %vm4848 = vmor %vm4846, %vm4847
    %v4849 = vsel %vm4848, %v4840, %v4845
    %v4850 = vmul.f32 %v4306, %v4539
    %v4851 = vmul.f32 %v4307, %v4549
    %v4852 = vmul.f32 %v4308, %v4559
    %v4853 = vmul.f32 %v4309, %v4569
    %v4854 = vmul.f32 %v4310, %v4579
    %v4855 = vmul.f32 %v4311, %v4589
    %v4856 = vmul.f32 %v4312, %v4599
    %v4857 = vmul.f32 %v4313, %v4609
    %v4858 = vmul.f32 %v4314, %v4619
    %v4859 = vmul.f32 %v4315, %v4629
    %v4860 = vmul.f32 %v4316, %v4639
    %v4861 = vmul.f32 %v4317, %v4649
    %v4862 = vmul.f32 %v4318, %v4659
    %v4863 = vmul.f32 %v4319, %v4669
    %v4864 = vmul.f32 %v4320, %v4679
    %v4865 = vmul.f32 %v4321, %v4689
    %v4866 = vmul.f32 %v4322, %v4699
    %v4867 = vmul.f32 %v4323, %v4709
    %v4868 = vmul.f32 %v4324, %v4719
    %v4869 = vmul.f32 %v4325, %v4729
    %v4870 = vmul.f32 %v4326, %v4739
    %v4871 = vmul.f32 %v4327, %v4749
    %v4872 = vmul.f32 %v4328, %v4759
    %v4873 = vmul.f32 %v4329, %v4769
    %v4874 = vmul.f32 %v4330, %v4779
    %v4875 = vmul.f32 %v4331, %v4789
    %v4876 = vmul.f32 %v4332, %v4799
    %v4877 = vmul.f32 %v4333, %v4809
    %v4878 = vmul.f32 %v4334, %v4819
    %v4879 = vmul.f32 %v4335, %v4829
    %v4880 = vmul.f32 %v4336, %v4839
    %v4881 = vmul.f32 %v4337, %v4849
    %v4882 = vperm.slane %v4176, 0
    %v4883 = vmul.f32 %v4850, %v4882
    %v4884 = vmul.f32 %v4851, %v4882
    %v4885 = vmul.f32 %v4852, %v4882
    %v4886 = vmul.f32 %v4853, %v4882
    %v4887 = vmul.f32 %v4854, %v4882
    %v4888 = vmul.f32 %v4855, %v4882
    %v4889 = vmul.f32 %v4856, %v4882
    %v4890 = vmul.f32 %v4857, %v4882
    %v4891 = vmul.f32 %v4858, %v4882
    %v4892 = vmul.f32 %v4859, %v4882
    %v4893 = vmul.f32 %v4860, %v4882
    %v4894 = vmul.f32 %v4861, %v4882
    %v4895 = vmul.f32 %v4862, %v4882
    %v4896 = vmul.f32 %v4863, %v4882
    %v4897 = vmul.f32 %v4864, %v4882
    %v4898 = vmul.f32 %v4865, %v4882
    %v4899 = vmul.f32 %v4866, %v4882
    %v4900 = vmul.f32 %v4867, %v4882
    %v4901 = vmul.f32 %v4868, %v4882
    %v4902 = vmul.f32 %v4869, %v4882
    %v4903 = vmul.f32 %v4870, %v4882
    %v4904 = vmul.f32 %v4871, %v4882
    %v4905 = vmul.f32 %v4872, %v4882
    %v4906 = vmul.f32 %v4873, %v4882
    %v4907 = vmul.f32 %v4874, %v4882
    %v4908 = vmul.f32 %v4875, %v4882
    %v4909 = vmul.f32 %v4876, %v4882
    %v4910 = vmul.f32 %v4877, %v4882
    %v4911 = vmul.f32 %v4878, %v4882
    %v4912 = vmul.f32 %v4879, %v4882
    %v4913 = vmul.f32 %v4880, %v4882
    %v4914 = vmul.f32 %v4881, %v4882
    %v4915 = vperm.slane %v4177, 0
    %v4916 = vadd.f32 %v4883, %v4915
    %v4917 = vadd.f32 %v4884, %v4915
    %v4918 = vadd.f32 %v4885, %v4915
    %v4919 = vadd.f32 %v4886, %v4915
    %v4920 = vadd.f32 %v4887, %v4915
    %v4921 = vadd.f32 %v4888, %v4915
    %v4922 = vadd.f32 %v4889, %v4915
    %v4923 = vadd.f32 %v4890, %v4915
    %v4924 = vadd.f32 %v4891, %v4915
    %v4925 = vadd.f32 %v4892, %v4915
    %v4926 = vadd.f32 %v4893, %v4915
    %v4927 = vadd.f32 %v4894, %v4915
    %v4928 = vadd.f32 %v4895, %v4915
    %v4929 = vadd.f32 %v4896, %v4915
    %v4930 = vadd.f32 %v4897, %v4915
    %v4931 = vadd.f32 %v4898, %v4915
    %v4932 = vadd.f32 %v4899, %v4915
    %v4933 = vadd.f32 %v4900, %v4915
    %v4934 = vadd.f32 %v4901, %v4915
    %v4935 = vadd.f32 %v4902, %v4915
    %v4936 = vadd.f32 %v4903, %v4915
    %v4937 = vadd.f32 %v4904, %v4915
    %v4938 = vadd.f32 %v4905, %v4915
    %v4939 = vadd.f32 %v4906, %v4915
    %v4940 = vadd.f32 %v4907, %v4915
    %v4941 = vadd.f32 %v4908, %v4915
    %v4942 = vadd.f32 %v4909, %v4915
    %v4943 = vadd.f32 %v4910, %v4915
    %v4944 = vadd.f32 %v4911, %v4915
    %v4945 = vadd.f32 %v4912, %v4915
    %v4946 = vadd.f32 %v4913, %v4915
    %v4947 = vadd.f32 %v4914, %v4915
    %v4948 = vld [vmem:[%s4 + $0x200] sm:$0xff]
    %v4949 = vld [vmem:[%s4 + $0x208] sm:$0xff]
    %v4950 = vld [vmem:[%s4 + $0x210] sm:$0xff]
    %v4951 = vld [vmem:[%s4 + $0x218] sm:$0xff]
    %v4952 = vld [vmem:[%s4 + $0x220] sm:$0xff]
    %v4953 = vld [vmem:[%s4 + $0x228] sm:$0xff]
    %v4954 = vld [vmem:[%s4 + $0x230] sm:$0xff]
    %v4955 = vld [vmem:[%s4 + $0x238] sm:$0xff]
    %4956 = vmatpush.msra.mxu0 %v4931
    %4957 = vmatpush.msra.mxu0 %v4930
    %4958 = vmatpush.msra.mxu0 %v4929
    %4959 = vmatpush.msra.mxu0 %v4928
    %4960 = vmatpush.msra.mxu0 %v4927
    %4961 = vmatpush.msra.mxu0 %v4926
    %4962 = vmatpush.msra.mxu0 %v4925
    %4963 = vmatpush.msra.mxu0 %v4924
    %4964 = vmatpush.msra.mxu0 %v4923
    %4965 = vmatpush.msra.mxu0 %v4922
    %4966 = vmatpush.msra.mxu0 %v4921
    %4967 = vmatpush.msra.mxu0 %v4920
    %4968 = vmatpush.msra.mxu0 %v4919
    %4969 = vmatpush.msra.mxu0 %v4918
    %4970 = vmatpush.msra.mxu0 %v4917
    %4971 = vmatpush.msra.mxu0 %v4916
    %4972 = vmatmul.f32.gmra.mxu0 %v4948
    %v4973 = vpop.f32.mrf.mxu0
    %v4974 = vadd.f32 0.0, %v4973
    %4975 = vmatmul.f32.gmra.mxu0 %v4950
    %v4976 = vpop.f32.mrf.mxu0
    %v4977 = vadd.f32 0.0, %v4976
    %4978 = vmatmul.f32.gmra.mxu0 %v4952
    %v4979 = vpop.f32.mrf.mxu0
    %v4980 = vadd.f32 0.0, %v4979
    %4981 = vmatmul.f32.gmra.mxu0 %v4954
    %v4982 = vpop.f32.mrf.mxu0
    %v4983 = vadd.f32 0.0, %v4982
    %4984 = vdwg.mxu0
    %4985 = vmatpush.msra.mxu0 %v4947
    %4986 = vmatpush.msra.mxu0 %v4946
    %4987 = vmatpush.msra.mxu0 %v4945
    %4988 = vmatpush.msra.mxu0 %v4944
    %4989 = vmatpush.msra.mxu0 %v4943
    %4990 = vmatpush.msra.mxu0 %v4942
    %4991 = vmatpush.msra.mxu0 %v4941
    %4992 = vmatpush.msra.mxu0 %v4940
    %4993 = vmatpush.msra.mxu0 %v4939
    %4994 = vmatpush.msra.mxu0 %v4938
    %4995 = vmatpush.msra.mxu0 %v4937
    %4996 = vmatpush.msra.mxu0 %v4936
    %4997 = vmatpush.msra.mxu0 %v4935
    %4998 = vmatpush.msra.mxu0 %v4934
    %4999 = vmatpush.msra.mxu0 %v4933
    %5000 = vmatpush.msra.mxu0 %v4932
    %5001 = vmatmul.f32.gmra.mxu0 %v4949
    %v5002 = vpop.f32.mrf.mxu0
    %v5003 = vadd.f32 %v4974, %v5002
    %5004 = vmatmul.f32.gmra.mxu0 %v4951
    %v5005 = vpop.f32.mrf.mxu0
    %v5006 = vadd.f32 %v4977, %v5005
    %5007 = vmatmul.f32.gmra.mxu0 %v4953
    %v5008 = vpop.f32.mrf.mxu0
    %v5009 = vadd.f32 %v4980, %v5008
    %5010 = vmatmul.f32.gmra.mxu0 %v4955
    %v5011 = vpop.f32.mrf.mxu0
    %v5012 = vadd.f32 %v4983, %v5011
    %5013 = vdwg.mxu0
    %v5014 = vpack.c.bf16 %v5006, %v5003
    %v5015 = vpack.c.bf16 %v5012, %v5009
    %v5016 = vld [vmem:[%s2 + $0x60] sm:$0xf]
    %v5017 = vld [vmem:[%s2 + $0x64] sm:$0xf]
    %v5018 = vld [vmem:[%s2 + $0x68] sm:$0xf]
    %v5019 = vld [vmem:[%s2 + $0x6c] sm:$0xf]
    %v5020 = vld [vmem:[%s3 + $0xc] sm:$0x1]
    %v5021 = vperm.slane %v5020, 0
    %v5026 = vunpack.c.l.b16 %v5016
    %v5027 = vunpack.c.l.b16 %v5017
    %v5028 = vunpack.c.l.b16 %v5018
    %v5029 = vunpack.c.l.b16 %v5019
    %v5030 = vpack.c.b16 %v5027, %v5026
    %v5031 = vpack.c.b16 %v5029, %v5028
    %v5035 = vsel %vm411, %v5014, 0
    %v5038 = vsel %vm411, %v5015, 0
    %5040 = vmatpush.bf16.msra.mxu0 0
    %5041 = vmatpush.bf16.msra.mxu0 0
    %5042 = vmatpush.bf16.msra.mxu0 0
    %5043 = vmatpush.bf16.msra.mxu0 0
    %5044 = vmatpush.bf16.msra.mxu0 0
    %5045 = vmatpush.bf16.msra.mxu0 0
    %5046 = vmatpush.bf16.msra.mxu0 %v5031
    %5047 = vmatpush.bf16.msra.mxu0 %v5030
    %5048 = vmatmul.bf16.gmra.mxu0 %v5035
    %v5049 = vpop.f32.mrf.mxu0
    %v5050 = vadd.f32 %v5021, %v5049
    %v5051 = vpop.f32.mrf.mxu0
    %v5052 = vadd.f32 %v5021, %v5051
    %5053 = vmatmul.bf16.gmra.mxu0 %v5038
    %v5054 = vpop.f32.mrf.mxu0
    %v5055 = vadd.f32 %v5021, %v5054
    %v5056 = vpop.f32.mrf.mxu0
    %v5057 = vadd.f32 %v5021, %v5056
    %5058 = vdwg.mxu0
    %v5059 = vmax.f32 %v5050, 0.0
    %v5060 = vmax.f32 %v5052, 0.0
    %v5061 = vmax.f32 %v5055, 0.0
    %v5062 = vmax.f32 %v5057, 0.0
    %v5063 = vpack.c.bf16 %v5060, %v5059
    %v5064 = vpack.c.bf16 %v5062, %v5061
    %v5065 = vld [vmem:[%s2 + $0x80] sm:$0xf]
    %v5066 = vld [vmem:[%s2 + $0x84] sm:$0xf]
    %v5067 = vld [vmem:[%s2 + $0x88] sm:$0xf]
    %v5068 = vld [vmem:[%s2 + $0x8c] sm:$0xf]
    %v5069 = vld [vmem:[%s3 + $0xd] sm:$0x1]
    %v5070 = vperm.slane %v5069, 0
    %v5075 = vunpack.c.l.b16 %v5065
    %v5076 = vunpack.c.l.b16 %v5066
    %v5077 = vunpack.c.l.b16 %v5067
    %v5078 = vunpack.c.l.b16 %v5068
    %v5079 = vpack.c.b16 %v5076, %v5075
    %v5080 = vpack.c.b16 %v5078, %v5077
    %v5084 = vsel %vm411, %v5063, 0
    %v5087 = vsel %vm411, %v5064, 0
    %5089 = vmatpush.bf16.msra.mxu0 0
    %5090 = vmatpush.bf16.msra.mxu0 0
    %5091 = vmatpush.bf16.msra.mxu0 0
    %5092 = vmatpush.bf16.msra.mxu0 0
    %5093 = vmatpush.bf16.msra.mxu0 0
    %5094 = vmatpush.bf16.msra.mxu0 0
    %5095 = vmatpush.bf16.msra.mxu0 %v5080
    %5096 = vmatpush.bf16.msra.mxu0 %v5079
    %5097 = vmatmul.bf16.gmra.mxu0 %v5084
    %v5098 = vpop.f32.mrf.mxu0
    %v5099 = vadd.f32 %v5070, %v5098
    %v5100 = vpop.f32.mrf.mxu0
    %v5101 = vadd.f32 %v5070, %v5100
    %5102 = vmatmul.bf16.gmra.mxu0 %v5087
    %v5103 = vpop.f32.mrf.mxu0
    %v5104 = vadd.f32 %v5070, %v5103
    %v5105 = vpop.f32.mrf.mxu0
    %v5106 = vadd.f32 %v5070, %v5105
    %5107 = vdwg.mxu0
    %5108 = vst [vmem:[#allocation2] sm:$0xff] %v5099
    %5109 = vst [vmem:[#allocation2 + $0x8] sm:$0xff] %v5101
    %5110 = vst [vmem:[#allocation2 + $0x10] sm:$0xff] %v5104
    %5111 = vst [vmem:[#allocation2 + $0x18] sm:$0xff] %v5106
    // Predicated region
    $region22: #{tpu_custom_call.1} parent=1 // pred_check
      _
    $region23: #{tpu_custom_call.1} parent=1 // pred_check_branch
      %5113 = sbr.rel (0) target = $region25
    $region24: #{tpu_custom_call.1} parent=1 // pred_region
      %5115 = vsyncadd [#allocation3], 0
      %s5116 = sshll.u32 [#allocation2], 4
      %s5117 = int_to_ptr.vmem [resolvable:$true] %s5116
      %s5118 = sshll.u32 %s5, 4
      %s5119 = int_to_ptr.hbm [resolvable:$true] %s5118
      %5124 = dma.vmem_to_hbm [thread:$0]  %s5117, 512, %s5119, [#allocation3], 128, 128, 8
    $region25: #{tpu_custom_call.1} parent=1 // pred_fallthru
      _
    // Predicated region
    $region26: #{tpu_custom_call.1} parent=1 // pred_check
      _
    $region27: #{tpu_custom_call.1} parent=1 // pred_check_branch
      %5126 = sbr.rel (0) target = $region29
    $region28: #{tpu_custom_call.1} parent=1 // pred_region
      %5128 = dma.done [#allocation3], 512
    $region29: #{tpu_custom_call.1} parent=1 // pred_fallthru
      _
    %5129 = vsyncpa [#allocation3], 1

</llo_original>
